<compile_context>
chip_gen: v5e
topology: v5e:2x2
jax: 0.10.0
libtpu: 0.0.40
codegen_flags: <defaults>
</compile_context>

<pallas_src>
import functools

import jax
import jax.numpy as jnp
from jax import lax
from jax.experimental import pallas as pl
from jax.experimental.pallas import tpu as pltpu


def _disc_loss_kernel(x_ref, w_ref, bc_ref, wfc_ref, bfc_ref, out_ref, xpad_ref, *,
                      label, batch, height, width, c_in, pad_rows):
    """conv3x3 (fused im2col matmul) -> ReLU -> fc-then-pool -> per-batch BCE."""
    hw = height * width
    nhw = batch * hw
    c_hid = w_ref.shape[-1]

    # ---- in-kernel zero-row padding of the flattened input (no HBM pad pass) ----
    zpad = jnp.zeros((pad_rows, c_in), dtype=x_ref.dtype)
    xpad_ref[0:pad_rows, :] = zpad
    xpad_ref[pad_rows + nhw:pad_rows + nhw + pad_rows, :] = zpad
    xpad_ref[pad_rows:pad_rows + nhw, :] = x_ref[...]

    # ---- hoisted spatial-validity masks (one iota; bit ops for power-of-two H, W) ----
    r = lax.broadcasted_iota(jnp.int32, (nhw, 1), 0)
    if (width & (width - 1)) == 0 and (height & (height - 1)) == 0:
        j = r & (width - 1)
        i = (r >> (width.bit_length() - 1)) & (height - 1)
    else:
        j = r % width
        i = (r // width) % height
    m_dy = {0: i >= 1, 2: i <= height - 2}     # dy = -1 / +1 validity
    m_dx = {0: j >= 1, 2: j <= width - 2}      # dx = -1 / +1 validity

    # ---- fused im2col: 9 row-shifted ref slices, boundary zeros baked in, lane-concat ----
    pieces = []
    for dy in range(3):
        for dx in range(3):
            shift = (dy - 1) * width + (dx - 1)
            start = pad_rows + shift
            sl = xpad_ref[start:start + nhw, :]            # (nhw, C) bf16, static ref view
            cond = None
            if dy != 1:
                cond = m_dy[dy]
            if dx != 1:
                cond = m_dx[dx] if cond is None else (cond & m_dx[dx])
            if cond is not None:
                sl = jnp.where(cond, sl, jnp.zeros_like(sl))
            pieces.append(sl)
    im2col = jnp.concatenate(pieces, axis=-1)              # (nhw, 9*C) bf16

    # ---- single conv matmul (bf16 operands, f32 accumulation on the MXU) ----
    acc = jnp.dot(im2col, w_ref[...], preferred_element_type=jnp.float32)  # (nhw, c_hid)
    h = jnp.maximum(acc + bc_ref[...], 0.0)                # f32, stays f32 from here on

    # ---- fc folded before the pool (linearity): VPU mul + reshape reduces, no pool matmul ----
    vw = h * wfc_ref[...]                                  # (nhw, c_hid) f32
    per_img = jnp.sum(vw.reshape(batch, hw, c_hid), axis=1)           # (batch, c_hid)
    z = jnp.sum(per_img, axis=-1, keepdims=True) * (1.0 / hw) + bfc_ref[...]   # (batch, 1)

    # ---- stable binary_cross_entropy_with_logits per batch element ----
    y = jnp.float32(label)
    out_ref[...] = jnp.maximum(z, 0.0) - z * y + jnp.log1p(jnp.exp(-jnp.abs(z)))


def discriminator_loss(x_nchw, w_conv, bc, wfc, bfc, *, real=False):
    """Pallas implementation of DiscriminatorLoss.forward.

    x_nchw : (N, C, H, W) float32 (PyTorch layout)
    w_conv : (3, 3, C, C_hid) conv weight (HWIO)
    bc     : (1, C_hid) conv bias
    wfc    : (C_hid, 1) fc weight
    bfc    : (1, 1)    fc bias
    returns scalar float32 loss.
    """
    n, c, h, w = x_nchw.shape
    c_hid = w_conv.shape[-1]
    hw = h * w
    nhw = n * hw
    pad_rows = -(-(w + 1) // 8) * 8            # >= w+1 and multiple of 8: aligned scratch stores
    rows = nhw + 2 * pad_rows
    c_hid_pad = -(-c_hid // 128) * 128         # lane-pad conv output channels to 128

    # NCHW -> NHWC pixel rows (single layout+cast op; padding & im2col live in-kernel).
    # TODO(synk): at real sizes take NHWC from the producer so this transpose disappears.
    x_rows = jnp.transpose(x_nchw, (0, 2, 3, 1)).reshape(nhw, c).astype(jnp.bfloat16)

    w9 = jnp.pad(w_conv.reshape(9 * c, c_hid).astype(jnp.bfloat16),
                 ((0, 0), (0, c_hid_pad - c_hid)))                         # (9C, 128) bf16
    bc_p = jnp.pad(bc.reshape(1, c_hid).astype(jnp.float32),
                   ((0, 0), (0, c_hid_pad - c_hid)))                       # (1, 128) f32
    wfc_p = jnp.pad(wfc.reshape(1, c_hid).astype(jnp.float32),
                    ((0, 0), (0, c_hid_pad - c_hid)))                      # (1, 128) f32
    bfc_f = bfc.reshape(1, 1).astype(jnp.float32)

    label = 0.1 if real else 0.9        # labels*0+0.1 (real)  /  labels-0.1 (fake)
    kernel = functools.partial(_disc_loss_kernel, label=label, batch=n, height=h,
                               width=w, c_in=c, pad_rows=pad_rows)

    losses = pl.pallas_call(
        kernel,
        out_shape=jax.ShapeDtypeStruct((n, 1), jnp.float32),
        grid_spec=pltpu.PrefetchScalarGridSpec(
            num_scalar_prefetch=0,
            grid=(1,),          # whole problem fits one invocation at these sizes
            in_specs=[
                pl.BlockSpec((nhw, c), lambda i: (0, 0)),
                pl.BlockSpec((9 * c, c_hid_pad), lambda i: (0, 0)),
                pl.BlockSpec((1, c_hid_pad), lambda i: (0, 0)),
                pl.BlockSpec((1, c_hid_pad), lambda i: (0, 0)),
                pl.BlockSpec((1, 1), lambda i: (0, 0)),
            ],
            out_specs=pl.BlockSpec((n, 1), lambda i: (0, 0)),
            scratch_shapes=[pltpu.VMEM((rows, c), jnp.bfloat16)],
        ),
        compiler_params=pltpu.CompilerParams(
            dimension_semantics=("arbitrary",)),
    )(x_rows, w9, bc_p, wfc_p, bfc_f)

    # Final batch mean in plain JAX (BCE is per-batch inside the kernel).
    return jnp.mean(losses)


# ----------------------------- plain-JAX references ----------------------------- #

def _im2col_3x3(x_nhwc):
    """3x3 patches with padding=1, stride=1.  Returns (N, H*W, 9*C), tap-major."""
    N, H, W, C = x_nhwc.shape
    xp = jnp.pad(x_nhwc, ((0, 0), (1, 1), (1, 1), (0, 0)))
    cols = [xp[:, dy:dy + H, dx:dx + W, :] for dy in range(3) for dx in range(3)]
    p = jnp.stack(cols, axis=3)                                     # (N, H, W, 9, C)
    return p.reshape(N, H * W, 9 * C)


def _reference_loss(x_nchw, w_conv, bc, wfc, bfc, *, real=False, bf16_like_kernel=False):
    """Reference.  bf16_like_kernel=True applies the kernel's only quantization points
    (x and the conv weight cast to bf16; everything downstream is f32) for a tight check."""
    n, c, hh, ww = x_nchw.shape
    c_hid = w_conv.shape[-1]
    x = jnp.transpose(x_nchw, (0, 2, 3, 1)).astype(jnp.float32)
    w2 = w_conv.reshape(9 * c, c_hid).astype(jnp.float32)
    if bf16_like_kernel:
        x = x.astype(jnp.bfloat16).astype(jnp.float32)
        w2 = w2.astype(jnp.bfloat16).astype(jnp.float32)
    patches = _im2col_3x3(x)                                        # (n, hh*ww, 9*c)
    h = jnp.einsum('npk,kc->npc', patches, w2,
                   precision=lax.Precision.HIGHEST) + bc.reshape(1, 1, c_hid)
    h = jnp.maximum(h, 0.0)
    pooled = jnp.mean(h, axis=1)                                    # (n, c_hid)
    z = jnp.sum(pooled * wfc.reshape(1, c_hid), axis=-1) + bfc.reshape(())
    y = 0.1 if real else 0.9
    loss = jnp.maximum(z, 0.0) - z * y + jnp.log1p(jnp.exp(-jnp.abs(z)))
    return jnp.mean(loss)


if __name__ == "__main__":
    key = jax.random.PRNGKey(0)
    k_x, k_wc, k_bc, k_wfc, k_bfc = jax.random.split(key, 5)

    N, C, H, W = 2, 4, 16, 16            # small NCHW input, as in the PyTorch module
    C_hid = 32

    x = jax.random.normal(k_x, (N, C, H, W), dtype=jnp.float32)

    # deterministic synthetic discriminator parameters
    w_conv = 0.05 * jax.random.normal(k_wc, (3, 3, C, C_hid), dtype=jnp.float32)
    bc = 0.01 * jax.random.normal(k_bc, (1, C_hid), dtype=jnp.float32)
    wfc = 0.05 * jax.random.normal(k_wfc, (C_hid, 1), dtype=jnp.float32)
    bfc = 0.01 * jax.random.normal(k_bfc, (1, 1), dtype=jnp.float32)

    loss_fake = discriminator_loss(x, w_conv, bc, wfc, bfc, real=False)
    loss_real = discriminator_loss(x, w_conv, bc, wfc, bfc, real=True)
    jax.block_until_ready((loss_fake, loss_real))

    # Tight check vs a reference with the kernel's bf16 quantization points (x, conv weight).
    refq_fake = _reference_loss(x, w_conv, bc, wfc, bfc, real=False, bf16_like_kernel=True)
    refq_real = _reference_loss(x, w_conv, bc, wfc, bfc, real=True, bf16_like_kernel=True)
    assert jnp.allclose(loss_fake, refq_fake, atol=1e-4, rtol=1e-4)
    assert jnp.allclose(loss_real, refq_real, atol=1e-4, rtol=1e-4)

    # Loose check vs the pure-f32 module semantics (bf16 MXU operand cast is intentional).
    ref_fake = _reference_loss(x, w_conv, bc, wfc, bfc, real=False)
    ref_real = _reference_loss(x, w_conv, bc, wfc, bfc, real=True)
    assert jnp.allclose(loss_fake, ref_fake, atol=2e-2, rtol=2e-2)
    assert jnp.allclose(loss_real, ref_real, atol=2e-2, rtol=2e-2)

    print("KERNEL_OK")
</pallas_src>

<mosaic_0001>
module attributes {stable_mosaic.version = 11 : i64} {
  func.func @_disc_loss_kernel(%arg0: i32, %arg1: memref<512x4xbf16, #tpu.memory_space<vmem>>, %arg2: memref<36x128xbf16, #tpu.memory_space<vmem>>, %arg3: memref<1x128xf32, #tpu.memory_space<vmem>>, %arg4: memref<1x128xf32, #tpu.memory_space<vmem>>, %arg5: memref<1x1xf32, #tpu.memory_space<vmem>>, %arg6: memref<2x1xf32, #tpu.memory_space<vmem>>, %arg7: memref<560x4xbf16, #tpu.memory_space<vmem>>) attributes {dimension_semantics = [#tpu.dimension_semantics<arbitrary>], iteration_bounds = array<i64: 1>, scalar_prefetch = 0 : i64, scratch_operands = 1 : i64, tpu.core_type = #tpu.core_type<tc>, window_params = [{pipeline_mode = #tpu.pipeline_mode<synchronous>, transform_indices = @transform_0, window_bounds = array<i64: 512, 4>}, {pipeline_mode = #tpu.pipeline_mode<synchronous>, transform_indices = @transform_1, window_bounds = array<i64: 36, 128>}, {pipeline_mode = #tpu.pipeline_mode<synchronous>, transform_indices = @transform_2, window_bounds = array<i64: 1, 128>}, {pipeline_mode = #tpu.pipeline_mode<synchronous>, transform_indices = @transform_3, window_bounds = array<i64: 1, 128>}, {pipeline_mode = #tpu.pipeline_mode<synchronous>, transform_indices = @transform_4, window_bounds = array<i64: 1, 1>}, {pipeline_mode = #tpu.pipeline_mode<synchronous>, transform_indices = @transform_5, window_bounds = array<i64: 2, 1>}]} {
    %cst = arith.constant 0.000000e+00 : bf16
    %0 = vector.broadcast %cst : bf16 to vector<24x4xbf16>
    %c0 = arith.constant 0 : index
    %c0_0 = arith.constant 0 : index
    %1 = vector.load %arg7[%c0, %c0_0] : memref<560x4xbf16, #tpu.memory_space<vmem>>, vector<24x4xbf16>
    tpu.vector_store %arg7[%c0, %c0_0], %0 {strides = array<i32>} : memref<560x4xbf16, #tpu.memory_space<vmem>>, vector<24x4xbf16>,
    %c536 = arith.constant 536 : index
    %c0_1 = arith.constant 0 : index
    %2 = vector.load %arg7[%c536, %c0_1] : memref<560x4xbf16, #tpu.memory_space<vmem>>, vector<24x4xbf16>
    tpu.vector_store %arg7[%c536, %c0_1], %0 {strides = array<i32>} : memref<560x4xbf16, #tpu.memory_space<vmem>>, vector<24x4xbf16>,
    %c0_2 = arith.constant 0 : index
    %c0_3 = arith.constant 0 : index
    %3 = vector.load %arg1[%c0_2, %c0_3] : memref<512x4xbf16, #tpu.memory_space<vmem>>, vector<512x4xbf16>
    %c24 = arith.constant 24 : index
    %c0_4 = arith.constant 0 : index
    %4 = vector.load %arg7[%c24, %c0_4] : memref<560x4xbf16, #tpu.memory_space<vmem>>, vector<512x4xbf16>
    tpu.vector_store %arg7[%c24, %c0_4], %3 {strides = array<i32>} : memref<560x4xbf16, #tpu.memory_space<vmem>>, vector<512x4xbf16>,
    %5 = tpu.iota {dimensions = array<i32: 0>} : vector<512x1xi32>
    %c15_i32 = arith.constant 15 : i32
    %6 = vector.broadcast %c15_i32 : i32 to vector<512x1xi32>
    %7 = arith.andi %5, %6 : vector<512x1xi32>
    %c4_i32 = arith.constant 4 : i32
    %8 = vector.broadcast %c4_i32 : i32 to vector<512x1xi32>
    %9 = arith.shrsi %5, %8 : vector<512x1xi32>
    %c15_i32_5 = arith.constant 15 : i32
    %10 = vector.broadcast %c15_i32_5 : i32 to vector<512x1xi32>
    %11 = arith.andi %9, %10 : vector<512x1xi32>
    %c1_i32 = arith.constant 1 : i32
    %12 = vector.broadcast %c1_i32 : i32 to vector<512x1xi32>
    %13 = arith.cmpi sge, %11, %12 : vector<512x1xi32>
    %c14_i32 = arith.constant 14 : i32
    %14 = vector.broadcast %c14_i32 : i32 to vector<512x1xi32>
    %15 = arith.cmpi sle, %11, %14 : vector<512x1xi32>
    %c1_i32_6 = arith.constant 1 : i32
    %16 = vector.broadcast %c1_i32_6 : i32 to vector<512x1xi32>
    %17 = arith.cmpi sge, %7, %16 : vector<512x1xi32>
    %c14_i32_7 = arith.constant 14 : i32
    %18 = vector.broadcast %c14_i32_7 : i32 to vector<512x1xi32>
    %19 = arith.cmpi sle, %7, %18 : vector<512x1xi32>
    %c7 = arith.constant 7 : index
    %c0_8 = arith.constant 0 : index
    %20 = vector.load %arg7[%c7, %c0_8] : memref<560x4xbf16, #tpu.memory_space<vmem>>, vector<512x4xbf16>
    %21 = arith.andi %13, %17 : vector<512x1xi1>
    %cst_9 = arith.constant 0.000000e+00 : bf16
    %22 = vector.broadcast %cst_9 : bf16 to vector<512x4xbf16>
    %23 = vector.shape_cast %21 : vector<512x1xi1> to vector<512x1xi1>
    %24 = vector.broadcast %23 : vector<512x1xi1> to vector<512x4xi1>
    %25 = arith.select %24, %20, %22 : vector<512x4xi1>, vector<512x4xbf16>
    %c8 = arith.constant 8 : index
    %c0_10 = arith.constant 0 : index
    %26 = vector.load %arg7[%c8, %c0_10] : memref<560x4xbf16, #tpu.memory_space<vmem>>, vector<512x4xbf16>
    %cst_11 = arith.constant 0.000000e+00 : bf16
    %27 = vector.broadcast %cst_11 : bf16 to vector<512x4xbf16>
    %28 = vector.shape_cast %13 : vector<512x1xi1> to vector<512x1xi1>
    %29 = vector.broadcast %28 : vector<512x1xi1> to vector<512x4xi1>
    %30 = arith.select %29, %26, %27 : vector<512x4xi1>, vector<512x4xbf16>
    %c9 = arith.constant 9 : index
    %c0_12 = arith.constant 0 : index
    %31 = vector.load %arg7[%c9, %c0_12] : memref<560x4xbf16, #tpu.memory_space<vmem>>, vector<512x4xbf16>
    %32 = arith.andi %13, %19 : vector<512x1xi1>
    %cst_13 = arith.constant 0.000000e+00 : bf16
    %33 = vector.broadcast %cst_13 : bf16 to vector<512x4xbf16>
    %34 = vector.shape_cast %32 : vector<512x1xi1> to vector<512x1xi1>
    %35 = vector.broadcast %34 : vector<512x1xi1> to vector<512x4xi1>
    %36 = arith.select %35, %31, %33 : vector<512x4xi1>, vector<512x4xbf16>
    %c23 = arith.constant 23 : index
    %c0_14 = arith.constant 0 : index
    %37 = vector.load %arg7[%c23, %c0_14] : memref<560x4xbf16, #tpu.memory_space<vmem>>, vector<512x4xbf16>
    %cst_15 = arith.constant 0.000000e+00 : bf16
    %38 = vector.broadcast %cst_15 : bf16 to vector<512x4xbf16>
    %39 = vector.shape_cast %17 : vector<512x1xi1> to vector<512x1xi1>
    %40 = vector.broadcast %39 : vector<512x1xi1> to vector<512x4xi1>
    %41 = arith.select %40, %37, %38 : vector<512x4xi1>, vector<512x4xbf16>
    %c24_16 = arith.constant 24 : index
    %c0_17 = arith.constant 0 : index
    %42 = vector.load %arg7[%c24_16, %c0_17] : memref<560x4xbf16, #tpu.memory_space<vmem>>, vector<512x4xbf16>
    %c25 = arith.constant 25 : index
    %c0_18 = arith.constant 0 : index
    %43 = vector.load %arg7[%c25, %c0_18] : memref<560x4xbf16, #tpu.memory_space<vmem>>, vector<512x4xbf16>
    %cst_19 = arith.constant 0.000000e+00 : bf16
    %44 = vector.broadcast %cst_19 : bf16 to vector<512x4xbf16>
    %45 = vector.shape_cast %19 : vector<512x1xi1> to vector<512x1xi1>
    %46 = vector.broadcast %45 : vector<512x1xi1> to vector<512x4xi1>
    %47 = arith.select %46, %43, %44 : vector<512x4xi1>, vector<512x4xbf16>
    %c39 = arith.constant 39 : index
    %c0_20 = arith.constant 0 : index
    %48 = vector.load %arg7[%c39, %c0_20] : memref<560x4xbf16, #tpu.memory_space<vmem>>, vector<512x4xbf16>
    %49 = arith.andi %15, %17 : vector<512x1xi1>
    %cst_21 = arith.constant 0.000000e+00 : bf16
    %50 = vector.broadcast %cst_21 : bf16 to vector<512x4xbf16>
    %51 = vector.shape_cast %49 : vector<512x1xi1> to vector<512x1xi1>
    %52 = vector.broadcast %51 : vector<512x1xi1> to vector<512x4xi1>
    %53 = arith.select %52, %48, %50 : vector<512x4xi1>, vector<512x4xbf16>
    %c40 = arith.constant 40 : index
    %c0_22 = arith.constant 0 : index
    %54 = vector.load %arg7[%c40, %c0_22] : memref<560x4xbf16, #tpu.memory_space<vmem>>, vector<512x4xbf16>
    %cst_23 = arith.constant 0.000000e+00 : bf16
    %55 = vector.broadcast %cst_23 : bf16 to vector<512x4xbf16>
    %56 = vector.shape_cast %15 : vector<512x1xi1> to vector<512x1xi1>
    %57 = vector.broadcast %56 : vector<512x1xi1> to vector<512x4xi1>
    %58 = arith.select %57, %54, %55 : vector<512x4xi1>, vector<512x4xbf16>
    %c41 = arith.constant 41 : index
    %c0_24 = arith.constant 0 : index
    %59 = vector.load %arg7[%c41, %c0_24] : memref<560x4xbf16, #tpu.memory_space<vmem>>, vector<512x4xbf16>
    %60 = arith.andi %15, %19 : vector<512x1xi1>
    %cst_25 = arith.constant 0.000000e+00 : bf16
    %61 = vector.broadcast %cst_25 : bf16 to vector<512x4xbf16>
    %62 = vector.shape_cast %60 : vector<512x1xi1> to vector<512x1xi1>
    %63 = vector.broadcast %62 : vector<512x1xi1> to vector<512x4xi1>
    %64 = arith.select %63, %59, %61 : vector<512x4xi1>, vector<512x4xbf16>
    %65 = tpu.concatenate %25, %30, %36, %41, %42, %47, %53, %58, %64 in 1 : vector<512x4xbf16>, vector<512x4xbf16>, vector<512x4xbf16>, vector<512x4xbf16>, vector<512x4xbf16>, vector<512x4xbf16>, vector<512x4xbf16>, vector<512x4xbf16>, vector<512x4xbf16> -> vector<512x36xbf16>
    %c0_26 = arith.constant 0 : index
    %c0_27 = arith.constant 0 : index
    %66 = vector.load %arg2[%c0_26, %c0_27] : memref<36x128xbf16, #tpu.memory_space<vmem>>, vector<36x128xbf16>
    %cst_28 = arith.constant dense<0.000000e+00> : vector<512x128xf32>
    %67 = tpu.matmul %65, %66, %cst_28 {dimension_numbers = #tpu.dot_dimension_numbers<[1], [0], [0], [1], [0, 0, 1, 1], [], []>} : vector<512x36xbf16>, vector<36x128xbf16>, vector<512x128xf32> -> vector<512x128xf32>
    %c0_29 = arith.constant 0 : index
    %c0_30 = arith.constant 0 : index
    %68 = vector.load %arg3[%c0_29, %c0_30] : memref<1x128xf32, #tpu.memory_space<vmem>>, vector<1x128xf32>
    %69 = vector.broadcast %68 : vector<1x128xf32> to vector<512x128xf32>
    %70 = arith.addf %67, %69 : vector<512x128xf32>
    %cst_31 = arith.constant 0.000000e+00 : f32
    %71 = vector.broadcast %cst_31 : f32 to vector<512x128xf32>
    %72 = arith.maximumf %70, %71 : vector<512x128xf32>
    %c0_32 = arith.constant 0 : index
    %c0_33 = arith.constant 0 : index
    %73 = vector.load %arg4[%c0_32, %c0_33] : memref<1x128xf32, #tpu.memory_space<vmem>>, vector<1x128xf32>
    %74 = vector.broadcast %73 : vector<1x128xf32> to vector<512x128xf32>
    %75 = arith.mulf %72, %74 : vector<512x128xf32>
    %76 = vector.shape_cast %75 : vector<512x128xf32> to vector<2x256x128xf32>
    %cst_34 = arith.constant dense<0.000000e+00> : vector<2x128xf32>
    %77 = vector.multi_reduction <add>, %76, %cst_34 [1] : vector<2x256x128xf32> to vector<2x128xf32>
    %cst_35 = arith.constant dense<0.000000e+00> : vector<2xf32>
    %78 = vector.multi_reduction <add>, %77, %cst_35 [1] : vector<2x128xf32> to vector<2xf32>
    %79 = vector.shape_cast %78 : vector<2xf32> to vector<2x1xf32>
    %cst_36 = arith.constant 3.906250e-03 : f32
    %80 = vector.broadcast %cst_36 : f32 to vector<2x1xf32>
    %81 = arith.mulf %79, %80 : vector<2x1xf32>
    %c0_37 = arith.constant 0 : index
    %c0_38 = arith.constant 0 : index
    %82 = vector.load %arg5[%c0_37, %c0_38] : memref<1x1xf32, #tpu.memory_space<vmem>>, vector<1x1xf32>
    %83 = vector.broadcast %82 : vector<1x1xf32> to vector<2x1xf32>
    %84 = arith.addf %81, %83 : vector<2x1xf32>
    %cst_39 = arith.constant 0.000000e+00 : f32
    %85 = vector.broadcast %cst_39 : f32 to vector<2x1xf32>
    %86 = arith.maximumf %84, %85 : vector<2x1xf32>
    %cst_40 = arith.constant 0.899999976 : f32
    %87 = vector.broadcast %cst_40 : f32 to vector<2x1xf32>
    %88 = arith.mulf %84, %87 : vector<2x1xf32>
    %89 = arith.subf %86, %88 : vector<2x1xf32>
    %90 = math.absf %84 : vector<2x1xf32>
    %cst_41 = arith.constant 0.000000e+00 : f32
    %91 = vector.broadcast %cst_41 : f32 to vector<2x1xf32>
    %92 = arith.subf %91, %90 : vector<2x1xf32>
    %93 = math.exp %92 : vector<2x1xf32>
    %94 = math.log1p %93 : vector<2x1xf32>
    %95 = arith.addf %89, %94 : vector<2x1xf32>
    %c0_42 = arith.constant 0 : index
    %c0_43 = arith.constant 0 : index
    %96 = vector.load %arg6[%c0_42, %c0_43] : memref<2x1xf32, #tpu.memory_space<vmem>>, vector<2x1xf32>
    tpu.vector_store %arg6[%c0_42, %c0_43], %95 {strides = array<i32>} : memref<2x1xf32, #tpu.memory_space<vmem>>, vector<2x1xf32>,
    return
  }
  func.func @transform_0(%arg0: i32) -> (i32, i32) {
    %c0_i32 = arith.constant 0 : i32
    %c0_i32_0 = arith.constant 0 : i32
    %c0_i32_1 = arith.constant 0 : i32
    return %c0_i32, %c0_i32_0 : i32, i32
  }
  func.func @transform_1(%arg0: i32) -> (i32, i32) {
    %c0_i32 = arith.constant 0 : i32
    %c0_i32_0 = arith.constant 0 : i32
    %c0_i32_1 = arith.constant 0 : i32
    return %c0_i32, %c0_i32_0 : i32, i32
  }
  func.func @transform_2(%arg0: i32) -> (i32, i32) {
    %c0_i32 = arith.constant 0 : i32
    %c0_i32_0 = arith.constant 0 : i32
    %c0_i32_1 = arith.constant 0 : i32
    return %c0_i32, %c0_i32_0 : i32, i32
  }
  func.func @transform_3(%arg0: i32) -> (i32, i32) {
    %c0_i32 = arith.constant 0 : i32
    %c0_i32_0 = arith.constant 0 : i32
    %c0_i32_1 = arith.constant 0 : i32
    return %c0_i32, %c0_i32_0 : i32, i32
  }
  func.func @transform_4(%arg0: i32) -> (i32, i32) {
    %c0_i32 = arith.constant 0 : i32
    %c0_i32_0 = arith.constant 0 : i32
    %c0_i32_1 = arith.constant 0 : i32
    return %c0_i32, %c0_i32_0 : i32, i32
  }
  func.func @transform_5(%arg0: i32) -> (i32, i32) {
    %c0_i32 = arith.constant 0 : i32
    %c0_i32_0 = arith.constant 0 : i32
    %c0_i32_1 = arith.constant 0 : i32
    return %c0_i32, %c0_i32_0 : i32, i32
  }
}

</mosaic_0001>

<llo_original>
// kernel: tpu_custom_call.1
$region0: #{tpu_custom_call.1}
  #allocation0 [shape = 'u32[]', space=smem, size = 0x4, offset = 0x4, fixed_abs, tag = 'smem constant byte address 0x4 - core index']
  #allocation1 [shape = 'u32[72,128]{1,0:T(1,128)}', space=vmem, size = 0x9000, scoped, tag = 'internal scratch']
  #allocation2 [shape = 'bf16[560,4]{1,0:T(8,128)(2,1)}', space=vmem, size = 0x23000, scoped, tag = 'scratch operand']
  #allocation3 [shape = 'f32[1,1]{1,0:T(1,128)S(1)}', space=vmem, size = 0x200, scoped, tag = 'scoped memory for tpu_custom_call.1']
  %s0 = inlined_call_operand.vmem [shape: bf16[512,4], index: 0, kind: input, shape index: {}]
  %s1 = inlined_call_operand.vmem [shape: bf16[36,128], index: 1, kind: input, shape index: {}]
  %s2 = inlined_call_operand.vmem [shape: f32[1,128], index: 2, kind: input, shape index: {}]
  %s3 = inlined_call_operand.vmem [shape: f32[1,128], index: 3, kind: input, shape index: {}]
  %s4 = inlined_call_operand.<no memory space> [shape: f32[1,1], index: 4, kind: input, shape index: {}]
  %s5 = inlined_call_operand.vmem [shape: f32[2,1], index: 5, kind: output, shape index: {}]
  %s6 = sld [smem:[#allocation0]]
  $region30: #{tpu_custom_call.1} parent=0
    _
  %s8 = ssub.s32 1, %s6
  %s9 = scalar_select 0, %s8, %s6
  %v10 = vstv %s4
  %11 = vst [vmem:[#allocation3] sm:$0x1] %v10
  // Predicated region
  $region2: #{tpu_custom_call.1} parent=0 // pred_check
    _
  $region3: #{tpu_custom_call.1} parent=0 // pred_check_branch
    %13 = sbr.rel (0) target = $region5
  $region4: #{tpu_custom_call.1} parent=0 // pred_region
    _
  $region5: #{tpu_custom_call.1} parent=0 // pred_fallthru
    _
  // Predicated region
  $region6: #{tpu_custom_call.1} parent=0 // pred_check
    _
  $region7: #{tpu_custom_call.1} parent=0 // pred_check_branch
    %15 = sbr.rel (0) target = $region9
  $region8: #{tpu_custom_call.1} parent=0 // pred_region
    _
  $region9: #{tpu_custom_call.1} parent=0 // pred_fallthru
    _
  // Predicated region
  $region10: #{tpu_custom_call.1} parent=0 // pred_check
    _
  $region11: #{tpu_custom_call.1} parent=0 // pred_check_branch
    %17 = sbr.rel (0) target = $region13
  $region12: #{tpu_custom_call.1} parent=0 // pred_region
    _
  $region13: #{tpu_custom_call.1} parent=0 // pred_fallthru
    _
  // Predicated region
  $region14: #{tpu_custom_call.1} parent=0 // pred_check
    _
  $region15: #{tpu_custom_call.1} parent=0 // pred_check_branch
    %19 = sbr.rel (0) target = $region17
  $region16: #{tpu_custom_call.1} parent=0 // pred_region
    _
  $region17: #{tpu_custom_call.1} parent=0 // pred_fallthru
    _
  // Predicated region
  $region18: #{tpu_custom_call.1} parent=0 // pred_check
    _
  $region19: #{tpu_custom_call.1} parent=0 // pred_check_branch
    %21 = sbr.rel (0) target = $region21
  $region20: #{tpu_custom_call.1} parent=0 // pred_region
    _
  $region21: #{tpu_custom_call.1} parent=0 // pred_fallthru
    _
  %vm25 = vcmask 27648
  %26 = vst.msk [vmem:[#allocation2] sm:$0xf] %vm25, 0
  %27 = vst.msk [vmem:[#allocation2 + $0x4] sm:$0xf] %vm25, 0
  %28 = vst.msk [vmem:[#allocation2 + $0x8] sm:$0xf] %vm25, 0
  %29 = vst.msk [vmem:[#allocation2 + $0x10c] sm:$0xf] %vm25, 0
  %30 = vst.msk [vmem:[#allocation2 + $0x110] sm:$0xf] %vm25, 0
  %31 = vst.msk [vmem:[#allocation2 + $0x114] sm:$0xf] %vm25, 0
  %v32 = vld [vmem:[%s0] sm:$0xf]
  %v33 = vld [vmem:[%s0 + $0x4] sm:$0xf]
  %v34 = vld [vmem:[%s0 + $0x8] sm:$0xf]
  %v35 = vld [vmem:[%s0 + $0xc] sm:$0xf]
  %v36 = vld [vmem:[%s0 + $0x10] sm:$0xf]
  %v37 = vld [vmem:[%s0 + $0x14] sm:$0xf]
  %v38 = vld [vmem:[%s0 + $0x18] sm:$0xf]
  %v39 = vld [vmem:[%s0 + $0x1c] sm:$0xf]
  %v40 = vld [vmem:[%s0 + $0x20] sm:$0xf]
  %v41 = vld [vmem:[%s0 + $0x24] sm:$0xf]
  %v42 = vld [vmem:[%s0 + $0x28] sm:$0xf]
  %v43 = vld [vmem:[%s0 + $0x2c] sm:$0xf]
  %v44 = vld [vmem:[%s0 + $0x30] sm:$0xf]
  %v45 = vld [vmem:[%s0 + $0x34] sm:$0xf]
  %v46 = vld [vmem:[%s0 + $0x38] sm:$0xf]
  %v47 = vld [vmem:[%s0 + $0x3c] sm:$0xf]
  %v48 = vld [vmem:[%s0 + $0x40] sm:$0xf]
  %v49 = vld [vmem:[%s0 + $0x44] sm:$0xf]
  %v50 = vld [vmem:[%s0 + $0x48] sm:$0xf]
  %v51 = vld [vmem:[%s0 + $0x4c] sm:$0xf]
  %v52 = vld [vmem:[%s0 + $0x50] sm:$0xf]
  %v53 = vld [vmem:[%s0 + $0x54] sm:$0xf]
  %v54 = vld [vmem:[%s0 + $0x58] sm:$0xf]
  %v55 = vld [vmem:[%s0 + $0x5c] sm:$0xf]
  %v56 = vld [vmem:[%s0 + $0x60] sm:$0xf]
  %v57 = vld [vmem:[%s0 + $0x64] sm:$0xf]
  %v58 = vld [vmem:[%s0 + $0x68] sm:$0xf]
  %v59 = vld [vmem:[%s0 + $0x6c] sm:$0xf]
  %v60 = vld [vmem:[%s0 + $0x70] sm:$0xf]
  %v61 = vld [vmem:[%s0 + $0x74] sm:$0xf]
  %v62 = vld [vmem:[%s0 + $0x78] sm:$0xf]
  %v63 = vld [vmem:[%s0 + $0x7c] sm:$0xf]
  %v64 = vld [vmem:[%s0 + $0x80] sm:$0xf]
  %v65 = vld [vmem:[%s0 + $0x84] sm:$0xf]
  %v66 = vld [vmem:[%s0 + $0x88] sm:$0xf]
  %v67 = vld [vmem:[%s0 + $0x8c] sm:$0xf]
  %v68 = vld [vmem:[%s0 + $0x90] sm:$0xf]
  %v69 = vld [vmem:[%s0 + $0x94] sm:$0xf]
  %v70 = vld [vmem:[%s0 + $0x98] sm:$0xf]
  %v71 = vld [vmem:[%s0 + $0x9c] sm:$0xf]
  %v72 = vld [vmem:[%s0 + $0xa0] sm:$0xf]
  %v73 = vld [vmem:[%s0 + $0xa4] sm:$0xf]
  %v74 = vld [vmem:[%s0 + $0xa8] sm:$0xf]
  %v75 = vld [vmem:[%s0 + $0xac] sm:$0xf]
  %v76 = vld [vmem:[%s0 + $0xb0] sm:$0xf]
  %v77 = vld [vmem:[%s0 + $0xb4] sm:$0xf]
  %v78 = vld [vmem:[%s0 + $0xb8] sm:$0xf]
  %v79 = vld [vmem:[%s0 + $0xbc] sm:$0xf]
  %v80 = vld [vmem:[%s0 + $0xc0] sm:$0xf]
  %v81 = vld [vmem:[%s0 + $0xc4] sm:$0xf]
  %v82 = vld [vmem:[%s0 + $0xc8] sm:$0xf]
  %v83 = vld [vmem:[%s0 + $0xcc] sm:$0xf]
  %v84 = vld [vmem:[%s0 + $0xd0] sm:$0xf]
  %v85 = vld [vmem:[%s0 + $0xd4] sm:$0xf]
  %v86 = vld [vmem:[%s0 + $0xd8] sm:$0xf]
  %v87 = vld [vmem:[%s0 + $0xdc] sm:$0xf]
  %v88 = vld [vmem:[%s0 + $0xe0] sm:$0xf]
  %v89 = vld [vmem:[%s0 + $0xe4] sm:$0xf]
  %v90 = vld [vmem:[%s0 + $0xe8] sm:$0xf]
  %v91 = vld [vmem:[%s0 + $0xec] sm:$0xf]
  %v92 = vld [vmem:[%s0 + $0xf0] sm:$0xf]
  %v93 = vld [vmem:[%s0 + $0xf4] sm:$0xf]
  %v94 = vld [vmem:[%s0 + $0xf8] sm:$0xf]
  %v95 = vld [vmem:[%s0 + $0xfc] sm:$0xf]
  %96 = vst.msk [vmem:[#allocation2 + $0xc] sm:$0xf] %vm25, %v32
  %97 = vst.msk [vmem:[#allocation2 + $0x10] sm:$0xf] %vm25, %v33
  %98 = vst.msk [vmem:[#allocation2 + $0x14] sm:$0xf] %vm25, %v34
  %99 = vst.msk [vmem:[#allocation2 + $0x18] sm:$0xf] %vm25, %v35
  %100 = vst.msk [vmem:[#allocation2 + $0x1c] sm:$0xf] %vm25, %v36
  %101 = vst.msk [vmem:[#allocation2 + $0x20] sm:$0xf] %vm25, %v37
  %102 = vst.msk [vmem:[#allocation2 + $0x24] sm:$0xf] %vm25, %v38
  %103 = vst.msk [vmem:[#allocation2 + $0x28] sm:$0xf] %vm25, %v39
  %104 = vst.msk [vmem:[#allocation2 + $0x2c] sm:$0xf] %vm25, %v40
  %105 = vst.msk [vmem:[#allocation2 + $0x30] sm:$0xf] %vm25, %v41
  %106 = vst.msk [vmem:[#allocation2 + $0x34] sm:$0xf] %vm25, %v42
  %107 = vst.msk [vmem:[#allocation2 + $0x38] sm:$0xf] %vm25, %v43
  %108 = vst.msk [vmem:[#allocation2 + $0x3c] sm:$0xf] %vm25, %v44
  %109 = vst.msk [vmem:[#allocation2 + $0x40] sm:$0xf] %vm25, %v45
  %110 = vst.msk [vmem:[#allocation2 + $0x44] sm:$0xf] %vm25, %v46
  %111 = vst.msk [vmem:[#allocation2 + $0x48] sm:$0xf] %vm25, %v47
  %112 = vst.msk [vmem:[#allocation2 + $0x4c] sm:$0xf] %vm25, %v48
  %113 = vst.msk [vmem:[#allocation2 + $0x50] sm:$0xf] %vm25, %v49
  %114 = vst.msk [vmem:[#allocation2 + $0x54] sm:$0xf] %vm25, %v50
  %115 = vst.msk [vmem:[#allocation2 + $0x58] sm:$0xf] %vm25, %v51
  %116 = vst.msk [vmem:[#allocation2 + $0x5c] sm:$0xf] %vm25, %v52
  %117 = vst.msk [vmem:[#allocation2 + $0x60] sm:$0xf] %vm25, %v53
  %118 = vst.msk [vmem:[#allocation2 + $0x64] sm:$0xf] %vm25, %v54
  %119 = vst.msk [vmem:[#allocation2 + $0x68] sm:$0xf] %vm25, %v55
  %120 = vst.msk [vmem:[#allocation2 + $0x6c] sm:$0xf] %vm25, %v56
  %121 = vst.msk [vmem:[#allocation2 + $0x70] sm:$0xf] %vm25, %v57
  %122 = vst.msk [vmem:[#allocation2 + $0x74] sm:$0xf] %vm25, %v58
  %123 = vst.msk [vmem:[#allocation2 + $0x78] sm:$0xf] %vm25, %v59
  %124 = vst.msk [vmem:[#allocation2 + $0x7c] sm:$0xf] %vm25, %v60
  %125 = vst.msk [vmem:[#allocation2 + $0x80] sm:$0xf] %vm25, %v61
  %126 = vst.msk [vmem:[#allocation2 + $0x84] sm:$0xf] %vm25, %v62
  %127 = vst.msk [vmem:[#allocation2 + $0x88] sm:$0xf] %vm25, %v63
  %128 = vst.msk [vmem:[#allocation2 + $0x8c] sm:$0xf] %vm25, %v64
  %129 = vst.msk [vmem:[#allocation2 + $0x90] sm:$0xf] %vm25, %v65
  %130 = vst.msk [vmem:[#allocation2 + $0x94] sm:$0xf] %vm25, %v66
  %131 = vst.msk [vmem:[#allocation2 + $0x98] sm:$0xf] %vm25, %v67
  %132 = vst.msk [vmem:[#allocation2 + $0x9c] sm:$0xf] %vm25, %v68
  %133 = vst.msk [vmem:[#allocation2 + $0xa0] sm:$0xf] %vm25, %v69
  %134 = vst.msk [vmem:[#allocation2 + $0xa4] sm:$0xf] %vm25, %v70
  %135 = vst.msk [vmem:[#allocation2 + $0xa8] sm:$0xf] %vm25, %v71
  %136 = vst.msk [vmem:[#allocation2 + $0xac] sm:$0xf] %vm25, %v72
  %137 = vst.msk [vmem:[#allocation2 + $0xb0] sm:$0xf] %vm25, %v73
  %138 = vst.msk [vmem:[#allocation2 + $0xb4] sm:$0xf] %vm25, %v74
  %139 = vst.msk [vmem:[#allocation2 + $0xb8] sm:$0xf] %vm25, %v75
  %140 = vst.msk [vmem:[#allocation2 + $0xbc] sm:$0xf] %vm25, %v76
  %141 = vst.msk [vmem:[#allocation2 + $0xc0] sm:$0xf] %vm25, %v77
  %142 = vst.msk [vmem:[#allocation2 + $0xc4] sm:$0xf] %vm25, %v78
  %143 = vst.msk [vmem:[#allocation2 + $0xc8] sm:$0xf] %vm25, %v79
  %144 = vst.msk [vmem:[#allocation2 + $0xcc] sm:$0xf] %vm25, %v80
  %145 = vst.msk [vmem:[#allocation2 + $0xd0] sm:$0xf] %vm25, %v81
  %146 = vst.msk [vmem:[#allocation2 + $0xd4] sm:$0xf] %vm25, %v82
  %147 = vst.msk [vmem:[#allocation2 + $0xd8] sm:$0xf] %vm25, %v83
  %148 = vst.msk [vmem:[#allocation2 + $0xdc] sm:$0xf] %vm25, %v84
  %149 = vst.msk [vmem:[#allocation2 + $0xe0] sm:$0xf] %vm25, %v85
  %150 = vst.msk [vmem:[#allocation2 + $0xe4] sm:$0xf] %vm25, %v86
  %151 = vst.msk [vmem:[#allocation2 + $0xe8] sm:$0xf] %vm25, %v87
  %152 = vst.msk [vmem:[#allocation2 + $0xec] sm:$0xf] %vm25, %v88
  %153 = vst.msk [vmem:[#allocation2 + $0xf0] sm:$0xf] %vm25, %v89
  %154 = vst.msk [vmem:[#allocation2 + $0xf4] sm:$0xf] %vm25, %v90
  %155 = vst.msk [vmem:[#allocation2 + $0xf8] sm:$0xf] %vm25, %v91
  %156 = vst.msk [vmem:[#allocation2 + $0xfc] sm:$0xf] %vm25, %v92
  %157 = vst.msk [vmem:[#allocation2 + $0x100] sm:$0xf] %vm25, %v93
  %158 = vst.msk [vmem:[#allocation2 + $0x104] sm:$0xf] %vm25, %v94
  %159 = vst.msk [vmem:[#allocation2 + $0x108] sm:$0xf] %vm25, %v95
  %v160 = vlaneseq
  %v161 = vshrl.u32 %v160, 7
  %v162 = vadd.s32 %v161, 8
  %v163 = vadd.s32 %v161, 16
  %v164 = vadd.s32 %v161, 24
  %v165 = vadd.s32 %v161, 32
  %v166 = vadd.s32 %v161, 40
  %v167 = vadd.s32 %v161, 48
  %v168 = vadd.s32 %v161, 56
  %v169 = vadd.s32 %v161, 64
  %v170 = vadd.s32 %v161, 72
  %v171 = vadd.s32 %v161, 80
  %v172 = vadd.s32 %v161, 88
  %v173 = vadd.s32 %v161, 96
  %v174 = vadd.s32 %v161, 104
  %v175 = vadd.s32 %v161, 112
  %v176 = vadd.s32 %v161, 120
  %v177 = vadd.s32 %v161, 128
  %v178 = vadd.s32 %v161, 136
  %v179 = vadd.s32 %v161, 144
  %v180 = vadd.s32 %v161, 152
  %v181 = vadd.s32 %v161, 160
  %v182 = vadd.s32 %v161, 168
  %v183 = vadd.s32 %v161, 176
  %v184 = vadd.s32 %v161, 184
  %v185 = vadd.s32 %v161, 192
  %v186 = vadd.s32 %v161, 200
  %v187 = vadd.s32 %v161, 208
  %v188 = vadd.s32 %v161, 216
  %v189 = vadd.s32 %v161, 224
  %v190 = vadd.s32 %v161, 232
  %v191 = vadd.s32 %v161, 240
  %v192 = vadd.s32 %v161, 248
  %v193 = vadd.s32 %v161, 256
  %v194 = vadd.s32 %v161, 264
  %v195 = vadd.s32 %v161, 272
  %v196 = vadd.s32 %v161, 280
  %v197 = vadd.s32 %v161, 288
  %v198 = vadd.s32 %v161, 296
  %v199 = vadd.s32 %v161, 304
  %v200 = vadd.s32 %v161, 312
  %v201 = vadd.s32 %v161, 320
  %v202 = vadd.s32 %v161, 328
  %v203 = vadd.s32 %v161, 336
  %v204 = vadd.s32 %v161, 344
  %v205 = vadd.s32 %v161, 352
  %v206 = vadd.s32 %v161, 360
  %v207 = vadd.s32 %v161, 368
  %v208 = vadd.s32 %v161, 376
  %v209 = vadd.s32 %v161, 384
  %v210 = vadd.s32 %v161, 392
  %v211 = vadd.s32 %v161, 400
  %v212 = vadd.s32 %v161, 408
  %v213 = vadd.s32 %v161, 416
  %v214 = vadd.s32 %v161, 424
  %v215 = vadd.s32 %v161, 432
  %v216 = vadd.s32 %v161, 440
  %v217 = vadd.s32 %v161, 448
  %v218 = vadd.s32 %v161, 456
  %v219 = vadd.s32 %v161, 464
  %v220 = vadd.s32 %v161, 472
  %v221 = vadd.s32 %v161, 480
  %v222 = vadd.s32 %v161, 488
  %v223 = vadd.s32 %v161, 496
  %v224 = vadd.s32 %v161, 504
  %v225 = vand.u32 %v161, 15
  %v226 = vand.u32 %v162, 15
  %v227 = vand.u32 %v163, 15
  %v228 = vand.u32 %v164, 15
  %v229 = vand.u32 %v165, 15
  %v230 = vand.u32 %v166, 15
  %v231 = vand.u32 %v167, 15
  %v232 = vand.u32 %v168, 15
  %v233 = vand.u32 %v169, 15
  %v234 = vand.u32 %v170, 15
  %v235 = vand.u32 %v171, 15
  %v236 = vand.u32 %v172, 15
  %v237 = vand.u32 %v173, 15
  %v238 = vand.u32 %v174, 15
  %v239 = vand.u32 %v175, 15
  %v240 = vand.u32 %v176, 15
  %v241 = vand.u32 %v177, 15
  %v242 = vand.u32 %v178, 15
  %v243 = vand.u32 %v179, 15
  %v244 = vand.u32 %v180, 15
  %v245 = vand.u32 %v181, 15
  %v246 = vand.u32 %v182, 15
  %v247 = vand.u32 %v183, 15
  %v248 = vand.u32 %v184, 15
  %v249 = vand.u32 %v185, 15
  %v250 = vand.u32 %v186, 15
  %v251 = vand.u32 %v187, 15
  %v252 = vand.u32 %v188, 15
  %v253 = vand.u32 %v189, 15
  %v254 = vand.u32 %v190, 15
  %v255 = vand.u32 %v191, 15
  %v256 = vand.u32 %v192, 15
  %v257 = vand.u32 %v193, 15
  %v258 = vand.u32 %v194, 15
  %v259 = vand.u32 %v195, 15
  %v260 = vand.u32 %v196, 15
  %v261 = vand.u32 %v197, 15
  %v262 = vand.u32 %v198, 15
  %v263 = vand.u32 %v199, 15
  %v264 = vand.u32 %v200, 15
  %v265 = vand.u32 %v201, 15
  %v266 = vand.u32 %v202, 15
  %v267 = vand.u32 %v203, 15
  %v268 = vand.u32 %v204, 15
  %v269 = vand.u32 %v205, 15
  %v270 = vand.u32 %v206, 15
  %v271 = vand.u32 %v207, 15
  %v272 = vand.u32 %v208, 15
  %v273 = vand.u32 %v209, 15
  %v274 = vand.u32 %v210, 15
  %v275 = vand.u32 %v211, 15
  %v276 = vand.u32 %v212, 15
  %v277 = vand.u32 %v213, 15
  %v278 = vand.u32 %v214, 15
  %v279 = vand.u32 %v215, 15
  %v280 = vand.u32 %v216, 15
  %v281 = vand.u32 %v217, 15
  %v282 = vand.u32 %v218, 15
  %v283 = vand.u32 %v219, 15
  %v284 = vand.u32 %v220, 15
  %v285 = vand.u32 %v221, 15
  %v286 = vand.u32 %v222, 15
  %v287 = vand.u32 %v223, 15
  %v288 = vand.u32 %v224, 15
  %v289 = vshra.s32 %v161, 4
  %v290 = vshra.s32 %v162, 4
  %v291 = vshra.s32 %v163, 4
  %v292 = vshra.s32 %v164, 4
  %v293 = vshra.s32 %v165, 4
  %v294 = vshra.s32 %v166, 4
  %v295 = vshra.s32 %v167, 4
  %v296 = vshra.s32 %v168, 4
  %v297 = vshra.s32 %v169, 4
  %v298 = vshra.s32 %v170, 4
  %v299 = vshra.s32 %v171, 4
  %v300 = vshra.s32 %v172, 4
  %v301 = vshra.s32 %v173, 4
  %v302 = vshra.s32 %v174, 4
  %v303 = vshra.s32 %v175, 4
  %v304 = vshra.s32 %v176, 4
  %v305 = vshra.s32 %v177, 4
  %v306 = vshra.s32 %v178, 4
  %v307 = vshra.s32 %v179, 4
  %v308 = vshra.s32 %v180, 4
  %v309 = vshra.s32 %v181, 4
  %v310 = vshra.s32 %v182, 4
  %v311 = vshra.s32 %v183, 4
  %v312 = vshra.s32 %v184, 4
  %v313 = vshra.s32 %v185, 4
  %v314 = vshra.s32 %v186, 4
  %v315 = vshra.s32 %v187, 4
  %v316 = vshra.s32 %v188, 4
  %v317 = vshra.s32 %v189, 4
  %v318 = vshra.s32 %v190, 4
  %v319 = vshra.s32 %v191, 4
  %v320 = vshra.s32 %v192, 4
  %v321 = vshra.s32 %v193, 4
  %v322 = vshra.s32 %v194, 4
  %v323 = vshra.s32 %v195, 4
  %v324 = vshra.s32 %v196, 4
  %v325 = vshra.s32 %v197, 4
  %v326 = vshra.s32 %v198, 4
  %v327 = vshra.s32 %v199, 4
  %v328 = vshra.s32 %v200, 4
  %v329 = vshra.s32 %v201, 4
  %v330 = vshra.s32 %v202, 4
  %v331 = vshra.s32 %v203, 4
  %v332 = vshra.s32 %v204, 4
  %v333 = vshra.s32 %v205, 4
  %v334 = vshra.s32 %v206, 4
  %v335 = vshra.s32 %v207, 4
  %v336 = vshra.s32 %v208, 4
  %v337 = vshra.s32 %v209, 4
  %v338 = vshra.s32 %v210, 4
  %v339 = vshra.s32 %v211, 4
  %v340 = vshra.s32 %v212, 4
  %v341 = vshra.s32 %v213, 4
  %v342 = vshra.s32 %v214, 4
  %v343 = vshra.s32 %v215, 4
  %v344 = vshra.s32 %v216, 4
  %v345 = vshra.s32 %v217, 4
  %v346 = vshra.s32 %v218, 4
  %v347 = vshra.s32 %v219, 4
  %v348 = vshra.s32 %v220, 4
  %v349 = vshra.s32 %v221, 4
  %v350 = vshra.s32 %v222, 4
  %v351 = vshra.s32 %v223, 4
  %v352 = vshra.s32 %v224, 4
  %v353 = vand.u32 %v289, 15
  %v354 = vand.u32 %v290, 15
  %v355 = vand.u32 %v291, 15
  %v356 = vand.u32 %v292, 15
  %v357 = vand.u32 %v293, 15
  %v358 = vand.u32 %v294, 15
  %v359 = vand.u32 %v295, 15
  %v360 = vand.u32 %v296, 15
  %v361 = vand.u32 %v297, 15
  %v362 = vand.u32 %v298, 15
  %v363 = vand.u32 %v299, 15
  %v364 = vand.u32 %v300, 15
  %v365 = vand.u32 %v301, 15
  %v366 = vand.u32 %v302, 15
  %v367 = vand.u32 %v303, 15
  %v368 = vand.u32 %v304, 15
  %v369 = vand.u32 %v305, 15
  %v370 = vand.u32 %v306, 15
  %v371 = vand.u32 %v307, 15
  %v372 = vand.u32 %v308, 15
  %v373 = vand.u32 %v309, 15
  %v374 = vand.u32 %v310, 15
  %v375 = vand.u32 %v311, 15
  %v376 = vand.u32 %v312, 15
  %v377 = vand.u32 %v313, 15
  %v378 = vand.u32 %v314, 15
  %v379 = vand.u32 %v315, 15
  %v380 = vand.u32 %v316, 15
  %v381 = vand.u32 %v317, 15
  %v382 = vand.u32 %v318, 15
  %v383 = vand.u32 %v319, 15
  %v384 = vand.u32 %v320, 15
  %v385 = vand.u32 %v321, 15
  %v386 = vand.u32 %v322, 15
  %v387 = vand.u32 %v323, 15
  %v388 = vand.u32 %v324, 15
  %v389 = vand.u32 %v325, 15
  %v390 = vand.u32 %v326, 15
  %v391 = vand.u32 %v327, 15
  %v392 = vand.u32 %v328, 15
  %v393 = vand.u32 %v329, 15
  %v394 = vand.u32 %v330, 15
  %v395 = vand.u32 %v331, 15
  %v396 = vand.u32 %v332, 15
  %v397 = vand.u32 %v333, 15
  %v398 = vand.u32 %v334, 15
  %v399 = vand.u32 %v335, 15
  %v400 = vand.u32 %v336, 15
  %v401 = vand.u32 %v337, 15
  %v402 = vand.u32 %v338, 15
  %v403 = vand.u32 %v339, 15
  %v404 = vand.u32 %v340, 15
  %v405 = vand.u32 %v341, 15
  %v406 = vand.u32 %v342, 15
  %v407 = vand.u32 %v343, 15
  %v408 = vand.u32 %v344, 15
  %v409 = vand.u32 %v345, 15
  %v410 = vand.u32 %v346, 15
  %v411 = vand.u32 %v347, 15
  %v412 = vand.u32 %v348, 15
  %v413 = vand.u32 %v349, 15
  %v414 = vand.u32 %v350, 15
  %v415 = vand.u32 %v351, 15
  %v416 = vand.u32 %v352, 15
  %vm417 = vcmp.ge.s32.totalorder %v353, 1
  %vm418 = vcmp.ge.s32.totalorder %v354, 1
  %vm419 = vcmp.ge.s32.totalorder %v355, 1
  %vm420 = vcmp.ge.s32.totalorder %v356, 1
  %vm421 = vcmp.ge.s32.totalorder %v357, 1
  %vm422 = vcmp.ge.s32.totalorder %v358, 1
  %vm423 = vcmp.ge.s32.totalorder %v359, 1
  %vm424 = vcmp.ge.s32.totalorder %v360, 1
  %vm425 = vcmp.ge.s32.totalorder %v361, 1
  %vm426 = vcmp.ge.s32.totalorder %v362, 1
  %vm427 = vcmp.ge.s32.totalorder %v363, 1
  %vm428 = vcmp.ge.s32.totalorder %v364, 1
  %vm429 = vcmp.ge.s32.totalorder %v365, 1
  %vm430 = vcmp.ge.s32.totalorder %v366, 1
  %vm431 = vcmp.ge.s32.totalorder %v367, 1
  %vm432 = vcmp.ge.s32.totalorder %v368, 1
  %vm433 = vcmp.ge.s32.totalorder %v369, 1
  %vm434 = vcmp.ge.s32.totalorder %v370, 1
  %vm435 = vcmp.ge.s32.totalorder %v371, 1
  %vm436 = vcmp.ge.s32.totalorder %v372, 1
  %vm437 = vcmp.ge.s32.totalorder %v373, 1
  %vm438 = vcmp.ge.s32.totalorder %v374, 1
  %vm439 = vcmp.ge.s32.totalorder %v375, 1
  %vm440 = vcmp.ge.s32.totalorder %v376, 1
  %vm441 = vcmp.ge.s32.totalorder %v377, 1
  %vm442 = vcmp.ge.s32.totalorder %v378, 1
  %vm443 = vcmp.ge.s32.totalorder %v379, 1
  %vm444 = vcmp.ge.s32.totalorder %v380, 1
  %vm445 = vcmp.ge.s32.totalorder %v381, 1
  %vm446 = vcmp.ge.s32.totalorder %v382, 1
  %vm447 = vcmp.ge.s32.totalorder %v383, 1
  %vm448 = vcmp.ge.s32.totalorder %v384, 1
  %vm449 = vcmp.ge.s32.totalorder %v385, 1
  %vm450 = vcmp.ge.s32.totalorder %v386, 1
  %vm451 = vcmp.ge.s32.totalorder %v387, 1
  %vm452 = vcmp.ge.s32.totalorder %v388, 1
  %vm453 = vcmp.ge.s32.totalorder %v389, 1
  %vm454 = vcmp.ge.s32.totalorder %v390, 1
  %vm455 = vcmp.ge.s32.totalorder %v391, 1
  %vm456 = vcmp.ge.s32.totalorder %v392, 1
  %vm457 = vcmp.ge.s32.totalorder %v393, 1
  %vm458 = vcmp.ge.s32.totalorder %v394, 1
  %vm459 = vcmp.ge.s32.totalorder %v395, 1
  %vm460 = vcmp.ge.s32.totalorder %v396, 1
  %vm461 = vcmp.ge.s32.totalorder %v397, 1
  %vm462 = vcmp.ge.s32.totalorder %v398, 1
  %vm463 = vcmp.ge.s32.totalorder %v399, 1
  %vm464 = vcmp.ge.s32.totalorder %v400, 1
  %vm465 = vcmp.ge.s32.totalorder %v401, 1
  %vm466 = vcmp.ge.s32.totalorder %v402, 1
  %vm467 = vcmp.ge.s32.totalorder %v403, 1
  %vm468 = vcmp.ge.s32.totalorder %v404, 1
  %vm469 = vcmp.ge.s32.totalorder %v405, 1
  %vm470 = vcmp.ge.s32.totalorder %v406, 1
  %vm471 = vcmp.ge.s32.totalorder %v407, 1
  %vm472 = vcmp.ge.s32.totalorder %v408, 1
  %vm473 = vcmp.ge.s32.totalorder %v409, 1
  %vm474 = vcmp.ge.s32.totalorder %v410, 1
  %vm475 = vcmp.ge.s32.totalorder %v411, 1
  %vm476 = vcmp.ge.s32.totalorder %v412, 1
  %vm477 = vcmp.ge.s32.totalorder %v413, 1
  %vm478 = vcmp.ge.s32.totalorder %v414, 1
  %vm479 = vcmp.ge.s32.totalorder %v415, 1
  %vm480 = vcmp.ge.s32.totalorder %v416, 1
  %vm481 = vcmp.le.s32.totalorder %v353, 14
  %vm482 = vcmp.le.s32.totalorder %v354, 14
  %vm483 = vcmp.le.s32.totalorder %v355, 14
  %vm484 = vcmp.le.s32.totalorder %v356, 14
  %vm485 = vcmp.le.s32.totalorder %v357, 14
  %vm486 = vcmp.le.s32.totalorder %v358, 14
  %vm487 = vcmp.le.s32.totalorder %v359, 14
  %vm488 = vcmp.le.s32.totalorder %v360, 14
  %vm489 = vcmp.le.s32.totalorder %v361, 14
  %vm490 = vcmp.le.s32.totalorder %v362, 14
  %vm491 = vcmp.le.s32.totalorder %v363, 14
  %vm492 = vcmp.le.s32.totalorder %v364, 14
  %vm493 = vcmp.le.s32.totalorder %v365, 14
  %vm494 = vcmp.le.s32.totalorder %v366, 14
  %vm495 = vcmp.le.s32.totalorder %v367, 14
  %vm496 = vcmp.le.s32.totalorder %v368, 14
  %vm497 = vcmp.le.s32.totalorder %v369, 14
  %vm498 = vcmp.le.s32.totalorder %v370, 14
  %vm499 = vcmp.le.s32.totalorder %v371, 14
  %vm500 = vcmp.le.s32.totalorder %v372, 14
  %vm501 = vcmp.le.s32.totalorder %v373, 14
  %vm502 = vcmp.le.s32.totalorder %v374, 14
  %vm503 = vcmp.le.s32.totalorder %v375, 14
  %vm504 = vcmp.le.s32.totalorder %v376, 14
  %vm505 = vcmp.le.s32.totalorder %v377, 14
  %vm506 = vcmp.le.s32.totalorder %v378, 14
  %vm507 = vcmp.le.s32.totalorder %v379, 14
  %vm508 = vcmp.le.s32.totalorder %v380, 14
  %vm509 = vcmp.le.s32.totalorder %v381, 14
  %vm510 = vcmp.le.s32.totalorder %v382, 14
  %vm511 = vcmp.le.s32.totalorder %v383, 14
  %vm512 = vcmp.le.s32.totalorder %v384, 14
  %vm513 = vcmp.le.s32.totalorder %v385, 14
  %vm514 = vcmp.le.s32.totalorder %v386, 14
  %vm515 = vcmp.le.s32.totalorder %v387, 14
  %vm516 = vcmp.le.s32.totalorder %v388, 14
  %vm517 = vcmp.le.s32.totalorder %v389, 14
  %vm518 = vcmp.le.s32.totalorder %v390, 14
  %vm519 = vcmp.le.s32.totalorder %v391, 14
  %vm520 = vcmp.le.s32.totalorder %v392, 14
  %vm521 = vcmp.le.s32.totalorder %v393, 14
  %vm522 = vcmp.le.s32.totalorder %v394, 14
  %vm523 = vcmp.le.s32.totalorder %v395, 14
  %vm524 = vcmp.le.s32.totalorder %v396, 14
  %vm525 = vcmp.le.s32.totalorder %v397, 14
  %vm526 = vcmp.le.s32.totalorder %v398, 14
  %vm527 = vcmp.le.s32.totalorder %v399, 14
  %vm528 = vcmp.le.s32.totalorder %v400, 14
  %vm529 = vcmp.le.s32.totalorder %v401, 14
  %vm530 = vcmp.le.s32.totalorder %v402, 14
  %vm531 = vcmp.le.s32.totalorder %v403, 14
  %vm532 = vcmp.le.s32.totalorder %v404, 14
  %vm533 = vcmp.le.s32.totalorder %v405, 14
  %vm534 = vcmp.le.s32.totalorder %v406, 14
  %vm535 = vcmp.le.s32.totalorder %v407, 14
  %vm536 = vcmp.le.s32.totalorder %v408, 14
  %vm537 = vcmp.le.s32.totalorder %v409, 14
  %vm538 = vcmp.le.s32.totalorder %v410, 14
  %vm539 = vcmp.le.s32.totalorder %v411, 14
  %vm540 = vcmp.le.s32.totalorder %v412, 14
  %vm541 = vcmp.le.s32.totalorder %v413, 14
  %vm542 = vcmp.le.s32.totalorder %v414, 14
  %vm543 = vcmp.le.s32.totalorder %v415, 14
  %vm544 = vcmp.le.s32.totalorder %v416, 14
  %vm545 = vcmp.ge.s32.totalorder %v225, 1
  %vm546 = vcmp.ge.s32.totalorder %v226, 1
  %vm547 = vcmp.ge.s32.totalorder %v227, 1
  %vm548 = vcmp.ge.s32.totalorder %v228, 1
  %vm549 = vcmp.ge.s32.totalorder %v229, 1
  %vm550 = vcmp.ge.s32.totalorder %v230, 1
  %vm551 = vcmp.ge.s32.totalorder %v231, 1
  %vm552 = vcmp.ge.s32.totalorder %v232, 1
  %vm553 = vcmp.ge.s32.totalorder %v233, 1
  %vm554 = vcmp.ge.s32.totalorder %v234, 1
  %vm555 = vcmp.ge.s32.totalorder %v235, 1
  %vm556 = vcmp.ge.s32.totalorder %v236, 1
  %vm557 = vcmp.ge.s32.totalorder %v237, 1
  %vm558 = vcmp.ge.s32.totalorder %v238, 1
  %vm559 = vcmp.ge.s32.totalorder %v239, 1
  %vm560 = vcmp.ge.s32.totalorder %v240, 1
  %vm561 = vcmp.ge.s32.totalorder %v241, 1
  %vm562 = vcmp.ge.s32.totalorder %v242, 1
  %vm563 = vcmp.ge.s32.totalorder %v243, 1
  %vm564 = vcmp.ge.s32.totalorder %v244, 1
  %vm565 = vcmp.ge.s32.totalorder %v245, 1
  %vm566 = vcmp.ge.s32.totalorder %v246, 1
  %vm567 = vcmp.ge.s32.totalorder %v247, 1
  %vm568 = vcmp.ge.s32.totalorder %v248, 1
  %vm569 = vcmp.ge.s32.totalorder %v249, 1
  %vm570 = vcmp.ge.s32.totalorder %v250, 1
  %vm571 = vcmp.ge.s32.totalorder %v251, 1
  %vm572 = vcmp.ge.s32.totalorder %v252, 1
  %vm573 = vcmp.ge.s32.totalorder %v253, 1
  %vm574 = vcmp.ge.s32.totalorder %v254, 1
  %vm575 = vcmp.ge.s32.totalorder %v255, 1
  %vm576 = vcmp.ge.s32.totalorder %v256, 1
  %vm577 = vcmp.ge.s32.totalorder %v257, 1
  %vm578 = vcmp.ge.s32.totalorder %v258, 1
  %vm579 = vcmp.ge.s32.totalorder %v259, 1
  %vm580 = vcmp.ge.s32.totalorder %v260, 1
  %vm581 = vcmp.ge.s32.totalorder %v261, 1
  %vm582 = vcmp.ge.s32.totalorder %v262, 1
  %vm583 = vcmp.ge.s32.totalorder %v263, 1
  %vm584 = vcmp.ge.s32.totalorder %v264, 1
  %vm585 = vcmp.ge.s32.totalorder %v265, 1
  %vm586 = vcmp.ge.s32.totalorder %v266, 1
  %vm587 = vcmp.ge.s32.totalorder %v267, 1
  %vm588 = vcmp.ge.s32.totalorder %v268, 1
  %vm589 = vcmp.ge.s32.totalorder %v269, 1
  %vm590 = vcmp.ge.s32.totalorder %v270, 1
  %vm591 = vcmp.ge.s32.totalorder %v271, 1
  %vm592 = vcmp.ge.s32.totalorder %v272, 1
  %vm593 = vcmp.ge.s32.totalorder %v273, 1
  %vm594 = vcmp.ge.s32.totalorder %v274, 1
  %vm595 = vcmp.ge.s32.totalorder %v275, 1
  %vm596 = vcmp.ge.s32.totalorder %v276, 1
  %vm597 = vcmp.ge.s32.totalorder %v277, 1
  %vm598 = vcmp.ge.s32.totalorder %v278, 1
  %vm599 = vcmp.ge.s32.totalorder %v279, 1
  %vm600 = vcmp.ge.s32.totalorder %v280, 1
  %vm601 = vcmp.ge.s32.totalorder %v281, 1
  %vm602 = vcmp.ge.s32.totalorder %v282, 1
  %vm603 = vcmp.ge.s32.totalorder %v283, 1
  %vm604 = vcmp.ge.s32.totalorder %v284, 1
  %vm605 = vcmp.ge.s32.totalorder %v285, 1
  %vm606 = vcmp.ge.s32.totalorder %v286, 1
  %vm607 = vcmp.ge.s32.totalorder %v287, 1
  %vm608 = vcmp.ge.s32.totalorder %v288, 1
  %vm609 = vcmp.le.s32.totalorder %v225, 14
  %vm610 = vcmp.le.s32.totalorder %v226, 14
  %vm611 = vcmp.le.s32.totalorder %v227, 14
  %vm612 = vcmp.le.s32.totalorder %v228, 14
  %vm613 = vcmp.le.s32.totalorder %v229, 14
  %vm614 = vcmp.le.s32.totalorder %v230, 14
  %vm615 = vcmp.le.s32.totalorder %v231, 14
  %vm616 = vcmp.le.s32.totalorder %v232, 14
  %vm617 = vcmp.le.s32.totalorder %v233, 14
  %vm618 = vcmp.le.s32.totalorder %v234, 14
  %vm619 = vcmp.le.s32.totalorder %v235, 14
  %vm620 = vcmp.le.s32.totalorder %v236, 14
  %vm621 = vcmp.le.s32.totalorder %v237, 14
  %vm622 = vcmp.le.s32.totalorder %v238, 14
  %vm623 = vcmp.le.s32.totalorder %v239, 14
  %vm624 = vcmp.le.s32.totalorder %v240, 14
  %vm625 = vcmp.le.s32.totalorder %v241, 14
  %vm626 = vcmp.le.s32.totalorder %v242, 14
  %vm627 = vcmp.le.s32.totalorder %v243, 14
  %vm628 = vcmp.le.s32.totalorder %v244, 14
  %vm629 = vcmp.le.s32.totalorder %v245, 14
  %vm630 = vcmp.le.s32.totalorder %v246, 14
  %vm631 = vcmp.le.s32.totalorder %v247, 14
  %vm632 = vcmp.le.s32.totalorder %v248, 14
  %vm633 = vcmp.le.s32.totalorder %v249, 14
  %vm634 = vcmp.le.s32.totalorder %v250, 14
  %vm635 = vcmp.le.s32.totalorder %v251, 14
  %vm636 = vcmp.le.s32.totalorder %v252, 14
  %vm637 = vcmp.le.s32.totalorder %v253, 14
  %vm638 = vcmp.le.s32.totalorder %v254, 14
  %vm639 = vcmp.le.s32.totalorder %v255, 14
  %vm640 = vcmp.le.s32.totalorder %v256, 14
  %vm641 = vcmp.le.s32.totalorder %v257, 14
  %vm642 = vcmp.le.s32.totalorder %v258, 14
  %vm643 = vcmp.le.s32.totalorder %v259, 14
  %vm644 = vcmp.le.s32.totalorder %v260, 14
  %vm645 = vcmp.le.s32.totalorder %v261, 14
  %vm646 = vcmp.le.s32.totalorder %v262, 14
  %vm647 = vcmp.le.s32.totalorder %v263, 14
  %vm648 = vcmp.le.s32.totalorder %v264, 14
  %vm649 = vcmp.le.s32.totalorder %v265, 14
  %vm650 = vcmp.le.s32.totalorder %v266, 14
  %vm651 = vcmp.le.s32.totalorder %v267, 14
  %vm652 = vcmp.le.s32.totalorder %v268, 14
  %vm653 = vcmp.le.s32.totalorder %v269, 14
  %vm654 = vcmp.le.s32.totalorder %v270, 14
  %vm655 = vcmp.le.s32.totalorder %v271, 14
  %vm656 = vcmp.le.s32.totalorder %v272, 14
  %vm657 = vcmp.le.s32.totalorder %v273, 14
  %vm658 = vcmp.le.s32.totalorder %v274, 14
  %vm659 = vcmp.le.s32.totalorder %v275, 14
  %vm660 = vcmp.le.s32.totalorder %v276, 14
  %vm661 = vcmp.le.s32.totalorder %v277, 14
  %vm662 = vcmp.le.s32.totalorder %v278, 14
  %vm663 = vcmp.le.s32.totalorder %v279, 14
  %vm664 = vcmp.le.s32.totalorder %v280, 14
  %vm665 = vcmp.le.s32.totalorder %v281, 14
  %vm666 = vcmp.le.s32.totalorder %v282, 14
  %vm667 = vcmp.le.s32.totalorder %v283, 14
  %vm668 = vcmp.le.s32.totalorder %v284, 14
  %vm669 = vcmp.le.s32.totalorder %v285, 14
  %vm670 = vcmp.le.s32.totalorder %v286, 14
  %vm671 = vcmp.le.s32.totalorder %v287, 14
  %vm672 = vcmp.le.s32.totalorder %v288, 14
  %v673 = vld [vmem:[#allocation2] sm:$0x8]
  %v674 = vld [vmem:[#allocation2 + $0x4] sm:$0xf]
  %v675 = vld [vmem:[#allocation2 + $0x8] sm:$0xf]
  %v676 = vld [vmem:[#allocation2 + $0xc] sm:$0xf]
  %v677 = vld [vmem:[#allocation2 + $0x10] sm:$0xf]
  %v678 = vld [vmem:[#allocation2 + $0x14] sm:$0xf]
  %v679 = vld [vmem:[#allocation2 + $0x18] sm:$0xf]
  %v680 = vld [vmem:[#allocation2 + $0x1c] sm:$0xf]
  %v681 = vld [vmem:[#allocation2 + $0x20] sm:$0xf]
  %v682 = vld [vmem:[#allocation2 + $0x24] sm:$0xf]
  %v683 = vld [vmem:[#allocation2 + $0x28] sm:$0xf]
  %v684 = vld [vmem:[#allocation2 + $0x2c] sm:$0xf]
  %v685 = vld [vmem:[#allocation2 + $0x30] sm:$0xf]
  %v686 = vld [vmem:[#allocation2 + $0x34] sm:$0xf]
  %v687 = vld [vmem:[#allocation2 + $0x38] sm:$0xf]
  %v688 = vld [vmem:[#allocation2 + $0x3c] sm:$0xf]
  %v689 = vld [vmem:[#allocation2 + $0x40] sm:$0xf]
  %v690 = vld [vmem:[#allocation2 + $0x44] sm:$0xf]
  %v691 = vld [vmem:[#allocation2 + $0x48] sm:$0xf]
  %v692 = vld [vmem:[#allocation2 + $0x4c] sm:$0xf]
  %v693 = vld [vmem:[#allocation2 + $0x50] sm:$0xf]
  %v694 = vld [vmem:[#allocation2 + $0x54] sm:$0xf]
  %v695 = vld [vmem:[#allocation2 + $0x58] sm:$0xf]
  %v696 = vld [vmem:[#allocation2 + $0x5c] sm:$0xf]
  %v697 = vld [vmem:[#allocation2 + $0x60] sm:$0xf]
  %v698 = vld [vmem:[#allocation2 + $0x64] sm:$0xf]
  %v699 = vld [vmem:[#allocation2 + $0x68] sm:$0xf]
  %v700 = vld [vmem:[#allocation2 + $0x6c] sm:$0xf]
  %v701 = vld [vmem:[#allocation2 + $0x70] sm:$0xf]
  %v702 = vld [vmem:[#allocation2 + $0x74] sm:$0xf]
  %v703 = vld [vmem:[#allocation2 + $0x78] sm:$0xf]
  %v704 = vld [vmem:[#allocation2 + $0x7c] sm:$0xf]
  %v705 = vld [vmem:[#allocation2 + $0x80] sm:$0xf]
  %v706 = vld [vmem:[#allocation2 + $0x84] sm:$0xf]
  %v707 = vld [vmem:[#allocation2 + $0x88] sm:$0xf]
  %v708 = vld [vmem:[#allocation2 + $0x8c] sm:$0xf]
  %v709 = vld [vmem:[#allocation2 + $0x90] sm:$0xf]
  %v710 = vld [vmem:[#allocation2 + $0x94] sm:$0xf]
  %v711 = vld [vmem:[#allocation2 + $0x98] sm:$0xf]
  %v712 = vld [vmem:[#allocation2 + $0x9c] sm:$0xf]
  %v713 = vld [vmem:[#allocation2 + $0xa0] sm:$0xf]
  %v714 = vld [vmem:[#allocation2 + $0xa4] sm:$0xf]
  %v715 = vld [vmem:[#allocation2 + $0xa8] sm:$0xf]
  %v716 = vld [vmem:[#allocation2 + $0xac] sm:$0xf]
  %v717 = vld [vmem:[#allocation2 + $0xb0] sm:$0xf]
  %v718 = vld [vmem:[#allocation2 + $0xb4] sm:$0xf]
  %v719 = vld [vmem:[#allocation2 + $0xb8] sm:$0xf]
  %v720 = vld [vmem:[#allocation2 + $0xbc] sm:$0xf]
  %v721 = vld [vmem:[#allocation2 + $0xc0] sm:$0xf]
  %v722 = vld [vmem:[#allocation2 + $0xc4] sm:$0xf]
  %v723 = vld [vmem:[#allocation2 + $0xc8] sm:$0xf]
  %v724 = vld [vmem:[#allocation2 + $0xcc] sm:$0xf]
  %v725 = vld [vmem:[#allocation2 + $0xd0] sm:$0xf]
  %v726 = vld [vmem:[#allocation2 + $0xd4] sm:$0xf]
  %v727 = vld [vmem:[#allocation2 + $0xd8] sm:$0xf]
  %v728 = vld [vmem:[#allocation2 + $0xdc] sm:$0xf]
  %v729 = vld [vmem:[#allocation2 + $0xe0] sm:$0xf]
  %v730 = vld [vmem:[#allocation2 + $0xe4] sm:$0xf]
  %v731 = vld [vmem:[#allocation2 + $0xe8] sm:$0xf]
  %v732 = vld [vmem:[#allocation2 + $0xec] sm:$0xf]
  %v733 = vld [vmem:[#allocation2 + $0xf0] sm:$0xf]
  %v734 = vld [vmem:[#allocation2 + $0xf4] sm:$0xf]
  %v735 = vld [vmem:[#allocation2 + $0xf8] sm:$0xf]
  %v736 = vld [vmem:[#allocation2 + $0xfc] sm:$0xf]
  %v737 = vld [vmem:[#allocation2 + $0x100] sm:$0xf]
  %vm738 = vmand %vm417, %vm545
  %vm739 = vmand %vm418, %vm546
  %vm740 = vmand %vm419, %vm547
  %vm741 = vmand %vm420, %vm548
  %vm742 = vmand %vm421, %vm549
  %vm743 = vmand %vm422, %vm550
  %vm744 = vmand %vm423, %vm551
  %vm745 = vmand %vm424, %vm552
  %vm746 = vmand %vm425, %vm553
  %vm747 = vmand %vm426, %vm554
  %vm748 = vmand %vm427, %vm555
  %vm749 = vmand %vm428, %vm556
  %vm750 = vmand %vm429, %vm557
  %vm751 = vmand %vm430, %vm558
  %vm752 = vmand %vm431, %vm559
  %vm753 = vmand %vm432, %vm560
  %vm754 = vmand %vm433, %vm561
  %vm755 = vmand %vm434, %vm562
  %vm756 = vmand %vm435, %vm563
  %vm757 = vmand %vm436, %vm564
  %vm758 = vmand %vm437, %vm565
  %vm759 = vmand %vm438, %vm566
  %vm760 = vmand %vm439, %vm567
  %vm761 = vmand %vm440, %vm568
  %vm762 = vmand %vm441, %vm569
  %vm763 = vmand %vm442, %vm570
  %vm764 = vmand %vm443, %vm571
  %vm765 = vmand %vm444, %vm572
  %vm766 = vmand %vm445, %vm573
  %vm767 = vmand %vm446, %vm574
  %vm768 = vmand %vm447, %vm575
  %vm769 = vmand %vm448, %vm576
  %vm770 = vmand %vm449, %vm577
  %vm771 = vmand %vm450, %vm578
  %vm772 = vmand %vm451, %vm579
  %vm773 = vmand %vm452, %vm580
  %vm774 = vmand %vm453, %vm581
  %vm775 = vmand %vm454, %vm582
  %vm776 = vmand %vm455, %vm583
  %vm777 = vmand %vm456, %vm584
  %vm778 = vmand %vm457, %vm585
  %vm779 = vmand %vm458, %vm586
  %vm780 = vmand %vm459, %vm587
  %vm781 = vmand %vm460, %vm588
  %vm782 = vmand %vm461, %vm589
  %vm783 = vmand %vm462, %vm590
  %vm784 = vmand %vm463, %vm591
  %vm785 = vmand %vm464, %vm592
  %vm786 = vmand %vm465, %vm593
  %vm787 = vmand %vm466, %vm594
  %vm788 = vmand %vm467, %vm595
  %vm789 = vmand %vm468, %vm596
  %vm790 = vmand %vm469, %vm597
  %vm791 = vmand %vm470, %vm598
  %vm792 = vmand %vm471, %vm599
  %vm793 = vmand %vm472, %vm600
  %vm794 = vmand %vm473, %vm601
  %vm795 = vmand %vm474, %vm602
  %vm796 = vmand %vm475, %vm603
  %vm797 = vmand %vm476, %vm604
  %vm798 = vmand %vm477, %vm605
  %vm799 = vmand %vm478, %vm606
  %vm800 = vmand %vm479, %vm607
  %vm801 = vmand %vm480, %vm608
  %v802 = vsel %vm738, 1, 0
  %v803 = vsel %vm739, 1, 0
  %v804 = vsel %vm740, 1, 0
  %v805 = vsel %vm741, 1, 0
  %v806 = vsel %vm742, 1, 0
  %v807 = vsel %vm743, 1, 0
  %v808 = vsel %vm744, 1, 0
  %v809 = vsel %vm745, 1, 0
  %v810 = vsel %vm746, 1, 0
  %v811 = vsel %vm747, 1, 0
  %v812 = vsel %vm748, 1, 0
  %v813 = vsel %vm749, 1, 0
  %v814 = vsel %vm750, 1, 0
  %v815 = vsel %vm751, 1, 0
  %v816 = vsel %vm752, 1, 0
  %v817 = vsel %vm753, 1, 0
  %v818 = vsel %vm754, 1, 0
  %v819 = vsel %vm755, 1, 0
  %v820 = vsel %vm756, 1, 0
  %v821 = vsel %vm757, 1, 0
  %v822 = vsel %vm758, 1, 0
  %v823 = vsel %vm759, 1, 0
  %v824 = vsel %vm760, 1, 0
  %v825 = vsel %vm761, 1, 0
  %v826 = vsel %vm762, 1, 0
  %v827 = vsel %vm763, 1, 0
  %v828 = vsel %vm764, 1, 0
  %v829 = vsel %vm765, 1, 0
  %v830 = vsel %vm766, 1, 0
  %v831 = vsel %vm767, 1, 0
  %v832 = vsel %vm768, 1, 0
  %v833 = vsel %vm769, 1, 0
  %v834 = vsel %vm770, 1, 0
  %v835 = vsel %vm771, 1, 0
  %v836 = vsel %vm772, 1, 0
  %v837 = vsel %vm773, 1, 0
  %v838 = vsel %vm774, 1, 0
  %v839 = vsel %vm775, 1, 0
  %v840 = vsel %vm776, 1, 0
  %v841 = vsel %vm777, 1, 0
  %v842 = vsel %vm778, 1, 0
  %v843 = vsel %vm779, 1, 0
  %v844 = vsel %vm780, 1, 0
  %v845 = vsel %vm781, 1, 0
  %v846 = vsel %vm782, 1, 0
  %v847 = vsel %vm783, 1, 0
  %v848 = vsel %vm784, 1, 0
  %v849 = vsel %vm785, 1, 0
  %v850 = vsel %vm786, 1, 0
  %v851 = vsel %vm787, 1, 0
  %v852 = vsel %vm788, 1, 0
  %v853 = vsel %vm789, 1, 0
  %v854 = vsel %vm790, 1, 0
  %v855 = vsel %vm791, 1, 0
  %v856 = vsel %vm792, 1, 0
  %v857 = vsel %vm793, 1, 0
  %v858 = vsel %vm794, 1, 0
  %v859 = vsel %vm795, 1, 0
  %v860 = vsel %vm796, 1, 0
  %v861 = vsel %vm797, 1, 0
  %v862 = vsel %vm798, 1, 0
  %v863 = vsel %vm799, 1, 0
  %v864 = vsel %vm800, 1, 0
  %v865 = vsel %vm801, 1, 0
  %vm866 = vcmp.eq.s32.totalorder %v802, 1
  %vm867 = vcmp.eq.s32.totalorder %v803, 1
  %vm868 = vcmp.eq.s32.totalorder %v804, 1
  %vm869 = vcmp.eq.s32.totalorder %v805, 1
  %vm870 = vcmp.eq.s32.totalorder %v806, 1
  %vm871 = vcmp.eq.s32.totalorder %v807, 1
  %vm872 = vcmp.eq.s32.totalorder %v808, 1
  %vm873 = vcmp.eq.s32.totalorder %v809, 1
  %vm874 = vcmp.eq.s32.totalorder %v810, 1
  %vm875 = vcmp.eq.s32.totalorder %v811, 1
  %vm876 = vcmp.eq.s32.totalorder %v812, 1
  %vm877 = vcmp.eq.s32.totalorder %v813, 1
  %vm878 = vcmp.eq.s32.totalorder %v814, 1
  %vm879 = vcmp.eq.s32.totalorder %v815, 1
  %vm880 = vcmp.eq.s32.totalorder %v816, 1
  %vm881 = vcmp.eq.s32.totalorder %v817, 1
  %vm882 = vcmp.eq.s32.totalorder %v818, 1
  %vm883 = vcmp.eq.s32.totalorder %v819, 1
  %vm884 = vcmp.eq.s32.totalorder %v820, 1
  %vm885 = vcmp.eq.s32.totalorder %v821, 1
  %vm886 = vcmp.eq.s32.totalorder %v822, 1
  %vm887 = vcmp.eq.s32.totalorder %v823, 1
  %vm888 = vcmp.eq.s32.totalorder %v824, 1
  %vm889 = vcmp.eq.s32.totalorder %v825, 1
  %vm890 = vcmp.eq.s32.totalorder %v826, 1
  %vm891 = vcmp.eq.s32.totalorder %v827, 1
  %vm892 = vcmp.eq.s32.totalorder %v828, 1
  %vm893 = vcmp.eq.s32.totalorder %v829, 1
  %vm894 = vcmp.eq.s32.totalorder %v830, 1
  %vm895 = vcmp.eq.s32.totalorder %v831, 1
  %vm896 = vcmp.eq.s32.totalorder %v832, 1
  %vm897 = vcmp.eq.s32.totalorder %v833, 1
  %vm898 = vcmp.eq.s32.totalorder %v834, 1
  %vm899 = vcmp.eq.s32.totalorder %v835, 1
  %vm900 = vcmp.eq.s32.totalorder %v836, 1
  %vm901 = vcmp.eq.s32.totalorder %v837, 1
  %vm902 = vcmp.eq.s32.totalorder %v838, 1
  %vm903 = vcmp.eq.s32.totalorder %v839, 1
  %vm904 = vcmp.eq.s32.totalorder %v840, 1
  %vm905 = vcmp.eq.s32.totalorder %v841, 1
  %vm906 = vcmp.eq.s32.totalorder %v842, 1
  %vm907 = vcmp.eq.s32.totalorder %v843, 1
  %vm908 = vcmp.eq.s32.totalorder %v844, 1
  %vm909 = vcmp.eq.s32.totalorder %v845, 1
  %vm910 = vcmp.eq.s32.totalorder %v846, 1
  %vm911 = vcmp.eq.s32.totalorder %v847, 1
  %vm912 = vcmp.eq.s32.totalorder %v848, 1
  %vm913 = vcmp.eq.s32.totalorder %v849, 1
  %vm914 = vcmp.eq.s32.totalorder %v850, 1
  %vm915 = vcmp.eq.s32.totalorder %v851, 1
  %vm916 = vcmp.eq.s32.totalorder %v852, 1
  %vm917 = vcmp.eq.s32.totalorder %v853, 1
  %vm918 = vcmp.eq.s32.totalorder %v854, 1
  %vm919 = vcmp.eq.s32.totalorder %v855, 1
  %vm920 = vcmp.eq.s32.totalorder %v856, 1
  %vm921 = vcmp.eq.s32.totalorder %v857, 1
  %vm922 = vcmp.eq.s32.totalorder %v858, 1
  %vm923 = vcmp.eq.s32.totalorder %v859, 1
  %vm924 = vcmp.eq.s32.totalorder %v860, 1
  %vm925 = vcmp.eq.s32.totalorder %v861, 1
  %vm926 = vcmp.eq.s32.totalorder %v862, 1
  %vm927 = vcmp.eq.s32.totalorder %v863, 1
  %vm928 = vcmp.eq.s32.totalorder %v864, 1
  %vm929 = vcmp.eq.s32.totalorder %v865, 1
  %vm930 = vmpackc.low %vm866, %vm866
  %vm931 = vmpackc.low %vm867, %vm867
  %vm932 = vmpackc.low %vm868, %vm868
  %vm933 = vmpackc.low %vm869, %vm869
  %vm934 = vmpackc.low %vm870, %vm870
  %vm935 = vmpackc.low %vm871, %vm871
  %vm936 = vmpackc.low %vm872, %vm872
  %vm937 = vmpackc.low %vm873, %vm873
  %vm938 = vmpackc.low %vm874, %vm874
  %vm939 = vmpackc.low %vm875, %vm875
  %vm940 = vmpackc.low %vm876, %vm876
  %vm941 = vmpackc.low %vm877, %vm877
  %vm942 = vmpackc.low %vm878, %vm878
  %vm943 = vmpackc.low %vm879, %vm879
  %vm944 = vmpackc.low %vm880, %vm880
  %vm945 = vmpackc.low %vm881, %vm881
  %vm946 = vmpackc.low %vm882, %vm882
  %vm947 = vmpackc.low %vm883, %vm883
  %vm948 = vmpackc.low %vm884, %vm884
  %vm949 = vmpackc.low %vm885, %vm885
  %vm950 = vmpackc.low %vm886, %vm886
  %vm951 = vmpackc.low %vm887, %vm887
  %vm952 = vmpackc.low %vm888, %vm888
  %vm953 = vmpackc.low %vm889, %vm889
  %vm954 = vmpackc.low %vm890, %vm890
  %vm955 = vmpackc.low %vm891, %vm891
  %vm956 = vmpackc.low %vm892, %vm892
  %vm957 = vmpackc.low %vm893, %vm893
  %vm958 = vmpackc.low %vm894, %vm894
  %vm959 = vmpackc.low %vm895, %vm895
  %vm960 = vmpackc.low %vm896, %vm896
  %vm961 = vmpackc.low %vm897, %vm897
  %vm962 = vmpackc.low %vm898, %vm898
  %vm963 = vmpackc.low %vm899, %vm899
  %vm964 = vmpackc.low %vm900, %vm900
  %vm965 = vmpackc.low %vm901, %vm901
  %vm966 = vmpackc.low %vm902, %vm902
  %vm967 = vmpackc.low %vm903, %vm903
  %vm968 = vmpackc.low %vm904, %vm904
  %vm969 = vmpackc.low %vm905, %vm905
  %vm970 = vmpackc.low %vm906, %vm906
  %vm971 = vmpackc.low %vm907, %vm907
  %vm972 = vmpackc.low %vm908, %vm908
  %vm973 = vmpackc.low %vm909, %vm909
  %vm974 = vmpackc.low %vm910, %vm910
  %vm975 = vmpackc.low %vm911, %vm911
  %vm976 = vmpackc.low %vm912, %vm912
  %vm977 = vmpackc.low %vm913, %vm913
  %vm978 = vmpackc.low %vm914, %vm914
  %vm979 = vmpackc.low %vm915, %vm915
  %vm980 = vmpackc.low %vm916, %vm916
  %vm981 = vmpackc.low %vm917, %vm917
  %vm982 = vmpackc.low %vm918, %vm918
  %vm983 = vmpackc.low %vm919, %vm919
  %vm984 = vmpackc.low %vm920, %vm920
  %vm985 = vmpackc.low %vm921, %vm921
  %vm986 = vmpackc.low %vm922, %vm922
  %vm987 = vmpackc.low %vm923, %vm923
  %vm988 = vmpackc.low %vm924, %vm924
  %vm989 = vmpackc.low %vm925, %vm925
  %vm990 = vmpackc.low %vm926, %vm926
  %vm991 = vmpackc.low %vm927, %vm927
  %vm992 = vmpackc.low %vm928, %vm928
  %vm993 = vmpackc.low %vm929, %vm929
  %v994 = vsel %vm930, 65537, 0
  %v995 = vsel %vm931, 65537, 0
  %v996 = vsel %vm932, 65537, 0
  %v997 = vsel %vm933, 65537, 0
  %v998 = vsel %vm934, 65537, 0
  %v999 = vsel %vm935, 65537, 0
  %v1000 = vsel %vm936, 65537, 0
  %v1001 = vsel %vm937, 65537, 0
  %v1002 = vsel %vm938, 65537, 0
  %v1003 = vsel %vm939, 65537, 0
  %v1004 = vsel %vm940, 65537, 0
  %v1005 = vsel %vm941, 65537, 0
  %v1006 = vsel %vm942, 65537, 0
  %v1007 = vsel %vm943, 65537, 0
  %v1008 = vsel %vm944, 65537, 0
  %v1009 = vsel %vm945, 65537, 0
  %v1010 = vsel %vm946, 65537, 0
  %v1011 = vsel %vm947, 65537, 0
  %v1012 = vsel %vm948, 65537, 0
  %v1013 = vsel %vm949, 65537, 0
  %v1014 = vsel %vm950, 65537, 0
  %v1015 = vsel %vm951, 65537, 0
  %v1016 = vsel %vm952, 65537, 0
  %v1017 = vsel %vm953, 65537, 0
  %v1018 = vsel %vm954, 65537, 0
  %v1019 = vsel %vm955, 65537, 0
  %v1020 = vsel %vm956, 65537, 0
  %v1021 = vsel %vm957, 65537, 0
  %v1022 = vsel %vm958, 65537, 0
  %v1023 = vsel %vm959, 65537, 0
  %v1024 = vsel %vm960, 65537, 0
  %v1025 = vsel %vm961, 65537, 0
  %v1026 = vsel %vm962, 65537, 0
  %v1027 = vsel %vm963, 65537, 0
  %v1028 = vsel %vm964, 65537, 0
  %v1029 = vsel %vm965, 65537, 0
  %v1030 = vsel %vm966, 65537, 0
  %v1031 = vsel %vm967, 65537, 0
  %v1032 = vsel %vm968, 65537, 0
  %v1033 = vsel %vm969, 65537, 0
  %v1034 = vsel %vm970, 65537, 0
  %v1035 = vsel %vm971, 65537, 0
  %v1036 = vsel %vm972, 65537, 0
  %v1037 = vsel %vm973, 65537, 0
  %v1038 = vsel %vm974, 65537, 0
  %v1039 = vsel %vm975, 65537, 0
  %v1040 = vsel %vm976, 65537, 0
  %v1041 = vsel %vm977, 65537, 0
  %v1042 = vsel %vm978, 65537, 0
  %v1043 = vsel %vm979, 65537, 0
  %v1044 = vsel %vm980, 65537, 0
  %v1045 = vsel %vm981, 65537, 0
  %v1046 = vsel %vm982, 65537, 0
  %v1047 = vsel %vm983, 65537, 0
  %v1048 = vsel %vm984, 65537, 0
  %v1049 = vsel %vm985, 65537, 0
  %v1050 = vsel %vm986, 65537, 0
  %v1051 = vsel %vm987, 65537, 0
  %v1052 = vsel %vm988, 65537, 0
  %v1053 = vsel %vm989, 65537, 0
  %v1054 = vsel %vm990, 65537, 0
  %v1055 = vsel %vm991, 65537, 0
  %v1056 = vsel %vm992, 65537, 0
  %v1057 = vsel %vm993, 65537, 0
  %vm1058 = vsmask.f32 3328
  %vm1059 = vsmask.f32 7440
  %vm1060 = vmor %vm1058, %vm1059
  %v1062 = vshll.u32 %v994, 16
  %v1064 = vrot.slane %v1062, 5
  %v1065 = vshrl.u32 %v994, 16
  %v1067 = vrot.slane %v1065, 4
  %v1068 = vor.u32 %v1067, %v1064
  %v1069 = vrot.slane %v1068, 4
  %v1071 = vshll.u32 %v995, 16
  %v1073 = vrot.slane %v1071, 5
  %v1074 = vsel %vm1060, %v1069, %v1073
  %v1075 = vshrl.u32 %v995, 16
  %v1077 = vrot.slane %v1075, 4
  %v1078 = vor.u32 %v1077, %v1073
  %v1079 = vrot.slane %v1078, 4
  %v1081 = vshll.u32 %v996, 16
  %v1083 = vrot.slane %v1081, 5
  %v1084 = vsel %vm1060, %v1079, %v1083
  %v1085 = vshrl.u32 %v996, 16
  %v1087 = vrot.slane %v1085, 4
  %v1088 = vor.u32 %v1087, %v1083
  %v1089 = vrot.slane %v1088, 4
  %v1091 = vshll.u32 %v997, 16
  %v1093 = vrot.slane %v1091, 5
  %v1094 = vsel %vm1060, %v1089, %v1093
  %v1095 = vshrl.u32 %v997, 16
  %v1097 = vrot.slane %v1095, 4
  %v1098 = vor.u32 %v1097, %v1093
  %v1099 = vrot.slane %v1098, 4
  %v1101 = vshll.u32 %v998, 16
  %v1103 = vrot.slane %v1101, 5
  %v1104 = vsel %vm1060, %v1099, %v1103
  %v1105 = vshrl.u32 %v998, 16
  %v1107 = vrot.slane %v1105, 4
  %v1108 = vor.u32 %v1107, %v1103
  %v1109 = vrot.slane %v1108, 4
  %v1111 = vshll.u32 %v999, 16
  %v1113 = vrot.slane %v1111, 5
  %v1114 = vsel %vm1060, %v1109, %v1113
  %v1115 = vshrl.u32 %v999, 16
  %v1117 = vrot.slane %v1115, 4
  %v1118 = vor.u32 %v1117, %v1113
  %v1119 = vrot.slane %v1118, 4
  %v1121 = vshll.u32 %v1000, 16
  %v1123 = vrot.slane %v1121, 5
  %v1124 = vsel %vm1060, %v1119, %v1123
  %v1125 = vshrl.u32 %v1000, 16
  %v1127 = vrot.slane %v1125, 4
  %v1128 = vor.u32 %v1127, %v1123
  %v1129 = vrot.slane %v1128, 4
  %v1131 = vshll.u32 %v1001, 16
  %v1133 = vrot.slane %v1131, 5
  %v1134 = vsel %vm1060, %v1129, %v1133
  %v1135 = vshrl.u32 %v1001, 16
  %v1137 = vrot.slane %v1135, 4
  %v1138 = vor.u32 %v1137, %v1133
  %v1139 = vrot.slane %v1138, 4
  %v1141 = vshll.u32 %v1002, 16
  %v1143 = vrot.slane %v1141, 5
  %v1144 = vsel %vm1060, %v1139, %v1143
  %v1145 = vshrl.u32 %v1002, 16
  %v1147 = vrot.slane %v1145, 4
  %v1148 = vor.u32 %v1147, %v1143
  %v1149 = vrot.slane %v1148, 4
  %v1151 = vshll.u32 %v1003, 16
  %v1153 = vrot.slane %v1151, 5
  %v1154 = vsel %vm1060, %v1149, %v1153
  %v1155 = vshrl.u32 %v1003, 16
  %v1157 = vrot.slane %v1155, 4
  %v1158 = vor.u32 %v1157, %v1153
  %v1159 = vrot.slane %v1158, 4
  %v1161 = vshll.u32 %v1004, 16
  %v1163 = vrot.slane %v1161, 5
  %v1164 = vsel %vm1060, %v1159, %v1163
  %v1165 = vshrl.u32 %v1004, 16
  %v1167 = vrot.slane %v1165, 4
  %v1168 = vor.u32 %v1167, %v1163
  %v1169 = vrot.slane %v1168, 4
  %v1171 = vshll.u32 %v1005, 16
  %v1173 = vrot.slane %v1171, 5
  %v1174 = vsel %vm1060, %v1169, %v1173
  %v1175 = vshrl.u32 %v1005, 16
  %v1177 = vrot.slane %v1175, 4
  %v1178 = vor.u32 %v1177, %v1173
  %v1179 = vrot.slane %v1178, 4
  %v1181 = vshll.u32 %v1006, 16
  %v1183 = vrot.slane %v1181, 5
  %v1184 = vsel %vm1060, %v1179, %v1183
  %v1185 = vshrl.u32 %v1006, 16
  %v1187 = vrot.slane %v1185, 4
  %v1188 = vor.u32 %v1187, %v1183
  %v1189 = vrot.slane %v1188, 4
  %v1191 = vshll.u32 %v1007, 16
  %v1193 = vrot.slane %v1191, 5
  %v1194 = vsel %vm1060, %v1189, %v1193
  %v1195 = vshrl.u32 %v1007, 16
  %v1197 = vrot.slane %v1195, 4
  %v1198 = vor.u32 %v1197, %v1193
  %v1199 = vrot.slane %v1198, 4
  %v1201 = vshll.u32 %v1008, 16
  %v1203 = vrot.slane %v1201, 5
  %v1204 = vsel %vm1060, %v1199, %v1203
  %v1205 = vshrl.u32 %v1008, 16
  %v1207 = vrot.slane %v1205, 4
  %v1208 = vor.u32 %v1207, %v1203
  %v1209 = vrot.slane %v1208, 4
  %v1211 = vshll.u32 %v1009, 16
  %v1213 = vrot.slane %v1211, 5
  %v1214 = vsel %vm1060, %v1209, %v1213
  %v1215 = vshrl.u32 %v1009, 16
  %v1217 = vrot.slane %v1215, 4
  %v1218 = vor.u32 %v1217, %v1213
  %v1219 = vrot.slane %v1218, 4
  %v1221 = vshll.u32 %v1010, 16
  %v1223 = vrot.slane %v1221, 5
  %v1224 = vsel %vm1060, %v1219, %v1223
  %v1225 = vshrl.u32 %v1010, 16
  %v1227 = vrot.slane %v1225, 4
  %v1228 = vor.u32 %v1227, %v1223
  %v1229 = vrot.slane %v1228, 4
  %v1231 = vshll.u32 %v1011, 16
  %v1233 = vrot.slane %v1231, 5
  %v1234 = vsel %vm1060, %v1229, %v1233
  %v1235 = vshrl.u32 %v1011, 16
  %v1237 = vrot.slane %v1235, 4
  %v1238 = vor.u32 %v1237, %v1233
  %v1239 = vrot.slane %v1238, 4
  %v1241 = vshll.u32 %v1012, 16
  %v1243 = vrot.slane %v1241, 5
  %v1244 = vsel %vm1060, %v1239, %v1243
  %v1245 = vshrl.u32 %v1012, 16
  %v1247 = vrot.slane %v1245, 4
  %v1248 = vor.u32 %v1247, %v1243
  %v1249 = vrot.slane %v1248, 4
  %v1251 = vshll.u32 %v1013, 16
  %v1253 = vrot.slane %v1251, 5
  %v1254 = vsel %vm1060, %v1249, %v1253
  %v1255 = vshrl.u32 %v1013, 16
  %v1257 = vrot.slane %v1255, 4
  %v1258 = vor.u32 %v1257, %v1253
  %v1259 = vrot.slane %v1258, 4
  %v1261 = vshll.u32 %v1014, 16
  %v1263 = vrot.slane %v1261, 5
  %v1264 = vsel %vm1060, %v1259, %v1263
  %v1265 = vshrl.u32 %v1014, 16
  %v1267 = vrot.slane %v1265, 4
  %v1268 = vor.u32 %v1267, %v1263
  %v1269 = vrot.slane %v1268, 4
  %v1271 = vshll.u32 %v1015, 16
  %v1273 = vrot.slane %v1271, 5
  %v1274 = vsel %vm1060, %v1269, %v1273
  %v1275 = vshrl.u32 %v1015, 16
  %v1277 = vrot.slane %v1275, 4
  %v1278 = vor.u32 %v1277, %v1273
  %v1279 = vrot.slane %v1278, 4
  %v1281 = vshll.u32 %v1016, 16
  %v1283 = vrot.slane %v1281, 5
  %v1284 = vsel %vm1060, %v1279, %v1283
  %v1285 = vshrl.u32 %v1016, 16
  %v1287 = vrot.slane %v1285, 4
  %v1288 = vor.u32 %v1287, %v1283
  %v1289 = vrot.slane %v1288, 4
  %v1291 = vshll.u32 %v1017, 16
  %v1293 = vrot.slane %v1291, 5
  %v1294 = vsel %vm1060, %v1289, %v1293
  %v1295 = vshrl.u32 %v1017, 16
  %v1297 = vrot.slane %v1295, 4
  %v1298 = vor.u32 %v1297, %v1293
  %v1299 = vrot.slane %v1298, 4
  %v1301 = vshll.u32 %v1018, 16
  %v1303 = vrot.slane %v1301, 5
  %v1304 = vsel %vm1060, %v1299, %v1303
  %v1305 = vshrl.u32 %v1018, 16
  %v1307 = vrot.slane %v1305, 4
  %v1308 = vor.u32 %v1307, %v1303
  %v1309 = vrot.slane %v1308, 4
  %v1311 = vshll.u32 %v1019, 16
  %v1313 = vrot.slane %v1311, 5
  %v1314 = vsel %vm1060, %v1309, %v1313
  %v1315 = vshrl.u32 %v1019, 16
  %v1317 = vrot.slane %v1315, 4
  %v1318 = vor.u32 %v1317, %v1313
  %v1319 = vrot.slane %v1318, 4
  %v1321 = vshll.u32 %v1020, 16
  %v1323 = vrot.slane %v1321, 5
  %v1324 = vsel %vm1060, %v1319, %v1323
  %v1325 = vshrl.u32 %v1020, 16
  %v1327 = vrot.slane %v1325, 4
  %v1328 = vor.u32 %v1327, %v1323
  %v1329 = vrot.slane %v1328, 4
  %v1331 = vshll.u32 %v1021, 16
  %v1333 = vrot.slane %v1331, 5
  %v1334 = vsel %vm1060, %v1329, %v1333
  %v1335 = vshrl.u32 %v1021, 16
  %v1337 = vrot.slane %v1335, 4
  %v1338 = vor.u32 %v1337, %v1333
  %v1339 = vrot.slane %v1338, 4
  %v1341 = vshll.u32 %v1022, 16
  %v1343 = vrot.slane %v1341, 5
  %v1344 = vsel %vm1060, %v1339, %v1343
  %v1345 = vshrl.u32 %v1022, 16
  %v1347 = vrot.slane %v1345, 4
  %v1348 = vor.u32 %v1347, %v1343
  %v1349 = vrot.slane %v1348, 4
  %v1351 = vshll.u32 %v1023, 16
  %v1353 = vrot.slane %v1351, 5
  %v1354 = vsel %vm1060, %v1349, %v1353
  %v1355 = vshrl.u32 %v1023, 16
  %v1357 = vrot.slane %v1355, 4
  %v1358 = vor.u32 %v1357, %v1353
  %v1359 = vrot.slane %v1358, 4
  %v1361 = vshll.u32 %v1024, 16
  %v1363 = vrot.slane %v1361, 5
  %v1364 = vsel %vm1060, %v1359, %v1363
  %v1365 = vshrl.u32 %v1024, 16
  %v1367 = vrot.slane %v1365, 4
  %v1368 = vor.u32 %v1367, %v1363
  %v1369 = vrot.slane %v1368, 4
  %v1371 = vshll.u32 %v1025, 16
  %v1373 = vrot.slane %v1371, 5
  %v1374 = vsel %vm1060, %v1369, %v1373
  %v1375 = vshrl.u32 %v1025, 16
  %v1377 = vrot.slane %v1375, 4
  %v1378 = vor.u32 %v1377, %v1373
  %v1379 = vrot.slane %v1378, 4
  %v1381 = vshll.u32 %v1026, 16
  %v1383 = vrot.slane %v1381, 5
  %v1384 = vsel %vm1060, %v1379, %v1383
  %v1385 = vshrl.u32 %v1026, 16
  %v1387 = vrot.slane %v1385, 4
  %v1388 = vor.u32 %v1387, %v1383
  %v1389 = vrot.slane %v1388, 4
  %v1391 = vshll.u32 %v1027, 16
  %v1393 = vrot.slane %v1391, 5
  %v1394 = vsel %vm1060, %v1389, %v1393
  %v1395 = vshrl.u32 %v1027, 16
  %v1397 = vrot.slane %v1395, 4
  %v1398 = vor.u32 %v1397, %v1393
  %v1399 = vrot.slane %v1398, 4
  %v1401 = vshll.u32 %v1028, 16
  %v1403 = vrot.slane %v1401, 5
  %v1404 = vsel %vm1060, %v1399, %v1403
  %v1405 = vshrl.u32 %v1028, 16
  %v1407 = vrot.slane %v1405, 4
  %v1408 = vor.u32 %v1407, %v1403
  %v1409 = vrot.slane %v1408, 4
  %v1411 = vshll.u32 %v1029, 16
  %v1413 = vrot.slane %v1411, 5
  %v1414 = vsel %vm1060, %v1409, %v1413
  %v1415 = vshrl.u32 %v1029, 16
  %v1417 = vrot.slane %v1415, 4
  %v1418 = vor.u32 %v1417, %v1413
  %v1419 = vrot.slane %v1418, 4
  %v1421 = vshll.u32 %v1030, 16
  %v1423 = vrot.slane %v1421, 5
  %v1424 = vsel %vm1060, %v1419, %v1423
  %v1425 = vshrl.u32 %v1030, 16
  %v1427 = vrot.slane %v1425, 4
  %v1428 = vor.u32 %v1427, %v1423
  %v1429 = vrot.slane %v1428, 4
  %v1431 = vshll.u32 %v1031, 16
  %v1433 = vrot.slane %v1431, 5
  %v1434 = vsel %vm1060, %v1429, %v1433
  %v1435 = vshrl.u32 %v1031, 16
  %v1437 = vrot.slane %v1435, 4
  %v1438 = vor.u32 %v1437, %v1433
  %v1439 = vrot.slane %v1438, 4
  %v1441 = vshll.u32 %v1032, 16
  %v1443 = vrot.slane %v1441, 5
  %v1444 = vsel %vm1060, %v1439, %v1443
  %v1445 = vshrl.u32 %v1032, 16
  %v1447 = vrot.slane %v1445, 4
  %v1448 = vor.u32 %v1447, %v1443
  %v1449 = vrot.slane %v1448, 4
  %v1451 = vshll.u32 %v1033, 16
  %v1453 = vrot.slane %v1451, 5
  %v1454 = vsel %vm1060, %v1449, %v1453
  %v1455 = vshrl.u32 %v1033, 16
  %v1457 = vrot.slane %v1455, 4
  %v1458 = vor.u32 %v1457, %v1453
  %v1459 = vrot.slane %v1458, 4
  %v1461 = vshll.u32 %v1034, 16
  %v1463 = vrot.slane %v1461, 5
  %v1464 = vsel %vm1060, %v1459, %v1463
  %v1465 = vshrl.u32 %v1034, 16
  %v1467 = vrot.slane %v1465, 4
  %v1468 = vor.u32 %v1467, %v1463
  %v1469 = vrot.slane %v1468, 4
  %v1471 = vshll.u32 %v1035, 16
  %v1473 = vrot.slane %v1471, 5
  %v1474 = vsel %vm1060, %v1469, %v1473
  %v1475 = vshrl.u32 %v1035, 16
  %v1477 = vrot.slane %v1475, 4
  %v1478 = vor.u32 %v1477, %v1473
  %v1479 = vrot.slane %v1478, 4
  %v1481 = vshll.u32 %v1036, 16
  %v1483 = vrot.slane %v1481, 5
  %v1484 = vsel %vm1060, %v1479, %v1483
  %v1485 = vshrl.u32 %v1036, 16
  %v1487 = vrot.slane %v1485, 4
  %v1488 = vor.u32 %v1487, %v1483
  %v1489 = vrot.slane %v1488, 4
  %v1491 = vshll.u32 %v1037, 16
  %v1493 = vrot.slane %v1491, 5
  %v1494 = vsel %vm1060, %v1489, %v1493
  %v1495 = vshrl.u32 %v1037, 16
  %v1497 = vrot.slane %v1495, 4
  %v1498 = vor.u32 %v1497, %v1493
  %v1499 = vrot.slane %v1498, 4
  %v1501 = vshll.u32 %v1038, 16
  %v1503 = vrot.slane %v1501, 5
  %v1504 = vsel %vm1060, %v1499, %v1503
  %v1505 = vshrl.u32 %v1038, 16
  %v1507 = vrot.slane %v1505, 4
  %v1508 = vor.u32 %v1507, %v1503
  %v1509 = vrot.slane %v1508, 4
  %v1511 = vshll.u32 %v1039, 16
  %v1513 = vrot.slane %v1511, 5
  %v1514 = vsel %vm1060, %v1509, %v1513
  %v1515 = vshrl.u32 %v1039, 16
  %v1517 = vrot.slane %v1515, 4
  %v1518 = vor.u32 %v1517, %v1513
  %v1519 = vrot.slane %v1518, 4
  %v1521 = vshll.u32 %v1040, 16
  %v1523 = vrot.slane %v1521, 5
  %v1524 = vsel %vm1060, %v1519, %v1523
  %v1525 = vshrl.u32 %v1040, 16
  %v1527 = vrot.slane %v1525, 4
  %v1528 = vor.u32 %v1527, %v1523
  %v1529 = vrot.slane %v1528, 4
  %v1531 = vshll.u32 %v1041, 16
  %v1533 = vrot.slane %v1531, 5
  %v1534 = vsel %vm1060, %v1529, %v1533
  %v1535 = vshrl.u32 %v1041, 16
  %v1537 = vrot.slane %v1535, 4
  %v1538 = vor.u32 %v1537, %v1533
  %v1539 = vrot.slane %v1538, 4
  %v1541 = vshll.u32 %v1042, 16
  %v1543 = vrot.slane %v1541, 5
  %v1544 = vsel %vm1060, %v1539, %v1543
  %v1545 = vshrl.u32 %v1042, 16
  %v1547 = vrot.slane %v1545, 4
  %v1548 = vor.u32 %v1547, %v1543
  %v1549 = vrot.slane %v1548, 4
  %v1551 = vshll.u32 %v1043, 16
  %v1553 = vrot.slane %v1551, 5
  %v1554 = vsel %vm1060, %v1549, %v1553
  %v1555 = vshrl.u32 %v1043, 16
  %v1557 = vrot.slane %v1555, 4
  %v1558 = vor.u32 %v1557, %v1553
  %v1559 = vrot.slane %v1558, 4
  %v1561 = vshll.u32 %v1044, 16
  %v1563 = vrot.slane %v1561, 5
  %v1564 = vsel %vm1060, %v1559, %v1563
  %v1565 = vshrl.u32 %v1044, 16
  %v1567 = vrot.slane %v1565, 4
  %v1568 = vor.u32 %v1567, %v1563
  %v1569 = vrot.slane %v1568, 4
  %v1571 = vshll.u32 %v1045, 16
  %v1573 = vrot.slane %v1571, 5
  %v1574 = vsel %vm1060, %v1569, %v1573
  %v1575 = vshrl.u32 %v1045, 16
  %v1577 = vrot.slane %v1575, 4
  %v1578 = vor.u32 %v1577, %v1573
  %v1579 = vrot.slane %v1578, 4
  %v1581 = vshll.u32 %v1046, 16
  %v1583 = vrot.slane %v1581, 5
  %v1584 = vsel %vm1060, %v1579, %v1583
  %v1585 = vshrl.u32 %v1046, 16
  %v1587 = vrot.slane %v1585, 4
  %v1588 = vor.u32 %v1587, %v1583
  %v1589 = vrot.slane %v1588, 4
  %v1591 = vshll.u32 %v1047, 16
  %v1593 = vrot.slane %v1591, 5
  %v1594 = vsel %vm1060, %v1589, %v1593
  %v1595 = vshrl.u32 %v1047, 16
  %v1597 = vrot.slane %v1595, 4
  %v1598 = vor.u32 %v1597, %v1593
  %v1599 = vrot.slane %v1598, 4
  %v1601 = vshll.u32 %v1048, 16
  %v1603 = vrot.slane %v1601, 5
  %v1604 = vsel %vm1060, %v1599, %v1603
  %v1605 = vshrl.u32 %v1048, 16
  %v1607 = vrot.slane %v1605, 4
  %v1608 = vor.u32 %v1607, %v1603
  %v1609 = vrot.slane %v1608, 4
  %v1611 = vshll.u32 %v1049, 16
  %v1613 = vrot.slane %v1611, 5
  %v1614 = vsel %vm1060, %v1609, %v1613
  %v1615 = vshrl.u32 %v1049, 16
  %v1617 = vrot.slane %v1615, 4
  %v1618 = vor.u32 %v1617, %v1613
  %v1619 = vrot.slane %v1618, 4
  %v1621 = vshll.u32 %v1050, 16
  %v1623 = vrot.slane %v1621, 5
  %v1624 = vsel %vm1060, %v1619, %v1623
  %v1625 = vshrl.u32 %v1050, 16
  %v1627 = vrot.slane %v1625, 4
  %v1628 = vor.u32 %v1627, %v1623
  %v1629 = vrot.slane %v1628, 4
  %v1631 = vshll.u32 %v1051, 16
  %v1633 = vrot.slane %v1631, 5
  %v1634 = vsel %vm1060, %v1629, %v1633
  %v1635 = vshrl.u32 %v1051, 16
  %v1637 = vrot.slane %v1635, 4
  %v1638 = vor.u32 %v1637, %v1633
  %v1639 = vrot.slane %v1638, 4
  %v1641 = vshll.u32 %v1052, 16
  %v1643 = vrot.slane %v1641, 5
  %v1644 = vsel %vm1060, %v1639, %v1643
  %v1645 = vshrl.u32 %v1052, 16
  %v1647 = vrot.slane %v1645, 4
  %v1648 = vor.u32 %v1647, %v1643
  %v1649 = vrot.slane %v1648, 4
  %v1651 = vshll.u32 %v1053, 16
  %v1653 = vrot.slane %v1651, 5
  %v1654 = vsel %vm1060, %v1649, %v1653
  %v1655 = vshrl.u32 %v1053, 16
  %v1657 = vrot.slane %v1655, 4
  %v1658 = vor.u32 %v1657, %v1653
  %v1659 = vrot.slane %v1658, 4
  %v1661 = vshll.u32 %v1054, 16
  %v1663 = vrot.slane %v1661, 5
  %v1664 = vsel %vm1060, %v1659, %v1663
  %v1665 = vshrl.u32 %v1054, 16
  %v1667 = vrot.slane %v1665, 4
  %v1668 = vor.u32 %v1667, %v1663
  %v1669 = vrot.slane %v1668, 4
  %v1671 = vshll.u32 %v1055, 16
  %v1673 = vrot.slane %v1671, 5
  %v1674 = vsel %vm1060, %v1669, %v1673
  %v1675 = vshrl.u32 %v1055, 16
  %v1677 = vrot.slane %v1675, 4
  %v1678 = vor.u32 %v1677, %v1673
  %v1679 = vrot.slane %v1678, 4
  %v1681 = vshll.u32 %v1056, 16
  %v1683 = vrot.slane %v1681, 5
  %v1684 = vsel %vm1060, %v1679, %v1683
  %v1685 = vshrl.u32 %v1056, 16
  %v1687 = vrot.slane %v1685, 4
  %v1688 = vor.u32 %v1687, %v1683
  %v1689 = vrot.slane %v1688, 4
  %v1691 = vshll.u32 %v1057, 16
  %v1693 = vrot.slane %v1691, 5
  %v1694 = vsel %vm1060, %v1689, %v1693
  %v1695 = vshrl.u32 %v1057, 16
  %v1697 = vrot.slane %v1695, 4
  %v1698 = vor.u32 %v1697, %v1693
  %v1699 = vrot.slane %v1698, 4
  %v1700 = vunpack.c.l.b16 %v1064
  %v1701 = vunpack.c.h.b16 %v1064
  %v1702 = vunpack.c.l.b16 0
  %v1703 = vunpack.c.h.b16 0
  %vm1704 = vcmp.ne.s32.totalorder %v1700, %v1702
  %vm1705 = vcmp.ne.s32.totalorder %v1701, %v1703
  %vm1706 = vmpackc.low %vm1705, %vm1704
  %v1707 = vunpack.c.l.b16 %v1074
  %v1708 = vunpack.c.h.b16 %v1074
  %v1709 = vunpack.c.l.b16 0
  %v1710 = vunpack.c.h.b16 0
  %vm1711 = vcmp.ne.s32.totalorder %v1707, %v1709
  %vm1712 = vcmp.ne.s32.totalorder %v1708, %v1710
  %vm1713 = vmpackc.low %vm1712, %vm1711
  %v1714 = vunpack.c.l.b16 %v1084
  %v1715 = vunpack.c.h.b16 %v1084
  %v1716 = vunpack.c.l.b16 0
  %v1717 = vunpack.c.h.b16 0
  %vm1718 = vcmp.ne.s32.totalorder %v1714, %v1716
  %vm1719 = vcmp.ne.s32.totalorder %v1715, %v1717
  %vm1720 = vmpackc.low %vm1719, %vm1718
  %v1721 = vunpack.c.l.b16 %v1094
  %v1722 = vunpack.c.h.b16 %v1094
  %v1723 = vunpack.c.l.b16 0
  %v1724 = vunpack.c.h.b16 0
  %vm1725 = vcmp.ne.s32.totalorder %v1721, %v1723
  %vm1726 = vcmp.ne.s32.totalorder %v1722, %v1724
  %vm1727 = vmpackc.low %vm1726, %vm1725
  %v1728 = vunpack.c.l.b16 %v1104
  %v1729 = vunpack.c.h.b16 %v1104
  %v1730 = vunpack.c.l.b16 0
  %v1731 = vunpack.c.h.b16 0
  %vm1732 = vcmp.ne.s32.totalorder %v1728, %v1730
  %vm1733 = vcmp.ne.s32.totalorder %v1729, %v1731
  %vm1734 = vmpackc.low %vm1733, %vm1732
  %v1735 = vunpack.c.l.b16 %v1114
  %v1736 = vunpack.c.h.b16 %v1114
  %v1737 = vunpack.c.l.b16 0
  %v1738 = vunpack.c.h.b16 0
  %vm1739 = vcmp.ne.s32.totalorder %v1735, %v1737
  %vm1740 = vcmp.ne.s32.totalorder %v1736, %v1738
  %vm1741 = vmpackc.low %vm1740, %vm1739
  %v1742 = vunpack.c.l.b16 %v1124
  %v1743 = vunpack.c.h.b16 %v1124
  %v1744 = vunpack.c.l.b16 0
  %v1745 = vunpack.c.h.b16 0
  %vm1746 = vcmp.ne.s32.totalorder %v1742, %v1744
  %vm1747 = vcmp.ne.s32.totalorder %v1743, %v1745
  %vm1748 = vmpackc.low %vm1747, %vm1746
  %v1749 = vunpack.c.l.b16 %v1134
  %v1750 = vunpack.c.h.b16 %v1134
  %v1751 = vunpack.c.l.b16 0
  %v1752 = vunpack.c.h.b16 0
  %vm1753 = vcmp.ne.s32.totalorder %v1749, %v1751
  %vm1754 = vcmp.ne.s32.totalorder %v1750, %v1752
  %vm1755 = vmpackc.low %vm1754, %vm1753
  %v1756 = vunpack.c.l.b16 %v1144
  %v1757 = vunpack.c.h.b16 %v1144
  %v1758 = vunpack.c.l.b16 0
  %v1759 = vunpack.c.h.b16 0
  %vm1760 = vcmp.ne.s32.totalorder %v1756, %v1758
  %vm1761 = vcmp.ne.s32.totalorder %v1757, %v1759
  %vm1762 = vmpackc.low %vm1761, %vm1760
  %v1763 = vunpack.c.l.b16 %v1154
  %v1764 = vunpack.c.h.b16 %v1154
  %v1765 = vunpack.c.l.b16 0
  %v1766 = vunpack.c.h.b16 0
  %vm1767 = vcmp.ne.s32.totalorder %v1763, %v1765
  %vm1768 = vcmp.ne.s32.totalorder %v1764, %v1766
  %vm1769 = vmpackc.low %vm1768, %vm1767
  %v1770 = vunpack.c.l.b16 %v1164
  %v1771 = vunpack.c.h.b16 %v1164
  %v1772 = vunpack.c.l.b16 0
  %v1773 = vunpack.c.h.b16 0
  %vm1774 = vcmp.ne.s32.totalorder %v1770, %v1772
  %vm1775 = vcmp.ne.s32.totalorder %v1771, %v1773
  %vm1776 = vmpackc.low %vm1775, %vm1774
  %v1777 = vunpack.c.l.b16 %v1174
  %v1778 = vunpack.c.h.b16 %v1174
  %v1779 = vunpack.c.l.b16 0
  %v1780 = vunpack.c.h.b16 0
  %vm1781 = vcmp.ne.s32.totalorder %v1777, %v1779
  %vm1782 = vcmp.ne.s32.totalorder %v1778, %v1780
  %vm1783 = vmpackc.low %vm1782, %vm1781
  %v1784 = vunpack.c.l.b16 %v1184
  %v1785 = vunpack.c.h.b16 %v1184
  %v1786 = vunpack.c.l.b16 0
  %v1787 = vunpack.c.h.b16 0
  %vm1788 = vcmp.ne.s32.totalorder %v1784, %v1786
  %vm1789 = vcmp.ne.s32.totalorder %v1785, %v1787
  %vm1790 = vmpackc.low %vm1789, %vm1788
  %v1791 = vunpack.c.l.b16 %v1194
  %v1792 = vunpack.c.h.b16 %v1194
  %v1793 = vunpack.c.l.b16 0
  %v1794 = vunpack.c.h.b16 0
  %vm1795 = vcmp.ne.s32.totalorder %v1791, %v1793
  %vm1796 = vcmp.ne.s32.totalorder %v1792, %v1794
  %vm1797 = vmpackc.low %vm1796, %vm1795
  %v1798 = vunpack.c.l.b16 %v1204
  %v1799 = vunpack.c.h.b16 %v1204
  %v1800 = vunpack.c.l.b16 0
  %v1801 = vunpack.c.h.b16 0
  %vm1802 = vcmp.ne.s32.totalorder %v1798, %v1800
  %vm1803 = vcmp.ne.s32.totalorder %v1799, %v1801
  %vm1804 = vmpackc.low %vm1803, %vm1802
  %v1805 = vunpack.c.l.b16 %v1214
  %v1806 = vunpack.c.h.b16 %v1214
  %v1807 = vunpack.c.l.b16 0
  %v1808 = vunpack.c.h.b16 0
  %vm1809 = vcmp.ne.s32.totalorder %v1805, %v1807
  %vm1810 = vcmp.ne.s32.totalorder %v1806, %v1808
  %vm1811 = vmpackc.low %vm1810, %vm1809
  %v1812 = vunpack.c.l.b16 %v1224
  %v1813 = vunpack.c.h.b16 %v1224
  %v1814 = vunpack.c.l.b16 0
  %v1815 = vunpack.c.h.b16 0
  %vm1816 = vcmp.ne.s32.totalorder %v1812, %v1814
  %vm1817 = vcmp.ne.s32.totalorder %v1813, %v1815
  %vm1818 = vmpackc.low %vm1817, %vm1816
  %v1819 = vunpack.c.l.b16 %v1234
  %v1820 = vunpack.c.h.b16 %v1234
  %v1821 = vunpack.c.l.b16 0
  %v1822 = vunpack.c.h.b16 0
  %vm1823 = vcmp.ne.s32.totalorder %v1819, %v1821
  %vm1824 = vcmp.ne.s32.totalorder %v1820, %v1822
  %vm1825 = vmpackc.low %vm1824, %vm1823
  %v1826 = vunpack.c.l.b16 %v1244
  %v1827 = vunpack.c.h.b16 %v1244
  %v1828 = vunpack.c.l.b16 0
  %v1829 = vunpack.c.h.b16 0
  %vm1830 = vcmp.ne.s32.totalorder %v1826, %v1828
  %vm1831 = vcmp.ne.s32.totalorder %v1827, %v1829
  %vm1832 = vmpackc.low %vm1831, %vm1830
  %v1833 = vunpack.c.l.b16 %v1254
  %v1834 = vunpack.c.h.b16 %v1254
  %v1835 = vunpack.c.l.b16 0
  %v1836 = vunpack.c.h.b16 0
  %vm1837 = vcmp.ne.s32.totalorder %v1833, %v1835
  %vm1838 = vcmp.ne.s32.totalorder %v1834, %v1836
  %vm1839 = vmpackc.low %vm1838, %vm1837
  %v1840 = vunpack.c.l.b16 %v1264
  %v1841 = vunpack.c.h.b16 %v1264
  %v1842 = vunpack.c.l.b16 0
  %v1843 = vunpack.c.h.b16 0
  %vm1844 = vcmp.ne.s32.totalorder %v1840, %v1842
  %vm1845 = vcmp.ne.s32.totalorder %v1841, %v1843
  %vm1846 = vmpackc.low %vm1845, %vm1844
  %v1847 = vunpack.c.l.b16 %v1274
  %v1848 = vunpack.c.h.b16 %v1274
  %v1849 = vunpack.c.l.b16 0
  %v1850 = vunpack.c.h.b16 0
  %vm1851 = vcmp.ne.s32.totalorder %v1847, %v1849
  %vm1852 = vcmp.ne.s32.totalorder %v1848, %v1850
  %vm1853 = vmpackc.low %vm1852, %vm1851
  %v1854 = vunpack.c.l.b16 %v1284
  %v1855 = vunpack.c.h.b16 %v1284
  %v1856 = vunpack.c.l.b16 0
  %v1857 = vunpack.c.h.b16 0
  %vm1858 = vcmp.ne.s32.totalorder %v1854, %v1856
  %vm1859 = vcmp.ne.s32.totalorder %v1855, %v1857
  %vm1860 = vmpackc.low %vm1859, %vm1858
  %v1861 = vunpack.c.l.b16 %v1294
  %v1862 = vunpack.c.h.b16 %v1294
  %v1863 = vunpack.c.l.b16 0
  %v1864 = vunpack.c.h.b16 0
  %vm1865 = vcmp.ne.s32.totalorder %v1861, %v1863
  %vm1866 = vcmp.ne.s32.totalorder %v1862, %v1864
  %vm1867 = vmpackc.low %vm1866, %vm1865
  %v1868 = vunpack.c.l.b16 %v1304
  %v1869 = vunpack.c.h.b16 %v1304
  %v1870 = vunpack.c.l.b16 0
  %v1871 = vunpack.c.h.b16 0
  %vm1872 = vcmp.ne.s32.totalorder %v1868, %v1870
  %vm1873 = vcmp.ne.s32.totalorder %v1869, %v1871
  %vm1874 = vmpackc.low %vm1873, %vm1872
  %v1875 = vunpack.c.l.b16 %v1314
  %v1876 = vunpack.c.h.b16 %v1314
  %v1877 = vunpack.c.l.b16 0
  %v1878 = vunpack.c.h.b16 0
  %vm1879 = vcmp.ne.s32.totalorder %v1875, %v1877
  %vm1880 = vcmp.ne.s32.totalorder %v1876, %v1878
  %vm1881 = vmpackc.low %vm1880, %vm1879
  %v1882 = vunpack.c.l.b16 %v1324
  %v1883 = vunpack.c.h.b16 %v1324
  %v1884 = vunpack.c.l.b16 0
  %v1885 = vunpack.c.h.b16 0
  %vm1886 = vcmp.ne.s32.totalorder %v1882, %v1884
  %vm1887 = vcmp.ne.s32.totalorder %v1883, %v1885
  %vm1888 = vmpackc.low %vm1887, %vm1886
  %v1889 = vunpack.c.l.b16 %v1334
  %v1890 = vunpack.c.h.b16 %v1334
  %v1891 = vunpack.c.l.b16 0
  %v1892 = vunpack.c.h.b16 0
  %vm1893 = vcmp.ne.s32.totalorder %v1889, %v1891
  %vm1894 = vcmp.ne.s32.totalorder %v1890, %v1892
  %vm1895 = vmpackc.low %vm1894, %vm1893
  %v1896 = vunpack.c.l.b16 %v1344
  %v1897 = vunpack.c.h.b16 %v1344
  %v1898 = vunpack.c.l.b16 0
  %v1899 = vunpack.c.h.b16 0
  %vm1900 = vcmp.ne.s32.totalorder %v1896, %v1898
  %vm1901 = vcmp.ne.s32.totalorder %v1897, %v1899
  %vm1902 = vmpackc.low %vm1901, %vm1900
  %v1903 = vunpack.c.l.b16 %v1354
  %v1904 = vunpack.c.h.b16 %v1354
  %v1905 = vunpack.c.l.b16 0
  %v1906 = vunpack.c.h.b16 0
  %vm1907 = vcmp.ne.s32.totalorder %v1903, %v1905
  %vm1908 = vcmp.ne.s32.totalorder %v1904, %v1906
  %vm1909 = vmpackc.low %vm1908, %vm1907
  %v1910 = vunpack.c.l.b16 %v1364
  %v1911 = vunpack.c.h.b16 %v1364
  %v1912 = vunpack.c.l.b16 0
  %v1913 = vunpack.c.h.b16 0
  %vm1914 = vcmp.ne.s32.totalorder %v1910, %v1912
  %vm1915 = vcmp.ne.s32.totalorder %v1911, %v1913
  %vm1916 = vmpackc.low %vm1915, %vm1914
  %v1917 = vunpack.c.l.b16 %v1374
  %v1918 = vunpack.c.h.b16 %v1374
  %v1919 = vunpack.c.l.b16 0
  %v1920 = vunpack.c.h.b16 0
  %vm1921 = vcmp.ne.s32.totalorder %v1917, %v1919
  %vm1922 = vcmp.ne.s32.totalorder %v1918, %v1920
  %vm1923 = vmpackc.low %vm1922, %vm1921
  %v1924 = vunpack.c.l.b16 %v1384
  %v1925 = vunpack.c.h.b16 %v1384
  %v1926 = vunpack.c.l.b16 0
  %v1927 = vunpack.c.h.b16 0
  %vm1928 = vcmp.ne.s32.totalorder %v1924, %v1926
  %vm1929 = vcmp.ne.s32.totalorder %v1925, %v1927
  %vm1930 = vmpackc.low %vm1929, %vm1928
  %v1931 = vunpack.c.l.b16 %v1394
  %v1932 = vunpack.c.h.b16 %v1394
  %v1933 = vunpack.c.l.b16 0
  %v1934 = vunpack.c.h.b16 0
  %vm1935 = vcmp.ne.s32.totalorder %v1931, %v1933
  %vm1936 = vcmp.ne.s32.totalorder %v1932, %v1934
  %vm1937 = vmpackc.low %vm1936, %vm1935
  %v1938 = vunpack.c.l.b16 %v1404
  %v1939 = vunpack.c.h.b16 %v1404
  %v1940 = vunpack.c.l.b16 0
  %v1941 = vunpack.c.h.b16 0
  %vm1942 = vcmp.ne.s32.totalorder %v1938, %v1940
  %vm1943 = vcmp.ne.s32.totalorder %v1939, %v1941
  %vm1944 = vmpackc.low %vm1943, %vm1942
  %v1945 = vunpack.c.l.b16 %v1414
  %v1946 = vunpack.c.h.b16 %v1414
  %v1947 = vunpack.c.l.b16 0
  %v1948 = vunpack.c.h.b16 0
  %vm1949 = vcmp.ne.s32.totalorder %v1945, %v1947
  %vm1950 = vcmp.ne.s32.totalorder %v1946, %v1948
  %vm1951 = vmpackc.low %vm1950, %vm1949
  %v1952 = vunpack.c.l.b16 %v1424
  %v1953 = vunpack.c.h.b16 %v1424
  %v1954 = vunpack.c.l.b16 0
  %v1955 = vunpack.c.h.b16 0
  %vm1956 = vcmp.ne.s32.totalorder %v1952, %v1954
  %vm1957 = vcmp.ne.s32.totalorder %v1953, %v1955
  %vm1958 = vmpackc.low %vm1957, %vm1956
  %v1959 = vunpack.c.l.b16 %v1434
  %v1960 = vunpack.c.h.b16 %v1434
  %v1961 = vunpack.c.l.b16 0
  %v1962 = vunpack.c.h.b16 0
  %vm1963 = vcmp.ne.s32.totalorder %v1959, %v1961
  %vm1964 = vcmp.ne.s32.totalorder %v1960, %v1962
  %vm1965 = vmpackc.low %vm1964, %vm1963
  %v1966 = vunpack.c.l.b16 %v1444
  %v1967 = vunpack.c.h.b16 %v1444
  %v1968 = vunpack.c.l.b16 0
  %v1969 = vunpack.c.h.b16 0
  %vm1970 = vcmp.ne.s32.totalorder %v1966, %v1968
  %vm1971 = vcmp.ne.s32.totalorder %v1967, %v1969
  %vm1972 = vmpackc.low %vm1971, %vm1970
  %v1973 = vunpack.c.l.b16 %v1454
  %v1974 = vunpack.c.h.b16 %v1454
  %v1975 = vunpack.c.l.b16 0
  %v1976 = vunpack.c.h.b16 0
  %vm1977 = vcmp.ne.s32.totalorder %v1973, %v1975
  %vm1978 = vcmp.ne.s32.totalorder %v1974, %v1976
  %vm1979 = vmpackc.low %vm1978, %vm1977
  %v1980 = vunpack.c.l.b16 %v1464
  %v1981 = vunpack.c.h.b16 %v1464
  %v1982 = vunpack.c.l.b16 0
  %v1983 = vunpack.c.h.b16 0
  %vm1984 = vcmp.ne.s32.totalorder %v1980, %v1982
  %vm1985 = vcmp.ne.s32.totalorder %v1981, %v1983
  %vm1986 = vmpackc.low %vm1985, %vm1984
  %v1987 = vunpack.c.l.b16 %v1474
  %v1988 = vunpack.c.h.b16 %v1474
  %v1989 = vunpack.c.l.b16 0
  %v1990 = vunpack.c.h.b16 0
  %vm1991 = vcmp.ne.s32.totalorder %v1987, %v1989
  %vm1992 = vcmp.ne.s32.totalorder %v1988, %v1990
  %vm1993 = vmpackc.low %vm1992, %vm1991
  %v1994 = vunpack.c.l.b16 %v1484
  %v1995 = vunpack.c.h.b16 %v1484
  %v1996 = vunpack.c.l.b16 0
  %v1997 = vunpack.c.h.b16 0
  %vm1998 = vcmp.ne.s32.totalorder %v1994, %v1996
  %vm1999 = vcmp.ne.s32.totalorder %v1995, %v1997
  %vm2000 = vmpackc.low %vm1999, %vm1998
  %v2001 = vunpack.c.l.b16 %v1494
  %v2002 = vunpack.c.h.b16 %v1494
  %v2003 = vunpack.c.l.b16 0
  %v2004 = vunpack.c.h.b16 0
  %vm2005 = vcmp.ne.s32.totalorder %v2001, %v2003
  %vm2006 = vcmp.ne.s32.totalorder %v2002, %v2004
  %vm2007 = vmpackc.low %vm2006, %vm2005
  %v2008 = vunpack.c.l.b16 %v1504
  %v2009 = vunpack.c.h.b16 %v1504
  %v2010 = vunpack.c.l.b16 0
  %v2011 = vunpack.c.h.b16 0
  %vm2012 = vcmp.ne.s32.totalorder %v2008, %v2010
  %vm2013 = vcmp.ne.s32.totalorder %v2009, %v2011
  %vm2014 = vmpackc.low %vm2013, %vm2012
  %v2015 = vunpack.c.l.b16 %v1514
  %v2016 = vunpack.c.h.b16 %v1514
  %v2017 = vunpack.c.l.b16 0
  %v2018 = vunpack.c.h.b16 0
  %vm2019 = vcmp.ne.s32.totalorder %v2015, %v2017
  %vm2020 = vcmp.ne.s32.totalorder %v2016, %v2018
  %vm2021 = vmpackc.low %vm2020, %vm2019
  %v2022 = vunpack.c.l.b16 %v1524
  %v2023 = vunpack.c.h.b16 %v1524
  %v2024 = vunpack.c.l.b16 0
  %v2025 = vunpack.c.h.b16 0
  %vm2026 = vcmp.ne.s32.totalorder %v2022, %v2024
  %vm2027 = vcmp.ne.s32.totalorder %v2023, %v2025
  %vm2028 = vmpackc.low %vm2027, %vm2026
  %v2029 = vunpack.c.l.b16 %v1534
  %v2030 = vunpack.c.h.b16 %v1534
  %v2031 = vunpack.c.l.b16 0
  %v2032 = vunpack.c.h.b16 0
  %vm2033 = vcmp.ne.s32.totalorder %v2029, %v2031
  %vm2034 = vcmp.ne.s32.totalorder %v2030, %v2032
  %vm2035 = vmpackc.low %vm2034, %vm2033
  %v2036 = vunpack.c.l.b16 %v1544
  %v2037 = vunpack.c.h.b16 %v1544
  %v2038 = vunpack.c.l.b16 0
  %v2039 = vunpack.c.h.b16 0
  %vm2040 = vcmp.ne.s32.totalorder %v2036, %v2038
  %vm2041 = vcmp.ne.s32.totalorder %v2037, %v2039
  %vm2042 = vmpackc.low %vm2041, %vm2040
  %v2043 = vunpack.c.l.b16 %v1554
  %v2044 = vunpack.c.h.b16 %v1554
  %v2045 = vunpack.c.l.b16 0
  %v2046 = vunpack.c.h.b16 0
  %vm2047 = vcmp.ne.s32.totalorder %v2043, %v2045
  %vm2048 = vcmp.ne.s32.totalorder %v2044, %v2046
  %vm2049 = vmpackc.low %vm2048, %vm2047
  %v2050 = vunpack.c.l.b16 %v1564
  %v2051 = vunpack.c.h.b16 %v1564
  %v2052 = vunpack.c.l.b16 0
  %v2053 = vunpack.c.h.b16 0
  %vm2054 = vcmp.ne.s32.totalorder %v2050, %v2052
  %vm2055 = vcmp.ne.s32.totalorder %v2051, %v2053
  %vm2056 = vmpackc.low %vm2055, %vm2054
  %v2057 = vunpack.c.l.b16 %v1574
  %v2058 = vunpack.c.h.b16 %v1574
  %v2059 = vunpack.c.l.b16 0
  %v2060 = vunpack.c.h.b16 0
  %vm2061 = vcmp.ne.s32.totalorder %v2057, %v2059
  %vm2062 = vcmp.ne.s32.totalorder %v2058, %v2060
  %vm2063 = vmpackc.low %vm2062, %vm2061
  %v2064 = vunpack.c.l.b16 %v1584
  %v2065 = vunpack.c.h.b16 %v1584
  %v2066 = vunpack.c.l.b16 0
  %v2067 = vunpack.c.h.b16 0
  %vm2068 = vcmp.ne.s32.totalorder %v2064, %v2066
  %vm2069 = vcmp.ne.s32.totalorder %v2065, %v2067
  %vm2070 = vmpackc.low %vm2069, %vm2068
  %v2071 = vunpack.c.l.b16 %v1594
  %v2072 = vunpack.c.h.b16 %v1594
  %v2073 = vunpack.c.l.b16 0
  %v2074 = vunpack.c.h.b16 0
  %vm2075 = vcmp.ne.s32.totalorder %v2071, %v2073
  %vm2076 = vcmp.ne.s32.totalorder %v2072, %v2074
  %vm2077 = vmpackc.low %vm2076, %vm2075
  %v2078 = vunpack.c.l.b16 %v1604
  %v2079 = vunpack.c.h.b16 %v1604
  %v2080 = vunpack.c.l.b16 0
  %v2081 = vunpack.c.h.b16 0
  %vm2082 = vcmp.ne.s32.totalorder %v2078, %v2080
  %vm2083 = vcmp.ne.s32.totalorder %v2079, %v2081
  %vm2084 = vmpackc.low %vm2083, %vm2082
  %v2085 = vunpack.c.l.b16 %v1614
  %v2086 = vunpack.c.h.b16 %v1614
  %v2087 = vunpack.c.l.b16 0
  %v2088 = vunpack.c.h.b16 0
  %vm2089 = vcmp.ne.s32.totalorder %v2085, %v2087
  %vm2090 = vcmp.ne.s32.totalorder %v2086, %v2088
  %vm2091 = vmpackc.low %vm2090, %vm2089
  %v2092 = vunpack.c.l.b16 %v1624
  %v2093 = vunpack.c.h.b16 %v1624
  %v2094 = vunpack.c.l.b16 0
  %v2095 = vunpack.c.h.b16 0
  %vm2096 = vcmp.ne.s32.totalorder %v2092, %v2094
  %vm2097 = vcmp.ne.s32.totalorder %v2093, %v2095
  %vm2098 = vmpackc.low %vm2097, %vm2096
  %v2099 = vunpack.c.l.b16 %v1634
  %v2100 = vunpack.c.h.b16 %v1634
  %v2101 = vunpack.c.l.b16 0
  %v2102 = vunpack.c.h.b16 0
  %vm2103 = vcmp.ne.s32.totalorder %v2099, %v2101
  %vm2104 = vcmp.ne.s32.totalorder %v2100, %v2102
  %vm2105 = vmpackc.low %vm2104, %vm2103
  %v2106 = vunpack.c.l.b16 %v1644
  %v2107 = vunpack.c.h.b16 %v1644
  %v2108 = vunpack.c.l.b16 0
  %v2109 = vunpack.c.h.b16 0
  %vm2110 = vcmp.ne.s32.totalorder %v2106, %v2108
  %vm2111 = vcmp.ne.s32.totalorder %v2107, %v2109
  %vm2112 = vmpackc.low %vm2111, %vm2110
  %v2113 = vunpack.c.l.b16 %v1654
  %v2114 = vunpack.c.h.b16 %v1654
  %v2115 = vunpack.c.l.b16 0
  %v2116 = vunpack.c.h.b16 0
  %vm2117 = vcmp.ne.s32.totalorder %v2113, %v2115
  %vm2118 = vcmp.ne.s32.totalorder %v2114, %v2116
  %vm2119 = vmpackc.low %vm2118, %vm2117
  %v2120 = vunpack.c.l.b16 %v1664
  %v2121 = vunpack.c.h.b16 %v1664
  %v2122 = vunpack.c.l.b16 0
  %v2123 = vunpack.c.h.b16 0
  %vm2124 = vcmp.ne.s32.totalorder %v2120, %v2122
  %vm2125 = vcmp.ne.s32.totalorder %v2121, %v2123
  %vm2126 = vmpackc.low %vm2125, %vm2124
  %v2127 = vunpack.c.l.b16 %v1674
  %v2128 = vunpack.c.h.b16 %v1674
  %v2129 = vunpack.c.l.b16 0
  %v2130 = vunpack.c.h.b16 0
  %vm2131 = vcmp.ne.s32.totalorder %v2127, %v2129
  %vm2132 = vcmp.ne.s32.totalorder %v2128, %v2130
  %vm2133 = vmpackc.low %vm2132, %vm2131
  %v2134 = vunpack.c.l.b16 %v1684
  %v2135 = vunpack.c.h.b16 %v1684
  %v2136 = vunpack.c.l.b16 0
  %v2137 = vunpack.c.h.b16 0
  %vm2138 = vcmp.ne.s32.totalorder %v2134, %v2136
  %vm2139 = vcmp.ne.s32.totalorder %v2135, %v2137
  %vm2140 = vmpackc.low %vm2139, %vm2138
  %v2141 = vunpack.c.l.b16 %v1694
  %v2142 = vunpack.c.h.b16 %v1694
  %v2143 = vunpack.c.l.b16 0
  %v2144 = vunpack.c.h.b16 0
  %vm2145 = vcmp.ne.s32.totalorder %v2141, %v2143
  %vm2146 = vcmp.ne.s32.totalorder %v2142, %v2144
  %vm2147 = vmpackc.low %vm2146, %vm2145
  %v2148 = vunpack.c.l.b16 %v1699
  %v2149 = vunpack.c.h.b16 %v1699
  %v2150 = vunpack.c.l.b16 0
  %v2151 = vunpack.c.h.b16 0
  %vm2152 = vcmp.ne.s32.totalorder %v2148, %v2150
  %vm2153 = vcmp.ne.s32.totalorder %v2149, %v2151
  %vm2154 = vmpackc.low %vm2153, %vm2152
  %v2155 = vsel %vm1706, %v673, 0
  %v2156 = vsel %vm1713, %v674, 0
  %v2157 = vsel %vm1720, %v675, 0
  %v2158 = vsel %vm1727, %v676, 0
  %v2159 = vsel %vm1734, %v677, 0
  %v2160 = vsel %vm1741, %v678, 0
  %v2161 = vsel %vm1748, %v679, 0
  %v2162 = vsel %vm1755, %v680, 0
  %v2163 = vsel %vm1762, %v681, 0
  %v2164 = vsel %vm1769, %v682, 0
  %v2165 = vsel %vm1776, %v683, 0
  %v2166 = vsel %vm1783, %v684, 0
  %v2167 = vsel %vm1790, %v685, 0
  %v2168 = vsel %vm1797, %v686, 0
  %v2169 = vsel %vm1804, %v687, 0
  %v2170 = vsel %vm1811, %v688, 0
  %v2171 = vsel %vm1818, %v689, 0
  %v2172 = vsel %vm1825, %v690, 0
  %v2173 = vsel %vm1832, %v691, 0
  %v2174 = vsel %vm1839, %v692, 0
  %v2175 = vsel %vm1846, %v693, 0
  %v2176 = vsel %vm1853, %v694, 0
  %v2177 = vsel %vm1860, %v695, 0
  %v2178 = vsel %vm1867, %v696, 0
  %v2179 = vsel %vm1874, %v697, 0
  %v2180 = vsel %vm1881, %v698, 0
  %v2181 = vsel %vm1888, %v699, 0
  %v2182 = vsel %vm1895, %v700, 0
  %v2183 = vsel %vm1902, %v701, 0
  %v2184 = vsel %vm1909, %v702, 0
  %v2185 = vsel %vm1916, %v703, 0
  %v2186 = vsel %vm1923, %v704, 0
  %v2187 = vsel %vm1930, %v705, 0
  %v2188 = vsel %vm1937, %v706, 0
  %v2189 = vsel %vm1944, %v707, 0
  %v2190 = vsel %vm1951, %v708, 0
  %v2191 = vsel %vm1958, %v709, 0
  %v2192 = vsel %vm1965, %v710, 0
  %v2193 = vsel %vm1972, %v711, 0
  %v2194 = vsel %vm1979, %v712, 0
  %v2195 = vsel %vm1986, %v713, 0
  %v2196 = vsel %vm1993, %v714, 0
  %v2197 = vsel %vm2000, %v715, 0
  %v2198 = vsel %vm2007, %v716, 0
  %v2199 = vsel %vm2014, %v717, 0
  %v2200 = vsel %vm2021, %v718, 0
  %v2201 = vsel %vm2028, %v719, 0
  %v2202 = vsel %vm2035, %v720, 0
  %v2203 = vsel %vm2042, %v721, 0
  %v2204 = vsel %vm2049, %v722, 0
  %v2205 = vsel %vm2056, %v723, 0
  %v2206 = vsel %vm2063, %v724, 0
  %v2207 = vsel %vm2070, %v725, 0
  %v2208 = vsel %vm2077, %v726, 0
  %v2209 = vsel %vm2084, %v727, 0
  %v2210 = vsel %vm2091, %v728, 0
  %v2211 = vsel %vm2098, %v729, 0
  %v2212 = vsel %vm2105, %v730, 0
  %v2213 = vsel %vm2112, %v731, 0
  %v2214 = vsel %vm2119, %v732, 0
  %v2215 = vsel %vm2126, %v733, 0
  %v2216 = vsel %vm2133, %v734, 0
  %v2217 = vsel %vm2140, %v735, 0
  %v2218 = vsel %vm2147, %v736, 0
  %v2219 = vsel %vm2154, %v737, 0
  %v2220 = vsel %vm417, 1, 0
  %v2221 = vsel %vm418, 1, 0
  %v2222 = vsel %vm419, 1, 0
  %v2223 = vsel %vm420, 1, 0
  %v2224 = vsel %vm421, 1, 0
  %v2225 = vsel %vm422, 1, 0
  %v2226 = vsel %vm423, 1, 0
  %v2227 = vsel %vm424, 1, 0
  %v2228 = vsel %vm425, 1, 0
  %v2229 = vsel %vm426, 1, 0
  %v2230 = vsel %vm427, 1, 0
  %v2231 = vsel %vm428, 1, 0
  %v2232 = vsel %vm429, 1, 0
  %v2233 = vsel %vm430, 1, 0
  %v2234 = vsel %vm431, 1, 0
  %v2235 = vsel %vm432, 1, 0
  %v2236 = vsel %vm433, 1, 0
  %v2237 = vsel %vm434, 1, 0
  %v2238 = vsel %vm435, 1, 0
  %v2239 = vsel %vm436, 1, 0
  %v2240 = vsel %vm437, 1, 0
  %v2241 = vsel %vm438, 1, 0
  %v2242 = vsel %vm439, 1, 0
  %v2243 = vsel %vm440, 1, 0
  %v2244 = vsel %vm441, 1, 0
  %v2245 = vsel %vm442, 1, 0
  %v2246 = vsel %vm443, 1, 0
  %v2247 = vsel %vm444, 1, 0
  %v2248 = vsel %vm445, 1, 0
  %v2249 = vsel %vm446, 1, 0
  %v2250 = vsel %vm447, 1, 0
  %v2251 = vsel %vm448, 1, 0
  %v2252 = vsel %vm449, 1, 0
  %v2253 = vsel %vm450, 1, 0
  %v2254 = vsel %vm451, 1, 0
  %v2255 = vsel %vm452, 1, 0
  %v2256 = vsel %vm453, 1, 0
  %v2257 = vsel %vm454, 1, 0
  %v2258 = vsel %vm455, 1, 0
  %v2259 = vsel %vm456, 1, 0
  %v2260 = vsel %vm457, 1, 0
  %v2261 = vsel %vm458, 1, 0
  %v2262 = vsel %vm459, 1, 0
  %v2263 = vsel %vm460, 1, 0
  %v2264 = vsel %vm461, 1, 0
  %v2265 = vsel %vm462, 1, 0
  %v2266 = vsel %vm463, 1, 0
  %v2267 = vsel %vm464, 1, 0
  %v2268 = vsel %vm465, 1, 0
  %v2269 = vsel %vm466, 1, 0
  %v2270 = vsel %vm467, 1, 0
  %v2271 = vsel %vm468, 1, 0
  %v2272 = vsel %vm469, 1, 0
  %v2273 = vsel %vm470, 1, 0
  %v2274 = vsel %vm471, 1, 0
  %v2275 = vsel %vm472, 1, 0
  %v2276 = vsel %vm473, 1, 0
  %v2277 = vsel %vm474, 1, 0
  %v2278 = vsel %vm475, 1, 0
  %v2279 = vsel %vm476, 1, 0
  %v2280 = vsel %vm477, 1, 0
  %v2281 = vsel %vm478, 1, 0
  %v2282 = vsel %vm479, 1, 0
  %v2283 = vsel %vm480, 1, 0
  %vm2284 = vcmp.eq.s32.totalorder %v2220, 1
  %vm2285 = vcmp.eq.s32.totalorder %v2221, 1
  %vm2286 = vcmp.eq.s32.totalorder %v2222, 1
  %vm2287 = vcmp.eq.s32.totalorder %v2223, 1
  %vm2288 = vcmp.eq.s32.totalorder %v2224, 1
  %vm2289 = vcmp.eq.s32.totalorder %v2225, 1
  %vm2290 = vcmp.eq.s32.totalorder %v2226, 1
  %vm2291 = vcmp.eq.s32.totalorder %v2227, 1
  %vm2292 = vcmp.eq.s32.totalorder %v2228, 1
  %vm2293 = vcmp.eq.s32.totalorder %v2229, 1
  %vm2294 = vcmp.eq.s32.totalorder %v2230, 1
  %vm2295 = vcmp.eq.s32.totalorder %v2231, 1
  %vm2296 = vcmp.eq.s32.totalorder %v2232, 1
  %vm2297 = vcmp.eq.s32.totalorder %v2233, 1
  %vm2298 = vcmp.eq.s32.totalorder %v2234, 1
  %vm2299 = vcmp.eq.s32.totalorder %v2235, 1
  %vm2300 = vcmp.eq.s32.totalorder %v2236, 1
  %vm2301 = vcmp.eq.s32.totalorder %v2237, 1
  %vm2302 = vcmp.eq.s32.totalorder %v2238, 1
  %vm2303 = vcmp.eq.s32.totalorder %v2239, 1
  %vm2304 = vcmp.eq.s32.totalorder %v2240, 1
  %vm2305 = vcmp.eq.s32.totalorder %v2241, 1
  %vm2306 = vcmp.eq.s32.totalorder %v2242, 1
  %vm2307 = vcmp.eq.s32.totalorder %v2243, 1
  %vm2308 = vcmp.eq.s32.totalorder %v2244, 1
  %vm2309 = vcmp.eq.s32.totalorder %v2245, 1
  %vm2310 = vcmp.eq.s32.totalorder %v2246, 1
  %vm2311 = vcmp.eq.s32.totalorder %v2247, 1
  %vm2312 = vcmp.eq.s32.totalorder %v2248, 1
  %vm2313 = vcmp.eq.s32.totalorder %v2249, 1
  %vm2314 = vcmp.eq.s32.totalorder %v2250, 1
  %vm2315 = vcmp.eq.s32.totalorder %v2251, 1
  %vm2316 = vcmp.eq.s32.totalorder %v2252, 1
  %vm2317 = vcmp.eq.s32.totalorder %v2253, 1
  %vm2318 = vcmp.eq.s32.totalorder %v2254, 1
  %vm2319 = vcmp.eq.s32.totalorder %v2255, 1
  %vm2320 = vcmp.eq.s32.totalorder %v2256, 1
  %vm2321 = vcmp.eq.s32.totalorder %v2257, 1
  %vm2322 = vcmp.eq.s32.totalorder %v2258, 1
  %vm2323 = vcmp.eq.s32.totalorder %v2259, 1
  %vm2324 = vcmp.eq.s32.totalorder %v2260, 1
  %vm2325 = vcmp.eq.s32.totalorder %v2261, 1
  %vm2326 = vcmp.eq.s32.totalorder %v2262, 1
  %vm2327 = vcmp.eq.s32.totalorder %v2263, 1
  %vm2328 = vcmp.eq.s32.totalorder %v2264, 1
  %vm2329 = vcmp.eq.s32.totalorder %v2265, 1
  %vm2330 = vcmp.eq.s32.totalorder %v2266, 1
  %vm2331 = vcmp.eq.s32.totalorder %v2267, 1
  %vm2332 = vcmp.eq.s32.totalorder %v2268, 1
  %vm2333 = vcmp.eq.s32.totalorder %v2269, 1
  %vm2334 = vcmp.eq.s32.totalorder %v2270, 1
  %vm2335 = vcmp.eq.s32.totalorder %v2271, 1
  %vm2336 = vcmp.eq.s32.totalorder %v2272, 1
  %vm2337 = vcmp.eq.s32.totalorder %v2273, 1
  %vm2338 = vcmp.eq.s32.totalorder %v2274, 1
  %vm2339 = vcmp.eq.s32.totalorder %v2275, 1
  %vm2340 = vcmp.eq.s32.totalorder %v2276, 1
  %vm2341 = vcmp.eq.s32.totalorder %v2277, 1
  %vm2342 = vcmp.eq.s32.totalorder %v2278, 1
  %vm2343 = vcmp.eq.s32.totalorder %v2279, 1
  %vm2344 = vcmp.eq.s32.totalorder %v2280, 1
  %vm2345 = vcmp.eq.s32.totalorder %v2281, 1
  %vm2346 = vcmp.eq.s32.totalorder %v2282, 1
  %vm2347 = vcmp.eq.s32.totalorder %v2283, 1
  %vm2348 = vmpackc.low %vm2284, %vm2284
  %vm2349 = vmpackc.low %vm2285, %vm2285
  %vm2350 = vmpackc.low %vm2286, %vm2286
  %vm2351 = vmpackc.low %vm2287, %vm2287
  %vm2352 = vmpackc.low %vm2288, %vm2288
  %vm2353 = vmpackc.low %vm2289, %vm2289
  %vm2354 = vmpackc.low %vm2290, %vm2290
  %vm2355 = vmpackc.low %vm2291, %vm2291
  %vm2356 = vmpackc.low %vm2292, %vm2292
  %vm2357 = vmpackc.low %vm2293, %vm2293
  %vm2358 = vmpackc.low %vm2294, %vm2294
  %vm2359 = vmpackc.low %vm2295, %vm2295
  %vm2360 = vmpackc.low %vm2296, %vm2296
  %vm2361 = vmpackc.low %vm2297, %vm2297
  %vm2362 = vmpackc.low %vm2298, %vm2298
  %vm2363 = vmpackc.low %vm2299, %vm2299
  %vm2364 = vmpackc.low %vm2300, %vm2300
  %vm2365 = vmpackc.low %vm2301, %vm2301
  %vm2366 = vmpackc.low %vm2302, %vm2302
  %vm2367 = vmpackc.low %vm2303, %vm2303
  %vm2368 = vmpackc.low %vm2304, %vm2304
  %vm2369 = vmpackc.low %vm2305, %vm2305
  %vm2370 = vmpackc.low %vm2306, %vm2306
  %vm2371 = vmpackc.low %vm2307, %vm2307
  %vm2372 = vmpackc.low %vm2308, %vm2308
  %vm2373 = vmpackc.low %vm2309, %vm2309
  %vm2374 = vmpackc.low %vm2310, %vm2310
  %vm2375 = vmpackc.low %vm2311, %vm2311
  %vm2376 = vmpackc.low %vm2312, %vm2312
  %vm2377 = vmpackc.low %vm2313, %vm2313
  %vm2378 = vmpackc.low %vm2314, %vm2314
  %vm2379 = vmpackc.low %vm2315, %vm2315
  %vm2380 = vmpackc.low %vm2316, %vm2316
  %vm2381 = vmpackc.low %vm2317, %vm2317
  %vm2382 = vmpackc.low %vm2318, %vm2318
  %vm2383 = vmpackc.low %vm2319, %vm2319
  %vm2384 = vmpackc.low %vm2320, %vm2320
  %vm2385 = vmpackc.low %vm2321, %vm2321
  %vm2386 = vmpackc.low %vm2322, %vm2322
  %vm2387 = vmpackc.low %vm2323, %vm2323
  %vm2388 = vmpackc.low %vm2324, %vm2324
  %vm2389 = vmpackc.low %vm2325, %vm2325
  %vm2390 = vmpackc.low %vm2326, %vm2326
  %vm2391 = vmpackc.low %vm2327, %vm2327
  %vm2392 = vmpackc.low %vm2328, %vm2328
  %vm2393 = vmpackc.low %vm2329, %vm2329
  %vm2394 = vmpackc.low %vm2330, %vm2330
  %vm2395 = vmpackc.low %vm2331, %vm2331
  %vm2396 = vmpackc.low %vm2332, %vm2332
  %vm2397 = vmpackc.low %vm2333, %vm2333
  %vm2398 = vmpackc.low %vm2334, %vm2334
  %vm2399 = vmpackc.low %vm2335, %vm2335
  %vm2400 = vmpackc.low %vm2336, %vm2336
  %vm2401 = vmpackc.low %vm2337, %vm2337
  %vm2402 = vmpackc.low %vm2338, %vm2338
  %vm2403 = vmpackc.low %vm2339, %vm2339
  %vm2404 = vmpackc.low %vm2340, %vm2340
  %vm2405 = vmpackc.low %vm2341, %vm2341
  %vm2406 = vmpackc.low %vm2342, %vm2342
  %vm2407 = vmpackc.low %vm2343, %vm2343
  %vm2408 = vmpackc.low %vm2344, %vm2344
  %vm2409 = vmpackc.low %vm2345, %vm2345
  %vm2410 = vmpackc.low %vm2346, %vm2346
  %vm2411 = vmpackc.low %vm2347, %vm2347
  %v2412 = vsel %vm2348, %v674, 0
  %v2413 = vsel %vm2349, %v675, 0
  %v2414 = vsel %vm2350, %v676, 0
  %v2415 = vsel %vm2351, %v677, 0
  %v2416 = vsel %vm2352, %v678, 0
  %v2417 = vsel %vm2353, %v679, 0
  %v2418 = vsel %vm2354, %v680, 0
  %v2419 = vsel %vm2355, %v681, 0
  %v2420 = vsel %vm2356, %v682, 0
  %v2421 = vsel %vm2357, %v683, 0
  %v2422 = vsel %vm2358, %v684, 0
  %v2423 = vsel %vm2359, %v685, 0
  %v2424 = vsel %vm2360, %v686, 0
  %v2425 = vsel %vm2361, %v687, 0
  %v2426 = vsel %vm2362, %v688, 0
  %v2427 = vsel %vm2363, %v689, 0
  %v2428 = vsel %vm2364, %v690, 0
  %v2429 = vsel %vm2365, %v691, 0
  %v2430 = vsel %vm2366, %v692, 0
  %v2431 = vsel %vm2367, %v693, 0
  %v2432 = vsel %vm2368, %v694, 0
  %v2433 = vsel %vm2369, %v695, 0
  %v2434 = vsel %vm2370, %v696, 0
  %v2435 = vsel %vm2371, %v697, 0
  %v2436 = vsel %vm2372, %v698, 0
  %v2437 = vsel %vm2373, %v699, 0
  %v2438 = vsel %vm2374, %v700, 0
  %v2439 = vsel %vm2375, %v701, 0
  %v2440 = vsel %vm2376, %v702, 0
  %v2441 = vsel %vm2377, %v703, 0
  %v2442 = vsel %vm2378, %v704, 0
  %v2443 = vsel %vm2379, %v705, 0
  %v2444 = vsel %vm2380, %v706, 0
  %v2445 = vsel %vm2381, %v707, 0
  %v2446 = vsel %vm2382, %v708, 0
  %v2447 = vsel %vm2383, %v709, 0
  %v2448 = vsel %vm2384, %v710, 0
  %v2449 = vsel %vm2385, %v711, 0
  %v2450 = vsel %vm2386, %v712, 0
  %v2451 = vsel %vm2387, %v713, 0
  %v2452 = vsel %vm2388, %v714, 0
  %v2453 = vsel %vm2389, %v715, 0
  %v2454 = vsel %vm2390, %v716, 0
  %v2455 = vsel %vm2391, %v717, 0
  %v2456 = vsel %vm2392, %v718, 0
  %v2457 = vsel %vm2393, %v719, 0
  %v2458 = vsel %vm2394, %v720, 0
  %v2459 = vsel %vm2395, %v721, 0
  %v2460 = vsel %vm2396, %v722, 0
  %v2461 = vsel %vm2397, %v723, 0
  %v2462 = vsel %vm2398, %v724, 0
  %v2463 = vsel %vm2399, %v725, 0
  %v2464 = vsel %vm2400, %v726, 0
  %v2465 = vsel %vm2401, %v727, 0
  %v2466 = vsel %vm2402, %v728, 0
  %v2467 = vsel %vm2403, %v729, 0
  %v2468 = vsel %vm2404, %v730, 0
  %v2469 = vsel %vm2405, %v731, 0
  %v2470 = vsel %vm2406, %v732, 0
  %v2471 = vsel %vm2407, %v733, 0
  %v2472 = vsel %vm2408, %v734, 0
  %v2473 = vsel %vm2409, %v735, 0
  %v2474 = vsel %vm2410, %v736, 0
  %v2475 = vsel %vm2411, %v737, 0
  %v2476 = vld [vmem:[#allocation2 + $0x104] sm:$0x1]
  %vm2477 = vmand %vm417, %vm609
  %vm2478 = vmand %vm418, %vm610
  %vm2479 = vmand %vm419, %vm611
  %vm2480 = vmand %vm420, %vm612
  %vm2481 = vmand %vm421, %vm613
  %vm2482 = vmand %vm422, %vm614
  %vm2483 = vmand %vm423, %vm615
  %vm2484 = vmand %vm424, %vm616
  %vm2485 = vmand %vm425, %vm617
  %vm2486 = vmand %vm426, %vm618
  %vm2487 = vmand %vm427, %vm619
  %vm2488 = vmand %vm428, %vm620
  %vm2489 = vmand %vm429, %vm621
  %vm2490 = vmand %vm430, %vm622
  %vm2491 = vmand %vm431, %vm623
  %vm2492 = vmand %vm432, %vm624
  %vm2493 = vmand %vm433, %vm625
  %vm2494 = vmand %vm434, %vm626
  %vm2495 = vmand %vm435, %vm627
  %vm2496 = vmand %vm436, %vm628
  %vm2497 = vmand %vm437, %vm629
  %vm2498 = vmand %vm438, %vm630
  %vm2499 = vmand %vm439, %vm631
  %vm2500 = vmand %vm440, %vm632
  %vm2501 = vmand %vm441, %vm633
  %vm2502 = vmand %vm442, %vm634
  %vm2503 = vmand %vm443, %vm635
  %vm2504 = vmand %vm444, %vm636
  %vm2505 = vmand %vm445, %vm637
  %vm2506 = vmand %vm446, %vm638
  %vm2507 = vmand %vm447, %vm639
  %vm2508 = vmand %vm448, %vm640
  %vm2509 = vmand %vm449, %vm641
  %vm2510 = vmand %vm450, %vm642
  %vm2511 = vmand %vm451, %vm643
  %vm2512 = vmand %vm452, %vm644
  %vm2513 = vmand %vm453, %vm645
  %vm2514 = vmand %vm454, %vm646
  %vm2515 = vmand %vm455, %vm647
  %vm2516 = vmand %vm456, %vm648
  %vm2517 = vmand %vm457, %vm649
  %vm2518 = vmand %vm458, %vm650
  %vm2519 = vmand %vm459, %vm651
  %vm2520 = vmand %vm460, %vm652
  %vm2521 = vmand %vm461, %vm653
  %vm2522 = vmand %vm462, %vm654
  %vm2523 = vmand %vm463, %vm655
  %vm2524 = vmand %vm464, %vm656
  %vm2525 = vmand %vm465, %vm657
  %vm2526 = vmand %vm466, %vm658
  %vm2527 = vmand %vm467, %vm659
  %vm2528 = vmand %vm468, %vm660
  %vm2529 = vmand %vm469, %vm661
  %vm2530 = vmand %vm470, %vm662
  %vm2531 = vmand %vm471, %vm663
  %vm2532 = vmand %vm472, %vm664
  %vm2533 = vmand %vm473, %vm665
  %vm2534 = vmand %vm474, %vm666
  %vm2535 = vmand %vm475, %vm667
  %vm2536 = vmand %vm476, %vm668
  %vm2537 = vmand %vm477, %vm669
  %vm2538 = vmand %vm478, %vm670
  %vm2539 = vmand %vm479, %vm671
  %vm2540 = vmand %vm480, %vm672
  %v2541 = vsel %vm2477, 1, 0
  %v2542 = vsel %vm2478, 1, 0
  %v2543 = vsel %vm2479, 1, 0
  %v2544 = vsel %vm2480, 1, 0
  %v2545 = vsel %vm2481, 1, 0
  %v2546 = vsel %vm2482, 1, 0
  %v2547 = vsel %vm2483, 1, 0
  %v2548 = vsel %vm2484, 1, 0
  %v2549 = vsel %vm2485, 1, 0
  %v2550 = vsel %vm2486, 1, 0
  %v2551 = vsel %vm2487, 1, 0
  %v2552 = vsel %vm2488, 1, 0
  %v2553 = vsel %vm2489, 1, 0
  %v2554 = vsel %vm2490, 1, 0
  %v2555 = vsel %vm2491, 1, 0
  %v2556 = vsel %vm2492, 1, 0
  %v2557 = vsel %vm2493, 1, 0
  %v2558 = vsel %vm2494, 1, 0
  %v2559 = vsel %vm2495, 1, 0
  %v2560 = vsel %vm2496, 1, 0
  %v2561 = vsel %vm2497, 1, 0
  %v2562 = vsel %vm2498, 1, 0
  %v2563 = vsel %vm2499, 1, 0
  %v2564 = vsel %vm2500, 1, 0
  %v2565 = vsel %vm2501, 1, 0
  %v2566 = vsel %vm2502, 1, 0
  %v2567 = vsel %vm2503, 1, 0
  %v2568 = vsel %vm2504, 1, 0
  %v2569 = vsel %vm2505, 1, 0
  %v2570 = vsel %vm2506, 1, 0
  %v2571 = vsel %vm2507, 1, 0
  %v2572 = vsel %vm2508, 1, 0
  %v2573 = vsel %vm2509, 1, 0
  %v2574 = vsel %vm2510, 1, 0
  %v2575 = vsel %vm2511, 1, 0
  %v2576 = vsel %vm2512, 1, 0
  %v2577 = vsel %vm2513, 1, 0
  %v2578 = vsel %vm2514, 1, 0
  %v2579 = vsel %vm2515, 1, 0
  %v2580 = vsel %vm2516, 1, 0
  %v2581 = vsel %vm2517, 1, 0
  %v2582 = vsel %vm2518, 1, 0
  %v2583 = vsel %vm2519, 1, 0
  %v2584 = vsel %vm2520, 1, 0
  %v2585 = vsel %vm2521, 1, 0
  %v2586 = vsel %vm2522, 1, 0
  %v2587 = vsel %vm2523, 1, 0
  %v2588 = vsel %vm2524, 1, 0
  %v2589 = vsel %vm2525, 1, 0
  %v2590 = vsel %vm2526, 1, 0
  %v2591 = vsel %vm2527, 1, 0
  %v2592 = vsel %vm2528, 1, 0
  %v2593 = vsel %vm2529, 1, 0
  %v2594 = vsel %vm2530, 1, 0
  %v2595 = vsel %vm2531, 1, 0
  %v2596 = vsel %vm2532, 1, 0
  %v2597 = vsel %vm2533, 1, 0
  %v2598 = vsel %vm2534, 1, 0
  %v2599 = vsel %vm2535, 1, 0
  %v2600 = vsel %vm2536, 1, 0
  %v2601 = vsel %vm2537, 1, 0
  %v2602 = vsel %vm2538, 1, 0
  %v2603 = vsel %vm2539, 1, 0
  %v2604 = vsel %vm2540, 1, 0
  %vm2605 = vcmp.eq.s32.totalorder %v2541, 1
  %vm2606 = vcmp.eq.s32.totalorder %v2542, 1
  %vm2607 = vcmp.eq.s32.totalorder %v2543, 1
  %vm2608 = vcmp.eq.s32.totalorder %v2544, 1
  %vm2609 = vcmp.eq.s32.totalorder %v2545, 1
  %vm2610 = vcmp.eq.s32.totalorder %v2546, 1
  %vm2611 = vcmp.eq.s32.totalorder %v2547, 1
  %vm2612 = vcmp.eq.s32.totalorder %v2548, 1
  %vm2613 = vcmp.eq.s32.totalorder %v2549, 1
  %vm2614 = vcmp.eq.s32.totalorder %v2550, 1
  %vm2615 = vcmp.eq.s32.totalorder %v2551, 1
  %vm2616 = vcmp.eq.s32.totalorder %v2552, 1
  %vm2617 = vcmp.eq.s32.totalorder %v2553, 1
  %vm2618 = vcmp.eq.s32.totalorder %v2554, 1
  %vm2619 = vcmp.eq.s32.totalorder %v2555, 1
  %vm2620 = vcmp.eq.s32.totalorder %v2556, 1
  %vm2621 = vcmp.eq.s32.totalorder %v2557, 1
  %vm2622 = vcmp.eq.s32.totalorder %v2558, 1
  %vm2623 = vcmp.eq.s32.totalorder %v2559, 1
  %vm2624 = vcmp.eq.s32.totalorder %v2560, 1
  %vm2625 = vcmp.eq.s32.totalorder %v2561, 1
  %vm2626 = vcmp.eq.s32.totalorder %v2562, 1
  %vm2627 = vcmp.eq.s32.totalorder %v2563, 1
  %vm2628 = vcmp.eq.s32.totalorder %v2564, 1
  %vm2629 = vcmp.eq.s32.totalorder %v2565, 1
  %vm2630 = vcmp.eq.s32.totalorder %v2566, 1
  %vm2631 = vcmp.eq.s32.totalorder %v2567, 1
  %vm2632 = vcmp.eq.s32.totalorder %v2568, 1
  %vm2633 = vcmp.eq.s32.totalorder %v2569, 1
  %vm2634 = vcmp.eq.s32.totalorder %v2570, 1
  %vm2635 = vcmp.eq.s32.totalorder %v2571, 1
  %vm2636 = vcmp.eq.s32.totalorder %v2572, 1
  %vm2637 = vcmp.eq.s32.totalorder %v2573, 1
  %vm2638 = vcmp.eq.s32.totalorder %v2574, 1
  %vm2639 = vcmp.eq.s32.totalorder %v2575, 1
  %vm2640 = vcmp.eq.s32.totalorder %v2576, 1
  %vm2641 = vcmp.eq.s32.totalorder %v2577, 1
  %vm2642 = vcmp.eq.s32.totalorder %v2578, 1
  %vm2643 = vcmp.eq.s32.totalorder %v2579, 1
  %vm2644 = vcmp.eq.s32.totalorder %v2580, 1
  %vm2645 = vcmp.eq.s32.totalorder %v2581, 1
  %vm2646 = vcmp.eq.s32.totalorder %v2582, 1
  %vm2647 = vcmp.eq.s32.totalorder %v2583, 1
  %vm2648 = vcmp.eq.s32.totalorder %v2584, 1
  %vm2649 = vcmp.eq.s32.totalorder %v2585, 1
  %vm2650 = vcmp.eq.s32.totalorder %v2586, 1
  %vm2651 = vcmp.eq.s32.totalorder %v2587, 1
  %vm2652 = vcmp.eq.s32.totalorder %v2588, 1
  %vm2653 = vcmp.eq.s32.totalorder %v2589, 1
  %vm2654 = vcmp.eq.s32.totalorder %v2590, 1
  %vm2655 = vcmp.eq.s32.totalorder %v2591, 1
  %vm2656 = vcmp.eq.s32.totalorder %v2592, 1
  %vm2657 = vcmp.eq.s32.totalorder %v2593, 1
  %vm2658 = vcmp.eq.s32.totalorder %v2594, 1
  %vm2659 = vcmp.eq.s32.totalorder %v2595, 1
  %vm2660 = vcmp.eq.s32.totalorder %v2596, 1
  %vm2661 = vcmp.eq.s32.totalorder %v2597, 1
  %vm2662 = vcmp.eq.s32.totalorder %v2598, 1
  %vm2663 = vcmp.eq.s32.totalorder %v2599, 1
  %vm2664 = vcmp.eq.s32.totalorder %v2600, 1
  %vm2665 = vcmp.eq.s32.totalorder %v2601, 1
  %vm2666 = vcmp.eq.s32.totalorder %v2602, 1
  %vm2667 = vcmp.eq.s32.totalorder %v2603, 1
  %vm2668 = vcmp.eq.s32.totalorder %v2604, 1
  %vm2669 = vmpackc.low %vm2605, %vm2605
  %vm2670 = vmpackc.low %vm2606, %vm2606
  %vm2671 = vmpackc.low %vm2607, %vm2607
  %vm2672 = vmpackc.low %vm2608, %vm2608
  %vm2673 = vmpackc.low %vm2609, %vm2609
  %vm2674 = vmpackc.low %vm2610, %vm2610
  %vm2675 = vmpackc.low %vm2611, %vm2611
  %vm2676 = vmpackc.low %vm2612, %vm2612
  %vm2677 = vmpackc.low %vm2613, %vm2613
  %vm2678 = vmpackc.low %vm2614, %vm2614
  %vm2679 = vmpackc.low %vm2615, %vm2615
  %vm2680 = vmpackc.low %vm2616, %vm2616
  %vm2681 = vmpackc.low %vm2617, %vm2617
  %vm2682 = vmpackc.low %vm2618, %vm2618
  %vm2683 = vmpackc.low %vm2619, %vm2619
  %vm2684 = vmpackc.low %vm2620, %vm2620
  %vm2685 = vmpackc.low %vm2621, %vm2621
  %vm2686 = vmpackc.low %vm2622, %vm2622
  %vm2687 = vmpackc.low %vm2623, %vm2623
  %vm2688 = vmpackc.low %vm2624, %vm2624
  %vm2689 = vmpackc.low %vm2625, %vm2625
  %vm2690 = vmpackc.low %vm2626, %vm2626
  %vm2691 = vmpackc.low %vm2627, %vm2627
  %vm2692 = vmpackc.low %vm2628, %vm2628
  %vm2693 = vmpackc.low %vm2629, %vm2629
  %vm2694 = vmpackc.low %vm2630, %vm2630
  %vm2695 = vmpackc.low %vm2631, %vm2631
  %vm2696 = vmpackc.low %vm2632, %vm2632
  %vm2697 = vmpackc.low %vm2633, %vm2633
  %vm2698 = vmpackc.low %vm2634, %vm2634
  %vm2699 = vmpackc.low %vm2635, %vm2635
  %vm2700 = vmpackc.low %vm2636, %vm2636
  %vm2701 = vmpackc.low %vm2637, %vm2637
  %vm2702 = vmpackc.low %vm2638, %vm2638
  %vm2703 = vmpackc.low %vm2639, %vm2639
  %vm2704 = vmpackc.low %vm2640, %vm2640
  %vm2705 = vmpackc.low %vm2641, %vm2641
  %vm2706 = vmpackc.low %vm2642, %vm2642
  %vm2707 = vmpackc.low %vm2643, %vm2643
  %vm2708 = vmpackc.low %vm2644, %vm2644
  %vm2709 = vmpackc.low %vm2645, %vm2645
  %vm2710 = vmpackc.low %vm2646, %vm2646
  %vm2711 = vmpackc.low %vm2647, %vm2647
  %vm2712 = vmpackc.low %vm2648, %vm2648
  %vm2713 = vmpackc.low %vm2649, %vm2649
  %vm2714 = vmpackc.low %vm2650, %vm2650
  %vm2715 = vmpackc.low %vm2651, %vm2651
  %vm2716 = vmpackc.low %vm2652, %vm2652
  %vm2717 = vmpackc.low %vm2653, %vm2653
  %vm2718 = vmpackc.low %vm2654, %vm2654
  %vm2719 = vmpackc.low %vm2655, %vm2655
  %vm2720 = vmpackc.low %vm2656, %vm2656
  %vm2721 = vmpackc.low %vm2657, %vm2657
  %vm2722 = vmpackc.low %vm2658, %vm2658
  %vm2723 = vmpackc.low %vm2659, %vm2659
  %vm2724 = vmpackc.low %vm2660, %vm2660
  %vm2725 = vmpackc.low %vm2661, %vm2661
  %vm2726 = vmpackc.low %vm2662, %vm2662
  %vm2727 = vmpackc.low %vm2663, %vm2663
  %vm2728 = vmpackc.low %vm2664, %vm2664
  %vm2729 = vmpackc.low %vm2665, %vm2665
  %vm2730 = vmpackc.low %vm2666, %vm2666
  %vm2731 = vmpackc.low %vm2667, %vm2667
  %vm2732 = vmpackc.low %vm2668, %vm2668
  %v2733 = vsel %vm2669, 65537, 0
  %v2734 = vsel %vm2670, 65537, 0
  %v2735 = vsel %vm2671, 65537, 0
  %v2736 = vsel %vm2672, 65537, 0
  %v2737 = vsel %vm2673, 65537, 0
  %v2738 = vsel %vm2674, 65537, 0
  %v2739 = vsel %vm2675, 65537, 0
  %v2740 = vsel %vm2676, 65537, 0
  %v2741 = vsel %vm2677, 65537, 0
  %v2742 = vsel %vm2678, 65537, 0
  %v2743 = vsel %vm2679, 65537, 0
  %v2744 = vsel %vm2680, 65537, 0
  %v2745 = vsel %vm2681, 65537, 0
  %v2746 = vsel %vm2682, 65537, 0
  %v2747 = vsel %vm2683, 65537, 0
  %v2748 = vsel %vm2684, 65537, 0
  %v2749 = vsel %vm2685, 65537, 0
  %v2750 = vsel %vm2686, 65537, 0
  %v2751 = vsel %vm2687, 65537, 0
  %v2752 = vsel %vm2688, 65537, 0
  %v2753 = vsel %vm2689, 65537, 0
  %v2754 = vsel %vm2690, 65537, 0
  %v2755 = vsel %vm2691, 65537, 0
  %v2756 = vsel %vm2692, 65537, 0
  %v2757 = vsel %vm2693, 65537, 0
  %v2758 = vsel %vm2694, 65537, 0
  %v2759 = vsel %vm2695, 65537, 0
  %v2760 = vsel %vm2696, 65537, 0
  %v2761 = vsel %vm2697, 65537, 0
  %v2762 = vsel %vm2698, 65537, 0
  %v2763 = vsel %vm2699, 65537, 0
  %v2764 = vsel %vm2700, 65537, 0
  %v2765 = vsel %vm2701, 65537, 0
  %v2766 = vsel %vm2702, 65537, 0
  %v2767 = vsel %vm2703, 65537, 0
  %v2768 = vsel %vm2704, 65537, 0
  %v2769 = vsel %vm2705, 65537, 0
  %v2770 = vsel %vm2706, 65537, 0
  %v2771 = vsel %vm2707, 65537, 0
  %v2772 = vsel %vm2708, 65537, 0
  %v2773 = vsel %vm2709, 65537, 0
  %v2774 = vsel %vm2710, 65537, 0
  %v2775 = vsel %vm2711, 65537, 0
  %v2776 = vsel %vm2712, 65537, 0
  %v2777 = vsel %vm2713, 65537, 0
  %v2778 = vsel %vm2714, 65537, 0
  %v2779 = vsel %vm2715, 65537, 0
  %v2780 = vsel %vm2716, 65537, 0
  %v2781 = vsel %vm2717, 65537, 0
  %v2782 = vsel %vm2718, 65537, 0
  %v2783 = vsel %vm2719, 65537, 0
  %v2784 = vsel %vm2720, 65537, 0
  %v2785 = vsel %vm2721, 65537, 0
  %v2786 = vsel %vm2722, 65537, 0
  %v2787 = vsel %vm2723, 65537, 0
  %v2788 = vsel %vm2724, 65537, 0
  %v2789 = vsel %vm2725, 65537, 0
  %v2790 = vsel %vm2726, 65537, 0
  %v2791 = vsel %vm2727, 65537, 0
  %v2792 = vsel %vm2728, 65537, 0
  %v2793 = vsel %vm2729, 65537, 0
  %v2794 = vsel %vm2730, 65537, 0
  %v2795 = vsel %vm2731, 65537, 0
  %v2796 = vsel %vm2732, 65537, 0
  %vm2797 = vsmask.f32 256
  %vm2798 = vsmask.f32 4368
  %vm2799 = vmor %vm2797, %vm2798
  %v2801 = vshrl.u32 %v2733, 16
  %v2803 = vrot.slane %v2801, 7
  %v2804 = vshll.u32 %v2733, 16
  %v2806 = vor.u32 %v2803, %v2804
  %v2807 = vrot.slane %v2803, 4
  %v2809 = vshrl.u32 %v2734, 16
  %v2811 = vrot.slane %v2809, 7
  %v2812 = vshll.u32 %v2734, 16
  %v2814 = vor.u32 %v2811, %v2812
  %v2815 = vsel %vm2799, %v2807, %v2814
  %v2816 = vrot.slane %v2811, 4
  %v2818 = vshrl.u32 %v2735, 16
  %v2820 = vrot.slane %v2818, 7
  %v2821 = vshll.u32 %v2735, 16
  %v2823 = vor.u32 %v2820, %v2821
  %v2824 = vsel %vm2799, %v2816, %v2823
  %v2825 = vrot.slane %v2820, 4
  %v2827 = vshrl.u32 %v2736, 16
  %v2829 = vrot.slane %v2827, 7
  %v2830 = vshll.u32 %v2736, 16
  %v2832 = vor.u32 %v2829, %v2830
  %v2833 = vsel %vm2799, %v2825, %v2832
  %v2834 = vrot.slane %v2829, 4
  %v2836 = vshrl.u32 %v2737, 16
  %v2838 = vrot.slane %v2836, 7
  %v2839 = vshll.u32 %v2737, 16
  %v2841 = vor.u32 %v2838, %v2839
  %v2842 = vsel %vm2799, %v2834, %v2841
  %v2843 = vrot.slane %v2838, 4
  %v2845 = vshrl.u32 %v2738, 16
  %v2847 = vrot.slane %v2845, 7
  %v2848 = vshll.u32 %v2738, 16
  %v2850 = vor.u32 %v2847, %v2848
  %v2851 = vsel %vm2799, %v2843, %v2850
  %v2852 = vrot.slane %v2847, 4
  %v2854 = vshrl.u32 %v2739, 16
  %v2856 = vrot.slane %v2854, 7
  %v2857 = vshll.u32 %v2739, 16
  %v2859 = vor.u32 %v2856, %v2857
  %v2860 = vsel %vm2799, %v2852, %v2859
  %v2861 = vrot.slane %v2856, 4
  %v2863 = vshrl.u32 %v2740, 16
  %v2865 = vrot.slane %v2863, 7
  %v2866 = vshll.u32 %v2740, 16
  %v2868 = vor.u32 %v2865, %v2866
  %v2869 = vsel %vm2799, %v2861, %v2868
  %v2870 = vrot.slane %v2865, 4
  %v2872 = vshrl.u32 %v2741, 16
  %v2874 = vrot.slane %v2872, 7
  %v2875 = vshll.u32 %v2741, 16
  %v2877 = vor.u32 %v2874, %v2875
  %v2878 = vsel %vm2799, %v2870, %v2877
  %v2879 = vrot.slane %v2874, 4
  %v2881 = vshrl.u32 %v2742, 16
  %v2883 = vrot.slane %v2881, 7
  %v2884 = vshll.u32 %v2742, 16
  %v2886 = vor.u32 %v2883, %v2884
  %v2887 = vsel %vm2799, %v2879, %v2886
  %v2888 = vrot.slane %v2883, 4
  %v2890 = vshrl.u32 %v2743, 16
  %v2892 = vrot.slane %v2890, 7
  %v2893 = vshll.u32 %v2743, 16
  %v2895 = vor.u32 %v2892, %v2893
  %v2896 = vsel %vm2799, %v2888, %v2895
  %v2897 = vrot.slane %v2892, 4
  %v2899 = vshrl.u32 %v2744, 16
  %v2901 = vrot.slane %v2899, 7
  %v2902 = vshll.u32 %v2744, 16
  %v2904 = vor.u32 %v2901, %v2902
  %v2905 = vsel %vm2799, %v2897, %v2904
  %v2906 = vrot.slane %v2901, 4
  %v2908 = vshrl.u32 %v2745, 16
  %v2910 = vrot.slane %v2908, 7
  %v2911 = vshll.u32 %v2745, 16
  %v2913 = vor.u32 %v2910, %v2911
  %v2914 = vsel %vm2799, %v2906, %v2913
  %v2915 = vrot.slane %v2910, 4
  %v2917 = vshrl.u32 %v2746, 16
  %v2919 = vrot.slane %v2917, 7
  %v2920 = vshll.u32 %v2746, 16
  %v2922 = vor.u32 %v2919, %v2920
  %v2923 = vsel %vm2799, %v2915, %v2922
  %v2924 = vrot.slane %v2919, 4
  %v2926 = vshrl.u32 %v2747, 16
  %v2928 = vrot.slane %v2926, 7
  %v2929 = vshll.u32 %v2747, 16
  %v2931 = vor.u32 %v2928, %v2929
  %v2932 = vsel %vm2799, %v2924, %v2931
  %v2933 = vrot.slane %v2928, 4
  %v2935 = vshrl.u32 %v2748, 16
  %v2937 = vrot.slane %v2935, 7
  %v2938 = vshll.u32 %v2748, 16
  %v2940 = vor.u32 %v2937, %v2938
  %v2941 = vsel %vm2799, %v2933, %v2940
  %v2942 = vrot.slane %v2937, 4
  %v2944 = vshrl.u32 %v2749, 16
  %v2946 = vrot.slane %v2944, 7
  %v2947 = vshll.u32 %v2749, 16
  %v2949 = vor.u32 %v2946, %v2947
  %v2950 = vsel %vm2799, %v2942, %v2949
  %v2951 = vrot.slane %v2946, 4
  %v2953 = vshrl.u32 %v2750, 16
  %v2955 = vrot.slane %v2953, 7
  %v2956 = vshll.u32 %v2750, 16
  %v2958 = vor.u32 %v2955, %v2956
  %v2959 = vsel %vm2799, %v2951, %v2958
  %v2960 = vrot.slane %v2955, 4
  %v2962 = vshrl.u32 %v2751, 16
  %v2964 = vrot.slane %v2962, 7
  %v2965 = vshll.u32 %v2751, 16
  %v2967 = vor.u32 %v2964, %v2965
  %v2968 = vsel %vm2799, %v2960, %v2967
  %v2969 = vrot.slane %v2964, 4
  %v2971 = vshrl.u32 %v2752, 16
  %v2973 = vrot.slane %v2971, 7
  %v2974 = vshll.u32 %v2752, 16
  %v2976 = vor.u32 %v2973, %v2974
  %v2977 = vsel %vm2799, %v2969, %v2976
  %v2978 = vrot.slane %v2973, 4
  %v2980 = vshrl.u32 %v2753, 16
  %v2982 = vrot.slane %v2980, 7
  %v2983 = vshll.u32 %v2753, 16
  %v2985 = vor.u32 %v2982, %v2983
  %v2986 = vsel %vm2799, %v2978, %v2985
  %v2987 = vrot.slane %v2982, 4
  %v2989 = vshrl.u32 %v2754, 16
  %v2991 = vrot.slane %v2989, 7
  %v2992 = vshll.u32 %v2754, 16
  %v2994 = vor.u32 %v2991, %v2992
  %v2995 = vsel %vm2799, %v2987, %v2994
  %v2996 = vrot.slane %v2991, 4
  %v2998 = vshrl.u32 %v2755, 16
  %v3000 = vrot.slane %v2998, 7
  %v3001 = vshll.u32 %v2755, 16
  %v3003 = vor.u32 %v3000, %v3001
  %v3004 = vsel %vm2799, %v2996, %v3003
  %v3005 = vrot.slane %v3000, 4
  %v3007 = vshrl.u32 %v2756, 16
  %v3009 = vrot.slane %v3007, 7
  %v3010 = vshll.u32 %v2756, 16
  %v3012 = vor.u32 %v3009, %v3010
  %v3013 = vsel %vm2799, %v3005, %v3012
  %v3014 = vrot.slane %v3009, 4
  %v3016 = vshrl.u32 %v2757, 16
  %v3018 = vrot.slane %v3016, 7
  %v3019 = vshll.u32 %v2757, 16
  %v3021 = vor.u32 %v3018, %v3019
  %v3022 = vsel %vm2799, %v3014, %v3021
  %v3023 = vrot.slane %v3018, 4
  %v3025 = vshrl.u32 %v2758, 16
  %v3027 = vrot.slane %v3025, 7
  %v3028 = vshll.u32 %v2758, 16
  %v3030 = vor.u32 %v3027, %v3028
  %v3031 = vsel %vm2799, %v3023, %v3030
  %v3032 = vrot.slane %v3027, 4
  %v3034 = vshrl.u32 %v2759, 16
  %v3036 = vrot.slane %v3034, 7
  %v3037 = vshll.u32 %v2759, 16
  %v3039 = vor.u32 %v3036, %v3037
  %v3040 = vsel %vm2799, %v3032, %v3039
  %v3041 = vrot.slane %v3036, 4
  %v3043 = vshrl.u32 %v2760, 16
  %v3045 = vrot.slane %v3043, 7
  %v3046 = vshll.u32 %v2760, 16
  %v3048 = vor.u32 %v3045, %v3046
  %v3049 = vsel %vm2799, %v3041, %v3048
  %v3050 = vrot.slane %v3045, 4
  %v3052 = vshrl.u32 %v2761, 16
  %v3054 = vrot.slane %v3052, 7
  %v3055 = vshll.u32 %v2761, 16
  %v3057 = vor.u32 %v3054, %v3055
  %v3058 = vsel %vm2799, %v3050, %v3057
  %v3059 = vrot.slane %v3054, 4
  %v3061 = vshrl.u32 %v2762, 16
  %v3063 = vrot.slane %v3061, 7
  %v3064 = vshll.u32 %v2762, 16
  %v3066 = vor.u32 %v3063, %v3064
  %v3067 = vsel %vm2799, %v3059, %v3066
  %v3068 = vrot.slane %v3063, 4
  %v3070 = vshrl.u32 %v2763, 16
  %v3072 = vrot.slane %v3070, 7
  %v3073 = vshll.u32 %v2763, 16
  %v3075 = vor.u32 %v3072, %v3073
  %v3076 = vsel %vm2799, %v3068, %v3075
  %v3077 = vrot.slane %v3072, 4
  %v3079 = vshrl.u32 %v2764, 16
  %v3081 = vrot.slane %v3079, 7
  %v3082 = vshll.u32 %v2764, 16
  %v3084 = vor.u32 %v3081, %v3082
  %v3085 = vsel %vm2799, %v3077, %v3084
  %v3086 = vrot.slane %v3081, 4
  %v3088 = vshrl.u32 %v2765, 16
  %v3090 = vrot.slane %v3088, 7
  %v3091 = vshll.u32 %v2765, 16
  %v3093 = vor.u32 %v3090, %v3091
  %v3094 = vsel %vm2799, %v3086, %v3093
  %v3095 = vrot.slane %v3090, 4
  %v3097 = vshrl.u32 %v2766, 16
  %v3099 = vrot.slane %v3097, 7
  %v3100 = vshll.u32 %v2766, 16
  %v3102 = vor.u32 %v3099, %v3100
  %v3103 = vsel %vm2799, %v3095, %v3102
  %v3104 = vrot.slane %v3099, 4
  %v3106 = vshrl.u32 %v2767, 16
  %v3108 = vrot.slane %v3106, 7
  %v3109 = vshll.u32 %v2767, 16
  %v3111 = vor.u32 %v3108, %v3109
  %v3112 = vsel %vm2799, %v3104, %v3111
  %v3113 = vrot.slane %v3108, 4
  %v3115 = vshrl.u32 %v2768, 16
  %v3117 = vrot.slane %v3115, 7
  %v3118 = vshll.u32 %v2768, 16
  %v3120 = vor.u32 %v3117, %v3118
  %v3121 = vsel %vm2799, %v3113, %v3120
  %v3122 = vrot.slane %v3117, 4
  %v3124 = vshrl.u32 %v2769, 16
  %v3126 = vrot.slane %v3124, 7
  %v3127 = vshll.u32 %v2769, 16
  %v3129 = vor.u32 %v3126, %v3127
  %v3130 = vsel %vm2799, %v3122, %v3129
  %v3131 = vrot.slane %v3126, 4
  %v3133 = vshrl.u32 %v2770, 16
  %v3135 = vrot.slane %v3133, 7
  %v3136 = vshll.u32 %v2770, 16
  %v3138 = vor.u32 %v3135, %v3136
  %v3139 = vsel %vm2799, %v3131, %v3138
  %v3140 = vrot.slane %v3135, 4
  %v3142 = vshrl.u32 %v2771, 16
  %v3144 = vrot.slane %v3142, 7
  %v3145 = vshll.u32 %v2771, 16
  %v3147 = vor.u32 %v3144, %v3145
  %v3148 = vsel %vm2799, %v3140, %v3147
  %v3149 = vrot.slane %v3144, 4
  %v3151 = vshrl.u32 %v2772, 16
  %v3153 = vrot.slane %v3151, 7
  %v3154 = vshll.u32 %v2772, 16
  %v3156 = vor.u32 %v3153, %v3154
  %v3157 = vsel %vm2799, %v3149, %v3156
  %v3158 = vrot.slane %v3153, 4
  %v3160 = vshrl.u32 %v2773, 16
  %v3162 = vrot.slane %v3160, 7
  %v3163 = vshll.u32 %v2773, 16
  %v3165 = vor.u32 %v3162, %v3163
  %v3166 = vsel %vm2799, %v3158, %v3165
  %v3167 = vrot.slane %v3162, 4
  %v3169 = vshrl.u32 %v2774, 16
  %v3171 = vrot.slane %v3169, 7
  %v3172 = vshll.u32 %v2774, 16
  %v3174 = vor.u32 %v3171, %v3172
  %v3175 = vsel %vm2799, %v3167, %v3174
  %v3176 = vrot.slane %v3171, 4
  %v3178 = vshrl.u32 %v2775, 16
  %v3180 = vrot.slane %v3178, 7
  %v3181 = vshll.u32 %v2775, 16
  %v3183 = vor.u32 %v3180, %v3181
  %v3184 = vsel %vm2799, %v3176, %v3183
  %v3185 = vrot.slane %v3180, 4
  %v3187 = vshrl.u32 %v2776, 16
  %v3189 = vrot.slane %v3187, 7
  %v3190 = vshll.u32 %v2776, 16
  %v3192 = vor.u32 %v3189, %v3190
  %v3193 = vsel %vm2799, %v3185, %v3192
  %v3194 = vrot.slane %v3189, 4
  %v3196 = vshrl.u32 %v2777, 16
  %v3198 = vrot.slane %v3196, 7
  %v3199 = vshll.u32 %v2777, 16
  %v3201 = vor.u32 %v3198, %v3199
  %v3202 = vsel %vm2799, %v3194, %v3201
  %v3203 = vrot.slane %v3198, 4
  %v3205 = vshrl.u32 %v2778, 16
  %v3207 = vrot.slane %v3205, 7
  %v3208 = vshll.u32 %v2778, 16
  %v3210 = vor.u32 %v3207, %v3208
  %v3211 = vsel %vm2799, %v3203, %v3210
  %v3212 = vrot.slane %v3207, 4
  %v3214 = vshrl.u32 %v2779, 16
  %v3216 = vrot.slane %v3214, 7
  %v3217 = vshll.u32 %v2779, 16
  %v3219 = vor.u32 %v3216, %v3217
  %v3220 = vsel %vm2799, %v3212, %v3219
  %v3221 = vrot.slane %v3216, 4
  %v3223 = vshrl.u32 %v2780, 16
  %v3225 = vrot.slane %v3223, 7
  %v3226 = vshll.u32 %v2780, 16
  %v3228 = vor.u32 %v3225, %v3226
  %v3229 = vsel %vm2799, %v3221, %v3228
  %v3230 = vrot.slane %v3225, 4
  %v3232 = vshrl.u32 %v2781, 16
  %v3234 = vrot.slane %v3232, 7
  %v3235 = vshll.u32 %v2781, 16
  %v3237 = vor.u32 %v3234, %v3235
  %v3238 = vsel %vm2799, %v3230, %v3237
  %v3239 = vrot.slane %v3234, 4
  %v3241 = vshrl.u32 %v2782, 16
  %v3243 = vrot.slane %v3241, 7
  %v3244 = vshll.u32 %v2782, 16
  %v3246 = vor.u32 %v3243, %v3244
  %v3247 = vsel %vm2799, %v3239, %v3246
  %v3248 = vrot.slane %v3243, 4
  %v3250 = vshrl.u32 %v2783, 16
  %v3252 = vrot.slane %v3250, 7
  %v3253 = vshll.u32 %v2783, 16
  %v3255 = vor.u32 %v3252, %v3253
  %v3256 = vsel %vm2799, %v3248, %v3255
  %v3257 = vrot.slane %v3252, 4
  %v3259 = vshrl.u32 %v2784, 16
  %v3261 = vrot.slane %v3259, 7
  %v3262 = vshll.u32 %v2784, 16
  %v3264 = vor.u32 %v3261, %v3262
  %v3265 = vsel %vm2799, %v3257, %v3264
  %v3266 = vrot.slane %v3261, 4
  %v3268 = vshrl.u32 %v2785, 16
  %v3270 = vrot.slane %v3268, 7
  %v3271 = vshll.u32 %v2785, 16
  %v3273 = vor.u32 %v3270, %v3271
  %v3274 = vsel %vm2799, %v3266, %v3273
  %v3275 = vrot.slane %v3270, 4
  %v3277 = vshrl.u32 %v2786, 16
  %v3279 = vrot.slane %v3277, 7
  %v3280 = vshll.u32 %v2786, 16
  %v3282 = vor.u32 %v3279, %v3280
  %v3283 = vsel %vm2799, %v3275, %v3282
  %v3284 = vrot.slane %v3279, 4
  %v3286 = vshrl.u32 %v2787, 16
  %v3288 = vrot.slane %v3286, 7
  %v3289 = vshll.u32 %v2787, 16
  %v3291 = vor.u32 %v3288, %v3289
  %v3292 = vsel %vm2799, %v3284, %v3291
  %v3293 = vrot.slane %v3288, 4
  %v3295 = vshrl.u32 %v2788, 16
  %v3297 = vrot.slane %v3295, 7
  %v3298 = vshll.u32 %v2788, 16
  %v3300 = vor.u32 %v3297, %v3298
  %v3301 = vsel %vm2799, %v3293, %v3300
  %v3302 = vrot.slane %v3297, 4
  %v3304 = vshrl.u32 %v2789, 16
  %v3306 = vrot.slane %v3304, 7
  %v3307 = vshll.u32 %v2789, 16
  %v3309 = vor.u32 %v3306, %v3307
  %v3310 = vsel %vm2799, %v3302, %v3309
  %v3311 = vrot.slane %v3306, 4
  %v3313 = vshrl.u32 %v2790, 16
  %v3315 = vrot.slane %v3313, 7
  %v3316 = vshll.u32 %v2790, 16
  %v3318 = vor.u32 %v3315, %v3316
  %v3319 = vsel %vm2799, %v3311, %v3318
  %v3320 = vrot.slane %v3315, 4
  %v3322 = vshrl.u32 %v2791, 16
  %v3324 = vrot.slane %v3322, 7
  %v3325 = vshll.u32 %v2791, 16
  %v3327 = vor.u32 %v3324, %v3325
  %v3328 = vsel %vm2799, %v3320, %v3327
  %v3329 = vrot.slane %v3324, 4
  %v3331 = vshrl.u32 %v2792, 16
  %v3333 = vrot.slane %v3331, 7
  %v3334 = vshll.u32 %v2792, 16
  %v3336 = vor.u32 %v3333, %v3334
  %v3337 = vsel %vm2799, %v3329, %v3336
  %v3338 = vrot.slane %v3333, 4
  %v3340 = vshrl.u32 %v2793, 16
  %v3342 = vrot.slane %v3340, 7
  %v3343 = vshll.u32 %v2793, 16
  %v3345 = vor.u32 %v3342, %v3343
  %v3346 = vsel %vm2799, %v3338, %v3345
  %v3347 = vrot.slane %v3342, 4
  %v3349 = vshrl.u32 %v2794, 16
  %v3351 = vrot.slane %v3349, 7
  %v3352 = vshll.u32 %v2794, 16
  %v3354 = vor.u32 %v3351, %v3352
  %v3355 = vsel %vm2799, %v3347, %v3354
  %v3356 = vrot.slane %v3351, 4
  %v3358 = vshrl.u32 %v2795, 16
  %v3360 = vrot.slane %v3358, 7
  %v3361 = vshll.u32 %v2795, 16
  %v3363 = vor.u32 %v3360, %v3361
  %v3364 = vsel %vm2799, %v3356, %v3363
  %v3365 = vrot.slane %v3360, 4
  %v3367 = vshrl.u32 %v2796, 16
  %v3369 = vrot.slane %v3367, 7
  %v3370 = vshll.u32 %v2796, 16
  %v3372 = vor.u32 %v3369, %v3370
  %v3373 = vsel %vm2799, %v3365, %v3372
  %v3374 = vrot.slane %v3369, 4
  %v3375 = vunpack.c.l.b16 %v2806
  %v3376 = vunpack.c.h.b16 %v2806
  %v3377 = vunpack.c.l.b16 0
  %v3378 = vunpack.c.h.b16 0
  %vm3379 = vcmp.ne.s32.totalorder %v3375, %v3377
  %vm3380 = vcmp.ne.s32.totalorder %v3376, %v3378
  %vm3381 = vmpackc.low %vm3380, %vm3379
  %v3382 = vunpack.c.l.b16 %v2815
  %v3383 = vunpack.c.h.b16 %v2815
  %v3384 = vunpack.c.l.b16 0
  %v3385 = vunpack.c.h.b16 0
  %vm3386 = vcmp.ne.s32.totalorder %v3382, %v3384
  %vm3387 = vcmp.ne.s32.totalorder %v3383, %v3385
  %vm3388 = vmpackc.low %vm3387, %vm3386
  %v3389 = vunpack.c.l.b16 %v2824
  %v3390 = vunpack.c.h.b16 %v2824
  %v3391 = vunpack.c.l.b16 0
  %v3392 = vunpack.c.h.b16 0
  %vm3393 = vcmp.ne.s32.totalorder %v3389, %v3391
  %vm3394 = vcmp.ne.s32.totalorder %v3390, %v3392
  %vm3395 = vmpackc.low %vm3394, %vm3393
  %v3396 = vunpack.c.l.b16 %v2833
  %v3397 = vunpack.c.h.b16 %v2833
  %v3398 = vunpack.c.l.b16 0
  %v3399 = vunpack.c.h.b16 0
  %vm3400 = vcmp.ne.s32.totalorder %v3396, %v3398
  %vm3401 = vcmp.ne.s32.totalorder %v3397, %v3399
  %vm3402 = vmpackc.low %vm3401, %vm3400
  %v3403 = vunpack.c.l.b16 %v2842
  %v3404 = vunpack.c.h.b16 %v2842
  %v3405 = vunpack.c.l.b16 0
  %v3406 = vunpack.c.h.b16 0
  %vm3407 = vcmp.ne.s32.totalorder %v3403, %v3405
  %vm3408 = vcmp.ne.s32.totalorder %v3404, %v3406
  %vm3409 = vmpackc.low %vm3408, %vm3407
  %v3410 = vunpack.c.l.b16 %v2851
  %v3411 = vunpack.c.h.b16 %v2851
  %v3412 = vunpack.c.l.b16 0
  %v3413 = vunpack.c.h.b16 0
  %vm3414 = vcmp.ne.s32.totalorder %v3410, %v3412
  %vm3415 = vcmp.ne.s32.totalorder %v3411, %v3413
  %vm3416 = vmpackc.low %vm3415, %vm3414
  %v3417 = vunpack.c.l.b16 %v2860
  %v3418 = vunpack.c.h.b16 %v2860
  %v3419 = vunpack.c.l.b16 0
  %v3420 = vunpack.c.h.b16 0
  %vm3421 = vcmp.ne.s32.totalorder %v3417, %v3419
  %vm3422 = vcmp.ne.s32.totalorder %v3418, %v3420
  %vm3423 = vmpackc.low %vm3422, %vm3421
  %v3424 = vunpack.c.l.b16 %v2869
  %v3425 = vunpack.c.h.b16 %v2869
  %v3426 = vunpack.c.l.b16 0
  %v3427 = vunpack.c.h.b16 0
  %vm3428 = vcmp.ne.s32.totalorder %v3424, %v3426
  %vm3429 = vcmp.ne.s32.totalorder %v3425, %v3427
  %vm3430 = vmpackc.low %vm3429, %vm3428
  %v3431 = vunpack.c.l.b16 %v2878
  %v3432 = vunpack.c.h.b16 %v2878
  %v3433 = vunpack.c.l.b16 0
  %v3434 = vunpack.c.h.b16 0
  %vm3435 = vcmp.ne.s32.totalorder %v3431, %v3433
  %vm3436 = vcmp.ne.s32.totalorder %v3432, %v3434
  %vm3437 = vmpackc.low %vm3436, %vm3435
  %v3438 = vunpack.c.l.b16 %v2887
  %v3439 = vunpack.c.h.b16 %v2887
  %v3440 = vunpack.c.l.b16 0
  %v3441 = vunpack.c.h.b16 0
  %vm3442 = vcmp.ne.s32.totalorder %v3438, %v3440
  %vm3443 = vcmp.ne.s32.totalorder %v3439, %v3441
  %vm3444 = vmpackc.low %vm3443, %vm3442
  %v3445 = vunpack.c.l.b16 %v2896
  %v3446 = vunpack.c.h.b16 %v2896
  %v3447 = vunpack.c.l.b16 0
  %v3448 = vunpack.c.h.b16 0
  %vm3449 = vcmp.ne.s32.totalorder %v3445, %v3447
  %vm3450 = vcmp.ne.s32.totalorder %v3446, %v3448
  %vm3451 = vmpackc.low %vm3450, %vm3449
  %v3452 = vunpack.c.l.b16 %v2905
  %v3453 = vunpack.c.h.b16 %v2905
  %v3454 = vunpack.c.l.b16 0
  %v3455 = vunpack.c.h.b16 0
  %vm3456 = vcmp.ne.s32.totalorder %v3452, %v3454
  %vm3457 = vcmp.ne.s32.totalorder %v3453, %v3455
  %vm3458 = vmpackc.low %vm3457, %vm3456
  %v3459 = vunpack.c.l.b16 %v2914
  %v3460 = vunpack.c.h.b16 %v2914
  %v3461 = vunpack.c.l.b16 0
  %v3462 = vunpack.c.h.b16 0
  %vm3463 = vcmp.ne.s32.totalorder %v3459, %v3461
  %vm3464 = vcmp.ne.s32.totalorder %v3460, %v3462
  %vm3465 = vmpackc.low %vm3464, %vm3463
  %v3466 = vunpack.c.l.b16 %v2923
  %v3467 = vunpack.c.h.b16 %v2923
  %v3468 = vunpack.c.l.b16 0
  %v3469 = vunpack.c.h.b16 0
  %vm3470 = vcmp.ne.s32.totalorder %v3466, %v3468
  %vm3471 = vcmp.ne.s32.totalorder %v3467, %v3469
  %vm3472 = vmpackc.low %vm3471, %vm3470
  %v3473 = vunpack.c.l.b16 %v2932
  %v3474 = vunpack.c.h.b16 %v2932
  %v3475 = vunpack.c.l.b16 0
  %v3476 = vunpack.c.h.b16 0
  %vm3477 = vcmp.ne.s32.totalorder %v3473, %v3475
  %vm3478 = vcmp.ne.s32.totalorder %v3474, %v3476
  %vm3479 = vmpackc.low %vm3478, %vm3477
  %v3480 = vunpack.c.l.b16 %v2941
  %v3481 = vunpack.c.h.b16 %v2941
  %v3482 = vunpack.c.l.b16 0
  %v3483 = vunpack.c.h.b16 0
  %vm3484 = vcmp.ne.s32.totalorder %v3480, %v3482
  %vm3485 = vcmp.ne.s32.totalorder %v3481, %v3483
  %vm3486 = vmpackc.low %vm3485, %vm3484
  %v3487 = vunpack.c.l.b16 %v2950
  %v3488 = vunpack.c.h.b16 %v2950
  %v3489 = vunpack.c.l.b16 0
  %v3490 = vunpack.c.h.b16 0
  %vm3491 = vcmp.ne.s32.totalorder %v3487, %v3489
  %vm3492 = vcmp.ne.s32.totalorder %v3488, %v3490
  %vm3493 = vmpackc.low %vm3492, %vm3491
  %v3494 = vunpack.c.l.b16 %v2959
  %v3495 = vunpack.c.h.b16 %v2959
  %v3496 = vunpack.c.l.b16 0
  %v3497 = vunpack.c.h.b16 0
  %vm3498 = vcmp.ne.s32.totalorder %v3494, %v3496
  %vm3499 = vcmp.ne.s32.totalorder %v3495, %v3497
  %vm3500 = vmpackc.low %vm3499, %vm3498
  %v3501 = vunpack.c.l.b16 %v2968
  %v3502 = vunpack.c.h.b16 %v2968
  %v3503 = vunpack.c.l.b16 0
  %v3504 = vunpack.c.h.b16 0
  %vm3505 = vcmp.ne.s32.totalorder %v3501, %v3503
  %vm3506 = vcmp.ne.s32.totalorder %v3502, %v3504
  %vm3507 = vmpackc.low %vm3506, %vm3505
  %v3508 = vunpack.c.l.b16 %v2977
  %v3509 = vunpack.c.h.b16 %v2977
  %v3510 = vunpack.c.l.b16 0
  %v3511 = vunpack.c.h.b16 0
  %vm3512 = vcmp.ne.s32.totalorder %v3508, %v3510
  %vm3513 = vcmp.ne.s32.totalorder %v3509, %v3511
  %vm3514 = vmpackc.low %vm3513, %vm3512
  %v3515 = vunpack.c.l.b16 %v2986
  %v3516 = vunpack.c.h.b16 %v2986
  %v3517 = vunpack.c.l.b16 0
  %v3518 = vunpack.c.h.b16 0
  %vm3519 = vcmp.ne.s32.totalorder %v3515, %v3517
  %vm3520 = vcmp.ne.s32.totalorder %v3516, %v3518
  %vm3521 = vmpackc.low %vm3520, %vm3519
  %v3522 = vunpack.c.l.b16 %v2995
  %v3523 = vunpack.c.h.b16 %v2995
  %v3524 = vunpack.c.l.b16 0
  %v3525 = vunpack.c.h.b16 0
  %vm3526 = vcmp.ne.s32.totalorder %v3522, %v3524
  %vm3527 = vcmp.ne.s32.totalorder %v3523, %v3525
  %vm3528 = vmpackc.low %vm3527, %vm3526
  %v3529 = vunpack.c.l.b16 %v3004
  %v3530 = vunpack.c.h.b16 %v3004
  %v3531 = vunpack.c.l.b16 0
  %v3532 = vunpack.c.h.b16 0
  %vm3533 = vcmp.ne.s32.totalorder %v3529, %v3531
  %vm3534 = vcmp.ne.s32.totalorder %v3530, %v3532
  %vm3535 = vmpackc.low %vm3534, %vm3533
  %v3536 = vunpack.c.l.b16 %v3013
  %v3537 = vunpack.c.h.b16 %v3013
  %v3538 = vunpack.c.l.b16 0
  %v3539 = vunpack.c.h.b16 0
  %vm3540 = vcmp.ne.s32.totalorder %v3536, %v3538
  %vm3541 = vcmp.ne.s32.totalorder %v3537, %v3539
  %vm3542 = vmpackc.low %vm3541, %vm3540
  %v3543 = vunpack.c.l.b16 %v3022
  %v3544 = vunpack.c.h.b16 %v3022
  %v3545 = vunpack.c.l.b16 0
  %v3546 = vunpack.c.h.b16 0
  %vm3547 = vcmp.ne.s32.totalorder %v3543, %v3545
  %vm3548 = vcmp.ne.s32.totalorder %v3544, %v3546
  %vm3549 = vmpackc.low %vm3548, %vm3547
  %v3550 = vunpack.c.l.b16 %v3031
  %v3551 = vunpack.c.h.b16 %v3031
  %v3552 = vunpack.c.l.b16 0
  %v3553 = vunpack.c.h.b16 0
  %vm3554 = vcmp.ne.s32.totalorder %v3550, %v3552
  %vm3555 = vcmp.ne.s32.totalorder %v3551, %v3553
  %vm3556 = vmpackc.low %vm3555, %vm3554
  %v3557 = vunpack.c.l.b16 %v3040
  %v3558 = vunpack.c.h.b16 %v3040
  %v3559 = vunpack.c.l.b16 0
  %v3560 = vunpack.c.h.b16 0
  %vm3561 = vcmp.ne.s32.totalorder %v3557, %v3559
  %vm3562 = vcmp.ne.s32.totalorder %v3558, %v3560
  %vm3563 = vmpackc.low %vm3562, %vm3561
  %v3564 = vunpack.c.l.b16 %v3049
  %v3565 = vunpack.c.h.b16 %v3049
  %v3566 = vunpack.c.l.b16 0
  %v3567 = vunpack.c.h.b16 0
  %vm3568 = vcmp.ne.s32.totalorder %v3564, %v3566
  %vm3569 = vcmp.ne.s32.totalorder %v3565, %v3567
  %vm3570 = vmpackc.low %vm3569, %vm3568
  %v3571 = vunpack.c.l.b16 %v3058
  %v3572 = vunpack.c.h.b16 %v3058
  %v3573 = vunpack.c.l.b16 0
  %v3574 = vunpack.c.h.b16 0
  %vm3575 = vcmp.ne.s32.totalorder %v3571, %v3573
  %vm3576 = vcmp.ne.s32.totalorder %v3572, %v3574
  %vm3577 = vmpackc.low %vm3576, %vm3575
  %v3578 = vunpack.c.l.b16 %v3067
  %v3579 = vunpack.c.h.b16 %v3067
  %v3580 = vunpack.c.l.b16 0
  %v3581 = vunpack.c.h.b16 0
  %vm3582 = vcmp.ne.s32.totalorder %v3578, %v3580
  %vm3583 = vcmp.ne.s32.totalorder %v3579, %v3581
  %vm3584 = vmpackc.low %vm3583, %vm3582
  %v3585 = vunpack.c.l.b16 %v3076
  %v3586 = vunpack.c.h.b16 %v3076
  %v3587 = vunpack.c.l.b16 0
  %v3588 = vunpack.c.h.b16 0
  %vm3589 = vcmp.ne.s32.totalorder %v3585, %v3587
  %vm3590 = vcmp.ne.s32.totalorder %v3586, %v3588
  %vm3591 = vmpackc.low %vm3590, %vm3589
  %v3592 = vunpack.c.l.b16 %v3085
  %v3593 = vunpack.c.h.b16 %v3085
  %v3594 = vunpack.c.l.b16 0
  %v3595 = vunpack.c.h.b16 0
  %vm3596 = vcmp.ne.s32.totalorder %v3592, %v3594
  %vm3597 = vcmp.ne.s32.totalorder %v3593, %v3595
  %vm3598 = vmpackc.low %vm3597, %vm3596
  %v3599 = vunpack.c.l.b16 %v3094
  %v3600 = vunpack.c.h.b16 %v3094
  %v3601 = vunpack.c.l.b16 0
  %v3602 = vunpack.c.h.b16 0
  %vm3603 = vcmp.ne.s32.totalorder %v3599, %v3601
  %vm3604 = vcmp.ne.s32.totalorder %v3600, %v3602
  %vm3605 = vmpackc.low %vm3604, %vm3603
  %v3606 = vunpack.c.l.b16 %v3103
  %v3607 = vunpack.c.h.b16 %v3103
  %v3608 = vunpack.c.l.b16 0
  %v3609 = vunpack.c.h.b16 0
  %vm3610 = vcmp.ne.s32.totalorder %v3606, %v3608
  %vm3611 = vcmp.ne.s32.totalorder %v3607, %v3609
  %vm3612 = vmpackc.low %vm3611, %vm3610
  %v3613 = vunpack.c.l.b16 %v3112
  %v3614 = vunpack.c.h.b16 %v3112
  %v3615 = vunpack.c.l.b16 0
  %v3616 = vunpack.c.h.b16 0
  %vm3617 = vcmp.ne.s32.totalorder %v3613, %v3615
  %vm3618 = vcmp.ne.s32.totalorder %v3614, %v3616
  %vm3619 = vmpackc.low %vm3618, %vm3617
  %v3620 = vunpack.c.l.b16 %v3121
  %v3621 = vunpack.c.h.b16 %v3121
  %v3622 = vunpack.c.l.b16 0
  %v3623 = vunpack.c.h.b16 0
  %vm3624 = vcmp.ne.s32.totalorder %v3620, %v3622
  %vm3625 = vcmp.ne.s32.totalorder %v3621, %v3623
  %vm3626 = vmpackc.low %vm3625, %vm3624
  %v3627 = vunpack.c.l.b16 %v3130
  %v3628 = vunpack.c.h.b16 %v3130
  %v3629 = vunpack.c.l.b16 0
  %v3630 = vunpack.c.h.b16 0
  %vm3631 = vcmp.ne.s32.totalorder %v3627, %v3629
  %vm3632 = vcmp.ne.s32.totalorder %v3628, %v3630
  %vm3633 = vmpackc.low %vm3632, %vm3631
  %v3634 = vunpack.c.l.b16 %v3139
  %v3635 = vunpack.c.h.b16 %v3139
  %v3636 = vunpack.c.l.b16 0
  %v3637 = vunpack.c.h.b16 0
  %vm3638 = vcmp.ne.s32.totalorder %v3634, %v3636
  %vm3639 = vcmp.ne.s32.totalorder %v3635, %v3637
  %vm3640 = vmpackc.low %vm3639, %vm3638
  %v3641 = vunpack.c.l.b16 %v3148
  %v3642 = vunpack.c.h.b16 %v3148
  %v3643 = vunpack.c.l.b16 0
  %v3644 = vunpack.c.h.b16 0
  %vm3645 = vcmp.ne.s32.totalorder %v3641, %v3643
  %vm3646 = vcmp.ne.s32.totalorder %v3642, %v3644
  %vm3647 = vmpackc.low %vm3646, %vm3645
  %v3648 = vunpack.c.l.b16 %v3157
  %v3649 = vunpack.c.h.b16 %v3157
  %v3650 = vunpack.c.l.b16 0
  %v3651 = vunpack.c.h.b16 0
  %vm3652 = vcmp.ne.s32.totalorder %v3648, %v3650
  %vm3653 = vcmp.ne.s32.totalorder %v3649, %v3651
  %vm3654 = vmpackc.low %vm3653, %vm3652
  %v3655 = vunpack.c.l.b16 %v3166
  %v3656 = vunpack.c.h.b16 %v3166
  %v3657 = vunpack.c.l.b16 0
  %v3658 = vunpack.c.h.b16 0
  %vm3659 = vcmp.ne.s32.totalorder %v3655, %v3657
  %vm3660 = vcmp.ne.s32.totalorder %v3656, %v3658
  %vm3661 = vmpackc.low %vm3660, %vm3659
  %v3662 = vunpack.c.l.b16 %v3175
  %v3663 = vunpack.c.h.b16 %v3175
  %v3664 = vunpack.c.l.b16 0
  %v3665 = vunpack.c.h.b16 0
  %vm3666 = vcmp.ne.s32.totalorder %v3662, %v3664
  %vm3667 = vcmp.ne.s32.totalorder %v3663, %v3665
  %vm3668 = vmpackc.low %vm3667, %vm3666
  %v3669 = vunpack.c.l.b16 %v3184
  %v3670 = vunpack.c.h.b16 %v3184
  %v3671 = vunpack.c.l.b16 0
  %v3672 = vunpack.c.h.b16 0
  %vm3673 = vcmp.ne.s32.totalorder %v3669, %v3671
  %vm3674 = vcmp.ne.s32.totalorder %v3670, %v3672
  %vm3675 = vmpackc.low %vm3674, %vm3673
  %v3676 = vunpack.c.l.b16 %v3193
  %v3677 = vunpack.c.h.b16 %v3193
  %v3678 = vunpack.c.l.b16 0
  %v3679 = vunpack.c.h.b16 0
  %vm3680 = vcmp.ne.s32.totalorder %v3676, %v3678
  %vm3681 = vcmp.ne.s32.totalorder %v3677, %v3679
  %vm3682 = vmpackc.low %vm3681, %vm3680
  %v3683 = vunpack.c.l.b16 %v3202
  %v3684 = vunpack.c.h.b16 %v3202
  %v3685 = vunpack.c.l.b16 0
  %v3686 = vunpack.c.h.b16 0
  %vm3687 = vcmp.ne.s32.totalorder %v3683, %v3685
  %vm3688 = vcmp.ne.s32.totalorder %v3684, %v3686
  %vm3689 = vmpackc.low %vm3688, %vm3687
  %v3690 = vunpack.c.l.b16 %v3211
  %v3691 = vunpack.c.h.b16 %v3211
  %v3692 = vunpack.c.l.b16 0
  %v3693 = vunpack.c.h.b16 0
  %vm3694 = vcmp.ne.s32.totalorder %v3690, %v3692
  %vm3695 = vcmp.ne.s32.totalorder %v3691, %v3693
  %vm3696 = vmpackc.low %vm3695, %vm3694
  %v3697 = vunpack.c.l.b16 %v3220
  %v3698 = vunpack.c.h.b16 %v3220
  %v3699 = vunpack.c.l.b16 0
  %v3700 = vunpack.c.h.b16 0
  %vm3701 = vcmp.ne.s32.totalorder %v3697, %v3699
  %vm3702 = vcmp.ne.s32.totalorder %v3698, %v3700
  %vm3703 = vmpackc.low %vm3702, %vm3701
  %v3704 = vunpack.c.l.b16 %v3229
  %v3705 = vunpack.c.h.b16 %v3229
  %v3706 = vunpack.c.l.b16 0
  %v3707 = vunpack.c.h.b16 0
  %vm3708 = vcmp.ne.s32.totalorder %v3704, %v3706
  %vm3709 = vcmp.ne.s32.totalorder %v3705, %v3707
  %vm3710 = vmpackc.low %vm3709, %vm3708
  %v3711 = vunpack.c.l.b16 %v3238
  %v3712 = vunpack.c.h.b16 %v3238
  %v3713 = vunpack.c.l.b16 0
  %v3714 = vunpack.c.h.b16 0
  %vm3715 = vcmp.ne.s32.totalorder %v3711, %v3713
  %vm3716 = vcmp.ne.s32.totalorder %v3712, %v3714
  %vm3717 = vmpackc.low %vm3716, %vm3715
  %v3718 = vunpack.c.l.b16 %v3247
  %v3719 = vunpack.c.h.b16 %v3247
  %v3720 = vunpack.c.l.b16 0
  %v3721 = vunpack.c.h.b16 0
  %vm3722 = vcmp.ne.s32.totalorder %v3718, %v3720
  %vm3723 = vcmp.ne.s32.totalorder %v3719, %v3721
  %vm3724 = vmpackc.low %vm3723, %vm3722
  %v3725 = vunpack.c.l.b16 %v3256
  %v3726 = vunpack.c.h.b16 %v3256
  %v3727 = vunpack.c.l.b16 0
  %v3728 = vunpack.c.h.b16 0
  %vm3729 = vcmp.ne.s32.totalorder %v3725, %v3727
  %vm3730 = vcmp.ne.s32.totalorder %v3726, %v3728
  %vm3731 = vmpackc.low %vm3730, %vm3729
  %v3732 = vunpack.c.l.b16 %v3265
  %v3733 = vunpack.c.h.b16 %v3265
  %v3734 = vunpack.c.l.b16 0
  %v3735 = vunpack.c.h.b16 0
  %vm3736 = vcmp.ne.s32.totalorder %v3732, %v3734
  %vm3737 = vcmp.ne.s32.totalorder %v3733, %v3735
  %vm3738 = vmpackc.low %vm3737, %vm3736
  %v3739 = vunpack.c.l.b16 %v3274
  %v3740 = vunpack.c.h.b16 %v3274
  %v3741 = vunpack.c.l.b16 0
  %v3742 = vunpack.c.h.b16 0
  %vm3743 = vcmp.ne.s32.totalorder %v3739, %v3741
  %vm3744 = vcmp.ne.s32.totalorder %v3740, %v3742
  %vm3745 = vmpackc.low %vm3744, %vm3743
  %v3746 = vunpack.c.l.b16 %v3283
  %v3747 = vunpack.c.h.b16 %v3283
  %v3748 = vunpack.c.l.b16 0
  %v3749 = vunpack.c.h.b16 0
  %vm3750 = vcmp.ne.s32.totalorder %v3746, %v3748
  %vm3751 = vcmp.ne.s32.totalorder %v3747, %v3749
  %vm3752 = vmpackc.low %vm3751, %vm3750
  %v3753 = vunpack.c.l.b16 %v3292
  %v3754 = vunpack.c.h.b16 %v3292
  %v3755 = vunpack.c.l.b16 0
  %v3756 = vunpack.c.h.b16 0
  %vm3757 = vcmp.ne.s32.totalorder %v3753, %v3755
  %vm3758 = vcmp.ne.s32.totalorder %v3754, %v3756
  %vm3759 = vmpackc.low %vm3758, %vm3757
  %v3760 = vunpack.c.l.b16 %v3301
  %v3761 = vunpack.c.h.b16 %v3301
  %v3762 = vunpack.c.l.b16 0
  %v3763 = vunpack.c.h.b16 0
  %vm3764 = vcmp.ne.s32.totalorder %v3760, %v3762
  %vm3765 = vcmp.ne.s32.totalorder %v3761, %v3763
  %vm3766 = vmpackc.low %vm3765, %vm3764
  %v3767 = vunpack.c.l.b16 %v3310
  %v3768 = vunpack.c.h.b16 %v3310
  %v3769 = vunpack.c.l.b16 0
  %v3770 = vunpack.c.h.b16 0
  %vm3771 = vcmp.ne.s32.totalorder %v3767, %v3769
  %vm3772 = vcmp.ne.s32.totalorder %v3768, %v3770
  %vm3773 = vmpackc.low %vm3772, %vm3771
  %v3774 = vunpack.c.l.b16 %v3319
  %v3775 = vunpack.c.h.b16 %v3319
  %v3776 = vunpack.c.l.b16 0
  %v3777 = vunpack.c.h.b16 0
  %vm3778 = vcmp.ne.s32.totalorder %v3774, %v3776
  %vm3779 = vcmp.ne.s32.totalorder %v3775, %v3777
  %vm3780 = vmpackc.low %vm3779, %vm3778
  %v3781 = vunpack.c.l.b16 %v3328
  %v3782 = vunpack.c.h.b16 %v3328
  %v3783 = vunpack.c.l.b16 0
  %v3784 = vunpack.c.h.b16 0
  %vm3785 = vcmp.ne.s32.totalorder %v3781, %v3783
  %vm3786 = vcmp.ne.s32.totalorder %v3782, %v3784
  %vm3787 = vmpackc.low %vm3786, %vm3785
  %v3788 = vunpack.c.l.b16 %v3337
  %v3789 = vunpack.c.h.b16 %v3337
  %v3790 = vunpack.c.l.b16 0
  %v3791 = vunpack.c.h.b16 0
  %vm3792 = vcmp.ne.s32.totalorder %v3788, %v3790
  %vm3793 = vcmp.ne.s32.totalorder %v3789, %v3791
  %vm3794 = vmpackc.low %vm3793, %vm3792
  %v3795 = vunpack.c.l.b16 %v3346
  %v3796 = vunpack.c.h.b16 %v3346
  %v3797 = vunpack.c.l.b16 0
  %v3798 = vunpack.c.h.b16 0
  %vm3799 = vcmp.ne.s32.totalorder %v3795, %v3797
  %vm3800 = vcmp.ne.s32.totalorder %v3796, %v3798
  %vm3801 = vmpackc.low %vm3800, %vm3799
  %v3802 = vunpack.c.l.b16 %v3355
  %v3803 = vunpack.c.h.b16 %v3355
  %v3804 = vunpack.c.l.b16 0
  %v3805 = vunpack.c.h.b16 0
  %vm3806 = vcmp.ne.s32.totalorder %v3802, %v3804
  %vm3807 = vcmp.ne.s32.totalorder %v3803, %v3805
  %vm3808 = vmpackc.low %vm3807, %vm3806
  %v3809 = vunpack.c.l.b16 %v3364
  %v3810 = vunpack.c.h.b16 %v3364
  %v3811 = vunpack.c.l.b16 0
  %v3812 = vunpack.c.h.b16 0
  %vm3813 = vcmp.ne.s32.totalorder %v3809, %v3811
  %vm3814 = vcmp.ne.s32.totalorder %v3810, %v3812
  %vm3815 = vmpackc.low %vm3814, %vm3813
  %v3816 = vunpack.c.l.b16 %v3373
  %v3817 = vunpack.c.h.b16 %v3373
  %v3818 = vunpack.c.l.b16 0
  %v3819 = vunpack.c.h.b16 0
  %vm3820 = vcmp.ne.s32.totalorder %v3816, %v3818
  %vm3821 = vcmp.ne.s32.totalorder %v3817, %v3819
  %vm3822 = vmpackc.low %vm3821, %vm3820
  %v3823 = vunpack.c.l.b16 %v3374
  %v3824 = vunpack.c.h.b16 %v3374
  %v3825 = vunpack.c.l.b16 0
  %v3826 = vunpack.c.h.b16 0
  %vm3827 = vcmp.ne.s32.totalorder %v3823, %v3825
  %vm3828 = vcmp.ne.s32.totalorder %v3824, %v3826
  %vm3829 = vmpackc.low %vm3828, %vm3827
  %v3830 = vsel %vm3381, %v674, 0
  %v3831 = vsel %vm3388, %v675, 0
  %v3832 = vsel %vm3395, %v676, 0
  %v3833 = vsel %vm3402, %v677, 0
  %v3834 = vsel %vm3409, %v678, 0
  %v3835 = vsel %vm3416, %v679, 0
  %v3836 = vsel %vm3423, %v680, 0
  %v3837 = vsel %vm3430, %v681, 0
  %v3838 = vsel %vm3437, %v682, 0
  %v3839 = vsel %vm3444, %v683, 0
  %v3840 = vsel %vm3451, %v684, 0
  %v3841 = vsel %vm3458, %v685, 0
  %v3842 = vsel %vm3465, %v686, 0
  %v3843 = vsel %vm3472, %v687, 0
  %v3844 = vsel %vm3479, %v688, 0
  %v3845 = vsel %vm3486, %v689, 0
  %v3846 = vsel %vm3493, %v690, 0
  %v3847 = vsel %vm3500, %v691, 0
  %v3848 = vsel %vm3507, %v692, 0
  %v3849 = vsel %vm3514, %v693, 0
  %v3850 = vsel %vm3521, %v694, 0
  %v3851 = vsel %vm3528, %v695, 0
  %v3852 = vsel %vm3535, %v696, 0
  %v3853 = vsel %vm3542, %v697, 0
  %v3854 = vsel %vm3549, %v698, 0
  %v3855 = vsel %vm3556, %v699, 0
  %v3856 = vsel %vm3563, %v700, 0
  %v3857 = vsel %vm3570, %v701, 0
  %v3858 = vsel %vm3577, %v702, 0
  %v3859 = vsel %vm3584, %v703, 0
  %v3860 = vsel %vm3591, %v704, 0
  %v3861 = vsel %vm3598, %v705, 0
  %v3862 = vsel %vm3605, %v706, 0
  %v3863 = vsel %vm3612, %v707, 0
  %v3864 = vsel %vm3619, %v708, 0
  %v3865 = vsel %vm3626, %v709, 0
  %v3866 = vsel %vm3633, %v710, 0
  %v3867 = vsel %vm3640, %v711, 0
  %v3868 = vsel %vm3647, %v712, 0
  %v3869 = vsel %vm3654, %v713, 0
  %v3870 = vsel %vm3661, %v714, 0
  %v3871 = vsel %vm3668, %v715, 0
  %v3872 = vsel %vm3675, %v716, 0
  %v3873 = vsel %vm3682, %v717, 0
  %v3874 = vsel %vm3689, %v718, 0
  %v3875 = vsel %vm3696, %v719, 0
  %v3876 = vsel %vm3703, %v720, 0
  %v3877 = vsel %vm3710, %v721, 0
  %v3878 = vsel %vm3717, %v722, 0
  %v3879 = vsel %vm3724, %v723, 0
  %v3880 = vsel %vm3731, %v724, 0
  %v3881 = vsel %vm3738, %v725, 0
  %v3882 = vsel %vm3745, %v726, 0
  %v3883 = vsel %vm3752, %v727, 0
  %v3884 = vsel %vm3759, %v728, 0
  %v3885 = vsel %vm3766, %v729, 0
  %v3886 = vsel %vm3773, %v730, 0
  %v3887 = vsel %vm3780, %v731, 0
  %v3888 = vsel %vm3787, %v732, 0
  %v3889 = vsel %vm3794, %v733, 0
  %v3890 = vsel %vm3801, %v734, 0
  %v3891 = vsel %vm3808, %v735, 0
  %v3892 = vsel %vm3815, %v736, 0
  %v3893 = vsel %vm3822, %v737, 0
  %v3894 = vsel %vm3829, %v2476, 0
  %v3895 = vld [vmem:[#allocation2 + $0x8] sm:$0x8]
  %v3896 = vld [vmem:[#allocation2 + $0x104] sm:$0xf]
  %v3897 = vld [vmem:[#allocation2 + $0x108] sm:$0xf]
  %v3898 = vsel %vm545, 1, 0
  %v3899 = vsel %vm546, 1, 0
  %v3900 = vsel %vm547, 1, 0
  %v3901 = vsel %vm548, 1, 0
  %v3902 = vsel %vm549, 1, 0
  %v3903 = vsel %vm550, 1, 0
  %v3904 = vsel %vm551, 1, 0
  %v3905 = vsel %vm552, 1, 0
  %v3906 = vsel %vm553, 1, 0
  %v3907 = vsel %vm554, 1, 0
  %v3908 = vsel %vm555, 1, 0
  %v3909 = vsel %vm556, 1, 0
  %v3910 = vsel %vm557, 1, 0
  %v3911 = vsel %vm558, 1, 0
  %v3912 = vsel %vm559, 1, 0
  %v3913 = vsel %vm560, 1, 0
  %v3914 = vsel %vm561, 1, 0
  %v3915 = vsel %vm562, 1, 0
  %v3916 = vsel %vm563, 1, 0
  %v3917 = vsel %vm564, 1, 0
  %v3918 = vsel %vm565, 1, 0
  %v3919 = vsel %vm566, 1, 0
  %v3920 = vsel %vm567, 1, 0
  %v3921 = vsel %vm568, 1, 0
  %v3922 = vsel %vm569, 1, 0
  %v3923 = vsel %vm570, 1, 0
  %v3924 = vsel %vm571, 1, 0
  %v3925 = vsel %vm572, 1, 0
  %v3926 = vsel %vm573, 1, 0
  %v3927 = vsel %vm574, 1, 0
  %v3928 = vsel %vm575, 1, 0
  %v3929 = vsel %vm576, 1, 0
  %v3930 = vsel %vm577, 1, 0
  %v3931 = vsel %vm578, 1, 0
  %v3932 = vsel %vm579, 1, 0
  %v3933 = vsel %vm580, 1, 0
  %v3934 = vsel %vm581, 1, 0
  %v3935 = vsel %vm582, 1, 0
  %v3936 = vsel %vm583, 1, 0
  %v3937 = vsel %vm584, 1, 0
  %v3938 = vsel %vm585, 1, 0
  %v3939 = vsel %vm586, 1, 0
  %v3940 = vsel %vm587, 1, 0
  %v3941 = vsel %vm588, 1, 0
  %v3942 = vsel %vm589, 1, 0
  %v3943 = vsel %vm590, 1, 0
  %v3944 = vsel %vm591, 1, 0
  %v3945 = vsel %vm592, 1, 0
  %v3946 = vsel %vm593, 1, 0
  %v3947 = vsel %vm594, 1, 0
  %v3948 = vsel %vm595, 1, 0
  %v3949 = vsel %vm596, 1, 0
  %v3950 = vsel %vm597, 1, 0
  %v3951 = vsel %vm598, 1, 0
  %v3952 = vsel %vm599, 1, 0
  %v3953 = vsel %vm600, 1, 0
  %v3954 = vsel %vm601, 1, 0
  %v3955 = vsel %vm602, 1, 0
  %v3956 = vsel %vm603, 1, 0
  %v3957 = vsel %vm604, 1, 0
  %v3958 = vsel %vm605, 1, 0
  %v3959 = vsel %vm606, 1, 0
  %v3960 = vsel %vm607, 1, 0
  %v3961 = vsel %vm608, 1, 0
  %vm3962 = vcmp.eq.s32.totalorder %v3898, 1
  %vm3963 = vcmp.eq.s32.totalorder %v3899, 1
  %vm3964 = vcmp.eq.s32.totalorder %v3900, 1
  %vm3965 = vcmp.eq.s32.totalorder %v3901, 1
  %vm3966 = vcmp.eq.s32.totalorder %v3902, 1
  %vm3967 = vcmp.eq.s32.totalorder %v3903, 1
  %vm3968 = vcmp.eq.s32.totalorder %v3904, 1
  %vm3969 = vcmp.eq.s32.totalorder %v3905, 1
  %vm3970 = vcmp.eq.s32.totalorder %v3906, 1
  %vm3971 = vcmp.eq.s32.totalorder %v3907, 1
  %vm3972 = vcmp.eq.s32.totalorder %v3908, 1
  %vm3973 = vcmp.eq.s32.totalorder %v3909, 1
  %vm3974 = vcmp.eq.s32.totalorder %v3910, 1
  %vm3975 = vcmp.eq.s32.totalorder %v3911, 1
  %vm3976 = vcmp.eq.s32.totalorder %v3912, 1
  %vm3977 = vcmp.eq.s32.totalorder %v3913, 1
  %vm3978 = vcmp.eq.s32.totalorder %v3914, 1
  %vm3979 = vcmp.eq.s32.totalorder %v3915, 1
  %vm3980 = vcmp.eq.s32.totalorder %v3916, 1
  %vm3981 = vcmp.eq.s32.totalorder %v3917, 1
  %vm3982 = vcmp.eq.s32.totalorder %v3918, 1
  %vm3983 = vcmp.eq.s32.totalorder %v3919, 1
  %vm3984 = vcmp.eq.s32.totalorder %v3920, 1
  %vm3985 = vcmp.eq.s32.totalorder %v3921, 1
  %vm3986 = vcmp.eq.s32.totalorder %v3922, 1
  %vm3987 = vcmp.eq.s32.totalorder %v3923, 1
  %vm3988 = vcmp.eq.s32.totalorder %v3924, 1
  %vm3989 = vcmp.eq.s32.totalorder %v3925, 1
  %vm3990 = vcmp.eq.s32.totalorder %v3926, 1
  %vm3991 = vcmp.eq.s32.totalorder %v3927, 1
  %vm3992 = vcmp.eq.s32.totalorder %v3928, 1
  %vm3993 = vcmp.eq.s32.totalorder %v3929, 1
  %vm3994 = vcmp.eq.s32.totalorder %v3930, 1
  %vm3995 = vcmp.eq.s32.totalorder %v3931, 1
  %vm3996 = vcmp.eq.s32.totalorder %v3932, 1
  %vm3997 = vcmp.eq.s32.totalorder %v3933, 1
  %vm3998 = vcmp.eq.s32.totalorder %v3934, 1
  %vm3999 = vcmp.eq.s32.totalorder %v3935, 1
  %vm4000 = vcmp.eq.s32.totalorder %v3936, 1
  %vm4001 = vcmp.eq.s32.totalorder %v3937, 1
  %vm4002 = vcmp.eq.s32.totalorder %v3938, 1
  %vm4003 = vcmp.eq.s32.totalorder %v3939, 1
  %vm4004 = vcmp.eq.s32.totalorder %v3940, 1
  %vm4005 = vcmp.eq.s32.totalorder %v3941, 1
  %vm4006 = vcmp.eq.s32.totalorder %v3942, 1
  %vm4007 = vcmp.eq.s32.totalorder %v3943, 1
  %vm4008 = vcmp.eq.s32.totalorder %v3944, 1
  %vm4009 = vcmp.eq.s32.totalorder %v3945, 1
  %vm4010 = vcmp.eq.s32.totalorder %v3946, 1
  %vm4011 = vcmp.eq.s32.totalorder %v3947, 1
  %vm4012 = vcmp.eq.s32.totalorder %v3948, 1
  %vm4013 = vcmp.eq.s32.totalorder %v3949, 1
  %vm4014 = vcmp.eq.s32.totalorder %v3950, 1
  %vm4015 = vcmp.eq.s32.totalorder %v3951, 1
  %vm4016 = vcmp.eq.s32.totalorder %v3952, 1
  %vm4017 = vcmp.eq.s32.totalorder %v3953, 1
  %vm4018 = vcmp.eq.s32.totalorder %v3954, 1
  %vm4019 = vcmp.eq.s32.totalorder %v3955, 1
  %vm4020 = vcmp.eq.s32.totalorder %v3956, 1
  %vm4021 = vcmp.eq.s32.totalorder %v3957, 1
  %vm4022 = vcmp.eq.s32.totalorder %v3958, 1
  %vm4023 = vcmp.eq.s32.totalorder %v3959, 1
  %vm4024 = vcmp.eq.s32.totalorder %v3960, 1
  %vm4025 = vcmp.eq.s32.totalorder %v3961, 1
  %vm4026 = vmpackc.low %vm3962, %vm3962
  %vm4027 = vmpackc.low %vm3963, %vm3963
  %vm4028 = vmpackc.low %vm3964, %vm3964
  %vm4029 = vmpackc.low %vm3965, %vm3965
  %vm4030 = vmpackc.low %vm3966, %vm3966
  %vm4031 = vmpackc.low %vm3967, %vm3967
  %vm4032 = vmpackc.low %vm3968, %vm3968
  %vm4033 = vmpackc.low %vm3969, %vm3969
  %vm4034 = vmpackc.low %vm3970, %vm3970
  %vm4035 = vmpackc.low %vm3971, %vm3971
  %vm4036 = vmpackc.low %vm3972, %vm3972
  %vm4037 = vmpackc.low %vm3973, %vm3973
  %vm4038 = vmpackc.low %vm3974, %vm3974
  %vm4039 = vmpackc.low %vm3975, %vm3975
  %vm4040 = vmpackc.low %vm3976, %vm3976
  %vm4041 = vmpackc.low %vm3977, %vm3977
  %vm4042 = vmpackc.low %vm3978, %vm3978
  %vm4043 = vmpackc.low %vm3979, %vm3979
  %vm4044 = vmpackc.low %vm3980, %vm3980
  %vm4045 = vmpackc.low %vm3981, %vm3981
  %vm4046 = vmpackc.low %vm3982, %vm3982
  %vm4047 = vmpackc.low %vm3983, %vm3983
  %vm4048 = vmpackc.low %vm3984, %vm3984
  %vm4049 = vmpackc.low %vm3985, %vm3985
  %vm4050 = vmpackc.low %vm3986, %vm3986
  %vm4051 = vmpackc.low %vm3987, %vm3987
  %vm4052 = vmpackc.low %vm3988, %vm3988
  %vm4053 = vmpackc.low %vm3989, %vm3989
  %vm4054 = vmpackc.low %vm3990, %vm3990
  %vm4055 = vmpackc.low %vm3991, %vm3991
  %vm4056 = vmpackc.low %vm3992, %vm3992
  %vm4057 = vmpackc.low %vm3993, %vm3993
  %vm4058 = vmpackc.low %vm3994, %vm3994
  %vm4059 = vmpackc.low %vm3995, %vm3995
  %vm4060 = vmpackc.low %vm3996, %vm3996
  %vm4061 = vmpackc.low %vm3997, %vm3997
  %vm4062 = vmpackc.low %vm3998, %vm3998
  %vm4063 = vmpackc.low %vm3999, %vm3999
  %vm4064 = vmpackc.low %vm4000, %vm4000
  %vm4065 = vmpackc.low %vm4001, %vm4001
  %vm4066 = vmpackc.low %vm4002, %vm4002
  %vm4067 = vmpackc.low %vm4003, %vm4003
  %vm4068 = vmpackc.low %vm4004, %vm4004
  %vm4069 = vmpackc.low %vm4005, %vm4005
  %vm4070 = vmpackc.low %vm4006, %vm4006
  %vm4071 = vmpackc.low %vm4007, %vm4007
  %vm4072 = vmpackc.low %vm4008, %vm4008
  %vm4073 = vmpackc.low %vm4009, %vm4009
  %vm4074 = vmpackc.low %vm4010, %vm4010
  %vm4075 = vmpackc.low %vm4011, %vm4011
  %vm4076 = vmpackc.low %vm4012, %vm4012
  %vm4077 = vmpackc.low %vm4013, %vm4013
  %vm4078 = vmpackc.low %vm4014, %vm4014
  %vm4079 = vmpackc.low %vm4015, %vm4015
  %vm4080 = vmpackc.low %vm4016, %vm4016
  %vm4081 = vmpackc.low %vm4017, %vm4017
  %vm4082 = vmpackc.low %vm4018, %vm4018
  %vm4083 = vmpackc.low %vm4019, %vm4019
  %vm4084 = vmpackc.low %vm4020, %vm4020
  %vm4085 = vmpackc.low %vm4021, %vm4021
  %vm4086 = vmpackc.low %vm4022, %vm4022
  %vm4087 = vmpackc.low %vm4023, %vm4023
  %vm4088 = vmpackc.low %vm4024, %vm4024
  %vm4089 = vmpackc.low %vm4025, %vm4025
  %v4090 = vsel %vm4026, 65537, 0
  %v4091 = vsel %vm4027, 65537, 0
  %v4092 = vsel %vm4028, 65537, 0
  %v4093 = vsel %vm4029, 65537, 0
  %v4094 = vsel %vm4030, 65537, 0
  %v4095 = vsel %vm4031, 65537, 0
  %v4096 = vsel %vm4032, 65537, 0
  %v4097 = vsel %vm4033, 65537, 0
  %v4098 = vsel %vm4034, 65537, 0
  %v4099 = vsel %vm4035, 65537, 0
  %v4100 = vsel %vm4036, 65537, 0
  %v4101 = vsel %vm4037, 65537, 0
  %v4102 = vsel %vm4038, 65537, 0
  %v4103 = vsel %vm4039, 65537, 0
  %v4104 = vsel %vm4040, 65537, 0
  %v4105 = vsel %vm4041, 65537, 0
  %v4106 = vsel %vm4042, 65537, 0
  %v4107 = vsel %vm4043, 65537, 0
  %v4108 = vsel %vm4044, 65537, 0
  %v4109 = vsel %vm4045, 65537, 0
  %v4110 = vsel %vm4046, 65537, 0
  %v4111 = vsel %vm4047, 65537, 0
  %v4112 = vsel %vm4048, 65537, 0
  %v4113 = vsel %vm4049, 65537, 0
  %v4114 = vsel %vm4050, 65537, 0
  %v4115 = vsel %vm4051, 65537, 0
  %v4116 = vsel %vm4052, 65537, 0
  %v4117 = vsel %vm4053, 65537, 0
  %v4118 = vsel %vm4054, 65537, 0
  %v4119 = vsel %vm4055, 65537, 0
  %v4120 = vsel %vm4056, 65537, 0
  %v4121 = vsel %vm4057, 65537, 0
  %v4122 = vsel %vm4058, 65537, 0
  %v4123 = vsel %vm4059, 65537, 0
  %v4124 = vsel %vm4060, 65537, 0
  %v4125 = vsel %vm4061, 65537, 0
  %v4126 = vsel %vm4062, 65537, 0
  %v4127 = vsel %vm4063, 65537, 0
  %v4128 = vsel %vm4064, 65537, 0
  %v4129 = vsel %vm4065, 65537, 0
  %v4130 = vsel %vm4066, 65537, 0
  %v4131 = vsel %vm4067, 65537, 0
  %v4132 = vsel %vm4068, 65537, 0
  %v4133 = vsel %vm4069, 65537, 0
  %v4134 = vsel %vm4070, 65537, 0
  %v4135 = vsel %vm4071, 65537, 0
  %v4136 = vsel %vm4072, 65537, 0
  %v4137 = vsel %vm4073, 65537, 0
  %v4138 = vsel %vm4074, 65537, 0
  %v4139 = vsel %vm4075, 65537, 0
  %v4140 = vsel %vm4076, 65537, 0
  %v4141 = vsel %vm4077, 65537, 0
  %v4142 = vsel %vm4078, 65537, 0
  %v4143 = vsel %vm4079, 65537, 0
  %v4144 = vsel %vm4080, 65537, 0
  %v4145 = vsel %vm4081, 65537, 0
  %v4146 = vsel %vm4082, 65537, 0
  %v4147 = vsel %vm4083, 65537, 0
  %v4148 = vsel %vm4084, 65537, 0
  %v4149 = vsel %vm4085, 65537, 0
  %v4150 = vsel %vm4086, 65537, 0
  %v4151 = vsel %vm4087, 65537, 0
  %v4152 = vsel %vm4088, 65537, 0
  %v4153 = vsel %vm4089, 65537, 0
  %v4155 = vshll.u32 %v4090, 16
  %v4157 = vrot.slane %v4155, 5
  %v4158 = vshrl.u32 %v4090, 16
  %v4160 = vrot.slane %v4158, 4
  %v4161 = vor.u32 %v4160, %v4157
  %v4162 = vrot.slane %v4161, 4
  %v4164 = vshll.u32 %v4091, 16
  %v4166 = vrot.slane %v4164, 5
  %v4167 = vsel %vm1060, %v4162, %v4166
  %v4168 = vshrl.u32 %v4091, 16
  %v4170 = vrot.slane %v4168, 4
  %v4171 = vor.u32 %v4170, %v4166
  %v4172 = vrot.slane %v4171, 4
  %v4174 = vshll.u32 %v4092, 16
  %v4176 = vrot.slane %v4174, 5
  %v4177 = vsel %vm1060, %v4172, %v4176
  %v4178 = vshrl.u32 %v4092, 16
  %v4180 = vrot.slane %v4178, 4
  %v4181 = vor.u32 %v4180, %v4176
  %v4182 = vrot.slane %v4181, 4
  %v4184 = vshll.u32 %v4093, 16
  %v4186 = vrot.slane %v4184, 5
  %v4187 = vsel %vm1060, %v4182, %v4186
  %v4188 = vshrl.u32 %v4093, 16
  %v4190 = vrot.slane %v4188, 4
  %v4191 = vor.u32 %v4190, %v4186
  %v4192 = vrot.slane %v4191, 4
  %v4194 = vshll.u32 %v4094, 16
  %v4196 = vrot.slane %v4194, 5
  %v4197 = vsel %vm1060, %v4192, %v4196
  %v4198 = vshrl.u32 %v4094, 16
  %v4200 = vrot.slane %v4198, 4
  %v4201 = vor.u32 %v4200, %v4196
  %v4202 = vrot.slane %v4201, 4
  %v4204 = vshll.u32 %v4095, 16
  %v4206 = vrot.slane %v4204, 5
  %v4207 = vsel %vm1060, %v4202, %v4206
  %v4208 = vshrl.u32 %v4095, 16
  %v4210 = vrot.slane %v4208, 4
  %v4211 = vor.u32 %v4210, %v4206
  %v4212 = vrot.slane %v4211, 4
  %v4214 = vshll.u32 %v4096, 16
  %v4216 = vrot.slane %v4214, 5
  %v4217 = vsel %vm1060, %v4212, %v4216
  %v4218 = vshrl.u32 %v4096, 16
  %v4220 = vrot.slane %v4218, 4
  %v4221 = vor.u32 %v4220, %v4216
  %v4222 = vrot.slane %v4221, 4
  %v4224 = vshll.u32 %v4097, 16
  %v4226 = vrot.slane %v4224, 5
  %v4227 = vsel %vm1060, %v4222, %v4226
  %v4228 = vshrl.u32 %v4097, 16
  %v4230 = vrot.slane %v4228, 4
  %v4231 = vor.u32 %v4230, %v4226
  %v4232 = vrot.slane %v4231, 4
  %v4234 = vshll.u32 %v4098, 16
  %v4236 = vrot.slane %v4234, 5
  %v4237 = vsel %vm1060, %v4232, %v4236
  %v4238 = vshrl.u32 %v4098, 16
  %v4240 = vrot.slane %v4238, 4
  %v4241 = vor.u32 %v4240, %v4236
  %v4242 = vrot.slane %v4241, 4
  %v4244 = vshll.u32 %v4099, 16
  %v4246 = vrot.slane %v4244, 5
  %v4247 = vsel %vm1060, %v4242, %v4246
  %v4248 = vshrl.u32 %v4099, 16
  %v4250 = vrot.slane %v4248, 4
  %v4251 = vor.u32 %v4250, %v4246
  %v4252 = vrot.slane %v4251, 4
  %v4254 = vshll.u32 %v4100, 16
  %v4256 = vrot.slane %v4254, 5
  %v4257 = vsel %vm1060, %v4252, %v4256
  %v4258 = vshrl.u32 %v4100, 16
  %v4260 = vrot.slane %v4258, 4
  %v4261 = vor.u32 %v4260, %v4256
  %v4262 = vrot.slane %v4261, 4
  %v4264 = vshll.u32 %v4101, 16
  %v4266 = vrot.slane %v4264, 5
  %v4267 = vsel %vm1060, %v4262, %v4266
  %v4268 = vshrl.u32 %v4101, 16
  %v4270 = vrot.slane %v4268, 4
  %v4271 = vor.u32 %v4270, %v4266
  %v4272 = vrot.slane %v4271, 4
  %v4274 = vshll.u32 %v4102, 16
  %v4276 = vrot.slane %v4274, 5
  %v4277 = vsel %vm1060, %v4272, %v4276
  %v4278 = vshrl.u32 %v4102, 16
  %v4280 = vrot.slane %v4278, 4
  %v4281 = vor.u32 %v4280, %v4276
  %v4282 = vrot.slane %v4281, 4
  %v4284 = vshll.u32 %v4103, 16
  %v4286 = vrot.slane %v4284, 5
  %v4287 = vsel %vm1060, %v4282, %v4286
  %v4288 = vshrl.u32 %v4103, 16
  %v4290 = vrot.slane %v4288, 4
  %v4291 = vor.u32 %v4290, %v4286
  %v4292 = vrot.slane %v4291, 4
  %v4294 = vshll.u32 %v4104, 16
  %v4296 = vrot.slane %v4294, 5
  %v4297 = vsel %vm1060, %v4292, %v4296
  %v4298 = vshrl.u32 %v4104, 16
  %v4300 = vrot.slane %v4298, 4
  %v4301 = vor.u32 %v4300, %v4296
  %v4302 = vrot.slane %v4301, 4
  %v4304 = vshll.u32 %v4105, 16
  %v4306 = vrot.slane %v4304, 5
  %v4307 = vsel %vm1060, %v4302, %v4306
  %v4308 = vshrl.u32 %v4105, 16
  %v4310 = vrot.slane %v4308, 4
  %v4311 = vor.u32 %v4310, %v4306
  %v4312 = vrot.slane %v4311, 4
  %v4314 = vshll.u32 %v4106, 16
  %v4316 = vrot.slane %v4314, 5
  %v4317 = vsel %vm1060, %v4312, %v4316
  %v4318 = vshrl.u32 %v4106, 16
  %v4320 = vrot.slane %v4318, 4
  %v4321 = vor.u32 %v4320, %v4316
  %v4322 = vrot.slane %v4321, 4
  %v4324 = vshll.u32 %v4107, 16
  %v4326 = vrot.slane %v4324, 5
  %v4327 = vsel %vm1060, %v4322, %v4326
  %v4328 = vshrl.u32 %v4107, 16
  %v4330 = vrot.slane %v4328, 4
  %v4331 = vor.u32 %v4330, %v4326
  %v4332 = vrot.slane %v4331, 4
  %v4334 = vshll.u32 %v4108, 16
  %v4336 = vrot.slane %v4334, 5
  %v4337 = vsel %vm1060, %v4332, %v4336
  %v4338 = vshrl.u32 %v4108, 16
  %v4340 = vrot.slane %v4338, 4
  %v4341 = vor.u32 %v4340, %v4336
  %v4342 = vrot.slane %v4341, 4
  %v4344 = vshll.u32 %v4109, 16
  %v4346 = vrot.slane %v4344, 5
  %v4347 = vsel %vm1060, %v4342, %v4346
  %v4348 = vshrl.u32 %v4109, 16
  %v4350 = vrot.slane %v4348, 4
  %v4351 = vor.u32 %v4350, %v4346
  %v4352 = vrot.slane %v4351, 4
  %v4354 = vshll.u32 %v4110, 16
  %v4356 = vrot.slane %v4354, 5
  %v4357 = vsel %vm1060, %v4352, %v4356
  %v4358 = vshrl.u32 %v4110, 16
  %v4360 = vrot.slane %v4358, 4
  %v4361 = vor.u32 %v4360, %v4356
  %v4362 = vrot.slane %v4361, 4
  %v4364 = vshll.u32 %v4111, 16
  %v4366 = vrot.slane %v4364, 5
  %v4367 = vsel %vm1060, %v4362, %v4366
  %v4368 = vshrl.u32 %v4111, 16
  %v4370 = vrot.slane %v4368, 4
  %v4371 = vor.u32 %v4370, %v4366
  %v4372 = vrot.slane %v4371, 4
  %v4374 = vshll.u32 %v4112, 16
  %v4376 = vrot.slane %v4374, 5
  %v4377 = vsel %vm1060, %v4372, %v4376
  %v4378 = vshrl.u32 %v4112, 16
  %v4380 = vrot.slane %v4378, 4
  %v4381 = vor.u32 %v4380, %v4376
  %v4382 = vrot.slane %v4381, 4
  %v4384 = vshll.u32 %v4113, 16
  %v4386 = vrot.slane %v4384, 5
  %v4387 = vsel %vm1060, %v4382, %v4386
  %v4388 = vshrl.u32 %v4113, 16
  %v4390 = vrot.slane %v4388, 4
  %v4391 = vor.u32 %v4390, %v4386
  %v4392 = vrot.slane %v4391, 4
  %v4394 = vshll.u32 %v4114, 16
  %v4396 = vrot.slane %v4394, 5
  %v4397 = vsel %vm1060, %v4392, %v4396
  %v4398 = vshrl.u32 %v4114, 16
  %v4400 = vrot.slane %v4398, 4
  %v4401 = vor.u32 %v4400, %v4396
  %v4402 = vrot.slane %v4401, 4
  %v4404 = vshll.u32 %v4115, 16
  %v4406 = vrot.slane %v4404, 5
  %v4407 = vsel %vm1060, %v4402, %v4406
  %v4408 = vshrl.u32 %v4115, 16
  %v4410 = vrot.slane %v4408, 4
  %v4411 = vor.u32 %v4410, %v4406
  %v4412 = vrot.slane %v4411, 4
  %v4414 = vshll.u32 %v4116, 16
  %v4416 = vrot.slane %v4414, 5
  %v4417 = vsel %vm1060, %v4412, %v4416
  %v4418 = vshrl.u32 %v4116, 16
  %v4420 = vrot.slane %v4418, 4
  %v4421 = vor.u32 %v4420, %v4416
  %v4422 = vrot.slane %v4421, 4
  %v4424 = vshll.u32 %v4117, 16
  %v4426 = vrot.slane %v4424, 5
  %v4427 = vsel %vm1060, %v4422, %v4426
  %v4428 = vshrl.u32 %v4117, 16
  %v4430 = vrot.slane %v4428, 4
  %v4431 = vor.u32 %v4430, %v4426
  %v4432 = vrot.slane %v4431, 4
  %v4434 = vshll.u32 %v4118, 16
  %v4436 = vrot.slane %v4434, 5
  %v4437 = vsel %vm1060, %v4432, %v4436
  %v4438 = vshrl.u32 %v4118, 16
  %v4440 = vrot.slane %v4438, 4
  %v4441 = vor.u32 %v4440, %v4436
  %v4442 = vrot.slane %v4441, 4
  %v4444 = vshll.u32 %v4119, 16
  %v4446 = vrot.slane %v4444, 5
  %v4447 = vsel %vm1060, %v4442, %v4446
  %v4448 = vshrl.u32 %v4119, 16
  %v4450 = vrot.slane %v4448, 4
  %v4451 = vor.u32 %v4450, %v4446
  %v4452 = vrot.slane %v4451, 4
  %v4454 = vshll.u32 %v4120, 16
  %v4456 = vrot.slane %v4454, 5
  %v4457 = vsel %vm1060, %v4452, %v4456
  %v4458 = vshrl.u32 %v4120, 16
  %v4460 = vrot.slane %v4458, 4
  %v4461 = vor.u32 %v4460, %v4456
  %v4462 = vrot.slane %v4461, 4
  %v4464 = vshll.u32 %v4121, 16
  %v4466 = vrot.slane %v4464, 5
  %v4467 = vsel %vm1060, %v4462, %v4466
  %v4468 = vshrl.u32 %v4121, 16
  %v4470 = vrot.slane %v4468, 4
  %v4471 = vor.u32 %v4470, %v4466
  %v4472 = vrot.slane %v4471, 4
  %v4474 = vshll.u32 %v4122, 16
  %v4476 = vrot.slane %v4474, 5
  %v4477 = vsel %vm1060, %v4472, %v4476
  %v4478 = vshrl.u32 %v4122, 16
  %v4480 = vrot.slane %v4478, 4
  %v4481 = vor.u32 %v4480, %v4476
  %v4482 = vrot.slane %v4481, 4
  %v4484 = vshll.u32 %v4123, 16
  %v4486 = vrot.slane %v4484, 5
  %v4487 = vsel %vm1060, %v4482, %v4486
  %v4488 = vshrl.u32 %v4123, 16
  %v4490 = vrot.slane %v4488, 4
  %v4491 = vor.u32 %v4490, %v4486
  %v4492 = vrot.slane %v4491, 4
  %v4494 = vshll.u32 %v4124, 16
  %v4496 = vrot.slane %v4494, 5
  %v4497 = vsel %vm1060, %v4492, %v4496
  %v4498 = vshrl.u32 %v4124, 16
  %v4500 = vrot.slane %v4498, 4
  %v4501 = vor.u32 %v4500, %v4496
  %v4502 = vrot.slane %v4501, 4
  %v4504 = vshll.u32 %v4125, 16
  %v4506 = vrot.slane %v4504, 5
  %v4507 = vsel %vm1060, %v4502, %v4506
  %v4508 = vshrl.u32 %v4125, 16
  %v4510 = vrot.slane %v4508, 4
  %v4511 = vor.u32 %v4510, %v4506
  %v4512 = vrot.slane %v4511, 4
  %v4514 = vshll.u32 %v4126, 16
  %v4516 = vrot.slane %v4514, 5
  %v4517 = vsel %vm1060, %v4512, %v4516
  %v4518 = vshrl.u32 %v4126, 16
  %v4520 = vrot.slane %v4518, 4
  %v4521 = vor.u32 %v4520, %v4516
  %v4522 = vrot.slane %v4521, 4
  %v4524 = vshll.u32 %v4127, 16
  %v4526 = vrot.slane %v4524, 5
  %v4527 = vsel %vm1060, %v4522, %v4526
  %v4528 = vshrl.u32 %v4127, 16
  %v4530 = vrot.slane %v4528, 4
  %v4531 = vor.u32 %v4530, %v4526
  %v4532 = vrot.slane %v4531, 4
  %v4534 = vshll.u32 %v4128, 16
  %v4536 = vrot.slane %v4534, 5
  %v4537 = vsel %vm1060, %v4532, %v4536
  %v4538 = vshrl.u32 %v4128, 16
  %v4540 = vrot.slane %v4538, 4
  %v4541 = vor.u32 %v4540, %v4536
  %v4542 = vrot.slane %v4541, 4
  %v4544 = vshll.u32 %v4129, 16
  %v4546 = vrot.slane %v4544, 5
  %v4547 = vsel %vm1060, %v4542, %v4546
  %v4548 = vshrl.u32 %v4129, 16
  %v4550 = vrot.slane %v4548, 4
  %v4551 = vor.u32 %v4550, %v4546
  %v4552 = vrot.slane %v4551, 4
  %v4554 = vshll.u32 %v4130, 16
  %v4556 = vrot.slane %v4554, 5
  %v4557 = vsel %vm1060, %v4552, %v4556
  %v4558 = vshrl.u32 %v4130, 16
  %v4560 = vrot.slane %v4558, 4
  %v4561 = vor.u32 %v4560, %v4556
  %v4562 = vrot.slane %v4561, 4
  %v4564 = vshll.u32 %v4131, 16
  %v4566 = vrot.slane %v4564, 5
  %v4567 = vsel %vm1060, %v4562, %v4566
  %v4568 = vshrl.u32 %v4131, 16
  %v4570 = vrot.slane %v4568, 4
  %v4571 = vor.u32 %v4570, %v4566
  %v4572 = vrot.slane %v4571, 4
  %v4574 = vshll.u32 %v4132, 16
  %v4576 = vrot.slane %v4574, 5
  %v4577 = vsel %vm1060, %v4572, %v4576
  %v4578 = vshrl.u32 %v4132, 16
  %v4580 = vrot.slane %v4578, 4
  %v4581 = vor.u32 %v4580, %v4576
  %v4582 = vrot.slane %v4581, 4
  %v4584 = vshll.u32 %v4133, 16
  %v4586 = vrot.slane %v4584, 5
  %v4587 = vsel %vm1060, %v4582, %v4586
  %v4588 = vshrl.u32 %v4133, 16
  %v4590 = vrot.slane %v4588, 4
  %v4591 = vor.u32 %v4590, %v4586
  %v4592 = vrot.slane %v4591, 4
  %v4594 = vshll.u32 %v4134, 16
  %v4596 = vrot.slane %v4594, 5
  %v4597 = vsel %vm1060, %v4592, %v4596
  %v4598 = vshrl.u32 %v4134, 16
  %v4600 = vrot.slane %v4598, 4
  %v4601 = vor.u32 %v4600, %v4596
  %v4602 = vrot.slane %v4601, 4
  %v4604 = vshll.u32 %v4135, 16
  %v4606 = vrot.slane %v4604, 5
  %v4607 = vsel %vm1060, %v4602, %v4606
  %v4608 = vshrl.u32 %v4135, 16
  %v4610 = vrot.slane %v4608, 4
  %v4611 = vor.u32 %v4610, %v4606
  %v4612 = vrot.slane %v4611, 4
  %v4614 = vshll.u32 %v4136, 16
  %v4616 = vrot.slane %v4614, 5
  %v4617 = vsel %vm1060, %v4612, %v4616
  %v4618 = vshrl.u32 %v4136, 16
  %v4620 = vrot.slane %v4618, 4
  %v4621 = vor.u32 %v4620, %v4616
  %v4622 = vrot.slane %v4621, 4
  %v4624 = vshll.u32 %v4137, 16
  %v4626 = vrot.slane %v4624, 5
  %v4627 = vsel %vm1060, %v4622, %v4626
  %v4628 = vshrl.u32 %v4137, 16
  %v4630 = vrot.slane %v4628, 4
  %v4631 = vor.u32 %v4630, %v4626
  %v4632 = vrot.slane %v4631, 4
  %v4634 = vshll.u32 %v4138, 16
  %v4636 = vrot.slane %v4634, 5
  %v4637 = vsel %vm1060, %v4632, %v4636
  %v4638 = vshrl.u32 %v4138, 16
  %v4640 = vrot.slane %v4638, 4
  %v4641 = vor.u32 %v4640, %v4636
  %v4642 = vrot.slane %v4641, 4
  %v4644 = vshll.u32 %v4139, 16
  %v4646 = vrot.slane %v4644, 5
  %v4647 = vsel %vm1060, %v4642, %v4646
  %v4648 = vshrl.u32 %v4139, 16
  %v4650 = vrot.slane %v4648, 4
  %v4651 = vor.u32 %v4650, %v4646
  %v4652 = vrot.slane %v4651, 4
  %v4654 = vshll.u32 %v4140, 16
  %v4656 = vrot.slane %v4654, 5
  %v4657 = vsel %vm1060, %v4652, %v4656
  %v4658 = vshrl.u32 %v4140, 16
  %v4660 = vrot.slane %v4658, 4
  %v4661 = vor.u32 %v4660, %v4656
  %v4662 = vrot.slane %v4661, 4
  %v4664 = vshll.u32 %v4141, 16
  %v4666 = vrot.slane %v4664, 5
  %v4667 = vsel %vm1060, %v4662, %v4666
  %v4668 = vshrl.u32 %v4141, 16
  %v4670 = vrot.slane %v4668, 4
  %v4671 = vor.u32 %v4670, %v4666
  %v4672 = vrot.slane %v4671, 4
  %v4674 = vshll.u32 %v4142, 16
  %v4676 = vrot.slane %v4674, 5
  %v4677 = vsel %vm1060, %v4672, %v4676
  %v4678 = vshrl.u32 %v4142, 16
  %v4680 = vrot.slane %v4678, 4
  %v4681 = vor.u32 %v4680, %v4676
  %v4682 = vrot.slane %v4681, 4
  %v4684 = vshll.u32 %v4143, 16
  %v4686 = vrot.slane %v4684, 5
  %v4687 = vsel %vm1060, %v4682, %v4686
  %v4688 = vshrl.u32 %v4143, 16
  %v4690 = vrot.slane %v4688, 4
  %v4691 = vor.u32 %v4690, %v4686
  %v4692 = vrot.slane %v4691, 4
  %v4694 = vshll.u32 %v4144, 16
  %v4696 = vrot.slane %v4694, 5
  %v4697 = vsel %vm1060, %v4692, %v4696
  %v4698 = vshrl.u32 %v4144, 16
  %v4700 = vrot.slane %v4698, 4
  %v4701 = vor.u32 %v4700, %v4696
  %v4702 = vrot.slane %v4701, 4
  %v4704 = vshll.u32 %v4145, 16
  %v4706 = vrot.slane %v4704, 5
  %v4707 = vsel %vm1060, %v4702, %v4706
  %v4708 = vshrl.u32 %v4145, 16
  %v4710 = vrot.slane %v4708, 4
  %v4711 = vor.u32 %v4710, %v4706
  %v4712 = vrot.slane %v4711, 4
  %v4714 = vshll.u32 %v4146, 16
  %v4716 = vrot.slane %v4714, 5
  %v4717 = vsel %vm1060, %v4712, %v4716
  %v4718 = vshrl.u32 %v4146, 16
  %v4720 = vrot.slane %v4718, 4
  %v4721 = vor.u32 %v4720, %v4716
  %v4722 = vrot.slane %v4721, 4
  %v4724 = vshll.u32 %v4147, 16
  %v4726 = vrot.slane %v4724, 5
  %v4727 = vsel %vm1060, %v4722, %v4726
  %v4728 = vshrl.u32 %v4147, 16
  %v4730 = vrot.slane %v4728, 4
  %v4731 = vor.u32 %v4730, %v4726
  %v4732 = vrot.slane %v4731, 4
  %v4734 = vshll.u32 %v4148, 16
  %v4736 = vrot.slane %v4734, 5
  %v4737 = vsel %vm1060, %v4732, %v4736
  %v4738 = vshrl.u32 %v4148, 16
  %v4740 = vrot.slane %v4738, 4
  %v4741 = vor.u32 %v4740, %v4736
  %v4742 = vrot.slane %v4741, 4
  %v4744 = vshll.u32 %v4149, 16
  %v4746 = vrot.slane %v4744, 5
  %v4747 = vsel %vm1060, %v4742, %v4746
  %v4748 = vshrl.u32 %v4149, 16
  %v4750 = vrot.slane %v4748, 4
  %v4751 = vor.u32 %v4750, %v4746
  %v4752 = vrot.slane %v4751, 4
  %v4754 = vshll.u32 %v4150, 16
  %v4756 = vrot.slane %v4754, 5
  %v4757 = vsel %vm1060, %v4752, %v4756
  %v4758 = vshrl.u32 %v4150, 16
  %v4760 = vrot.slane %v4758, 4
  %v4761 = vor.u32 %v4760, %v4756
  %v4762 = vrot.slane %v4761, 4
  %v4764 = vshll.u32 %v4151, 16
  %v4766 = vrot.slane %v4764, 5
  %v4767 = vsel %vm1060, %v4762, %v4766
  %v4768 = vshrl.u32 %v4151, 16
  %v4770 = vrot.slane %v4768, 4
  %v4771 = vor.u32 %v4770, %v4766
  %v4772 = vrot.slane %v4771, 4
  %v4774 = vshll.u32 %v4152, 16
  %v4776 = vrot.slane %v4774, 5
  %v4777 = vsel %vm1060, %v4772, %v4776
  %v4778 = vshrl.u32 %v4152, 16
  %v4780 = vrot.slane %v4778, 4
  %v4781 = vor.u32 %v4780, %v4776
  %v4782 = vrot.slane %v4781, 4
  %v4784 = vshll.u32 %v4153, 16
  %v4786 = vrot.slane %v4784, 5
  %v4787 = vsel %vm1060, %v4782, %v4786
  %v4788 = vshrl.u32 %v4153, 16
  %v4790 = vrot.slane %v4788, 4
  %v4791 = vor.u32 %v4790, %v4786
  %v4792 = vrot.slane %v4791, 4
  %v4793 = vunpack.c.l.b16 %v4157
  %v4794 = vunpack.c.h.b16 %v4157
  %v4795 = vunpack.c.l.b16 0
  %v4796 = vunpack.c.h.b16 0
  %vm4797 = vcmp.ne.s32.totalorder %v4793, %v4795
  %vm4798 = vcmp.ne.s32.totalorder %v4794, %v4796
  %vm4799 = vmpackc.low %vm4798, %vm4797
  %v4800 = vunpack.c.l.b16 %v4167
  %v4801 = vunpack.c.h.b16 %v4167
  %v4802 = vunpack.c.l.b16 0
  %v4803 = vunpack.c.h.b16 0
  %vm4804 = vcmp.ne.s32.totalorder %v4800, %v4802
  %vm4805 = vcmp.ne.s32.totalorder %v4801, %v4803
  %vm4806 = vmpackc.low %vm4805, %vm4804
  %v4807 = vunpack.c.l.b16 %v4177
  %v4808 = vunpack.c.h.b16 %v4177
  %v4809 = vunpack.c.l.b16 0
  %v4810 = vunpack.c.h.b16 0
  %vm4811 = vcmp.ne.s32.totalorder %v4807, %v4809
  %vm4812 = vcmp.ne.s32.totalorder %v4808, %v4810
  %vm4813 = vmpackc.low %vm4812, %vm4811
  %v4814 = vunpack.c.l.b16 %v4187
  %v4815 = vunpack.c.h.b16 %v4187
  %v4816 = vunpack.c.l.b16 0
  %v4817 = vunpack.c.h.b16 0
  %vm4818 = vcmp.ne.s32.totalorder %v4814, %v4816
  %vm4819 = vcmp.ne.s32.totalorder %v4815, %v4817
  %vm4820 = vmpackc.low %vm4819, %vm4818
  %v4821 = vunpack.c.l.b16 %v4197
  %v4822 = vunpack.c.h.b16 %v4197
  %v4823 = vunpack.c.l.b16 0
  %v4824 = vunpack.c.h.b16 0
  %vm4825 = vcmp.ne.s32.totalorder %v4821, %v4823
  %vm4826 = vcmp.ne.s32.totalorder %v4822, %v4824
  %vm4827 = vmpackc.low %vm4826, %vm4825
  %v4828 = vunpack.c.l.b16 %v4207
  %v4829 = vunpack.c.h.b16 %v4207
  %v4830 = vunpack.c.l.b16 0
  %v4831 = vunpack.c.h.b16 0
  %vm4832 = vcmp.ne.s32.totalorder %v4828, %v4830
  %vm4833 = vcmp.ne.s32.totalorder %v4829, %v4831
  %vm4834 = vmpackc.low %vm4833, %vm4832
  %v4835 = vunpack.c.l.b16 %v4217
  %v4836 = vunpack.c.h.b16 %v4217
  %v4837 = vunpack.c.l.b16 0
  %v4838 = vunpack.c.h.b16 0
  %vm4839 = vcmp.ne.s32.totalorder %v4835, %v4837
  %vm4840 = vcmp.ne.s32.totalorder %v4836, %v4838
  %vm4841 = vmpackc.low %vm4840, %vm4839
  %v4842 = vunpack.c.l.b16 %v4227
  %v4843 = vunpack.c.h.b16 %v4227
  %v4844 = vunpack.c.l.b16 0
  %v4845 = vunpack.c.h.b16 0
  %vm4846 = vcmp.ne.s32.totalorder %v4842, %v4844
  %vm4847 = vcmp.ne.s32.totalorder %v4843, %v4845
  %vm4848 = vmpackc.low %vm4847, %vm4846
  %v4849 = vunpack.c.l.b16 %v4237
  %v4850 = vunpack.c.h.b16 %v4237
  %v4851 = vunpack.c.l.b16 0
  %v4852 = vunpack.c.h.b16 0
  %vm4853 = vcmp.ne.s32.totalorder %v4849, %v4851
  %vm4854 = vcmp.ne.s32.totalorder %v4850, %v4852
  %vm4855 = vmpackc.low %vm4854, %vm4853
  %v4856 = vunpack.c.l.b16 %v4247
  %v4857 = vunpack.c.h.b16 %v4247
  %v4858 = vunpack.c.l.b16 0
  %v4859 = vunpack.c.h.b16 0
  %vm4860 = vcmp.ne.s32.totalorder %v4856, %v4858
  %vm4861 = vcmp.ne.s32.totalorder %v4857, %v4859
  %vm4862 = vmpackc.low %vm4861, %vm4860
  %v4863 = vunpack.c.l.b16 %v4257
  %v4864 = vunpack.c.h.b16 %v4257
  %v4865 = vunpack.c.l.b16 0
  %v4866 = vunpack.c.h.b16 0
  %vm4867 = vcmp.ne.s32.totalorder %v4863, %v4865
  %vm4868 = vcmp.ne.s32.totalorder %v4864, %v4866
  %vm4869 = vmpackc.low %vm4868, %vm4867
  %v4870 = vunpack.c.l.b16 %v4267
  %v4871 = vunpack.c.h.b16 %v4267
  %v4872 = vunpack.c.l.b16 0
  %v4873 = vunpack.c.h.b16 0
  %vm4874 = vcmp.ne.s32.totalorder %v4870, %v4872
  %vm4875 = vcmp.ne.s32.totalorder %v4871, %v4873
  %vm4876 = vmpackc.low %vm4875, %vm4874
  %v4877 = vunpack.c.l.b16 %v4277
  %v4878 = vunpack.c.h.b16 %v4277
  %v4879 = vunpack.c.l.b16 0
  %v4880 = vunpack.c.h.b16 0
  %vm4881 = vcmp.ne.s32.totalorder %v4877, %v4879
  %vm4882 = vcmp.ne.s32.totalorder %v4878, %v4880
  %vm4883 = vmpackc.low %vm4882, %vm4881
  %v4884 = vunpack.c.l.b16 %v4287
  %v4885 = vunpack.c.h.b16 %v4287
  %v4886 = vunpack.c.l.b16 0
  %v4887 = vunpack.c.h.b16 0
  %vm4888 = vcmp.ne.s32.totalorder %v4884, %v4886
  %vm4889 = vcmp.ne.s32.totalorder %v4885, %v4887
  %vm4890 = vmpackc.low %vm4889, %vm4888
  %v4891 = vunpack.c.l.b16 %v4297
  %v4892 = vunpack.c.h.b16 %v4297
  %v4893 = vunpack.c.l.b16 0
  %v4894 = vunpack.c.h.b16 0
  %vm4895 = vcmp.ne.s32.totalorder %v4891, %v4893
  %vm4896 = vcmp.ne.s32.totalorder %v4892, %v4894
  %vm4897 = vmpackc.low %vm4896, %vm4895
  %v4898 = vunpack.c.l.b16 %v4307
  %v4899 = vunpack.c.h.b16 %v4307
  %v4900 = vunpack.c.l.b16 0
  %v4901 = vunpack.c.h.b16 0
  %vm4902 = vcmp.ne.s32.totalorder %v4898, %v4900
  %vm4903 = vcmp.ne.s32.totalorder %v4899, %v4901
  %vm4904 = vmpackc.low %vm4903, %vm4902
  %v4905 = vunpack.c.l.b16 %v4317
  %v4906 = vunpack.c.h.b16 %v4317
  %v4907 = vunpack.c.l.b16 0
  %v4908 = vunpack.c.h.b16 0
  %vm4909 = vcmp.ne.s32.totalorder %v4905, %v4907
  %vm4910 = vcmp.ne.s32.totalorder %v4906, %v4908
  %vm4911 = vmpackc.low %vm4910, %vm4909
  %v4912 = vunpack.c.l.b16 %v4327
  %v4913 = vunpack.c.h.b16 %v4327
  %v4914 = vunpack.c.l.b16 0
  %v4915 = vunpack.c.h.b16 0
  %vm4916 = vcmp.ne.s32.totalorder %v4912, %v4914
  %vm4917 = vcmp.ne.s32.totalorder %v4913, %v4915
  %vm4918 = vmpackc.low %vm4917, %vm4916
  %v4919 = vunpack.c.l.b16 %v4337
  %v4920 = vunpack.c.h.b16 %v4337
  %v4921 = vunpack.c.l.b16 0
  %v4922 = vunpack.c.h.b16 0
  %vm4923 = vcmp.ne.s32.totalorder %v4919, %v4921
  %vm4924 = vcmp.ne.s32.totalorder %v4920, %v4922
  %vm4925 = vmpackc.low %vm4924, %vm4923
  %v4926 = vunpack.c.l.b16 %v4347
  %v4927 = vunpack.c.h.b16 %v4347
  %v4928 = vunpack.c.l.b16 0
  %v4929 = vunpack.c.h.b16 0
  %vm4930 = vcmp.ne.s32.totalorder %v4926, %v4928
  %vm4931 = vcmp.ne.s32.totalorder %v4927, %v4929
  %vm4932 = vmpackc.low %vm4931, %vm4930
  %v4933 = vunpack.c.l.b16 %v4357
  %v4934 = vunpack.c.h.b16 %v4357
  %v4935 = vunpack.c.l.b16 0
  %v4936 = vunpack.c.h.b16 0
  %vm4937 = vcmp.ne.s32.totalorder %v4933, %v4935
  %vm4938 = vcmp.ne.s32.totalorder %v4934, %v4936
  %vm4939 = vmpackc.low %vm4938, %vm4937
  %v4940 = vunpack.c.l.b16 %v4367
  %v4941 = vunpack.c.h.b16 %v4367
  %v4942 = vunpack.c.l.b16 0
  %v4943 = vunpack.c.h.b16 0
  %vm4944 = vcmp.ne.s32.totalorder %v4940, %v4942
  %vm4945 = vcmp.ne.s32.totalorder %v4941, %v4943
  %vm4946 = vmpackc.low %vm4945, %vm4944
  %v4947 = vunpack.c.l.b16 %v4377
  %v4948 = vunpack.c.h.b16 %v4377
  %v4949 = vunpack.c.l.b16 0
  %v4950 = vunpack.c.h.b16 0
  %vm4951 = vcmp.ne.s32.totalorder %v4947, %v4949
  %vm4952 = vcmp.ne.s32.totalorder %v4948, %v4950
  %vm4953 = vmpackc.low %vm4952, %vm4951
  %v4954 = vunpack.c.l.b16 %v4387
  %v4955 = vunpack.c.h.b16 %v4387
  %v4956 = vunpack.c.l.b16 0
  %v4957 = vunpack.c.h.b16 0
  %vm4958 = vcmp.ne.s32.totalorder %v4954, %v4956
  %vm4959 = vcmp.ne.s32.totalorder %v4955, %v4957
  %vm4960 = vmpackc.low %vm4959, %vm4958
  %v4961 = vunpack.c.l.b16 %v4397
  %v4962 = vunpack.c.h.b16 %v4397
  %v4963 = vunpack.c.l.b16 0
  %v4964 = vunpack.c.h.b16 0
  %vm4965 = vcmp.ne.s32.totalorder %v4961, %v4963
  %vm4966 = vcmp.ne.s32.totalorder %v4962, %v4964
  %vm4967 = vmpackc.low %vm4966, %vm4965
  %v4968 = vunpack.c.l.b16 %v4407
  %v4969 = vunpack.c.h.b16 %v4407
  %v4970 = vunpack.c.l.b16 0
  %v4971 = vunpack.c.h.b16 0
  %vm4972 = vcmp.ne.s32.totalorder %v4968, %v4970
  %vm4973 = vcmp.ne.s32.totalorder %v4969, %v4971
  %vm4974 = vmpackc.low %vm4973, %vm4972
  %v4975 = vunpack.c.l.b16 %v4417
  %v4976 = vunpack.c.h.b16 %v4417
  %v4977 = vunpack.c.l.b16 0
  %v4978 = vunpack.c.h.b16 0
  %vm4979 = vcmp.ne.s32.totalorder %v4975, %v4977
  %vm4980 = vcmp.ne.s32.totalorder %v4976, %v4978
  %vm4981 = vmpackc.low %vm4980, %vm4979
  %v4982 = vunpack.c.l.b16 %v4427
  %v4983 = vunpack.c.h.b16 %v4427
  %v4984 = vunpack.c.l.b16 0
  %v4985 = vunpack.c.h.b16 0
  %vm4986 = vcmp.ne.s32.totalorder %v4982, %v4984
  %vm4987 = vcmp.ne.s32.totalorder %v4983, %v4985
  %vm4988 = vmpackc.low %vm4987, %vm4986
  %v4989 = vunpack.c.l.b16 %v4437
  %v4990 = vunpack.c.h.b16 %v4437
  %v4991 = vunpack.c.l.b16 0
  %v4992 = vunpack.c.h.b16 0
  %vm4993 = vcmp.ne.s32.totalorder %v4989, %v4991
  %vm4994 = vcmp.ne.s32.totalorder %v4990, %v4992
  %vm4995 = vmpackc.low %vm4994, %vm4993
  %v4996 = vunpack.c.l.b16 %v4447
  %v4997 = vunpack.c.h.b16 %v4447
  %v4998 = vunpack.c.l.b16 0
  %v4999 = vunpack.c.h.b16 0
  %vm5000 = vcmp.ne.s32.totalorder %v4996, %v4998
  %vm5001 = vcmp.ne.s32.totalorder %v4997, %v4999
  %vm5002 = vmpackc.low %vm5001, %vm5000
  %v5003 = vunpack.c.l.b16 %v4457
  %v5004 = vunpack.c.h.b16 %v4457
  %v5005 = vunpack.c.l.b16 0
  %v5006 = vunpack.c.h.b16 0
  %vm5007 = vcmp.ne.s32.totalorder %v5003, %v5005
  %vm5008 = vcmp.ne.s32.totalorder %v5004, %v5006
  %vm5009 = vmpackc.low %vm5008, %vm5007
  %v5010 = vunpack.c.l.b16 %v4467
  %v5011 = vunpack.c.h.b16 %v4467
  %v5012 = vunpack.c.l.b16 0
  %v5013 = vunpack.c.h.b16 0
  %vm5014 = vcmp.ne.s32.totalorder %v5010, %v5012
  %vm5015 = vcmp.ne.s32.totalorder %v5011, %v5013
  %vm5016 = vmpackc.low %vm5015, %vm5014
  %v5017 = vunpack.c.l.b16 %v4477
  %v5018 = vunpack.c.h.b16 %v4477
  %v5019 = vunpack.c.l.b16 0
  %v5020 = vunpack.c.h.b16 0
  %vm5021 = vcmp.ne.s32.totalorder %v5017, %v5019
  %vm5022 = vcmp.ne.s32.totalorder %v5018, %v5020
  %vm5023 = vmpackc.low %vm5022, %vm5021
  %v5024 = vunpack.c.l.b16 %v4487
  %v5025 = vunpack.c.h.b16 %v4487
  %v5026 = vunpack.c.l.b16 0
  %v5027 = vunpack.c.h.b16 0
  %vm5028 = vcmp.ne.s32.totalorder %v5024, %v5026
  %vm5029 = vcmp.ne.s32.totalorder %v5025, %v5027
  %vm5030 = vmpackc.low %vm5029, %vm5028
  %v5031 = vunpack.c.l.b16 %v4497
  %v5032 = vunpack.c.h.b16 %v4497
  %v5033 = vunpack.c.l.b16 0
  %v5034 = vunpack.c.h.b16 0
  %vm5035 = vcmp.ne.s32.totalorder %v5031, %v5033
  %vm5036 = vcmp.ne.s32.totalorder %v5032, %v5034
  %vm5037 = vmpackc.low %vm5036, %vm5035
  %v5038 = vunpack.c.l.b16 %v4507
  %v5039 = vunpack.c.h.b16 %v4507
  %v5040 = vunpack.c.l.b16 0
  %v5041 = vunpack.c.h.b16 0
  %vm5042 = vcmp.ne.s32.totalorder %v5038, %v5040
  %vm5043 = vcmp.ne.s32.totalorder %v5039, %v5041
  %vm5044 = vmpackc.low %vm5043, %vm5042
  %v5045 = vunpack.c.l.b16 %v4517
  %v5046 = vunpack.c.h.b16 %v4517
  %v5047 = vunpack.c.l.b16 0
  %v5048 = vunpack.c.h.b16 0
  %vm5049 = vcmp.ne.s32.totalorder %v5045, %v5047
  %vm5050 = vcmp.ne.s32.totalorder %v5046, %v5048
  %vm5051 = vmpackc.low %vm5050, %vm5049
  %v5052 = vunpack.c.l.b16 %v4527
  %v5053 = vunpack.c.h.b16 %v4527
  %v5054 = vunpack.c.l.b16 0
  %v5055 = vunpack.c.h.b16 0
  %vm5056 = vcmp.ne.s32.totalorder %v5052, %v5054
  %vm5057 = vcmp.ne.s32.totalorder %v5053, %v5055
  %vm5058 = vmpackc.low %vm5057, %vm5056
  %v5059 = vunpack.c.l.b16 %v4537
  %v5060 = vunpack.c.h.b16 %v4537
  %v5061 = vunpack.c.l.b16 0
  %v5062 = vunpack.c.h.b16 0
  %vm5063 = vcmp.ne.s32.totalorder %v5059, %v5061
  %vm5064 = vcmp.ne.s32.totalorder %v5060, %v5062
  %vm5065 = vmpackc.low %vm5064, %vm5063
  %v5066 = vunpack.c.l.b16 %v4547
  %v5067 = vunpack.c.h.b16 %v4547
  %v5068 = vunpack.c.l.b16 0
  %v5069 = vunpack.c.h.b16 0
  %vm5070 = vcmp.ne.s32.totalorder %v5066, %v5068
  %vm5071 = vcmp.ne.s32.totalorder %v5067, %v5069
  %vm5072 = vmpackc.low %vm5071, %vm5070
  %v5073 = vunpack.c.l.b16 %v4557
  %v5074 = vunpack.c.h.b16 %v4557
  %v5075 = vunpack.c.l.b16 0
  %v5076 = vunpack.c.h.b16 0
  %vm5077 = vcmp.ne.s32.totalorder %v5073, %v5075
  %vm5078 = vcmp.ne.s32.totalorder %v5074, %v5076
  %vm5079 = vmpackc.low %vm5078, %vm5077
  %v5080 = vunpack.c.l.b16 %v4567
  %v5081 = vunpack.c.h.b16 %v4567
  %v5082 = vunpack.c.l.b16 0
  %v5083 = vunpack.c.h.b16 0
  %vm5084 = vcmp.ne.s32.totalorder %v5080, %v5082
  %vm5085 = vcmp.ne.s32.totalorder %v5081, %v5083
  %vm5086 = vmpackc.low %vm5085, %vm5084
  %v5087 = vunpack.c.l.b16 %v4577
  %v5088 = vunpack.c.h.b16 %v4577
  %v5089 = vunpack.c.l.b16 0
  %v5090 = vunpack.c.h.b16 0
  %vm5091 = vcmp.ne.s32.totalorder %v5087, %v5089
  %vm5092 = vcmp.ne.s32.totalorder %v5088, %v5090
  %vm5093 = vmpackc.low %vm5092, %vm5091
  %v5094 = vunpack.c.l.b16 %v4587
  %v5095 = vunpack.c.h.b16 %v4587
  %v5096 = vunpack.c.l.b16 0
  %v5097 = vunpack.c.h.b16 0
  %vm5098 = vcmp.ne.s32.totalorder %v5094, %v5096
  %vm5099 = vcmp.ne.s32.totalorder %v5095, %v5097
  %vm5100 = vmpackc.low %vm5099, %vm5098
  %v5101 = vunpack.c.l.b16 %v4597
  %v5102 = vunpack.c.h.b16 %v4597
  %v5103 = vunpack.c.l.b16 0
  %v5104 = vunpack.c.h.b16 0
  %vm5105 = vcmp.ne.s32.totalorder %v5101, %v5103
  %vm5106 = vcmp.ne.s32.totalorder %v5102, %v5104
  %vm5107 = vmpackc.low %vm5106, %vm5105
  %v5108 = vunpack.c.l.b16 %v4607
  %v5109 = vunpack.c.h.b16 %v4607
  %v5110 = vunpack.c.l.b16 0
  %v5111 = vunpack.c.h.b16 0
  %vm5112 = vcmp.ne.s32.totalorder %v5108, %v5110
  %vm5113 = vcmp.ne.s32.totalorder %v5109, %v5111
  %vm5114 = vmpackc.low %vm5113, %vm5112
  %v5115 = vunpack.c.l.b16 %v4617
  %v5116 = vunpack.c.h.b16 %v4617
  %v5117 = vunpack.c.l.b16 0
  %v5118 = vunpack.c.h.b16 0
  %vm5119 = vcmp.ne.s32.totalorder %v5115, %v5117
  %vm5120 = vcmp.ne.s32.totalorder %v5116, %v5118
  %vm5121 = vmpackc.low %vm5120, %vm5119
  %v5122 = vunpack.c.l.b16 %v4627
  %v5123 = vunpack.c.h.b16 %v4627
  %v5124 = vunpack.c.l.b16 0
  %v5125 = vunpack.c.h.b16 0
  %vm5126 = vcmp.ne.s32.totalorder %v5122, %v5124
  %vm5127 = vcmp.ne.s32.totalorder %v5123, %v5125
  %vm5128 = vmpackc.low %vm5127, %vm5126
  %v5129 = vunpack.c.l.b16 %v4637
  %v5130 = vunpack.c.h.b16 %v4637
  %v5131 = vunpack.c.l.b16 0
  %v5132 = vunpack.c.h.b16 0
  %vm5133 = vcmp.ne.s32.totalorder %v5129, %v5131
  %vm5134 = vcmp.ne.s32.totalorder %v5130, %v5132
  %vm5135 = vmpackc.low %vm5134, %vm5133
  %v5136 = vunpack.c.l.b16 %v4647
  %v5137 = vunpack.c.h.b16 %v4647
  %v5138 = vunpack.c.l.b16 0
  %v5139 = vunpack.c.h.b16 0
  %vm5140 = vcmp.ne.s32.totalorder %v5136, %v5138
  %vm5141 = vcmp.ne.s32.totalorder %v5137, %v5139
  %vm5142 = vmpackc.low %vm5141, %vm5140
  %v5143 = vunpack.c.l.b16 %v4657
  %v5144 = vunpack.c.h.b16 %v4657
  %v5145 = vunpack.c.l.b16 0
  %v5146 = vunpack.c.h.b16 0
  %vm5147 = vcmp.ne.s32.totalorder %v5143, %v5145
  %vm5148 = vcmp.ne.s32.totalorder %v5144, %v5146
  %vm5149 = vmpackc.low %vm5148, %vm5147
  %v5150 = vunpack.c.l.b16 %v4667
  %v5151 = vunpack.c.h.b16 %v4667
  %v5152 = vunpack.c.l.b16 0
  %v5153 = vunpack.c.h.b16 0
  %vm5154 = vcmp.ne.s32.totalorder %v5150, %v5152
  %vm5155 = vcmp.ne.s32.totalorder %v5151, %v5153
  %vm5156 = vmpackc.low %vm5155, %vm5154
  %v5157 = vunpack.c.l.b16 %v4677
  %v5158 = vunpack.c.h.b16 %v4677
  %v5159 = vunpack.c.l.b16 0
  %v5160 = vunpack.c.h.b16 0
  %vm5161 = vcmp.ne.s32.totalorder %v5157, %v5159
  %vm5162 = vcmp.ne.s32.totalorder %v5158, %v5160
  %vm5163 = vmpackc.low %vm5162, %vm5161
  %v5164 = vunpack.c.l.b16 %v4687
  %v5165 = vunpack.c.h.b16 %v4687
  %v5166 = vunpack.c.l.b16 0
  %v5167 = vunpack.c.h.b16 0
  %vm5168 = vcmp.ne.s32.totalorder %v5164, %v5166
  %vm5169 = vcmp.ne.s32.totalorder %v5165, %v5167
  %vm5170 = vmpackc.low %vm5169, %vm5168
  %v5171 = vunpack.c.l.b16 %v4697
  %v5172 = vunpack.c.h.b16 %v4697
  %v5173 = vunpack.c.l.b16 0
  %v5174 = vunpack.c.h.b16 0
  %vm5175 = vcmp.ne.s32.totalorder %v5171, %v5173
  %vm5176 = vcmp.ne.s32.totalorder %v5172, %v5174
  %vm5177 = vmpackc.low %vm5176, %vm5175
  %v5178 = vunpack.c.l.b16 %v4707
  %v5179 = vunpack.c.h.b16 %v4707
  %v5180 = vunpack.c.l.b16 0
  %v5181 = vunpack.c.h.b16 0
  %vm5182 = vcmp.ne.s32.totalorder %v5178, %v5180
  %vm5183 = vcmp.ne.s32.totalorder %v5179, %v5181
  %vm5184 = vmpackc.low %vm5183, %vm5182
  %v5185 = vunpack.c.l.b16 %v4717
  %v5186 = vunpack.c.h.b16 %v4717
  %v5187 = vunpack.c.l.b16 0
  %v5188 = vunpack.c.h.b16 0
  %vm5189 = vcmp.ne.s32.totalorder %v5185, %v5187
  %vm5190 = vcmp.ne.s32.totalorder %v5186, %v5188
  %vm5191 = vmpackc.low %vm5190, %vm5189
  %v5192 = vunpack.c.l.b16 %v4727
  %v5193 = vunpack.c.h.b16 %v4727
  %v5194 = vunpack.c.l.b16 0
  %v5195 = vunpack.c.h.b16 0
  %vm5196 = vcmp.ne.s32.totalorder %v5192, %v5194
  %vm5197 = vcmp.ne.s32.totalorder %v5193, %v5195
  %vm5198 = vmpackc.low %vm5197, %vm5196
  %v5199 = vunpack.c.l.b16 %v4737
  %v5200 = vunpack.c.h.b16 %v4737
  %v5201 = vunpack.c.l.b16 0
  %v5202 = vunpack.c.h.b16 0
  %vm5203 = vcmp.ne.s32.totalorder %v5199, %v5201
  %vm5204 = vcmp.ne.s32.totalorder %v5200, %v5202
  %vm5205 = vmpackc.low %vm5204, %vm5203
  %v5206 = vunpack.c.l.b16 %v4747
  %v5207 = vunpack.c.h.b16 %v4747
  %v5208 = vunpack.c.l.b16 0
  %v5209 = vunpack.c.h.b16 0
  %vm5210 = vcmp.ne.s32.totalorder %v5206, %v5208
  %vm5211 = vcmp.ne.s32.totalorder %v5207, %v5209
  %vm5212 = vmpackc.low %vm5211, %vm5210
  %v5213 = vunpack.c.l.b16 %v4757
  %v5214 = vunpack.c.h.b16 %v4757
  %v5215 = vunpack.c.l.b16 0
  %v5216 = vunpack.c.h.b16 0
  %vm5217 = vcmp.ne.s32.totalorder %v5213, %v5215
  %vm5218 = vcmp.ne.s32.totalorder %v5214, %v5216
  %vm5219 = vmpackc.low %vm5218, %vm5217
  %v5220 = vunpack.c.l.b16 %v4767
  %v5221 = vunpack.c.h.b16 %v4767
  %v5222 = vunpack.c.l.b16 0
  %v5223 = vunpack.c.h.b16 0
  %vm5224 = vcmp.ne.s32.totalorder %v5220, %v5222
  %vm5225 = vcmp.ne.s32.totalorder %v5221, %v5223
  %vm5226 = vmpackc.low %vm5225, %vm5224
  %v5227 = vunpack.c.l.b16 %v4777
  %v5228 = vunpack.c.h.b16 %v4777
  %v5229 = vunpack.c.l.b16 0
  %v5230 = vunpack.c.h.b16 0
  %vm5231 = vcmp.ne.s32.totalorder %v5227, %v5229
  %vm5232 = vcmp.ne.s32.totalorder %v5228, %v5230
  %vm5233 = vmpackc.low %vm5232, %vm5231
  %v5234 = vunpack.c.l.b16 %v4787
  %v5235 = vunpack.c.h.b16 %v4787
  %v5236 = vunpack.c.l.b16 0
  %v5237 = vunpack.c.h.b16 0
  %vm5238 = vcmp.ne.s32.totalorder %v5234, %v5236
  %vm5239 = vcmp.ne.s32.totalorder %v5235, %v5237
  %vm5240 = vmpackc.low %vm5239, %vm5238
  %v5241 = vunpack.c.l.b16 %v4792
  %v5242 = vunpack.c.h.b16 %v4792
  %v5243 = vunpack.c.l.b16 0
  %v5244 = vunpack.c.h.b16 0
  %vm5245 = vcmp.ne.s32.totalorder %v5241, %v5243
  %vm5246 = vcmp.ne.s32.totalorder %v5242, %v5244
  %vm5247 = vmpackc.low %vm5246, %vm5245
  %v5248 = vsel %vm4799, %v3895, 0
  %v5249 = vsel %vm4806, %v676, 0
  %v5250 = vsel %vm4813, %v677, 0
  %v5251 = vsel %vm4820, %v678, 0
  %v5252 = vsel %vm4827, %v679, 0
  %v5253 = vsel %vm4834, %v680, 0
  %v5254 = vsel %vm4841, %v681, 0
  %v5255 = vsel %vm4848, %v682, 0
  %v5256 = vsel %vm4855, %v683, 0
  %v5257 = vsel %vm4862, %v684, 0
  %v5258 = vsel %vm4869, %v685, 0
  %v5259 = vsel %vm4876, %v686, 0
  %v5260 = vsel %vm4883, %v687, 0
  %v5261 = vsel %vm4890, %v688, 0
  %v5262 = vsel %vm4897, %v689, 0
  %v5263 = vsel %vm4904, %v690, 0
  %v5264 = vsel %vm4911, %v691, 0
  %v5265 = vsel %vm4918, %v692, 0
  %v5266 = vsel %vm4925, %v693, 0
  %v5267 = vsel %vm4932, %v694, 0
  %v5268 = vsel %vm4939, %v695, 0
  %v5269 = vsel %vm4946, %v696, 0
  %v5270 = vsel %vm4953, %v697, 0
  %v5271 = vsel %vm4960, %v698, 0
  %v5272 = vsel %vm4967, %v699, 0
  %v5273 = vsel %vm4974, %v700, 0
  %v5274 = vsel %vm4981, %v701, 0
  %v5275 = vsel %vm4988, %v702, 0
  %v5276 = vsel %vm4995, %v703, 0
  %v5277 = vsel %vm5002, %v704, 0
  %v5278 = vsel %vm5009, %v705, 0
  %v5279 = vsel %vm5016, %v706, 0
  %v5280 = vsel %vm5023, %v707, 0
  %v5281 = vsel %vm5030, %v708, 0
  %v5282 = vsel %vm5037, %v709, 0
  %v5283 = vsel %vm5044, %v710, 0
  %v5284 = vsel %vm5051, %v711, 0
  %v5285 = vsel %vm5058, %v712, 0
  %v5286 = vsel %vm5065, %v713, 0
  %v5287 = vsel %vm5072, %v714, 0
  %v5288 = vsel %vm5079, %v715, 0
  %v5289 = vsel %vm5086, %v716, 0
  %v5290 = vsel %vm5093, %v717, 0
  %v5291 = vsel %vm5100, %v718, 0
  %v5292 = vsel %vm5107, %v719, 0
  %v5293 = vsel %vm5114, %v720, 0
  %v5294 = vsel %vm5121, %v721, 0
  %v5295 = vsel %vm5128, %v722, 0
  %v5296 = vsel %vm5135, %v723, 0
  %v5297 = vsel %vm5142, %v724, 0
  %v5298 = vsel %vm5149, %v725, 0
  %v5299 = vsel %vm5156, %v726, 0
  %v5300 = vsel %vm5163, %v727, 0
  %v5301 = vsel %vm5170, %v728, 0
  %v5302 = vsel %vm5177, %v729, 0
  %v5303 = vsel %vm5184, %v730, 0
  %v5304 = vsel %vm5191, %v731, 0
  %v5305 = vsel %vm5198, %v732, 0
  %v5306 = vsel %vm5205, %v733, 0
  %v5307 = vsel %vm5212, %v734, 0
  %v5308 = vsel %vm5219, %v735, 0
  %v5309 = vsel %vm5226, %v736, 0
  %v5310 = vsel %vm5233, %v737, 0
  %v5311 = vsel %vm5240, %v3896, 0
  %v5312 = vsel %vm5247, %v3897, 0
  %v5313 = vld [vmem:[#allocation2 + $0x10c] sm:$0x1]
  %v5314 = vsel %vm609, 1, 0
  %v5315 = vsel %vm610, 1, 0
  %v5316 = vsel %vm611, 1, 0
  %v5317 = vsel %vm612, 1, 0
  %v5318 = vsel %vm613, 1, 0
  %v5319 = vsel %vm614, 1, 0
  %v5320 = vsel %vm615, 1, 0
  %v5321 = vsel %vm616, 1, 0
  %v5322 = vsel %vm617, 1, 0
  %v5323 = vsel %vm618, 1, 0
  %v5324 = vsel %vm619, 1, 0
  %v5325 = vsel %vm620, 1, 0
  %v5326 = vsel %vm621, 1, 0
  %v5327 = vsel %vm622, 1, 0
  %v5328 = vsel %vm623, 1, 0
  %v5329 = vsel %vm624, 1, 0
  %v5330 = vsel %vm625, 1, 0
  %v5331 = vsel %vm626, 1, 0
  %v5332 = vsel %vm627, 1, 0
  %v5333 = vsel %vm628, 1, 0
  %v5334 = vsel %vm629, 1, 0
  %v5335 = vsel %vm630, 1, 0
  %v5336 = vsel %vm631, 1, 0
  %v5337 = vsel %vm632, 1, 0
  %v5338 = vsel %vm633, 1, 0
  %v5339 = vsel %vm634, 1, 0
  %v5340 = vsel %vm635, 1, 0
  %v5341 = vsel %vm636, 1, 0
  %v5342 = vsel %vm637, 1, 0
  %v5343 = vsel %vm638, 1, 0
  %v5344 = vsel %vm639, 1, 0
  %v5345 = vsel %vm640, 1, 0
  %v5346 = vsel %vm641, 1, 0
  %v5347 = vsel %vm642, 1, 0
  %v5348 = vsel %vm643, 1, 0
  %v5349 = vsel %vm644, 1, 0
  %v5350 = vsel %vm645, 1, 0
  %v5351 = vsel %vm646, 1, 0
  %v5352 = vsel %vm647, 1, 0
  %v5353 = vsel %vm648, 1, 0
  %v5354 = vsel %vm649, 1, 0
  %v5355 = vsel %vm650, 1, 0
  %v5356 = vsel %vm651, 1, 0
  %v5357 = vsel %vm652, 1, 0
  %v5358 = vsel %vm653, 1, 0
  %v5359 = vsel %vm654, 1, 0
  %v5360 = vsel %vm655, 1, 0
  %v5361 = vsel %vm656, 1, 0
  %v5362 = vsel %vm657, 1, 0
  %v5363 = vsel %vm658, 1, 0
  %v5364 = vsel %vm659, 1, 0
  %v5365 = vsel %vm660, 1, 0
  %v5366 = vsel %vm661, 1, 0
  %v5367 = vsel %vm662, 1, 0
  %v5368 = vsel %vm663, 1, 0
  %v5369 = vsel %vm664, 1, 0
  %v5370 = vsel %vm665, 1, 0
  %v5371 = vsel %vm666, 1, 0
  %v5372 = vsel %vm667, 1, 0
  %v5373 = vsel %vm668, 1, 0
  %v5374 = vsel %vm669, 1, 0
  %v5375 = vsel %vm670, 1, 0
  %v5376 = vsel %vm671, 1, 0
  %v5377 = vsel %vm672, 1, 0
  %vm5378 = vcmp.eq.s32.totalorder %v5314, 1
  %vm5379 = vcmp.eq.s32.totalorder %v5315, 1
  %vm5380 = vcmp.eq.s32.totalorder %v5316, 1
  %vm5381 = vcmp.eq.s32.totalorder %v5317, 1
  %vm5382 = vcmp.eq.s32.totalorder %v5318, 1
  %vm5383 = vcmp.eq.s32.totalorder %v5319, 1
  %vm5384 = vcmp.eq.s32.totalorder %v5320, 1
  %vm5385 = vcmp.eq.s32.totalorder %v5321, 1
  %vm5386 = vcmp.eq.s32.totalorder %v5322, 1
  %vm5387 = vcmp.eq.s32.totalorder %v5323, 1
  %vm5388 = vcmp.eq.s32.totalorder %v5324, 1
  %vm5389 = vcmp.eq.s32.totalorder %v5325, 1
  %vm5390 = vcmp.eq.s32.totalorder %v5326, 1
  %vm5391 = vcmp.eq.s32.totalorder %v5327, 1
  %vm5392 = vcmp.eq.s32.totalorder %v5328, 1
  %vm5393 = vcmp.eq.s32.totalorder %v5329, 1
  %vm5394 = vcmp.eq.s32.totalorder %v5330, 1
  %vm5395 = vcmp.eq.s32.totalorder %v5331, 1
  %vm5396 = vcmp.eq.s32.totalorder %v5332, 1
  %vm5397 = vcmp.eq.s32.totalorder %v5333, 1
  %vm5398 = vcmp.eq.s32.totalorder %v5334, 1
  %vm5399 = vcmp.eq.s32.totalorder %v5335, 1
  %vm5400 = vcmp.eq.s32.totalorder %v5336, 1
  %vm5401 = vcmp.eq.s32.totalorder %v5337, 1
  %vm5402 = vcmp.eq.s32.totalorder %v5338, 1
  %vm5403 = vcmp.eq.s32.totalorder %v5339, 1
  %vm5404 = vcmp.eq.s32.totalorder %v5340, 1
  %vm5405 = vcmp.eq.s32.totalorder %v5341, 1
  %vm5406 = vcmp.eq.s32.totalorder %v5342, 1
  %vm5407 = vcmp.eq.s32.totalorder %v5343, 1
  %vm5408 = vcmp.eq.s32.totalorder %v5344, 1
  %vm5409 = vcmp.eq.s32.totalorder %v5345, 1
  %vm5410 = vcmp.eq.s32.totalorder %v5346, 1
  %vm5411 = vcmp.eq.s32.totalorder %v5347, 1
  %vm5412 = vcmp.eq.s32.totalorder %v5348, 1
  %vm5413 = vcmp.eq.s32.totalorder %v5349, 1
  %vm5414 = vcmp.eq.s32.totalorder %v5350, 1
  %vm5415 = vcmp.eq.s32.totalorder %v5351, 1
  %vm5416 = vcmp.eq.s32.totalorder %v5352, 1
  %vm5417 = vcmp.eq.s32.totalorder %v5353, 1
  %vm5418 = vcmp.eq.s32.totalorder %v5354, 1
  %vm5419 = vcmp.eq.s32.totalorder %v5355, 1
  %vm5420 = vcmp.eq.s32.totalorder %v5356, 1
  %vm5421 = vcmp.eq.s32.totalorder %v5357, 1
  %vm5422 = vcmp.eq.s32.totalorder %v5358, 1
  %vm5423 = vcmp.eq.s32.totalorder %v5359, 1
  %vm5424 = vcmp.eq.s32.totalorder %v5360, 1
  %vm5425 = vcmp.eq.s32.totalorder %v5361, 1
  %vm5426 = vcmp.eq.s32.totalorder %v5362, 1
  %vm5427 = vcmp.eq.s32.totalorder %v5363, 1
  %vm5428 = vcmp.eq.s32.totalorder %v5364, 1
  %vm5429 = vcmp.eq.s32.totalorder %v5365, 1
  %vm5430 = vcmp.eq.s32.totalorder %v5366, 1
  %vm5431 = vcmp.eq.s32.totalorder %v5367, 1
  %vm5432 = vcmp.eq.s32.totalorder %v5368, 1
  %vm5433 = vcmp.eq.s32.totalorder %v5369, 1
  %vm5434 = vcmp.eq.s32.totalorder %v5370, 1
  %vm5435 = vcmp.eq.s32.totalorder %v5371, 1
  %vm5436 = vcmp.eq.s32.totalorder %v5372, 1
  %vm5437 = vcmp.eq.s32.totalorder %v5373, 1
  %vm5438 = vcmp.eq.s32.totalorder %v5374, 1
  %vm5439 = vcmp.eq.s32.totalorder %v5375, 1
  %vm5440 = vcmp.eq.s32.totalorder %v5376, 1
  %vm5441 = vcmp.eq.s32.totalorder %v5377, 1
  %vm5442 = vmpackc.low %vm5378, %vm5378
  %vm5443 = vmpackc.low %vm5379, %vm5379
  %vm5444 = vmpackc.low %vm5380, %vm5380
  %vm5445 = vmpackc.low %vm5381, %vm5381
  %vm5446 = vmpackc.low %vm5382, %vm5382
  %vm5447 = vmpackc.low %vm5383, %vm5383
  %vm5448 = vmpackc.low %vm5384, %vm5384
  %vm5449 = vmpackc.low %vm5385, %vm5385
  %vm5450 = vmpackc.low %vm5386, %vm5386
  %vm5451 = vmpackc.low %vm5387, %vm5387
  %vm5452 = vmpackc.low %vm5388, %vm5388
  %vm5453 = vmpackc.low %vm5389, %vm5389
  %vm5454 = vmpackc.low %vm5390, %vm5390
  %vm5455 = vmpackc.low %vm5391, %vm5391
  %vm5456 = vmpackc.low %vm5392, %vm5392
  %vm5457 = vmpackc.low %vm5393, %vm5393
  %vm5458 = vmpackc.low %vm5394, %vm5394
  %vm5459 = vmpackc.low %vm5395, %vm5395
  %vm5460 = vmpackc.low %vm5396, %vm5396
  %vm5461 = vmpackc.low %vm5397, %vm5397
  %vm5462 = vmpackc.low %vm5398, %vm5398
  %vm5463 = vmpackc.low %vm5399, %vm5399
  %vm5464 = vmpackc.low %vm5400, %vm5400
  %vm5465 = vmpackc.low %vm5401, %vm5401
  %vm5466 = vmpackc.low %vm5402, %vm5402
  %vm5467 = vmpackc.low %vm5403, %vm5403
  %vm5468 = vmpackc.low %vm5404, %vm5404
  %vm5469 = vmpackc.low %vm5405, %vm5405
  %vm5470 = vmpackc.low %vm5406, %vm5406
  %vm5471 = vmpackc.low %vm5407, %vm5407
  %vm5472 = vmpackc.low %vm5408, %vm5408
  %vm5473 = vmpackc.low %vm5409, %vm5409
  %vm5474 = vmpackc.low %vm5410, %vm5410
  %vm5475 = vmpackc.low %vm5411, %vm5411
  %vm5476 = vmpackc.low %vm5412, %vm5412
  %vm5477 = vmpackc.low %vm5413, %vm5413
  %vm5478 = vmpackc.low %vm5414, %vm5414
  %vm5479 = vmpackc.low %vm5415, %vm5415
  %vm5480 = vmpackc.low %vm5416, %vm5416
  %vm5481 = vmpackc.low %vm5417, %vm5417
  %vm5482 = vmpackc.low %vm5418, %vm5418
  %vm5483 = vmpackc.low %vm5419, %vm5419
  %vm5484 = vmpackc.low %vm5420, %vm5420
  %vm5485 = vmpackc.low %vm5421, %vm5421
  %vm5486 = vmpackc.low %vm5422, %vm5422
  %vm5487 = vmpackc.low %vm5423, %vm5423
  %vm5488 = vmpackc.low %vm5424, %vm5424
  %vm5489 = vmpackc.low %vm5425, %vm5425
  %vm5490 = vmpackc.low %vm5426, %vm5426
  %vm5491 = vmpackc.low %vm5427, %vm5427
  %vm5492 = vmpackc.low %vm5428, %vm5428
  %vm5493 = vmpackc.low %vm5429, %vm5429
  %vm5494 = vmpackc.low %vm5430, %vm5430
  %vm5495 = vmpackc.low %vm5431, %vm5431
  %vm5496 = vmpackc.low %vm5432, %vm5432
  %vm5497 = vmpackc.low %vm5433, %vm5433
  %vm5498 = vmpackc.low %vm5434, %vm5434
  %vm5499 = vmpackc.low %vm5435, %vm5435
  %vm5500 = vmpackc.low %vm5436, %vm5436
  %vm5501 = vmpackc.low %vm5437, %vm5437
  %vm5502 = vmpackc.low %vm5438, %vm5438
  %vm5503 = vmpackc.low %vm5439, %vm5439
  %vm5504 = vmpackc.low %vm5440, %vm5440
  %vm5505 = vmpackc.low %vm5441, %vm5441
  %v5506 = vsel %vm5442, 65537, 0
  %v5507 = vsel %vm5443, 65537, 0
  %v5508 = vsel %vm5444, 65537, 0
  %v5509 = vsel %vm5445, 65537, 0
  %v5510 = vsel %vm5446, 65537, 0
  %v5511 = vsel %vm5447, 65537, 0
  %v5512 = vsel %vm5448, 65537, 0
  %v5513 = vsel %vm5449, 65537, 0
  %v5514 = vsel %vm5450, 65537, 0
  %v5515 = vsel %vm5451, 65537, 0
  %v5516 = vsel %vm5452, 65537, 0
  %v5517 = vsel %vm5453, 65537, 0
  %v5518 = vsel %vm5454, 65537, 0
  %v5519 = vsel %vm5455, 65537, 0
  %v5520 = vsel %vm5456, 65537, 0
  %v5521 = vsel %vm5457, 65537, 0
  %v5522 = vsel %vm5458, 65537, 0
  %v5523 = vsel %vm5459, 65537, 0
  %v5524 = vsel %vm5460, 65537, 0
  %v5525 = vsel %vm5461, 65537, 0
  %v5526 = vsel %vm5462, 65537, 0
  %v5527 = vsel %vm5463, 65537, 0
  %v5528 = vsel %vm5464, 65537, 0
  %v5529 = vsel %vm5465, 65537, 0
  %v5530 = vsel %vm5466, 65537, 0
  %v5531 = vsel %vm5467, 65537, 0
  %v5532 = vsel %vm5468, 65537, 0
  %v5533 = vsel %vm5469, 65537, 0
  %v5534 = vsel %vm5470, 65537, 0
  %v5535 = vsel %vm5471, 65537, 0
  %v5536 = vsel %vm5472, 65537, 0
  %v5537 = vsel %vm5473, 65537, 0
  %v5538 = vsel %vm5474, 65537, 0
  %v5539 = vsel %vm5475, 65537, 0
  %v5540 = vsel %vm5476, 65537, 0
  %v5541 = vsel %vm5477, 65537, 0
  %v5542 = vsel %vm5478, 65537, 0
  %v5543 = vsel %vm5479, 65537, 0
  %v5544 = vsel %vm5480, 65537, 0
  %v5545 = vsel %vm5481, 65537, 0
  %v5546 = vsel %vm5482, 65537, 0
  %v5547 = vsel %vm5483, 65537, 0
  %v5548 = vsel %vm5484, 65537, 0
  %v5549 = vsel %vm5485, 65537, 0
  %v5550 = vsel %vm5486, 65537, 0
  %v5551 = vsel %vm5487, 65537, 0
  %v5552 = vsel %vm5488, 65537, 0
  %v5553 = vsel %vm5489, 65537, 0
  %v5554 = vsel %vm5490, 65537, 0
  %v5555 = vsel %vm5491, 65537, 0
  %v5556 = vsel %vm5492, 65537, 0
  %v5557 = vsel %vm5493, 65537, 0
  %v5558 = vsel %vm5494, 65537, 0
  %v5559 = vsel %vm5495, 65537, 0
  %v5560 = vsel %vm5496, 65537, 0
  %v5561 = vsel %vm5497, 65537, 0
  %v5562 = vsel %vm5498, 65537, 0
  %v5563 = vsel %vm5499, 65537, 0
  %v5564 = vsel %vm5500, 65537, 0
  %v5565 = vsel %vm5501, 65537, 0
  %v5566 = vsel %vm5502, 65537, 0
  %v5567 = vsel %vm5503, 65537, 0
  %v5568 = vsel %vm5504, 65537, 0
  %v5569 = vsel %vm5505, 65537, 0
  %v5571 = vshrl.u32 %v5506, 16
  %v5573 = vrot.slane %v5571, 7
  %v5574 = vshll.u32 %v5506, 16
  %v5576 = vor.u32 %v5573, %v5574
  %v5577 = vrot.slane %v5573, 4
  %v5579 = vshrl.u32 %v5507, 16
  %v5581 = vrot.slane %v5579, 7
  %v5582 = vshll.u32 %v5507, 16
  %v5584 = vor.u32 %v5581, %v5582
  %v5585 = vsel %vm2799, %v5577, %v5584
  %v5586 = vrot.slane %v5581, 4
  %v5588 = vshrl.u32 %v5508, 16
  %v5590 = vrot.slane %v5588, 7
  %v5591 = vshll.u32 %v5508, 16
  %v5593 = vor.u32 %v5590, %v5591
  %v5594 = vsel %vm2799, %v5586, %v5593
  %v5595 = vrot.slane %v5590, 4
  %v5597 = vshrl.u32 %v5509, 16
  %v5599 = vrot.slane %v5597, 7
  %v5600 = vshll.u32 %v5509, 16
  %v5602 = vor.u32 %v5599, %v5600
  %v5603 = vsel %vm2799, %v5595, %v5602
  %v5604 = vrot.slane %v5599, 4
  %v5606 = vshrl.u32 %v5510, 16
  %v5608 = vrot.slane %v5606, 7
  %v5609 = vshll.u32 %v5510, 16
  %v5611 = vor.u32 %v5608, %v5609
  %v5612 = vsel %vm2799, %v5604, %v5611
  %v5613 = vrot.slane %v5608, 4
  %v5615 = vshrl.u32 %v5511, 16
  %v5617 = vrot.slane %v5615, 7
  %v5618 = vshll.u32 %v5511, 16
  %v5620 = vor.u32 %v5617, %v5618
  %v5621 = vsel %vm2799, %v5613, %v5620
  %v5622 = vrot.slane %v5617, 4
  %v5624 = vshrl.u32 %v5512, 16
  %v5626 = vrot.slane %v5624, 7
  %v5627 = vshll.u32 %v5512, 16
  %v5629 = vor.u32 %v5626, %v5627
  %v5630 = vsel %vm2799, %v5622, %v5629
  %v5631 = vrot.slane %v5626, 4
  %v5633 = vshrl.u32 %v5513, 16
  %v5635 = vrot.slane %v5633, 7
  %v5636 = vshll.u32 %v5513, 16
  %v5638 = vor.u32 %v5635, %v5636
  %v5639 = vsel %vm2799, %v5631, %v5638
  %v5640 = vrot.slane %v5635, 4
  %v5642 = vshrl.u32 %v5514, 16
  %v5644 = vrot.slane %v5642, 7
  %v5645 = vshll.u32 %v5514, 16
  %v5647 = vor.u32 %v5644, %v5645
  %v5648 = vsel %vm2799, %v5640, %v5647
  %v5649 = vrot.slane %v5644, 4
  %v5651 = vshrl.u32 %v5515, 16
  %v5653 = vrot.slane %v5651, 7
  %v5654 = vshll.u32 %v5515, 16
  %v5656 = vor.u32 %v5653, %v5654
  %v5657 = vsel %vm2799, %v5649, %v5656
  %v5658 = vrot.slane %v5653, 4
  %v5660 = vshrl.u32 %v5516, 16
  %v5662 = vrot.slane %v5660, 7
  %v5663 = vshll.u32 %v5516, 16
  %v5665 = vor.u32 %v5662, %v5663
  %v5666 = vsel %vm2799, %v5658, %v5665
  %v5667 = vrot.slane %v5662, 4
  %v5669 = vshrl.u32 %v5517, 16
  %v5671 = vrot.slane %v5669, 7
  %v5672 = vshll.u32 %v5517, 16
  %v5674 = vor.u32 %v5671, %v5672
  %v5675 = vsel %vm2799, %v5667, %v5674
  %v5676 = vrot.slane %v5671, 4
  %v5678 = vshrl.u32 %v5518, 16
  %v5680 = vrot.slane %v5678, 7
  %v5681 = vshll.u32 %v5518, 16
  %v5683 = vor.u32 %v5680, %v5681
  %v5684 = vsel %vm2799, %v5676, %v5683
  %v5685 = vrot.slane %v5680, 4
  %v5687 = vshrl.u32 %v5519, 16
  %v5689 = vrot.slane %v5687, 7
  %v5690 = vshll.u32 %v5519, 16
  %v5692 = vor.u32 %v5689, %v5690
  %v5693 = vsel %vm2799, %v5685, %v5692
  %v5694 = vrot.slane %v5689, 4
  %v5696 = vshrl.u32 %v5520, 16
  %v5698 = vrot.slane %v5696, 7
  %v5699 = vshll.u32 %v5520, 16
  %v5701 = vor.u32 %v5698, %v5699
  %v5702 = vsel %vm2799, %v5694, %v5701
  %v5703 = vrot.slane %v5698, 4
  %v5705 = vshrl.u32 %v5521, 16
  %v5707 = vrot.slane %v5705, 7
  %v5708 = vshll.u32 %v5521, 16
  %v5710 = vor.u32 %v5707, %v5708
  %v5711 = vsel %vm2799, %v5703, %v5710
  %v5712 = vrot.slane %v5707, 4
  %v5714 = vshrl.u32 %v5522, 16
  %v5716 = vrot.slane %v5714, 7
  %v5717 = vshll.u32 %v5522, 16
  %v5719 = vor.u32 %v5716, %v5717
  %v5720 = vsel %vm2799, %v5712, %v5719
  %v5721 = vrot.slane %v5716, 4
  %v5723 = vshrl.u32 %v5523, 16
  %v5725 = vrot.slane %v5723, 7
  %v5726 = vshll.u32 %v5523, 16
  %v5728 = vor.u32 %v5725, %v5726
  %v5729 = vsel %vm2799, %v5721, %v5728
  %v5730 = vrot.slane %v5725, 4
  %v5732 = vshrl.u32 %v5524, 16
  %v5734 = vrot.slane %v5732, 7
  %v5735 = vshll.u32 %v5524, 16
  %v5737 = vor.u32 %v5734, %v5735
  %v5738 = vsel %vm2799, %v5730, %v5737
  %v5739 = vrot.slane %v5734, 4
  %v5741 = vshrl.u32 %v5525, 16
  %v5743 = vrot.slane %v5741, 7
  %v5744 = vshll.u32 %v5525, 16
  %v5746 = vor.u32 %v5743, %v5744
  %v5747 = vsel %vm2799, %v5739, %v5746
  %v5748 = vrot.slane %v5743, 4
  %v5750 = vshrl.u32 %v5526, 16
  %v5752 = vrot.slane %v5750, 7
  %v5753 = vshll.u32 %v5526, 16
  %v5755 = vor.u32 %v5752, %v5753
  %v5756 = vsel %vm2799, %v5748, %v5755
  %v5757 = vrot.slane %v5752, 4
  %v5759 = vshrl.u32 %v5527, 16
  %v5761 = vrot.slane %v5759, 7
  %v5762 = vshll.u32 %v5527, 16
  %v5764 = vor.u32 %v5761, %v5762
  %v5765 = vsel %vm2799, %v5757, %v5764
  %v5766 = vrot.slane %v5761, 4
  %v5768 = vshrl.u32 %v5528, 16
  %v5770 = vrot.slane %v5768, 7
  %v5771 = vshll.u32 %v5528, 16
  %v5773 = vor.u32 %v5770, %v5771
  %v5774 = vsel %vm2799, %v5766, %v5773
  %v5775 = vrot.slane %v5770, 4
  %v5777 = vshrl.u32 %v5529, 16
  %v5779 = vrot.slane %v5777, 7
  %v5780 = vshll.u32 %v5529, 16
  %v5782 = vor.u32 %v5779, %v5780
  %v5783 = vsel %vm2799, %v5775, %v5782
  %v5784 = vrot.slane %v5779, 4
  %v5786 = vshrl.u32 %v5530, 16
  %v5788 = vrot.slane %v5786, 7
  %v5789 = vshll.u32 %v5530, 16
  %v5791 = vor.u32 %v5788, %v5789
  %v5792 = vsel %vm2799, %v5784, %v5791
  %v5793 = vrot.slane %v5788, 4
  %v5795 = vshrl.u32 %v5531, 16
  %v5797 = vrot.slane %v5795, 7
  %v5798 = vshll.u32 %v5531, 16
  %v5800 = vor.u32 %v5797, %v5798
  %v5801 = vsel %vm2799, %v5793, %v5800
  %v5802 = vrot.slane %v5797, 4
  %v5804 = vshrl.u32 %v5532, 16
  %v5806 = vrot.slane %v5804, 7
  %v5807 = vshll.u32 %v5532, 16
  %v5809 = vor.u32 %v5806, %v5807
  %v5810 = vsel %vm2799, %v5802, %v5809
  %v5811 = vrot.slane %v5806, 4
  %v5813 = vshrl.u32 %v5533, 16
  %v5815 = vrot.slane %v5813, 7
  %v5816 = vshll.u32 %v5533, 16
  %v5818 = vor.u32 %v5815, %v5816
  %v5819 = vsel %vm2799, %v5811, %v5818
  %v5820 = vrot.slane %v5815, 4
  %v5822 = vshrl.u32 %v5534, 16
  %v5824 = vrot.slane %v5822, 7
  %v5825 = vshll.u32 %v5534, 16
  %v5827 = vor.u32 %v5824, %v5825
  %v5828 = vsel %vm2799, %v5820, %v5827
  %v5829 = vrot.slane %v5824, 4
  %v5831 = vshrl.u32 %v5535, 16
  %v5833 = vrot.slane %v5831, 7
  %v5834 = vshll.u32 %v5535, 16
  %v5836 = vor.u32 %v5833, %v5834
  %v5837 = vsel %vm2799, %v5829, %v5836
  %v5838 = vrot.slane %v5833, 4
  %v5840 = vshrl.u32 %v5536, 16
  %v5842 = vrot.slane %v5840, 7
  %v5843 = vshll.u32 %v5536, 16
  %v5845 = vor.u32 %v5842, %v5843
  %v5846 = vsel %vm2799, %v5838, %v5845
  %v5847 = vrot.slane %v5842, 4
  %v5849 = vshrl.u32 %v5537, 16
  %v5851 = vrot.slane %v5849, 7
  %v5852 = vshll.u32 %v5537, 16
  %v5854 = vor.u32 %v5851, %v5852
  %v5855 = vsel %vm2799, %v5847, %v5854
  %v5856 = vrot.slane %v5851, 4
  %v5858 = vshrl.u32 %v5538, 16
  %v5860 = vrot.slane %v5858, 7
  %v5861 = vshll.u32 %v5538, 16
  %v5863 = vor.u32 %v5860, %v5861
  %v5864 = vsel %vm2799, %v5856, %v5863
  %v5865 = vrot.slane %v5860, 4
  %v5867 = vshrl.u32 %v5539, 16
  %v5869 = vrot.slane %v5867, 7
  %v5870 = vshll.u32 %v5539, 16
  %v5872 = vor.u32 %v5869, %v5870
  %v5873 = vsel %vm2799, %v5865, %v5872
  %v5874 = vrot.slane %v5869, 4
  %v5876 = vshrl.u32 %v5540, 16
  %v5878 = vrot.slane %v5876, 7
  %v5879 = vshll.u32 %v5540, 16
  %v5881 = vor.u32 %v5878, %v5879
  %v5882 = vsel %vm2799, %v5874, %v5881
  %v5883 = vrot.slane %v5878, 4
  %v5885 = vshrl.u32 %v5541, 16
  %v5887 = vrot.slane %v5885, 7
  %v5888 = vshll.u32 %v5541, 16
  %v5890 = vor.u32 %v5887, %v5888
  %v5891 = vsel %vm2799, %v5883, %v5890
  %v5892 = vrot.slane %v5887, 4
  %v5894 = vshrl.u32 %v5542, 16
  %v5896 = vrot.slane %v5894, 7
  %v5897 = vshll.u32 %v5542, 16
  %v5899 = vor.u32 %v5896, %v5897
  %v5900 = vsel %vm2799, %v5892, %v5899
  %v5901 = vrot.slane %v5896, 4
  %v5903 = vshrl.u32 %v5543, 16
  %v5905 = vrot.slane %v5903, 7
  %v5906 = vshll.u32 %v5543, 16
  %v5908 = vor.u32 %v5905, %v5906
  %v5909 = vsel %vm2799, %v5901, %v5908
  %v5910 = vrot.slane %v5905, 4
  %v5912 = vshrl.u32 %v5544, 16
  %v5914 = vrot.slane %v5912, 7
  %v5915 = vshll.u32 %v5544, 16
  %v5917 = vor.u32 %v5914, %v5915
  %v5918 = vsel %vm2799, %v5910, %v5917
  %v5919 = vrot.slane %v5914, 4
  %v5921 = vshrl.u32 %v5545, 16
  %v5923 = vrot.slane %v5921, 7
  %v5924 = vshll.u32 %v5545, 16
  %v5926 = vor.u32 %v5923, %v5924
  %v5927 = vsel %vm2799, %v5919, %v5926
  %v5928 = vrot.slane %v5923, 4
  %v5930 = vshrl.u32 %v5546, 16
  %v5932 = vrot.slane %v5930, 7
  %v5933 = vshll.u32 %v5546, 16
  %v5935 = vor.u32 %v5932, %v5933
  %v5936 = vsel %vm2799, %v5928, %v5935
  %v5937 = vrot.slane %v5932, 4
  %v5939 = vshrl.u32 %v5547, 16
  %v5941 = vrot.slane %v5939, 7
  %v5942 = vshll.u32 %v5547, 16
  %v5944 = vor.u32 %v5941, %v5942
  %v5945 = vsel %vm2799, %v5937, %v5944
  %v5946 = vrot.slane %v5941, 4
  %v5948 = vshrl.u32 %v5548, 16
  %v5950 = vrot.slane %v5948, 7
  %v5951 = vshll.u32 %v5548, 16
  %v5953 = vor.u32 %v5950, %v5951
  %v5954 = vsel %vm2799, %v5946, %v5953
  %v5955 = vrot.slane %v5950, 4
  %v5957 = vshrl.u32 %v5549, 16
  %v5959 = vrot.slane %v5957, 7
  %v5960 = vshll.u32 %v5549, 16
  %v5962 = vor.u32 %v5959, %v5960
  %v5963 = vsel %vm2799, %v5955, %v5962
  %v5964 = vrot.slane %v5959, 4
  %v5966 = vshrl.u32 %v5550, 16
  %v5968 = vrot.slane %v5966, 7
  %v5969 = vshll.u32 %v5550, 16
  %v5971 = vor.u32 %v5968, %v5969
  %v5972 = vsel %vm2799, %v5964, %v5971
  %v5973 = vrot.slane %v5968, 4
  %v5975 = vshrl.u32 %v5551, 16
  %v5977 = vrot.slane %v5975, 7
  %v5978 = vshll.u32 %v5551, 16
  %v5980 = vor.u32 %v5977, %v5978
  %v5981 = vsel %vm2799, %v5973, %v5980
  %v5982 = vrot.slane %v5977, 4
  %v5984 = vshrl.u32 %v5552, 16
  %v5986 = vrot.slane %v5984, 7
  %v5987 = vshll.u32 %v5552, 16
  %v5989 = vor.u32 %v5986, %v5987
  %v5990 = vsel %vm2799, %v5982, %v5989
  %v5991 = vrot.slane %v5986, 4
  %v5993 = vshrl.u32 %v5553, 16
  %v5995 = vrot.slane %v5993, 7
  %v5996 = vshll.u32 %v5553, 16
  %v5998 = vor.u32 %v5995, %v5996
  %v5999 = vsel %vm2799, %v5991, %v5998
  %v6000 = vrot.slane %v5995, 4
  %v6002 = vshrl.u32 %v5554, 16
  %v6004 = vrot.slane %v6002, 7
  %v6005 = vshll.u32 %v5554, 16
  %v6007 = vor.u32 %v6004, %v6005
  %v6008 = vsel %vm2799, %v6000, %v6007
  %v6009 = vrot.slane %v6004, 4
  %v6011 = vshrl.u32 %v5555, 16
  %v6013 = vrot.slane %v6011, 7
  %v6014 = vshll.u32 %v5555, 16
  %v6016 = vor.u32 %v6013, %v6014
  %v6017 = vsel %vm2799, %v6009, %v6016
  %v6018 = vrot.slane %v6013, 4
  %v6020 = vshrl.u32 %v5556, 16
  %v6022 = vrot.slane %v6020, 7
  %v6023 = vshll.u32 %v5556, 16
  %v6025 = vor.u32 %v6022, %v6023
  %v6026 = vsel %vm2799, %v6018, %v6025
  %v6027 = vrot.slane %v6022, 4
  %v6029 = vshrl.u32 %v5557, 16
  %v6031 = vrot.slane %v6029, 7
  %v6032 = vshll.u32 %v5557, 16
  %v6034 = vor.u32 %v6031, %v6032
  %v6035 = vsel %vm2799, %v6027, %v6034
  %v6036 = vrot.slane %v6031, 4
  %v6038 = vshrl.u32 %v5558, 16
  %v6040 = vrot.slane %v6038, 7
  %v6041 = vshll.u32 %v5558, 16
  %v6043 = vor.u32 %v6040, %v6041
  %v6044 = vsel %vm2799, %v6036, %v6043
  %v6045 = vrot.slane %v6040, 4
  %v6047 = vshrl.u32 %v5559, 16
  %v6049 = vrot.slane %v6047, 7
  %v6050 = vshll.u32 %v5559, 16
  %v6052 = vor.u32 %v6049, %v6050
  %v6053 = vsel %vm2799, %v6045, %v6052
  %v6054 = vrot.slane %v6049, 4
  %v6056 = vshrl.u32 %v5560, 16
  %v6058 = vrot.slane %v6056, 7
  %v6059 = vshll.u32 %v5560, 16
  %v6061 = vor.u32 %v6058, %v6059
  %v6062 = vsel %vm2799, %v6054, %v6061
  %v6063 = vrot.slane %v6058, 4
  %v6065 = vshrl.u32 %v5561, 16
  %v6067 = vrot.slane %v6065, 7
  %v6068 = vshll.u32 %v5561, 16
  %v6070 = vor.u32 %v6067, %v6068
  %v6071 = vsel %vm2799, %v6063, %v6070
  %v6072 = vrot.slane %v6067, 4
  %v6074 = vshrl.u32 %v5562, 16
  %v6076 = vrot.slane %v6074, 7
  %v6077 = vshll.u32 %v5562, 16
  %v6079 = vor.u32 %v6076, %v6077
  %v6080 = vsel %vm2799, %v6072, %v6079
  %v6081 = vrot.slane %v6076, 4
  %v6083 = vshrl.u32 %v5563, 16
  %v6085 = vrot.slane %v6083, 7
  %v6086 = vshll.u32 %v5563, 16
  %v6088 = vor.u32 %v6085, %v6086
  %v6089 = vsel %vm2799, %v6081, %v6088
  %v6090 = vrot.slane %v6085, 4
  %v6092 = vshrl.u32 %v5564, 16
  %v6094 = vrot.slane %v6092, 7
  %v6095 = vshll.u32 %v5564, 16
  %v6097 = vor.u32 %v6094, %v6095
  %v6098 = vsel %vm2799, %v6090, %v6097
  %v6099 = vrot.slane %v6094, 4
  %v6101 = vshrl.u32 %v5565, 16
  %v6103 = vrot.slane %v6101, 7
  %v6104 = vshll.u32 %v5565, 16
  %v6106 = vor.u32 %v6103, %v6104
  %v6107 = vsel %vm2799, %v6099, %v6106
  %v6108 = vrot.slane %v6103, 4
  %v6110 = vshrl.u32 %v5566, 16
  %v6112 = vrot.slane %v6110, 7
  %v6113 = vshll.u32 %v5566, 16
  %v6115 = vor.u32 %v6112, %v6113
  %v6116 = vsel %vm2799, %v6108, %v6115
  %v6117 = vrot.slane %v6112, 4
  %v6119 = vshrl.u32 %v5567, 16
  %v6121 = vrot.slane %v6119, 7
  %v6122 = vshll.u32 %v5567, 16
  %v6124 = vor.u32 %v6121, %v6122
  %v6125 = vsel %vm2799, %v6117, %v6124
  %v6126 = vrot.slane %v6121, 4
  %v6128 = vshrl.u32 %v5568, 16
  %v6130 = vrot.slane %v6128, 7
  %v6131 = vshll.u32 %v5568, 16
  %v6133 = vor.u32 %v6130, %v6131
  %v6134 = vsel %vm2799, %v6126, %v6133
  %v6135 = vrot.slane %v6130, 4
  %v6137 = vshrl.u32 %v5569, 16
  %v6139 = vrot.slane %v6137, 7
  %v6140 = vshll.u32 %v5569, 16
  %v6142 = vor.u32 %v6139, %v6140
  %v6143 = vsel %vm2799, %v6135, %v6142
  %v6144 = vrot.slane %v6139, 4
  %v6145 = vunpack.c.l.b16 %v5576
  %v6146 = vunpack.c.h.b16 %v5576
  %v6147 = vunpack.c.l.b16 0
  %v6148 = vunpack.c.h.b16 0
  %vm6149 = vcmp.ne.s32.totalorder %v6145, %v6147
  %vm6150 = vcmp.ne.s32.totalorder %v6146, %v6148
  %vm6151 = vmpackc.low %vm6150, %vm6149
  %v6152 = vunpack.c.l.b16 %v5585
  %v6153 = vunpack.c.h.b16 %v5585
  %v6154 = vunpack.c.l.b16 0
  %v6155 = vunpack.c.h.b16 0
  %vm6156 = vcmp.ne.s32.totalorder %v6152, %v6154
  %vm6157 = vcmp.ne.s32.totalorder %v6153, %v6155
  %vm6158 = vmpackc.low %vm6157, %vm6156
  %v6159 = vunpack.c.l.b16 %v5594
  %v6160 = vunpack.c.h.b16 %v5594
  %v6161 = vunpack.c.l.b16 0
  %v6162 = vunpack.c.h.b16 0
  %vm6163 = vcmp.ne.s32.totalorder %v6159, %v6161
  %vm6164 = vcmp.ne.s32.totalorder %v6160, %v6162
  %vm6165 = vmpackc.low %vm6164, %vm6163
  %v6166 = vunpack.c.l.b16 %v5603
  %v6167 = vunpack.c.h.b16 %v5603
  %v6168 = vunpack.c.l.b16 0
  %v6169 = vunpack.c.h.b16 0
  %vm6170 = vcmp.ne.s32.totalorder %v6166, %v6168
  %vm6171 = vcmp.ne.s32.totalorder %v6167, %v6169
  %vm6172 = vmpackc.low %vm6171, %vm6170
  %v6173 = vunpack.c.l.b16 %v5612
  %v6174 = vunpack.c.h.b16 %v5612
  %v6175 = vunpack.c.l.b16 0
  %v6176 = vunpack.c.h.b16 0
  %vm6177 = vcmp.ne.s32.totalorder %v6173, %v6175
  %vm6178 = vcmp.ne.s32.totalorder %v6174, %v6176
  %vm6179 = vmpackc.low %vm6178, %vm6177
  %v6180 = vunpack.c.l.b16 %v5621
  %v6181 = vunpack.c.h.b16 %v5621
  %v6182 = vunpack.c.l.b16 0
  %v6183 = vunpack.c.h.b16 0
  %vm6184 = vcmp.ne.s32.totalorder %v6180, %v6182
  %vm6185 = vcmp.ne.s32.totalorder %v6181, %v6183
  %vm6186 = vmpackc.low %vm6185, %vm6184
  %v6187 = vunpack.c.l.b16 %v5630
  %v6188 = vunpack.c.h.b16 %v5630
  %v6189 = vunpack.c.l.b16 0
  %v6190 = vunpack.c.h.b16 0
  %vm6191 = vcmp.ne.s32.totalorder %v6187, %v6189
  %vm6192 = vcmp.ne.s32.totalorder %v6188, %v6190
  %vm6193 = vmpackc.low %vm6192, %vm6191
  %v6194 = vunpack.c.l.b16 %v5639
  %v6195 = vunpack.c.h.b16 %v5639
  %v6196 = vunpack.c.l.b16 0
  %v6197 = vunpack.c.h.b16 0
  %vm6198 = vcmp.ne.s32.totalorder %v6194, %v6196
  %vm6199 = vcmp.ne.s32.totalorder %v6195, %v6197
  %vm6200 = vmpackc.low %vm6199, %vm6198
  %v6201 = vunpack.c.l.b16 %v5648
  %v6202 = vunpack.c.h.b16 %v5648
  %v6203 = vunpack.c.l.b16 0
  %v6204 = vunpack.c.h.b16 0
  %vm6205 = vcmp.ne.s32.totalorder %v6201, %v6203
  %vm6206 = vcmp.ne.s32.totalorder %v6202, %v6204
  %vm6207 = vmpackc.low %vm6206, %vm6205
  %v6208 = vunpack.c.l.b16 %v5657
  %v6209 = vunpack.c.h.b16 %v5657
  %v6210 = vunpack.c.l.b16 0
  %v6211 = vunpack.c.h.b16 0
  %vm6212 = vcmp.ne.s32.totalorder %v6208, %v6210
  %vm6213 = vcmp.ne.s32.totalorder %v6209, %v6211
  %vm6214 = vmpackc.low %vm6213, %vm6212
  %v6215 = vunpack.c.l.b16 %v5666
  %v6216 = vunpack.c.h.b16 %v5666
  %v6217 = vunpack.c.l.b16 0
  %v6218 = vunpack.c.h.b16 0
  %vm6219 = vcmp.ne.s32.totalorder %v6215, %v6217
  %vm6220 = vcmp.ne.s32.totalorder %v6216, %v6218
  %vm6221 = vmpackc.low %vm6220, %vm6219
  %v6222 = vunpack.c.l.b16 %v5675
  %v6223 = vunpack.c.h.b16 %v5675
  %v6224 = vunpack.c.l.b16 0
  %v6225 = vunpack.c.h.b16 0
  %vm6226 = vcmp.ne.s32.totalorder %v6222, %v6224
  %vm6227 = vcmp.ne.s32.totalorder %v6223, %v6225
  %vm6228 = vmpackc.low %vm6227, %vm6226
  %v6229 = vunpack.c.l.b16 %v5684
  %v6230 = vunpack.c.h.b16 %v5684
  %v6231 = vunpack.c.l.b16 0
  %v6232 = vunpack.c.h.b16 0
  %vm6233 = vcmp.ne.s32.totalorder %v6229, %v6231
  %vm6234 = vcmp.ne.s32.totalorder %v6230, %v6232
  %vm6235 = vmpackc.low %vm6234, %vm6233
  %v6236 = vunpack.c.l.b16 %v5693
  %v6237 = vunpack.c.h.b16 %v5693
  %v6238 = vunpack.c.l.b16 0
  %v6239 = vunpack.c.h.b16 0
  %vm6240 = vcmp.ne.s32.totalorder %v6236, %v6238
  %vm6241 = vcmp.ne.s32.totalorder %v6237, %v6239
  %vm6242 = vmpackc.low %vm6241, %vm6240
  %v6243 = vunpack.c.l.b16 %v5702
  %v6244 = vunpack.c.h.b16 %v5702
  %v6245 = vunpack.c.l.b16 0
  %v6246 = vunpack.c.h.b16 0
  %vm6247 = vcmp.ne.s32.totalorder %v6243, %v6245
  %vm6248 = vcmp.ne.s32.totalorder %v6244, %v6246
  %vm6249 = vmpackc.low %vm6248, %vm6247
  %v6250 = vunpack.c.l.b16 %v5711
  %v6251 = vunpack.c.h.b16 %v5711
  %v6252 = vunpack.c.l.b16 0
  %v6253 = vunpack.c.h.b16 0
  %vm6254 = vcmp.ne.s32.totalorder %v6250, %v6252
  %vm6255 = vcmp.ne.s32.totalorder %v6251, %v6253
  %vm6256 = vmpackc.low %vm6255, %vm6254
  %v6257 = vunpack.c.l.b16 %v5720
  %v6258 = vunpack.c.h.b16 %v5720
  %v6259 = vunpack.c.l.b16 0
  %v6260 = vunpack.c.h.b16 0
  %vm6261 = vcmp.ne.s32.totalorder %v6257, %v6259
  %vm6262 = vcmp.ne.s32.totalorder %v6258, %v6260
  %vm6263 = vmpackc.low %vm6262, %vm6261
  %v6264 = vunpack.c.l.b16 %v5729
  %v6265 = vunpack.c.h.b16 %v5729
  %v6266 = vunpack.c.l.b16 0
  %v6267 = vunpack.c.h.b16 0
  %vm6268 = vcmp.ne.s32.totalorder %v6264, %v6266
  %vm6269 = vcmp.ne.s32.totalorder %v6265, %v6267
  %vm6270 = vmpackc.low %vm6269, %vm6268
  %v6271 = vunpack.c.l.b16 %v5738
  %v6272 = vunpack.c.h.b16 %v5738
  %v6273 = vunpack.c.l.b16 0
  %v6274 = vunpack.c.h.b16 0
  %vm6275 = vcmp.ne.s32.totalorder %v6271, %v6273
  %vm6276 = vcmp.ne.s32.totalorder %v6272, %v6274
  %vm6277 = vmpackc.low %vm6276, %vm6275
  %v6278 = vunpack.c.l.b16 %v5747
  %v6279 = vunpack.c.h.b16 %v5747
  %v6280 = vunpack.c.l.b16 0
  %v6281 = vunpack.c.h.b16 0
  %vm6282 = vcmp.ne.s32.totalorder %v6278, %v6280
  %vm6283 = vcmp.ne.s32.totalorder %v6279, %v6281
  %vm6284 = vmpackc.low %vm6283, %vm6282
  %v6285 = vunpack.c.l.b16 %v5756
  %v6286 = vunpack.c.h.b16 %v5756
  %v6287 = vunpack.c.l.b16 0
  %v6288 = vunpack.c.h.b16 0
  %vm6289 = vcmp.ne.s32.totalorder %v6285, %v6287
  %vm6290 = vcmp.ne.s32.totalorder %v6286, %v6288
  %vm6291 = vmpackc.low %vm6290, %vm6289
  %v6292 = vunpack.c.l.b16 %v5765
  %v6293 = vunpack.c.h.b16 %v5765
  %v6294 = vunpack.c.l.b16 0
  %v6295 = vunpack.c.h.b16 0
  %vm6296 = vcmp.ne.s32.totalorder %v6292, %v6294
  %vm6297 = vcmp.ne.s32.totalorder %v6293, %v6295
  %vm6298 = vmpackc.low %vm6297, %vm6296
  %v6299 = vunpack.c.l.b16 %v5774
  %v6300 = vunpack.c.h.b16 %v5774
  %v6301 = vunpack.c.l.b16 0
  %v6302 = vunpack.c.h.b16 0
  %vm6303 = vcmp.ne.s32.totalorder %v6299, %v6301
  %vm6304 = vcmp.ne.s32.totalorder %v6300, %v6302
  %vm6305 = vmpackc.low %vm6304, %vm6303
  %v6306 = vunpack.c.l.b16 %v5783
  %v6307 = vunpack.c.h.b16 %v5783
  %v6308 = vunpack.c.l.b16 0
  %v6309 = vunpack.c.h.b16 0
  %vm6310 = vcmp.ne.s32.totalorder %v6306, %v6308
  %vm6311 = vcmp.ne.s32.totalorder %v6307, %v6309
  %vm6312 = vmpackc.low %vm6311, %vm6310
  %v6313 = vunpack.c.l.b16 %v5792
  %v6314 = vunpack.c.h.b16 %v5792
  %v6315 = vunpack.c.l.b16 0
  %v6316 = vunpack.c.h.b16 0
  %vm6317 = vcmp.ne.s32.totalorder %v6313, %v6315
  %vm6318 = vcmp.ne.s32.totalorder %v6314, %v6316
  %vm6319 = vmpackc.low %vm6318, %vm6317
  %v6320 = vunpack.c.l.b16 %v5801
  %v6321 = vunpack.c.h.b16 %v5801
  %v6322 = vunpack.c.l.b16 0
  %v6323 = vunpack.c.h.b16 0
  %vm6324 = vcmp.ne.s32.totalorder %v6320, %v6322
  %vm6325 = vcmp.ne.s32.totalorder %v6321, %v6323
  %vm6326 = vmpackc.low %vm6325, %vm6324
  %v6327 = vunpack.c.l.b16 %v5810
  %v6328 = vunpack.c.h.b16 %v5810
  %v6329 = vunpack.c.l.b16 0
  %v6330 = vunpack.c.h.b16 0
  %vm6331 = vcmp.ne.s32.totalorder %v6327, %v6329
  %vm6332 = vcmp.ne.s32.totalorder %v6328, %v6330
  %vm6333 = vmpackc.low %vm6332, %vm6331
  %v6334 = vunpack.c.l.b16 %v5819
  %v6335 = vunpack.c.h.b16 %v5819
  %v6336 = vunpack.c.l.b16 0
  %v6337 = vunpack.c.h.b16 0
  %vm6338 = vcmp.ne.s32.totalorder %v6334, %v6336
  %vm6339 = vcmp.ne.s32.totalorder %v6335, %v6337
  %vm6340 = vmpackc.low %vm6339, %vm6338
  %v6341 = vunpack.c.l.b16 %v5828
  %v6342 = vunpack.c.h.b16 %v5828
  %v6343 = vunpack.c.l.b16 0
  %v6344 = vunpack.c.h.b16 0
  %vm6345 = vcmp.ne.s32.totalorder %v6341, %v6343
  %vm6346 = vcmp.ne.s32.totalorder %v6342, %v6344
  %vm6347 = vmpackc.low %vm6346, %vm6345
  %v6348 = vunpack.c.l.b16 %v5837
  %v6349 = vunpack.c.h.b16 %v5837
  %v6350 = vunpack.c.l.b16 0
  %v6351 = vunpack.c.h.b16 0
  %vm6352 = vcmp.ne.s32.totalorder %v6348, %v6350
  %vm6353 = vcmp.ne.s32.totalorder %v6349, %v6351
  %vm6354 = vmpackc.low %vm6353, %vm6352
  %v6355 = vunpack.c.l.b16 %v5846
  %v6356 = vunpack.c.h.b16 %v5846
  %v6357 = vunpack.c.l.b16 0
  %v6358 = vunpack.c.h.b16 0
  %vm6359 = vcmp.ne.s32.totalorder %v6355, %v6357
  %vm6360 = vcmp.ne.s32.totalorder %v6356, %v6358
  %vm6361 = vmpackc.low %vm6360, %vm6359
  %v6362 = vunpack.c.l.b16 %v5855
  %v6363 = vunpack.c.h.b16 %v5855
  %v6364 = vunpack.c.l.b16 0
  %v6365 = vunpack.c.h.b16 0
  %vm6366 = vcmp.ne.s32.totalorder %v6362, %v6364
  %vm6367 = vcmp.ne.s32.totalorder %v6363, %v6365
  %vm6368 = vmpackc.low %vm6367, %vm6366
  %v6369 = vunpack.c.l.b16 %v5864
  %v6370 = vunpack.c.h.b16 %v5864
  %v6371 = vunpack.c.l.b16 0
  %v6372 = vunpack.c.h.b16 0
  %vm6373 = vcmp.ne.s32.totalorder %v6369, %v6371
  %vm6374 = vcmp.ne.s32.totalorder %v6370, %v6372
  %vm6375 = vmpackc.low %vm6374, %vm6373
  %v6376 = vunpack.c.l.b16 %v5873
  %v6377 = vunpack.c.h.b16 %v5873
  %v6378 = vunpack.c.l.b16 0
  %v6379 = vunpack.c.h.b16 0
  %vm6380 = vcmp.ne.s32.totalorder %v6376, %v6378
  %vm6381 = vcmp.ne.s32.totalorder %v6377, %v6379
  %vm6382 = vmpackc.low %vm6381, %vm6380
  %v6383 = vunpack.c.l.b16 %v5882
  %v6384 = vunpack.c.h.b16 %v5882
  %v6385 = vunpack.c.l.b16 0
  %v6386 = vunpack.c.h.b16 0
  %vm6387 = vcmp.ne.s32.totalorder %v6383, %v6385
  %vm6388 = vcmp.ne.s32.totalorder %v6384, %v6386
  %vm6389 = vmpackc.low %vm6388, %vm6387
  %v6390 = vunpack.c.l.b16 %v5891
  %v6391 = vunpack.c.h.b16 %v5891
  %v6392 = vunpack.c.l.b16 0
  %v6393 = vunpack.c.h.b16 0
  %vm6394 = vcmp.ne.s32.totalorder %v6390, %v6392
  %vm6395 = vcmp.ne.s32.totalorder %v6391, %v6393
  %vm6396 = vmpackc.low %vm6395, %vm6394
  %v6397 = vunpack.c.l.b16 %v5900
  %v6398 = vunpack.c.h.b16 %v5900
  %v6399 = vunpack.c.l.b16 0
  %v6400 = vunpack.c.h.b16 0
  %vm6401 = vcmp.ne.s32.totalorder %v6397, %v6399
  %vm6402 = vcmp.ne.s32.totalorder %v6398, %v6400
  %vm6403 = vmpackc.low %vm6402, %vm6401
  %v6404 = vunpack.c.l.b16 %v5909
  %v6405 = vunpack.c.h.b16 %v5909
  %v6406 = vunpack.c.l.b16 0
  %v6407 = vunpack.c.h.b16 0
  %vm6408 = vcmp.ne.s32.totalorder %v6404, %v6406
  %vm6409 = vcmp.ne.s32.totalorder %v6405, %v6407
  %vm6410 = vmpackc.low %vm6409, %vm6408
  %v6411 = vunpack.c.l.b16 %v5918
  %v6412 = vunpack.c.h.b16 %v5918
  %v6413 = vunpack.c.l.b16 0
  %v6414 = vunpack.c.h.b16 0
  %vm6415 = vcmp.ne.s32.totalorder %v6411, %v6413
  %vm6416 = vcmp.ne.s32.totalorder %v6412, %v6414
  %vm6417 = vmpackc.low %vm6416, %vm6415
  %v6418 = vunpack.c.l.b16 %v5927
  %v6419 = vunpack.c.h.b16 %v5927
  %v6420 = vunpack.c.l.b16 0
  %v6421 = vunpack.c.h.b16 0
  %vm6422 = vcmp.ne.s32.totalorder %v6418, %v6420
  %vm6423 = vcmp.ne.s32.totalorder %v6419, %v6421
  %vm6424 = vmpackc.low %vm6423, %vm6422
  %v6425 = vunpack.c.l.b16 %v5936
  %v6426 = vunpack.c.h.b16 %v5936
  %v6427 = vunpack.c.l.b16 0
  %v6428 = vunpack.c.h.b16 0
  %vm6429 = vcmp.ne.s32.totalorder %v6425, %v6427
  %vm6430 = vcmp.ne.s32.totalorder %v6426, %v6428
  %vm6431 = vmpackc.low %vm6430, %vm6429
  %v6432 = vunpack.c.l.b16 %v5945
  %v6433 = vunpack.c.h.b16 %v5945
  %v6434 = vunpack.c.l.b16 0
  %v6435 = vunpack.c.h.b16 0
  %vm6436 = vcmp.ne.s32.totalorder %v6432, %v6434
  %vm6437 = vcmp.ne.s32.totalorder %v6433, %v6435
  %vm6438 = vmpackc.low %vm6437, %vm6436
  %v6439 = vunpack.c.l.b16 %v5954
  %v6440 = vunpack.c.h.b16 %v5954
  %v6441 = vunpack.c.l.b16 0
  %v6442 = vunpack.c.h.b16 0
  %vm6443 = vcmp.ne.s32.totalorder %v6439, %v6441
  %vm6444 = vcmp.ne.s32.totalorder %v6440, %v6442
  %vm6445 = vmpackc.low %vm6444, %vm6443
  %v6446 = vunpack.c.l.b16 %v5963
  %v6447 = vunpack.c.h.b16 %v5963
  %v6448 = vunpack.c.l.b16 0
  %v6449 = vunpack.c.h.b16 0
  %vm6450 = vcmp.ne.s32.totalorder %v6446, %v6448
  %vm6451 = vcmp.ne.s32.totalorder %v6447, %v6449
  %vm6452 = vmpackc.low %vm6451, %vm6450
  %v6453 = vunpack.c.l.b16 %v5972
  %v6454 = vunpack.c.h.b16 %v5972
  %v6455 = vunpack.c.l.b16 0
  %v6456 = vunpack.c.h.b16 0
  %vm6457 = vcmp.ne.s32.totalorder %v6453, %v6455
  %vm6458 = vcmp.ne.s32.totalorder %v6454, %v6456
  %vm6459 = vmpackc.low %vm6458, %vm6457
  %v6460 = vunpack.c.l.b16 %v5981
  %v6461 = vunpack.c.h.b16 %v5981
  %v6462 = vunpack.c.l.b16 0
  %v6463 = vunpack.c.h.b16 0
  %vm6464 = vcmp.ne.s32.totalorder %v6460, %v6462
  %vm6465 = vcmp.ne.s32.totalorder %v6461, %v6463
  %vm6466 = vmpackc.low %vm6465, %vm6464
  %v6467 = vunpack.c.l.b16 %v5990
  %v6468 = vunpack.c.h.b16 %v5990
  %v6469 = vunpack.c.l.b16 0
  %v6470 = vunpack.c.h.b16 0
  %vm6471 = vcmp.ne.s32.totalorder %v6467, %v6469
  %vm6472 = vcmp.ne.s32.totalorder %v6468, %v6470
  %vm6473 = vmpackc.low %vm6472, %vm6471
  %v6474 = vunpack.c.l.b16 %v5999
  %v6475 = vunpack.c.h.b16 %v5999
  %v6476 = vunpack.c.l.b16 0
  %v6477 = vunpack.c.h.b16 0
  %vm6478 = vcmp.ne.s32.totalorder %v6474, %v6476
  %vm6479 = vcmp.ne.s32.totalorder %v6475, %v6477
  %vm6480 = vmpackc.low %vm6479, %vm6478
  %v6481 = vunpack.c.l.b16 %v6008
  %v6482 = vunpack.c.h.b16 %v6008
  %v6483 = vunpack.c.l.b16 0
  %v6484 = vunpack.c.h.b16 0
  %vm6485 = vcmp.ne.s32.totalorder %v6481, %v6483
  %vm6486 = vcmp.ne.s32.totalorder %v6482, %v6484
  %vm6487 = vmpackc.low %vm6486, %vm6485
  %v6488 = vunpack.c.l.b16 %v6017
  %v6489 = vunpack.c.h.b16 %v6017
  %v6490 = vunpack.c.l.b16 0
  %v6491 = vunpack.c.h.b16 0
  %vm6492 = vcmp.ne.s32.totalorder %v6488, %v6490
  %vm6493 = vcmp.ne.s32.totalorder %v6489, %v6491
  %vm6494 = vmpackc.low %vm6493, %vm6492
  %v6495 = vunpack.c.l.b16 %v6026
  %v6496 = vunpack.c.h.b16 %v6026
  %v6497 = vunpack.c.l.b16 0
  %v6498 = vunpack.c.h.b16 0
  %vm6499 = vcmp.ne.s32.totalorder %v6495, %v6497
  %vm6500 = vcmp.ne.s32.totalorder %v6496, %v6498
  %vm6501 = vmpackc.low %vm6500, %vm6499
  %v6502 = vunpack.c.l.b16 %v6035
  %v6503 = vunpack.c.h.b16 %v6035
  %v6504 = vunpack.c.l.b16 0
  %v6505 = vunpack.c.h.b16 0
  %vm6506 = vcmp.ne.s32.totalorder %v6502, %v6504
  %vm6507 = vcmp.ne.s32.totalorder %v6503, %v6505
  %vm6508 = vmpackc.low %vm6507, %vm6506
  %v6509 = vunpack.c.l.b16 %v6044
  %v6510 = vunpack.c.h.b16 %v6044
  %v6511 = vunpack.c.l.b16 0
  %v6512 = vunpack.c.h.b16 0
  %vm6513 = vcmp.ne.s32.totalorder %v6509, %v6511
  %vm6514 = vcmp.ne.s32.totalorder %v6510, %v6512
  %vm6515 = vmpackc.low %vm6514, %vm6513
  %v6516 = vunpack.c.l.b16 %v6053
  %v6517 = vunpack.c.h.b16 %v6053
  %v6518 = vunpack.c.l.b16 0
  %v6519 = vunpack.c.h.b16 0
  %vm6520 = vcmp.ne.s32.totalorder %v6516, %v6518
  %vm6521 = vcmp.ne.s32.totalorder %v6517, %v6519
  %vm6522 = vmpackc.low %vm6521, %vm6520
  %v6523 = vunpack.c.l.b16 %v6062
  %v6524 = vunpack.c.h.b16 %v6062
  %v6525 = vunpack.c.l.b16 0
  %v6526 = vunpack.c.h.b16 0
  %vm6527 = vcmp.ne.s32.totalorder %v6523, %v6525
  %vm6528 = vcmp.ne.s32.totalorder %v6524, %v6526
  %vm6529 = vmpackc.low %vm6528, %vm6527
  %v6530 = vunpack.c.l.b16 %v6071
  %v6531 = vunpack.c.h.b16 %v6071
  %v6532 = vunpack.c.l.b16 0
  %v6533 = vunpack.c.h.b16 0
  %vm6534 = vcmp.ne.s32.totalorder %v6530, %v6532
  %vm6535 = vcmp.ne.s32.totalorder %v6531, %v6533
  %vm6536 = vmpackc.low %vm6535, %vm6534
  %v6537 = vunpack.c.l.b16 %v6080
  %v6538 = vunpack.c.h.b16 %v6080
  %v6539 = vunpack.c.l.b16 0
  %v6540 = vunpack.c.h.b16 0
  %vm6541 = vcmp.ne.s32.totalorder %v6537, %v6539
  %vm6542 = vcmp.ne.s32.totalorder %v6538, %v6540
  %vm6543 = vmpackc.low %vm6542, %vm6541
  %v6544 = vunpack.c.l.b16 %v6089
  %v6545 = vunpack.c.h.b16 %v6089
  %v6546 = vunpack.c.l.b16 0
  %v6547 = vunpack.c.h.b16 0
  %vm6548 = vcmp.ne.s32.totalorder %v6544, %v6546
  %vm6549 = vcmp.ne.s32.totalorder %v6545, %v6547
  %vm6550 = vmpackc.low %vm6549, %vm6548
  %v6551 = vunpack.c.l.b16 %v6098
  %v6552 = vunpack.c.h.b16 %v6098
  %v6553 = vunpack.c.l.b16 0
  %v6554 = vunpack.c.h.b16 0
  %vm6555 = vcmp.ne.s32.totalorder %v6551, %v6553
  %vm6556 = vcmp.ne.s32.totalorder %v6552, %v6554
  %vm6557 = vmpackc.low %vm6556, %vm6555
  %v6558 = vunpack.c.l.b16 %v6107
  %v6559 = vunpack.c.h.b16 %v6107
  %v6560 = vunpack.c.l.b16 0
  %v6561 = vunpack.c.h.b16 0
  %vm6562 = vcmp.ne.s32.totalorder %v6558, %v6560
  %vm6563 = vcmp.ne.s32.totalorder %v6559, %v6561
  %vm6564 = vmpackc.low %vm6563, %vm6562
  %v6565 = vunpack.c.l.b16 %v6116
  %v6566 = vunpack.c.h.b16 %v6116
  %v6567 = vunpack.c.l.b16 0
  %v6568 = vunpack.c.h.b16 0
  %vm6569 = vcmp.ne.s32.totalorder %v6565, %v6567
  %vm6570 = vcmp.ne.s32.totalorder %v6566, %v6568
  %vm6571 = vmpackc.low %vm6570, %vm6569
  %v6572 = vunpack.c.l.b16 %v6125
  %v6573 = vunpack.c.h.b16 %v6125
  %v6574 = vunpack.c.l.b16 0
  %v6575 = vunpack.c.h.b16 0
  %vm6576 = vcmp.ne.s32.totalorder %v6572, %v6574
  %vm6577 = vcmp.ne.s32.totalorder %v6573, %v6575
  %vm6578 = vmpackc.low %vm6577, %vm6576
  %v6579 = vunpack.c.l.b16 %v6134
  %v6580 = vunpack.c.h.b16 %v6134
  %v6581 = vunpack.c.l.b16 0
  %v6582 = vunpack.c.h.b16 0
  %vm6583 = vcmp.ne.s32.totalorder %v6579, %v6581
  %vm6584 = vcmp.ne.s32.totalorder %v6580, %v6582
  %vm6585 = vmpackc.low %vm6584, %vm6583
  %v6586 = vunpack.c.l.b16 %v6143
  %v6587 = vunpack.c.h.b16 %v6143
  %v6588 = vunpack.c.l.b16 0
  %v6589 = vunpack.c.h.b16 0
  %vm6590 = vcmp.ne.s32.totalorder %v6586, %v6588
  %vm6591 = vcmp.ne.s32.totalorder %v6587, %v6589
  %vm6592 = vmpackc.low %vm6591, %vm6590
  %v6593 = vunpack.c.l.b16 %v6144
  %v6594 = vunpack.c.h.b16 %v6144
  %v6595 = vunpack.c.l.b16 0
  %v6596 = vunpack.c.h.b16 0
  %vm6597 = vcmp.ne.s32.totalorder %v6593, %v6595
  %vm6598 = vcmp.ne.s32.totalorder %v6594, %v6596
  %vm6599 = vmpackc.low %vm6598, %vm6597
  %v6600 = vsel %vm6151, %v676, 0
  %v6601 = vsel %vm6158, %v677, 0
  %v6602 = vsel %vm6165, %v678, 0
  %v6603 = vsel %vm6172, %v679, 0
  %v6604 = vsel %vm6179, %v680, 0
  %v6605 = vsel %vm6186, %v681, 0
  %v6606 = vsel %vm6193, %v682, 0
  %v6607 = vsel %vm6200, %v683, 0
  %v6608 = vsel %vm6207, %v684, 0
  %v6609 = vsel %vm6214, %v685, 0
  %v6610 = vsel %vm6221, %v686, 0
  %v6611 = vsel %vm6228, %v687, 0
  %v6612 = vsel %vm6235, %v688, 0
  %v6613 = vsel %vm6242, %v689, 0
  %v6614 = vsel %vm6249, %v690, 0
  %v6615 = vsel %vm6256, %v691, 0
  %v6616 = vsel %vm6263, %v692, 0
  %v6617 = vsel %vm6270, %v693, 0
  %v6618 = vsel %vm6277, %v694, 0
  %v6619 = vsel %vm6284, %v695, 0
  %v6620 = vsel %vm6291, %v696, 0
  %v6621 = vsel %vm6298, %v697, 0
  %v6622 = vsel %vm6305, %v698, 0
  %v6623 = vsel %vm6312, %v699, 0
  %v6624 = vsel %vm6319, %v700, 0
  %v6625 = vsel %vm6326, %v701, 0
  %v6626 = vsel %vm6333, %v702, 0
  %v6627 = vsel %vm6340, %v703, 0
  %v6628 = vsel %vm6347, %v704, 0
  %v6629 = vsel %vm6354, %v705, 0
  %v6630 = vsel %vm6361, %v706, 0
  %v6631 = vsel %vm6368, %v707, 0
  %v6632 = vsel %vm6375, %v708, 0
  %v6633 = vsel %vm6382, %v709, 0
  %v6634 = vsel %vm6389, %v710, 0
  %v6635 = vsel %vm6396, %v711, 0
  %v6636 = vsel %vm6403, %v712, 0
  %v6637 = vsel %vm6410, %v713, 0
  %v6638 = vsel %vm6417, %v714, 0
  %v6639 = vsel %vm6424, %v715, 0
  %v6640 = vsel %vm6431, %v716, 0
  %v6641 = vsel %vm6438, %v717, 0
  %v6642 = vsel %vm6445, %v718, 0
  %v6643 = vsel %vm6452, %v719, 0
  %v6644 = vsel %vm6459, %v720, 0
  %v6645 = vsel %vm6466, %v721, 0
  %v6646 = vsel %vm6473, %v722, 0
  %v6647 = vsel %vm6480, %v723, 0
  %v6648 = vsel %vm6487, %v724, 0
  %v6649 = vsel %vm6494, %v725, 0
  %v6650 = vsel %vm6501, %v726, 0
  %v6651 = vsel %vm6508, %v727, 0
  %v6652 = vsel %vm6515, %v728, 0
  %v6653 = vsel %vm6522, %v729, 0
  %v6654 = vsel %vm6529, %v730, 0
  %v6655 = vsel %vm6536, %v731, 0
  %v6656 = vsel %vm6543, %v732, 0
  %v6657 = vsel %vm6550, %v733, 0
  %v6658 = vsel %vm6557, %v734, 0
  %v6659 = vsel %vm6564, %v735, 0
  %v6660 = vsel %vm6571, %v736, 0
  %v6661 = vsel %vm6578, %v737, 0
  %v6662 = vsel %vm6585, %v3896, 0
  %v6663 = vsel %vm6592, %v3897, 0
  %v6664 = vsel %vm6599, %v5313, 0
  %v6665 = vld [vmem:[#allocation2 + $0x10] sm:$0x8]
  %v6666 = vld [vmem:[#allocation2 + $0x10c] sm:$0xf]
  %v6667 = vld [vmem:[#allocation2 + $0x110] sm:$0xf]
  %vm6668 = vmand %vm481, %vm545
  %vm6669 = vmand %vm482, %vm546
  %vm6670 = vmand %vm483, %vm547
  %vm6671 = vmand %vm484, %vm548
  %vm6672 = vmand %vm485, %vm549
  %vm6673 = vmand %vm486, %vm550
  %vm6674 = vmand %vm487, %vm551
  %vm6675 = vmand %vm488, %vm552
  %vm6676 = vmand %vm489, %vm553
  %vm6677 = vmand %vm490, %vm554
  %vm6678 = vmand %vm491, %vm555
  %vm6679 = vmand %vm492, %vm556
  %vm6680 = vmand %vm493, %vm557
  %vm6681 = vmand %vm494, %vm558
  %vm6682 = vmand %vm495, %vm559
  %vm6683 = vmand %vm496, %vm560
  %vm6684 = vmand %vm497, %vm561
  %vm6685 = vmand %vm498, %vm562
  %vm6686 = vmand %vm499, %vm563
  %vm6687 = vmand %vm500, %vm564
  %vm6688 = vmand %vm501, %vm565
  %vm6689 = vmand %vm502, %vm566
  %vm6690 = vmand %vm503, %vm567
  %vm6691 = vmand %vm504, %vm568
  %vm6692 = vmand %vm505, %vm569
  %vm6693 = vmand %vm506, %vm570
  %vm6694 = vmand %vm507, %vm571
  %vm6695 = vmand %vm508, %vm572
  %vm6696 = vmand %vm509, %vm573
  %vm6697 = vmand %vm510, %vm574
  %vm6698 = vmand %vm511, %vm575
  %vm6699 = vmand %vm512, %vm576
  %vm6700 = vmand %vm513, %vm577
  %vm6701 = vmand %vm514, %vm578
  %vm6702 = vmand %vm515, %vm579
  %vm6703 = vmand %vm516, %vm580
  %vm6704 = vmand %vm517, %vm581
  %vm6705 = vmand %vm518, %vm582
  %vm6706 = vmand %vm519, %vm583
  %vm6707 = vmand %vm520, %vm584
  %vm6708 = vmand %vm521, %vm585
  %vm6709 = vmand %vm522, %vm586
  %vm6710 = vmand %vm523, %vm587
  %vm6711 = vmand %vm524, %vm588
  %vm6712 = vmand %vm525, %vm589
  %vm6713 = vmand %vm526, %vm590
  %vm6714 = vmand %vm527, %vm591
  %vm6715 = vmand %vm528, %vm592
  %vm6716 = vmand %vm529, %vm593
  %vm6717 = vmand %vm530, %vm594
  %vm6718 = vmand %vm531, %vm595
  %vm6719 = vmand %vm532, %vm596
  %vm6720 = vmand %vm533, %vm597
  %vm6721 = vmand %vm534, %vm598
  %vm6722 = vmand %vm535, %vm599
  %vm6723 = vmand %vm536, %vm600
  %vm6724 = vmand %vm537, %vm601
  %vm6725 = vmand %vm538, %vm602
  %vm6726 = vmand %vm539, %vm603
  %vm6727 = vmand %vm540, %vm604
  %vm6728 = vmand %vm541, %vm605
  %vm6729 = vmand %vm542, %vm606
  %vm6730 = vmand %vm543, %vm607
  %vm6731 = vmand %vm544, %vm608
  %v6732 = vsel %vm6668, 1, 0
  %v6733 = vsel %vm6669, 1, 0
  %v6734 = vsel %vm6670, 1, 0
  %v6735 = vsel %vm6671, 1, 0
  %v6736 = vsel %vm6672, 1, 0
  %v6737 = vsel %vm6673, 1, 0
  %v6738 = vsel %vm6674, 1, 0
  %v6739 = vsel %vm6675, 1, 0
  %v6740 = vsel %vm6676, 1, 0
  %v6741 = vsel %vm6677, 1, 0
  %v6742 = vsel %vm6678, 1, 0
  %v6743 = vsel %vm6679, 1, 0
  %v6744 = vsel %vm6680, 1, 0
  %v6745 = vsel %vm6681, 1, 0
  %v6746 = vsel %vm6682, 1, 0
  %v6747 = vsel %vm6683, 1, 0
  %v6748 = vsel %vm6684, 1, 0
  %v6749 = vsel %vm6685, 1, 0
  %v6750 = vsel %vm6686, 1, 0
  %v6751 = vsel %vm6687, 1, 0
  %v6752 = vsel %vm6688, 1, 0
  %v6753 = vsel %vm6689, 1, 0
  %v6754 = vsel %vm6690, 1, 0
  %v6755 = vsel %vm6691, 1, 0
  %v6756 = vsel %vm6692, 1, 0
  %v6757 = vsel %vm6693, 1, 0
  %v6758 = vsel %vm6694, 1, 0
  %v6759 = vsel %vm6695, 1, 0
  %v6760 = vsel %vm6696, 1, 0
  %v6761 = vsel %vm6697, 1, 0
  %v6762 = vsel %vm6698, 1, 0
  %v6763 = vsel %vm6699, 1, 0
  %v6764 = vsel %vm6700, 1, 0
  %v6765 = vsel %vm6701, 1, 0
  %v6766 = vsel %vm6702, 1, 0
  %v6767 = vsel %vm6703, 1, 0
  %v6768 = vsel %vm6704, 1, 0
  %v6769 = vsel %vm6705, 1, 0
  %v6770 = vsel %vm6706, 1, 0
  %v6771 = vsel %vm6707, 1, 0
  %v6772 = vsel %vm6708, 1, 0
  %v6773 = vsel %vm6709, 1, 0
  %v6774 = vsel %vm6710, 1, 0
  %v6775 = vsel %vm6711, 1, 0
  %v6776 = vsel %vm6712, 1, 0
  %v6777 = vsel %vm6713, 1, 0
  %v6778 = vsel %vm6714, 1, 0
  %v6779 = vsel %vm6715, 1, 0
  %v6780 = vsel %vm6716, 1, 0
  %v6781 = vsel %vm6717, 1, 0
  %v6782 = vsel %vm6718, 1, 0
  %v6783 = vsel %vm6719, 1, 0
  %v6784 = vsel %vm6720, 1, 0
  %v6785 = vsel %vm6721, 1, 0
  %v6786 = vsel %vm6722, 1, 0
  %v6787 = vsel %vm6723, 1, 0
  %v6788 = vsel %vm6724, 1, 0
  %v6789 = vsel %vm6725, 1, 0
  %v6790 = vsel %vm6726, 1, 0
  %v6791 = vsel %vm6727, 1, 0
  %v6792 = vsel %vm6728, 1, 0
  %v6793 = vsel %vm6729, 1, 0
  %v6794 = vsel %vm6730, 1, 0
  %v6795 = vsel %vm6731, 1, 0
  %vm6796 = vcmp.eq.s32.totalorder %v6732, 1
  %vm6797 = vcmp.eq.s32.totalorder %v6733, 1
  %vm6798 = vcmp.eq.s32.totalorder %v6734, 1
  %vm6799 = vcmp.eq.s32.totalorder %v6735, 1
  %vm6800 = vcmp.eq.s32.totalorder %v6736, 1
  %vm6801 = vcmp.eq.s32.totalorder %v6737, 1
  %vm6802 = vcmp.eq.s32.totalorder %v6738, 1
  %vm6803 = vcmp.eq.s32.totalorder %v6739, 1
  %vm6804 = vcmp.eq.s32.totalorder %v6740, 1
  %vm6805 = vcmp.eq.s32.totalorder %v6741, 1
  %vm6806 = vcmp.eq.s32.totalorder %v6742, 1
  %vm6807 = vcmp.eq.s32.totalorder %v6743, 1
  %vm6808 = vcmp.eq.s32.totalorder %v6744, 1
  %vm6809 = vcmp.eq.s32.totalorder %v6745, 1
  %vm6810 = vcmp.eq.s32.totalorder %v6746, 1
  %vm6811 = vcmp.eq.s32.totalorder %v6747, 1
  %vm6812 = vcmp.eq.s32.totalorder %v6748, 1
  %vm6813 = vcmp.eq.s32.totalorder %v6749, 1
  %vm6814 = vcmp.eq.s32.totalorder %v6750, 1
  %vm6815 = vcmp.eq.s32.totalorder %v6751, 1
  %vm6816 = vcmp.eq.s32.totalorder %v6752, 1
  %vm6817 = vcmp.eq.s32.totalorder %v6753, 1
  %vm6818 = vcmp.eq.s32.totalorder %v6754, 1
  %vm6819 = vcmp.eq.s32.totalorder %v6755, 1
  %vm6820 = vcmp.eq.s32.totalorder %v6756, 1
  %vm6821 = vcmp.eq.s32.totalorder %v6757, 1
  %vm6822 = vcmp.eq.s32.totalorder %v6758, 1
  %vm6823 = vcmp.eq.s32.totalorder %v6759, 1
  %vm6824 = vcmp.eq.s32.totalorder %v6760, 1
  %vm6825 = vcmp.eq.s32.totalorder %v6761, 1
  %vm6826 = vcmp.eq.s32.totalorder %v6762, 1
  %vm6827 = vcmp.eq.s32.totalorder %v6763, 1
  %vm6828 = vcmp.eq.s32.totalorder %v6764, 1
  %vm6829 = vcmp.eq.s32.totalorder %v6765, 1
  %vm6830 = vcmp.eq.s32.totalorder %v6766, 1
  %vm6831 = vcmp.eq.s32.totalorder %v6767, 1
  %vm6832 = vcmp.eq.s32.totalorder %v6768, 1
  %vm6833 = vcmp.eq.s32.totalorder %v6769, 1
  %vm6834 = vcmp.eq.s32.totalorder %v6770, 1
  %vm6835 = vcmp.eq.s32.totalorder %v6771, 1
  %vm6836 = vcmp.eq.s32.totalorder %v6772, 1
  %vm6837 = vcmp.eq.s32.totalorder %v6773, 1
  %vm6838 = vcmp.eq.s32.totalorder %v6774, 1
  %vm6839 = vcmp.eq.s32.totalorder %v6775, 1
  %vm6840 = vcmp.eq.s32.totalorder %v6776, 1
  %vm6841 = vcmp.eq.s32.totalorder %v6777, 1
  %vm6842 = vcmp.eq.s32.totalorder %v6778, 1
  %vm6843 = vcmp.eq.s32.totalorder %v6779, 1
  %vm6844 = vcmp.eq.s32.totalorder %v6780, 1
  %vm6845 = vcmp.eq.s32.totalorder %v6781, 1
  %vm6846 = vcmp.eq.s32.totalorder %v6782, 1
  %vm6847 = vcmp.eq.s32.totalorder %v6783, 1
  %vm6848 = vcmp.eq.s32.totalorder %v6784, 1
  %vm6849 = vcmp.eq.s32.totalorder %v6785, 1
  %vm6850 = vcmp.eq.s32.totalorder %v6786, 1
  %vm6851 = vcmp.eq.s32.totalorder %v6787, 1
  %vm6852 = vcmp.eq.s32.totalorder %v6788, 1
  %vm6853 = vcmp.eq.s32.totalorder %v6789, 1
  %vm6854 = vcmp.eq.s32.totalorder %v6790, 1
  %vm6855 = vcmp.eq.s32.totalorder %v6791, 1
  %vm6856 = vcmp.eq.s32.totalorder %v6792, 1
  %vm6857 = vcmp.eq.s32.totalorder %v6793, 1
  %vm6858 = vcmp.eq.s32.totalorder %v6794, 1
  %vm6859 = vcmp.eq.s32.totalorder %v6795, 1
  %vm6860 = vmpackc.low %vm6796, %vm6796
  %vm6861 = vmpackc.low %vm6797, %vm6797
  %vm6862 = vmpackc.low %vm6798, %vm6798
  %vm6863 = vmpackc.low %vm6799, %vm6799
  %vm6864 = vmpackc.low %vm6800, %vm6800
  %vm6865 = vmpackc.low %vm6801, %vm6801
  %vm6866 = vmpackc.low %vm6802, %vm6802
  %vm6867 = vmpackc.low %vm6803, %vm6803
  %vm6868 = vmpackc.low %vm6804, %vm6804
  %vm6869 = vmpackc.low %vm6805, %vm6805
  %vm6870 = vmpackc.low %vm6806, %vm6806
  %vm6871 = vmpackc.low %vm6807, %vm6807
  %vm6872 = vmpackc.low %vm6808, %vm6808
  %vm6873 = vmpackc.low %vm6809, %vm6809
  %vm6874 = vmpackc.low %vm6810, %vm6810
  %vm6875 = vmpackc.low %vm6811, %vm6811
  %vm6876 = vmpackc.low %vm6812, %vm6812
  %vm6877 = vmpackc.low %vm6813, %vm6813
  %vm6878 = vmpackc.low %vm6814, %vm6814
  %vm6879 = vmpackc.low %vm6815, %vm6815
  %vm6880 = vmpackc.low %vm6816, %vm6816
  %vm6881 = vmpackc.low %vm6817, %vm6817
  %vm6882 = vmpackc.low %vm6818, %vm6818
  %vm6883 = vmpackc.low %vm6819, %vm6819
  %vm6884 = vmpackc.low %vm6820, %vm6820
  %vm6885 = vmpackc.low %vm6821, %vm6821
  %vm6886 = vmpackc.low %vm6822, %vm6822
  %vm6887 = vmpackc.low %vm6823, %vm6823
  %vm6888 = vmpackc.low %vm6824, %vm6824
  %vm6889 = vmpackc.low %vm6825, %vm6825
  %vm6890 = vmpackc.low %vm6826, %vm6826
  %vm6891 = vmpackc.low %vm6827, %vm6827
  %vm6892 = vmpackc.low %vm6828, %vm6828
  %vm6893 = vmpackc.low %vm6829, %vm6829
  %vm6894 = vmpackc.low %vm6830, %vm6830
  %vm6895 = vmpackc.low %vm6831, %vm6831
  %vm6896 = vmpackc.low %vm6832, %vm6832
  %vm6897 = vmpackc.low %vm6833, %vm6833
  %vm6898 = vmpackc.low %vm6834, %vm6834
  %vm6899 = vmpackc.low %vm6835, %vm6835
  %vm6900 = vmpackc.low %vm6836, %vm6836
  %vm6901 = vmpackc.low %vm6837, %vm6837
  %vm6902 = vmpackc.low %vm6838, %vm6838
  %vm6903 = vmpackc.low %vm6839, %vm6839
  %vm6904 = vmpackc.low %vm6840, %vm6840
  %vm6905 = vmpackc.low %vm6841, %vm6841
  %vm6906 = vmpackc.low %vm6842, %vm6842
  %vm6907 = vmpackc.low %vm6843, %vm6843
  %vm6908 = vmpackc.low %vm6844, %vm6844
  %vm6909 = vmpackc.low %vm6845, %vm6845
  %vm6910 = vmpackc.low %vm6846, %vm6846
  %vm6911 = vmpackc.low %vm6847, %vm6847
  %vm6912 = vmpackc.low %vm6848, %vm6848
  %vm6913 = vmpackc.low %vm6849, %vm6849
  %vm6914 = vmpackc.low %vm6850, %vm6850
  %vm6915 = vmpackc.low %vm6851, %vm6851
  %vm6916 = vmpackc.low %vm6852, %vm6852
  %vm6917 = vmpackc.low %vm6853, %vm6853
  %vm6918 = vmpackc.low %vm6854, %vm6854
  %vm6919 = vmpackc.low %vm6855, %vm6855
  %vm6920 = vmpackc.low %vm6856, %vm6856
  %vm6921 = vmpackc.low %vm6857, %vm6857
  %vm6922 = vmpackc.low %vm6858, %vm6858
  %vm6923 = vmpackc.low %vm6859, %vm6859
  %v6924 = vsel %vm6860, 65537, 0
  %v6925 = vsel %vm6861, 65537, 0
  %v6926 = vsel %vm6862, 65537, 0
  %v6927 = vsel %vm6863, 65537, 0
  %v6928 = vsel %vm6864, 65537, 0
  %v6929 = vsel %vm6865, 65537, 0
  %v6930 = vsel %vm6866, 65537, 0
  %v6931 = vsel %vm6867, 65537, 0
  %v6932 = vsel %vm6868, 65537, 0
  %v6933 = vsel %vm6869, 65537, 0
  %v6934 = vsel %vm6870, 65537, 0
  %v6935 = vsel %vm6871, 65537, 0
  %v6936 = vsel %vm6872, 65537, 0
  %v6937 = vsel %vm6873, 65537, 0
  %v6938 = vsel %vm6874, 65537, 0
  %v6939 = vsel %vm6875, 65537, 0
  %v6940 = vsel %vm6876, 65537, 0
  %v6941 = vsel %vm6877, 65537, 0
  %v6942 = vsel %vm6878, 65537, 0
  %v6943 = vsel %vm6879, 65537, 0
  %v6944 = vsel %vm6880, 65537, 0
  %v6945 = vsel %vm6881, 65537, 0
  %v6946 = vsel %vm6882, 65537, 0
  %v6947 = vsel %vm6883, 65537, 0
  %v6948 = vsel %vm6884, 65537, 0
  %v6949 = vsel %vm6885, 65537, 0
  %v6950 = vsel %vm6886, 65537, 0
  %v6951 = vsel %vm6887, 65537, 0
  %v6952 = vsel %vm6888, 65537, 0
  %v6953 = vsel %vm6889, 65537, 0
  %v6954 = vsel %vm6890, 65537, 0
  %v6955 = vsel %vm6891, 65537, 0
  %v6956 = vsel %vm6892, 65537, 0
  %v6957 = vsel %vm6893, 65537, 0
  %v6958 = vsel %vm6894, 65537, 0
  %v6959 = vsel %vm6895, 65537, 0
  %v6960 = vsel %vm6896, 65537, 0
  %v6961 = vsel %vm6897, 65537, 0
  %v6962 = vsel %vm6898, 65537, 0
  %v6963 = vsel %vm6899, 65537, 0
  %v6964 = vsel %vm6900, 65537, 0
  %v6965 = vsel %vm6901, 65537, 0
  %v6966 = vsel %vm6902, 65537, 0
  %v6967 = vsel %vm6903, 65537, 0
  %v6968 = vsel %vm6904, 65537, 0
  %v6969 = vsel %vm6905, 65537, 0
  %v6970 = vsel %vm6906, 65537, 0
  %v6971 = vsel %vm6907, 65537, 0
  %v6972 = vsel %vm6908, 65537, 0
  %v6973 = vsel %vm6909, 65537, 0
  %v6974 = vsel %vm6910, 65537, 0
  %v6975 = vsel %vm6911, 65537, 0
  %v6976 = vsel %vm6912, 65537, 0
  %v6977 = vsel %vm6913, 65537, 0
  %v6978 = vsel %vm6914, 65537, 0
  %v6979 = vsel %vm6915, 65537, 0
  %v6980 = vsel %vm6916, 65537, 0
  %v6981 = vsel %vm6917, 65537, 0
  %v6982 = vsel %vm6918, 65537, 0
  %v6983 = vsel %vm6919, 65537, 0
  %v6984 = vsel %vm6920, 65537, 0
  %v6985 = vsel %vm6921, 65537, 0
  %v6986 = vsel %vm6922, 65537, 0
  %v6987 = vsel %vm6923, 65537, 0
  %v6989 = vshll.u32 %v6924, 16
  %v6991 = vrot.slane %v6989, 5
  %v6992 = vshrl.u32 %v6924, 16
  %v6994 = vrot.slane %v6992, 4
  %v6995 = vor.u32 %v6994, %v6991
  %v6996 = vrot.slane %v6995, 4
  %v6998 = vshll.u32 %v6925, 16
  %v7000 = vrot.slane %v6998, 5
  %v7001 = vsel %vm1060, %v6996, %v7000
  %v7002 = vshrl.u32 %v6925, 16
  %v7004 = vrot.slane %v7002, 4
  %v7005 = vor.u32 %v7004, %v7000
  %v7006 = vrot.slane %v7005, 4
  %v7008 = vshll.u32 %v6926, 16
  %v7010 = vrot.slane %v7008, 5
  %v7011 = vsel %vm1060, %v7006, %v7010
  %v7012 = vshrl.u32 %v6926, 16
  %v7014 = vrot.slane %v7012, 4
  %v7015 = vor.u32 %v7014, %v7010
  %v7016 = vrot.slane %v7015, 4
  %v7018 = vshll.u32 %v6927, 16
  %v7020 = vrot.slane %v7018, 5
  %v7021 = vsel %vm1060, %v7016, %v7020
  %v7022 = vshrl.u32 %v6927, 16
  %v7024 = vrot.slane %v7022, 4
  %v7025 = vor.u32 %v7024, %v7020
  %v7026 = vrot.slane %v7025, 4
  %v7028 = vshll.u32 %v6928, 16
  %v7030 = vrot.slane %v7028, 5
  %v7031 = vsel %vm1060, %v7026, %v7030
  %v7032 = vshrl.u32 %v6928, 16
  %v7034 = vrot.slane %v7032, 4
  %v7035 = vor.u32 %v7034, %v7030
  %v7036 = vrot.slane %v7035, 4
  %v7038 = vshll.u32 %v6929, 16
  %v7040 = vrot.slane %v7038, 5
  %v7041 = vsel %vm1060, %v7036, %v7040
  %v7042 = vshrl.u32 %v6929, 16
  %v7044 = vrot.slane %v7042, 4
  %v7045 = vor.u32 %v7044, %v7040
  %v7046 = vrot.slane %v7045, 4
  %v7048 = vshll.u32 %v6930, 16
  %v7050 = vrot.slane %v7048, 5
  %v7051 = vsel %vm1060, %v7046, %v7050
  %v7052 = vshrl.u32 %v6930, 16
  %v7054 = vrot.slane %v7052, 4
  %v7055 = vor.u32 %v7054, %v7050
  %v7056 = vrot.slane %v7055, 4
  %v7058 = vshll.u32 %v6931, 16
  %v7060 = vrot.slane %v7058, 5
  %v7061 = vsel %vm1060, %v7056, %v7060
  %v7062 = vshrl.u32 %v6931, 16
  %v7064 = vrot.slane %v7062, 4
  %v7065 = vor.u32 %v7064, %v7060
  %v7066 = vrot.slane %v7065, 4
  %v7068 = vshll.u32 %v6932, 16
  %v7070 = vrot.slane %v7068, 5
  %v7071 = vsel %vm1060, %v7066, %v7070
  %v7072 = vshrl.u32 %v6932, 16
  %v7074 = vrot.slane %v7072, 4
  %v7075 = vor.u32 %v7074, %v7070
  %v7076 = vrot.slane %v7075, 4
  %v7078 = vshll.u32 %v6933, 16
  %v7080 = vrot.slane %v7078, 5
  %v7081 = vsel %vm1060, %v7076, %v7080
  %v7082 = vshrl.u32 %v6933, 16
  %v7084 = vrot.slane %v7082, 4
  %v7085 = vor.u32 %v7084, %v7080
  %v7086 = vrot.slane %v7085, 4
  %v7088 = vshll.u32 %v6934, 16
  %v7090 = vrot.slane %v7088, 5
  %v7091 = vsel %vm1060, %v7086, %v7090
  %v7092 = vshrl.u32 %v6934, 16
  %v7094 = vrot.slane %v7092, 4
  %v7095 = vor.u32 %v7094, %v7090
  %v7096 = vrot.slane %v7095, 4
  %v7098 = vshll.u32 %v6935, 16
  %v7100 = vrot.slane %v7098, 5
  %v7101 = vsel %vm1060, %v7096, %v7100
  %v7102 = vshrl.u32 %v6935, 16
  %v7104 = vrot.slane %v7102, 4
  %v7105 = vor.u32 %v7104, %v7100
  %v7106 = vrot.slane %v7105, 4
  %v7108 = vshll.u32 %v6936, 16
  %v7110 = vrot.slane %v7108, 5
  %v7111 = vsel %vm1060, %v7106, %v7110
  %v7112 = vshrl.u32 %v6936, 16
  %v7114 = vrot.slane %v7112, 4
  %v7115 = vor.u32 %v7114, %v7110
  %v7116 = vrot.slane %v7115, 4
  %v7118 = vshll.u32 %v6937, 16
  %v7120 = vrot.slane %v7118, 5
  %v7121 = vsel %vm1060, %v7116, %v7120
  %v7122 = vshrl.u32 %v6937, 16
  %v7124 = vrot.slane %v7122, 4
  %v7125 = vor.u32 %v7124, %v7120
  %v7126 = vrot.slane %v7125, 4
  %v7128 = vshll.u32 %v6938, 16
  %v7130 = vrot.slane %v7128, 5
  %v7131 = vsel %vm1060, %v7126, %v7130
  %v7132 = vshrl.u32 %v6938, 16
  %v7134 = vrot.slane %v7132, 4
  %v7135 = vor.u32 %v7134, %v7130
  %v7136 = vrot.slane %v7135, 4
  %v7138 = vshll.u32 %v6939, 16
  %v7140 = vrot.slane %v7138, 5
  %v7141 = vsel %vm1060, %v7136, %v7140
  %v7142 = vshrl.u32 %v6939, 16
  %v7144 = vrot.slane %v7142, 4
  %v7145 = vor.u32 %v7144, %v7140
  %v7146 = vrot.slane %v7145, 4
  %v7148 = vshll.u32 %v6940, 16
  %v7150 = vrot.slane %v7148, 5
  %v7151 = vsel %vm1060, %v7146, %v7150
  %v7152 = vshrl.u32 %v6940, 16
  %v7154 = vrot.slane %v7152, 4
  %v7155 = vor.u32 %v7154, %v7150
  %v7156 = vrot.slane %v7155, 4
  %v7158 = vshll.u32 %v6941, 16
  %v7160 = vrot.slane %v7158, 5
  %v7161 = vsel %vm1060, %v7156, %v7160
  %v7162 = vshrl.u32 %v6941, 16
  %v7164 = vrot.slane %v7162, 4
  %v7165 = vor.u32 %v7164, %v7160
  %v7166 = vrot.slane %v7165, 4
  %v7168 = vshll.u32 %v6942, 16
  %v7170 = vrot.slane %v7168, 5
  %v7171 = vsel %vm1060, %v7166, %v7170
  %v7172 = vshrl.u32 %v6942, 16
  %v7174 = vrot.slane %v7172, 4
  %v7175 = vor.u32 %v7174, %v7170
  %v7176 = vrot.slane %v7175, 4
  %v7178 = vshll.u32 %v6943, 16
  %v7180 = vrot.slane %v7178, 5
  %v7181 = vsel %vm1060, %v7176, %v7180
  %v7182 = vshrl.u32 %v6943, 16
  %v7184 = vrot.slane %v7182, 4
  %v7185 = vor.u32 %v7184, %v7180
  %v7186 = vrot.slane %v7185, 4
  %v7188 = vshll.u32 %v6944, 16
  %v7190 = vrot.slane %v7188, 5
  %v7191 = vsel %vm1060, %v7186, %v7190
  %v7192 = vshrl.u32 %v6944, 16
  %v7194 = vrot.slane %v7192, 4
  %v7195 = vor.u32 %v7194, %v7190
  %v7196 = vrot.slane %v7195, 4
  %v7198 = vshll.u32 %v6945, 16
  %v7200 = vrot.slane %v7198, 5
  %v7201 = vsel %vm1060, %v7196, %v7200
  %v7202 = vshrl.u32 %v6945, 16
  %v7204 = vrot.slane %v7202, 4
  %v7205 = vor.u32 %v7204, %v7200
  %v7206 = vrot.slane %v7205, 4
  %v7208 = vshll.u32 %v6946, 16
  %v7210 = vrot.slane %v7208, 5
  %v7211 = vsel %vm1060, %v7206, %v7210
  %v7212 = vshrl.u32 %v6946, 16
  %v7214 = vrot.slane %v7212, 4
  %v7215 = vor.u32 %v7214, %v7210
  %v7216 = vrot.slane %v7215, 4
  %v7218 = vshll.u32 %v6947, 16
  %v7220 = vrot.slane %v7218, 5
  %v7221 = vsel %vm1060, %v7216, %v7220
  %v7222 = vshrl.u32 %v6947, 16
  %v7224 = vrot.slane %v7222, 4
  %v7225 = vor.u32 %v7224, %v7220
  %v7226 = vrot.slane %v7225, 4
  %v7228 = vshll.u32 %v6948, 16
  %v7230 = vrot.slane %v7228, 5
  %v7231 = vsel %vm1060, %v7226, %v7230
  %v7232 = vshrl.u32 %v6948, 16
  %v7234 = vrot.slane %v7232, 4
  %v7235 = vor.u32 %v7234, %v7230
  %v7236 = vrot.slane %v7235, 4
  %v7238 = vshll.u32 %v6949, 16
  %v7240 = vrot.slane %v7238, 5
  %v7241 = vsel %vm1060, %v7236, %v7240
  %v7242 = vshrl.u32 %v6949, 16
  %v7244 = vrot.slane %v7242, 4
  %v7245 = vor.u32 %v7244, %v7240
  %v7246 = vrot.slane %v7245, 4
  %v7248 = vshll.u32 %v6950, 16
  %v7250 = vrot.slane %v7248, 5
  %v7251 = vsel %vm1060, %v7246, %v7250
  %v7252 = vshrl.u32 %v6950, 16
  %v7254 = vrot.slane %v7252, 4
  %v7255 = vor.u32 %v7254, %v7250
  %v7256 = vrot.slane %v7255, 4
  %v7258 = vshll.u32 %v6951, 16
  %v7260 = vrot.slane %v7258, 5
  %v7261 = vsel %vm1060, %v7256, %v7260
  %v7262 = vshrl.u32 %v6951, 16
  %v7264 = vrot.slane %v7262, 4
  %v7265 = vor.u32 %v7264, %v7260
  %v7266 = vrot.slane %v7265, 4
  %v7268 = vshll.u32 %v6952, 16
  %v7270 = vrot.slane %v7268, 5
  %v7271 = vsel %vm1060, %v7266, %v7270
  %v7272 = vshrl.u32 %v6952, 16
  %v7274 = vrot.slane %v7272, 4
  %v7275 = vor.u32 %v7274, %v7270
  %v7276 = vrot.slane %v7275, 4
  %v7278 = vshll.u32 %v6953, 16
  %v7280 = vrot.slane %v7278, 5
  %v7281 = vsel %vm1060, %v7276, %v7280
  %v7282 = vshrl.u32 %v6953, 16
  %v7284 = vrot.slane %v7282, 4
  %v7285 = vor.u32 %v7284, %v7280
  %v7286 = vrot.slane %v7285, 4
  %v7288 = vshll.u32 %v6954, 16
  %v7290 = vrot.slane %v7288, 5
  %v7291 = vsel %vm1060, %v7286, %v7290
  %v7292 = vshrl.u32 %v6954, 16
  %v7294 = vrot.slane %v7292, 4
  %v7295 = vor.u32 %v7294, %v7290
  %v7296 = vrot.slane %v7295, 4
  %v7298 = vshll.u32 %v6955, 16
  %v7300 = vrot.slane %v7298, 5
  %v7301 = vsel %vm1060, %v7296, %v7300
  %v7302 = vshrl.u32 %v6955, 16
  %v7304 = vrot.slane %v7302, 4
  %v7305 = vor.u32 %v7304, %v7300
  %v7306 = vrot.slane %v7305, 4
  %v7308 = vshll.u32 %v6956, 16
  %v7310 = vrot.slane %v7308, 5
  %v7311 = vsel %vm1060, %v7306, %v7310
  %v7312 = vshrl.u32 %v6956, 16
  %v7314 = vrot.slane %v7312, 4
  %v7315 = vor.u32 %v7314, %v7310
  %v7316 = vrot.slane %v7315, 4
  %v7318 = vshll.u32 %v6957, 16
  %v7320 = vrot.slane %v7318, 5
  %v7321 = vsel %vm1060, %v7316, %v7320
  %v7322 = vshrl.u32 %v6957, 16
  %v7324 = vrot.slane %v7322, 4
  %v7325 = vor.u32 %v7324, %v7320
  %v7326 = vrot.slane %v7325, 4
  %v7328 = vshll.u32 %v6958, 16
  %v7330 = vrot.slane %v7328, 5
  %v7331 = vsel %vm1060, %v7326, %v7330
  %v7332 = vshrl.u32 %v6958, 16
  %v7334 = vrot.slane %v7332, 4
  %v7335 = vor.u32 %v7334, %v7330
  %v7336 = vrot.slane %v7335, 4
  %v7338 = vshll.u32 %v6959, 16
  %v7340 = vrot.slane %v7338, 5
  %v7341 = vsel %vm1060, %v7336, %v7340
  %v7342 = vshrl.u32 %v6959, 16
  %v7344 = vrot.slane %v7342, 4
  %v7345 = vor.u32 %v7344, %v7340
  %v7346 = vrot.slane %v7345, 4
  %v7348 = vshll.u32 %v6960, 16
  %v7350 = vrot.slane %v7348, 5
  %v7351 = vsel %vm1060, %v7346, %v7350
  %v7352 = vshrl.u32 %v6960, 16
  %v7354 = vrot.slane %v7352, 4
  %v7355 = vor.u32 %v7354, %v7350
  %v7356 = vrot.slane %v7355, 4
  %v7358 = vshll.u32 %v6961, 16
  %v7360 = vrot.slane %v7358, 5
  %v7361 = vsel %vm1060, %v7356, %v7360
  %v7362 = vshrl.u32 %v6961, 16
  %v7364 = vrot.slane %v7362, 4
  %v7365 = vor.u32 %v7364, %v7360
  %v7366 = vrot.slane %v7365, 4
  %v7368 = vshll.u32 %v6962, 16
  %v7370 = vrot.slane %v7368, 5
  %v7371 = vsel %vm1060, %v7366, %v7370
  %v7372 = vshrl.u32 %v6962, 16
  %v7374 = vrot.slane %v7372, 4
  %v7375 = vor.u32 %v7374, %v7370
  %v7376 = vrot.slane %v7375, 4
  %v7378 = vshll.u32 %v6963, 16
  %v7380 = vrot.slane %v7378, 5
  %v7381 = vsel %vm1060, %v7376, %v7380
  %v7382 = vshrl.u32 %v6963, 16
  %v7384 = vrot.slane %v7382, 4
  %v7385 = vor.u32 %v7384, %v7380
  %v7386 = vrot.slane %v7385, 4
  %v7388 = vshll.u32 %v6964, 16
  %v7390 = vrot.slane %v7388, 5
  %v7391 = vsel %vm1060, %v7386, %v7390
  %v7392 = vshrl.u32 %v6964, 16
  %v7394 = vrot.slane %v7392, 4
  %v7395 = vor.u32 %v7394, %v7390
  %v7396 = vrot.slane %v7395, 4
  %v7398 = vshll.u32 %v6965, 16
  %v7400 = vrot.slane %v7398, 5
  %v7401 = vsel %vm1060, %v7396, %v7400
  %v7402 = vshrl.u32 %v6965, 16
  %v7404 = vrot.slane %v7402, 4
  %v7405 = vor.u32 %v7404, %v7400
  %v7406 = vrot.slane %v7405, 4
  %v7408 = vshll.u32 %v6966, 16
  %v7410 = vrot.slane %v7408, 5
  %v7411 = vsel %vm1060, %v7406, %v7410
  %v7412 = vshrl.u32 %v6966, 16
  %v7414 = vrot.slane %v7412, 4
  %v7415 = vor.u32 %v7414, %v7410
  %v7416 = vrot.slane %v7415, 4
  %v7418 = vshll.u32 %v6967, 16
  %v7420 = vrot.slane %v7418, 5
  %v7421 = vsel %vm1060, %v7416, %v7420
  %v7422 = vshrl.u32 %v6967, 16
  %v7424 = vrot.slane %v7422, 4
  %v7425 = vor.u32 %v7424, %v7420
  %v7426 = vrot.slane %v7425, 4
  %v7428 = vshll.u32 %v6968, 16
  %v7430 = vrot.slane %v7428, 5
  %v7431 = vsel %vm1060, %v7426, %v7430
  %v7432 = vshrl.u32 %v6968, 16
  %v7434 = vrot.slane %v7432, 4
  %v7435 = vor.u32 %v7434, %v7430
  %v7436 = vrot.slane %v7435, 4
  %v7438 = vshll.u32 %v6969, 16
  %v7440 = vrot.slane %v7438, 5
  %v7441 = vsel %vm1060, %v7436, %v7440
  %v7442 = vshrl.u32 %v6969, 16
  %v7444 = vrot.slane %v7442, 4
  %v7445 = vor.u32 %v7444, %v7440
  %v7446 = vrot.slane %v7445, 4
  %v7448 = vshll.u32 %v6970, 16
  %v7450 = vrot.slane %v7448, 5
  %v7451 = vsel %vm1060, %v7446, %v7450
  %v7452 = vshrl.u32 %v6970, 16
  %v7454 = vrot.slane %v7452, 4
  %v7455 = vor.u32 %v7454, %v7450
  %v7456 = vrot.slane %v7455, 4
  %v7458 = vshll.u32 %v6971, 16
  %v7460 = vrot.slane %v7458, 5
  %v7461 = vsel %vm1060, %v7456, %v7460
  %v7462 = vshrl.u32 %v6971, 16
  %v7464 = vrot.slane %v7462, 4
  %v7465 = vor.u32 %v7464, %v7460
  %v7466 = vrot.slane %v7465, 4
  %v7468 = vshll.u32 %v6972, 16
  %v7470 = vrot.slane %v7468, 5
  %v7471 = vsel %vm1060, %v7466, %v7470
  %v7472 = vshrl.u32 %v6972, 16
  %v7474 = vrot.slane %v7472, 4
  %v7475 = vor.u32 %v7474, %v7470
  %v7476 = vrot.slane %v7475, 4
  %v7478 = vshll.u32 %v6973, 16
  %v7480 = vrot.slane %v7478, 5
  %v7481 = vsel %vm1060, %v7476, %v7480
  %v7482 = vshrl.u32 %v6973, 16
  %v7484 = vrot.slane %v7482, 4
  %v7485 = vor.u32 %v7484, %v7480
  %v7486 = vrot.slane %v7485, 4
  %v7488 = vshll.u32 %v6974, 16
  %v7490 = vrot.slane %v7488, 5
  %v7491 = vsel %vm1060, %v7486, %v7490
  %v7492 = vshrl.u32 %v6974, 16
  %v7494 = vrot.slane %v7492, 4
  %v7495 = vor.u32 %v7494, %v7490
  %v7496 = vrot.slane %v7495, 4
  %v7498 = vshll.u32 %v6975, 16
  %v7500 = vrot.slane %v7498, 5
  %v7501 = vsel %vm1060, %v7496, %v7500
  %v7502 = vshrl.u32 %v6975, 16
  %v7504 = vrot.slane %v7502, 4
  %v7505 = vor.u32 %v7504, %v7500
  %v7506 = vrot.slane %v7505, 4
  %v7508 = vshll.u32 %v6976, 16
  %v7510 = vrot.slane %v7508, 5
  %v7511 = vsel %vm1060, %v7506, %v7510
  %v7512 = vshrl.u32 %v6976, 16
  %v7514 = vrot.slane %v7512, 4
  %v7515 = vor.u32 %v7514, %v7510
  %v7516 = vrot.slane %v7515, 4
  %v7518 = vshll.u32 %v6977, 16
  %v7520 = vrot.slane %v7518, 5
  %v7521 = vsel %vm1060, %v7516, %v7520
  %v7522 = vshrl.u32 %v6977, 16
  %v7524 = vrot.slane %v7522, 4
  %v7525 = vor.u32 %v7524, %v7520
  %v7526 = vrot.slane %v7525, 4
  %v7528 = vshll.u32 %v6978, 16
  %v7530 = vrot.slane %v7528, 5
  %v7531 = vsel %vm1060, %v7526, %v7530
  %v7532 = vshrl.u32 %v6978, 16
  %v7534 = vrot.slane %v7532, 4
  %v7535 = vor.u32 %v7534, %v7530
  %v7536 = vrot.slane %v7535, 4
  %v7538 = vshll.u32 %v6979, 16
  %v7540 = vrot.slane %v7538, 5
  %v7541 = vsel %vm1060, %v7536, %v7540
  %v7542 = vshrl.u32 %v6979, 16
  %v7544 = vrot.slane %v7542, 4
  %v7545 = vor.u32 %v7544, %v7540
  %v7546 = vrot.slane %v7545, 4
  %v7548 = vshll.u32 %v6980, 16
  %v7550 = vrot.slane %v7548, 5
  %v7551 = vsel %vm1060, %v7546, %v7550
  %v7552 = vshrl.u32 %v6980, 16
  %v7554 = vrot.slane %v7552, 4
  %v7555 = vor.u32 %v7554, %v7550
  %v7556 = vrot.slane %v7555, 4
  %v7558 = vshll.u32 %v6981, 16
  %v7560 = vrot.slane %v7558, 5
  %v7561 = vsel %vm1060, %v7556, %v7560
  %v7562 = vshrl.u32 %v6981, 16
  %v7564 = vrot.slane %v7562, 4
  %v7565 = vor.u32 %v7564, %v7560
  %v7566 = vrot.slane %v7565, 4
  %v7568 = vshll.u32 %v6982, 16
  %v7570 = vrot.slane %v7568, 5
  %v7571 = vsel %vm1060, %v7566, %v7570
  %v7572 = vshrl.u32 %v6982, 16
  %v7574 = vrot.slane %v7572, 4
  %v7575 = vor.u32 %v7574, %v7570
  %v7576 = vrot.slane %v7575, 4
  %v7578 = vshll.u32 %v6983, 16
  %v7580 = vrot.slane %v7578, 5
  %v7581 = vsel %vm1060, %v7576, %v7580
  %v7582 = vshrl.u32 %v6983, 16
  %v7584 = vrot.slane %v7582, 4
  %v7585 = vor.u32 %v7584, %v7580
  %v7586 = vrot.slane %v7585, 4
  %v7588 = vshll.u32 %v6984, 16
  %v7590 = vrot.slane %v7588, 5
  %v7591 = vsel %vm1060, %v7586, %v7590
  %v7592 = vshrl.u32 %v6984, 16
  %v7594 = vrot.slane %v7592, 4
  %v7595 = vor.u32 %v7594, %v7590
  %v7596 = vrot.slane %v7595, 4
  %v7598 = vshll.u32 %v6985, 16
  %v7600 = vrot.slane %v7598, 5
  %v7601 = vsel %vm1060, %v7596, %v7600
  %v7602 = vshrl.u32 %v6985, 16
  %v7604 = vrot.slane %v7602, 4
  %v7605 = vor.u32 %v7604, %v7600
  %v7606 = vrot.slane %v7605, 4
  %v7608 = vshll.u32 %v6986, 16
  %v7610 = vrot.slane %v7608, 5
  %v7611 = vsel %vm1060, %v7606, %v7610
  %v7612 = vshrl.u32 %v6986, 16
  %v7614 = vrot.slane %v7612, 4
  %v7615 = vor.u32 %v7614, %v7610
  %v7616 = vrot.slane %v7615, 4
  %v7618 = vshll.u32 %v6987, 16
  %v7620 = vrot.slane %v7618, 5
  %v7621 = vsel %vm1060, %v7616, %v7620
  %v7622 = vshrl.u32 %v6987, 16
  %v7624 = vrot.slane %v7622, 4
  %v7625 = vor.u32 %v7624, %v7620
  %v7626 = vrot.slane %v7625, 4
  %v7627 = vunpack.c.l.b16 %v6991
  %v7628 = vunpack.c.h.b16 %v6991
  %v7629 = vunpack.c.l.b16 0
  %v7630 = vunpack.c.h.b16 0
  %vm7631 = vcmp.ne.s32.totalorder %v7627, %v7629
  %vm7632 = vcmp.ne.s32.totalorder %v7628, %v7630
  %vm7633 = vmpackc.low %vm7632, %vm7631
  %v7634 = vunpack.c.l.b16 %v7001
  %v7635 = vunpack.c.h.b16 %v7001
  %v7636 = vunpack.c.l.b16 0
  %v7637 = vunpack.c.h.b16 0
  %vm7638 = vcmp.ne.s32.totalorder %v7634, %v7636
  %vm7639 = vcmp.ne.s32.totalorder %v7635, %v7637
  %vm7640 = vmpackc.low %vm7639, %vm7638
  %v7641 = vunpack.c.l.b16 %v7011
  %v7642 = vunpack.c.h.b16 %v7011
  %v7643 = vunpack.c.l.b16 0
  %v7644 = vunpack.c.h.b16 0
  %vm7645 = vcmp.ne.s32.totalorder %v7641, %v7643
  %vm7646 = vcmp.ne.s32.totalorder %v7642, %v7644
  %vm7647 = vmpackc.low %vm7646, %vm7645
  %v7648 = vunpack.c.l.b16 %v7021
  %v7649 = vunpack.c.h.b16 %v7021
  %v7650 = vunpack.c.l.b16 0
  %v7651 = vunpack.c.h.b16 0
  %vm7652 = vcmp.ne.s32.totalorder %v7648, %v7650
  %vm7653 = vcmp.ne.s32.totalorder %v7649, %v7651
  %vm7654 = vmpackc.low %vm7653, %vm7652
  %v7655 = vunpack.c.l.b16 %v7031
  %v7656 = vunpack.c.h.b16 %v7031
  %v7657 = vunpack.c.l.b16 0
  %v7658 = vunpack.c.h.b16 0
  %vm7659 = vcmp.ne.s32.totalorder %v7655, %v7657
  %vm7660 = vcmp.ne.s32.totalorder %v7656, %v7658
  %vm7661 = vmpackc.low %vm7660, %vm7659
  %v7662 = vunpack.c.l.b16 %v7041
  %v7663 = vunpack.c.h.b16 %v7041
  %v7664 = vunpack.c.l.b16 0
  %v7665 = vunpack.c.h.b16 0
  %vm7666 = vcmp.ne.s32.totalorder %v7662, %v7664
  %vm7667 = vcmp.ne.s32.totalorder %v7663, %v7665
  %vm7668 = vmpackc.low %vm7667, %vm7666
  %v7669 = vunpack.c.l.b16 %v7051
  %v7670 = vunpack.c.h.b16 %v7051
  %v7671 = vunpack.c.l.b16 0
  %v7672 = vunpack.c.h.b16 0
  %vm7673 = vcmp.ne.s32.totalorder %v7669, %v7671
  %vm7674 = vcmp.ne.s32.totalorder %v7670, %v7672
  %vm7675 = vmpackc.low %vm7674, %vm7673
  %v7676 = vunpack.c.l.b16 %v7061
  %v7677 = vunpack.c.h.b16 %v7061
  %v7678 = vunpack.c.l.b16 0
  %v7679 = vunpack.c.h.b16 0
  %vm7680 = vcmp.ne.s32.totalorder %v7676, %v7678
  %vm7681 = vcmp.ne.s32.totalorder %v7677, %v7679
  %vm7682 = vmpackc.low %vm7681, %vm7680
  %v7683 = vunpack.c.l.b16 %v7071
  %v7684 = vunpack.c.h.b16 %v7071
  %v7685 = vunpack.c.l.b16 0
  %v7686 = vunpack.c.h.b16 0
  %vm7687 = vcmp.ne.s32.totalorder %v7683, %v7685
  %vm7688 = vcmp.ne.s32.totalorder %v7684, %v7686
  %vm7689 = vmpackc.low %vm7688, %vm7687
  %v7690 = vunpack.c.l.b16 %v7081
  %v7691 = vunpack.c.h.b16 %v7081
  %v7692 = vunpack.c.l.b16 0
  %v7693 = vunpack.c.h.b16 0
  %vm7694 = vcmp.ne.s32.totalorder %v7690, %v7692
  %vm7695 = vcmp.ne.s32.totalorder %v7691, %v7693
  %vm7696 = vmpackc.low %vm7695, %vm7694
  %v7697 = vunpack.c.l.b16 %v7091
  %v7698 = vunpack.c.h.b16 %v7091
  %v7699 = vunpack.c.l.b16 0
  %v7700 = vunpack.c.h.b16 0
  %vm7701 = vcmp.ne.s32.totalorder %v7697, %v7699
  %vm7702 = vcmp.ne.s32.totalorder %v7698, %v7700
  %vm7703 = vmpackc.low %vm7702, %vm7701
  %v7704 = vunpack.c.l.b16 %v7101
  %v7705 = vunpack.c.h.b16 %v7101
  %v7706 = vunpack.c.l.b16 0
  %v7707 = vunpack.c.h.b16 0
  %vm7708 = vcmp.ne.s32.totalorder %v7704, %v7706
  %vm7709 = vcmp.ne.s32.totalorder %v7705, %v7707
  %vm7710 = vmpackc.low %vm7709, %vm7708
  %v7711 = vunpack.c.l.b16 %v7111
  %v7712 = vunpack.c.h.b16 %v7111
  %v7713 = vunpack.c.l.b16 0
  %v7714 = vunpack.c.h.b16 0
  %vm7715 = vcmp.ne.s32.totalorder %v7711, %v7713
  %vm7716 = vcmp.ne.s32.totalorder %v7712, %v7714
  %vm7717 = vmpackc.low %vm7716, %vm7715
  %v7718 = vunpack.c.l.b16 %v7121
  %v7719 = vunpack.c.h.b16 %v7121
  %v7720 = vunpack.c.l.b16 0
  %v7721 = vunpack.c.h.b16 0
  %vm7722 = vcmp.ne.s32.totalorder %v7718, %v7720
  %vm7723 = vcmp.ne.s32.totalorder %v7719, %v7721
  %vm7724 = vmpackc.low %vm7723, %vm7722
  %v7725 = vunpack.c.l.b16 %v7131
  %v7726 = vunpack.c.h.b16 %v7131
  %v7727 = vunpack.c.l.b16 0
  %v7728 = vunpack.c.h.b16 0
  %vm7729 = vcmp.ne.s32.totalorder %v7725, %v7727
  %vm7730 = vcmp.ne.s32.totalorder %v7726, %v7728
  %vm7731 = vmpackc.low %vm7730, %vm7729
  %v7732 = vunpack.c.l.b16 %v7141
  %v7733 = vunpack.c.h.b16 %v7141
  %v7734 = vunpack.c.l.b16 0
  %v7735 = vunpack.c.h.b16 0
  %vm7736 = vcmp.ne.s32.totalorder %v7732, %v7734
  %vm7737 = vcmp.ne.s32.totalorder %v7733, %v7735
  %vm7738 = vmpackc.low %vm7737, %vm7736
  %v7739 = vunpack.c.l.b16 %v7151
  %v7740 = vunpack.c.h.b16 %v7151
  %v7741 = vunpack.c.l.b16 0
  %v7742 = vunpack.c.h.b16 0
  %vm7743 = vcmp.ne.s32.totalorder %v7739, %v7741
  %vm7744 = vcmp.ne.s32.totalorder %v7740, %v7742
  %vm7745 = vmpackc.low %vm7744, %vm7743
  %v7746 = vunpack.c.l.b16 %v7161
  %v7747 = vunpack.c.h.b16 %v7161
  %v7748 = vunpack.c.l.b16 0
  %v7749 = vunpack.c.h.b16 0
  %vm7750 = vcmp.ne.s32.totalorder %v7746, %v7748
  %vm7751 = vcmp.ne.s32.totalorder %v7747, %v7749
  %vm7752 = vmpackc.low %vm7751, %vm7750
  %v7753 = vunpack.c.l.b16 %v7171
  %v7754 = vunpack.c.h.b16 %v7171
  %v7755 = vunpack.c.l.b16 0
  %v7756 = vunpack.c.h.b16 0
  %vm7757 = vcmp.ne.s32.totalorder %v7753, %v7755
  %vm7758 = vcmp.ne.s32.totalorder %v7754, %v7756
  %vm7759 = vmpackc.low %vm7758, %vm7757
  %v7760 = vunpack.c.l.b16 %v7181
  %v7761 = vunpack.c.h.b16 %v7181
  %v7762 = vunpack.c.l.b16 0
  %v7763 = vunpack.c.h.b16 0
  %vm7764 = vcmp.ne.s32.totalorder %v7760, %v7762
  %vm7765 = vcmp.ne.s32.totalorder %v7761, %v7763
  %vm7766 = vmpackc.low %vm7765, %vm7764
  %v7767 = vunpack.c.l.b16 %v7191
  %v7768 = vunpack.c.h.b16 %v7191
  %v7769 = vunpack.c.l.b16 0
  %v7770 = vunpack.c.h.b16 0
  %vm7771 = vcmp.ne.s32.totalorder %v7767, %v7769
  %vm7772 = vcmp.ne.s32.totalorder %v7768, %v7770
  %vm7773 = vmpackc.low %vm7772, %vm7771
  %v7774 = vunpack.c.l.b16 %v7201
  %v7775 = vunpack.c.h.b16 %v7201
  %v7776 = vunpack.c.l.b16 0
  %v7777 = vunpack.c.h.b16 0
  %vm7778 = vcmp.ne.s32.totalorder %v7774, %v7776
  %vm7779 = vcmp.ne.s32.totalorder %v7775, %v7777
  %vm7780 = vmpackc.low %vm7779, %vm7778
  %v7781 = vunpack.c.l.b16 %v7211
  %v7782 = vunpack.c.h.b16 %v7211
  %v7783 = vunpack.c.l.b16 0
  %v7784 = vunpack.c.h.b16 0
  %vm7785 = vcmp.ne.s32.totalorder %v7781, %v7783
  %vm7786 = vcmp.ne.s32.totalorder %v7782, %v7784
  %vm7787 = vmpackc.low %vm7786, %vm7785
  %v7788 = vunpack.c.l.b16 %v7221
  %v7789 = vunpack.c.h.b16 %v7221
  %v7790 = vunpack.c.l.b16 0
  %v7791 = vunpack.c.h.b16 0
  %vm7792 = vcmp.ne.s32.totalorder %v7788, %v7790
  %vm7793 = vcmp.ne.s32.totalorder %v7789, %v7791
  %vm7794 = vmpackc.low %vm7793, %vm7792
  %v7795 = vunpack.c.l.b16 %v7231
  %v7796 = vunpack.c.h.b16 %v7231
  %v7797 = vunpack.c.l.b16 0
  %v7798 = vunpack.c.h.b16 0
  %vm7799 = vcmp.ne.s32.totalorder %v7795, %v7797
  %vm7800 = vcmp.ne.s32.totalorder %v7796, %v7798
  %vm7801 = vmpackc.low %vm7800, %vm7799
  %v7802 = vunpack.c.l.b16 %v7241
  %v7803 = vunpack.c.h.b16 %v7241
  %v7804 = vunpack.c.l.b16 0
  %v7805 = vunpack.c.h.b16 0
  %vm7806 = vcmp.ne.s32.totalorder %v7802, %v7804
  %vm7807 = vcmp.ne.s32.totalorder %v7803, %v7805
  %vm7808 = vmpackc.low %vm7807, %vm7806
  %v7809 = vunpack.c.l.b16 %v7251
  %v7810 = vunpack.c.h.b16 %v7251
  %v7811 = vunpack.c.l.b16 0
  %v7812 = vunpack.c.h.b16 0
  %vm7813 = vcmp.ne.s32.totalorder %v7809, %v7811
  %vm7814 = vcmp.ne.s32.totalorder %v7810, %v7812
  %vm7815 = vmpackc.low %vm7814, %vm7813
  %v7816 = vunpack.c.l.b16 %v7261
  %v7817 = vunpack.c.h.b16 %v7261
  %v7818 = vunpack.c.l.b16 0
  %v7819 = vunpack.c.h.b16 0
  %vm7820 = vcmp.ne.s32.totalorder %v7816, %v7818
  %vm7821 = vcmp.ne.s32.totalorder %v7817, %v7819
  %vm7822 = vmpackc.low %vm7821, %vm7820
  %v7823 = vunpack.c.l.b16 %v7271
  %v7824 = vunpack.c.h.b16 %v7271
  %v7825 = vunpack.c.l.b16 0
  %v7826 = vunpack.c.h.b16 0
  %vm7827 = vcmp.ne.s32.totalorder %v7823, %v7825
  %vm7828 = vcmp.ne.s32.totalorder %v7824, %v7826
  %vm7829 = vmpackc.low %vm7828, %vm7827
  %v7830 = vunpack.c.l.b16 %v7281
  %v7831 = vunpack.c.h.b16 %v7281
  %v7832 = vunpack.c.l.b16 0
  %v7833 = vunpack.c.h.b16 0
  %vm7834 = vcmp.ne.s32.totalorder %v7830, %v7832
  %vm7835 = vcmp.ne.s32.totalorder %v7831, %v7833
  %vm7836 = vmpackc.low %vm7835, %vm7834
  %v7837 = vunpack.c.l.b16 %v7291
  %v7838 = vunpack.c.h.b16 %v7291
  %v7839 = vunpack.c.l.b16 0
  %v7840 = vunpack.c.h.b16 0
  %vm7841 = vcmp.ne.s32.totalorder %v7837, %v7839
  %vm7842 = vcmp.ne.s32.totalorder %v7838, %v7840
  %vm7843 = vmpackc.low %vm7842, %vm7841
  %v7844 = vunpack.c.l.b16 %v7301
  %v7845 = vunpack.c.h.b16 %v7301
  %v7846 = vunpack.c.l.b16 0
  %v7847 = vunpack.c.h.b16 0
  %vm7848 = vcmp.ne.s32.totalorder %v7844, %v7846
  %vm7849 = vcmp.ne.s32.totalorder %v7845, %v7847
  %vm7850 = vmpackc.low %vm7849, %vm7848
  %v7851 = vunpack.c.l.b16 %v7311
  %v7852 = vunpack.c.h.b16 %v7311
  %v7853 = vunpack.c.l.b16 0
  %v7854 = vunpack.c.h.b16 0
  %vm7855 = vcmp.ne.s32.totalorder %v7851, %v7853
  %vm7856 = vcmp.ne.s32.totalorder %v7852, %v7854
  %vm7857 = vmpackc.low %vm7856, %vm7855
  %v7858 = vunpack.c.l.b16 %v7321
  %v7859 = vunpack.c.h.b16 %v7321
  %v7860 = vunpack.c.l.b16 0
  %v7861 = vunpack.c.h.b16 0
  %vm7862 = vcmp.ne.s32.totalorder %v7858, %v7860
  %vm7863 = vcmp.ne.s32.totalorder %v7859, %v7861
  %vm7864 = vmpackc.low %vm7863, %vm7862
  %v7865 = vunpack.c.l.b16 %v7331
  %v7866 = vunpack.c.h.b16 %v7331
  %v7867 = vunpack.c.l.b16 0
  %v7868 = vunpack.c.h.b16 0
  %vm7869 = vcmp.ne.s32.totalorder %v7865, %v7867
  %vm7870 = vcmp.ne.s32.totalorder %v7866, %v7868
  %vm7871 = vmpackc.low %vm7870, %vm7869
  %v7872 = vunpack.c.l.b16 %v7341
  %v7873 = vunpack.c.h.b16 %v7341
  %v7874 = vunpack.c.l.b16 0
  %v7875 = vunpack.c.h.b16 0
  %vm7876 = vcmp.ne.s32.totalorder %v7872, %v7874
  %vm7877 = vcmp.ne.s32.totalorder %v7873, %v7875
  %vm7878 = vmpackc.low %vm7877, %vm7876
  %v7879 = vunpack.c.l.b16 %v7351
  %v7880 = vunpack.c.h.b16 %v7351
  %v7881 = vunpack.c.l.b16 0
  %v7882 = vunpack.c.h.b16 0
  %vm7883 = vcmp.ne.s32.totalorder %v7879, %v7881
  %vm7884 = vcmp.ne.s32.totalorder %v7880, %v7882
  %vm7885 = vmpackc.low %vm7884, %vm7883
  %v7886 = vunpack.c.l.b16 %v7361
  %v7887 = vunpack.c.h.b16 %v7361
  %v7888 = vunpack.c.l.b16 0
  %v7889 = vunpack.c.h.b16 0
  %vm7890 = vcmp.ne.s32.totalorder %v7886, %v7888
  %vm7891 = vcmp.ne.s32.totalorder %v7887, %v7889
  %vm7892 = vmpackc.low %vm7891, %vm7890
  %v7893 = vunpack.c.l.b16 %v7371
  %v7894 = vunpack.c.h.b16 %v7371
  %v7895 = vunpack.c.l.b16 0
  %v7896 = vunpack.c.h.b16 0
  %vm7897 = vcmp.ne.s32.totalorder %v7893, %v7895
  %vm7898 = vcmp.ne.s32.totalorder %v7894, %v7896
  %vm7899 = vmpackc.low %vm7898, %vm7897
  %v7900 = vunpack.c.l.b16 %v7381
  %v7901 = vunpack.c.h.b16 %v7381
  %v7902 = vunpack.c.l.b16 0
  %v7903 = vunpack.c.h.b16 0
  %vm7904 = vcmp.ne.s32.totalorder %v7900, %v7902
  %vm7905 = vcmp.ne.s32.totalorder %v7901, %v7903
  %vm7906 = vmpackc.low %vm7905, %vm7904
  %v7907 = vunpack.c.l.b16 %v7391
  %v7908 = vunpack.c.h.b16 %v7391
  %v7909 = vunpack.c.l.b16 0
  %v7910 = vunpack.c.h.b16 0
  %vm7911 = vcmp.ne.s32.totalorder %v7907, %v7909
  %vm7912 = vcmp.ne.s32.totalorder %v7908, %v7910
  %vm7913 = vmpackc.low %vm7912, %vm7911
  %v7914 = vunpack.c.l.b16 %v7401
  %v7915 = vunpack.c.h.b16 %v7401
  %v7916 = vunpack.c.l.b16 0
  %v7917 = vunpack.c.h.b16 0
  %vm7918 = vcmp.ne.s32.totalorder %v7914, %v7916
  %vm7919 = vcmp.ne.s32.totalorder %v7915, %v7917
  %vm7920 = vmpackc.low %vm7919, %vm7918
  %v7921 = vunpack.c.l.b16 %v7411
  %v7922 = vunpack.c.h.b16 %v7411
  %v7923 = vunpack.c.l.b16 0
  %v7924 = vunpack.c.h.b16 0
  %vm7925 = vcmp.ne.s32.totalorder %v7921, %v7923
  %vm7926 = vcmp.ne.s32.totalorder %v7922, %v7924
  %vm7927 = vmpackc.low %vm7926, %vm7925
  %v7928 = vunpack.c.l.b16 %v7421
  %v7929 = vunpack.c.h.b16 %v7421
  %v7930 = vunpack.c.l.b16 0
  %v7931 = vunpack.c.h.b16 0
  %vm7932 = vcmp.ne.s32.totalorder %v7928, %v7930
  %vm7933 = vcmp.ne.s32.totalorder %v7929, %v7931
  %vm7934 = vmpackc.low %vm7933, %vm7932
  %v7935 = vunpack.c.l.b16 %v7431
  %v7936 = vunpack.c.h.b16 %v7431
  %v7937 = vunpack.c.l.b16 0
  %v7938 = vunpack.c.h.b16 0
  %vm7939 = vcmp.ne.s32.totalorder %v7935, %v7937
  %vm7940 = vcmp.ne.s32.totalorder %v7936, %v7938
  %vm7941 = vmpackc.low %vm7940, %vm7939
  %v7942 = vunpack.c.l.b16 %v7441
  %v7943 = vunpack.c.h.b16 %v7441
  %v7944 = vunpack.c.l.b16 0
  %v7945 = vunpack.c.h.b16 0
  %vm7946 = vcmp.ne.s32.totalorder %v7942, %v7944
  %vm7947 = vcmp.ne.s32.totalorder %v7943, %v7945
  %vm7948 = vmpackc.low %vm7947, %vm7946
  %v7949 = vunpack.c.l.b16 %v7451
  %v7950 = vunpack.c.h.b16 %v7451
  %v7951 = vunpack.c.l.b16 0
  %v7952 = vunpack.c.h.b16 0
  %vm7953 = vcmp.ne.s32.totalorder %v7949, %v7951
  %vm7954 = vcmp.ne.s32.totalorder %v7950, %v7952
  %vm7955 = vmpackc.low %vm7954, %vm7953
  %v7956 = vunpack.c.l.b16 %v7461
  %v7957 = vunpack.c.h.b16 %v7461
  %v7958 = vunpack.c.l.b16 0
  %v7959 = vunpack.c.h.b16 0
  %vm7960 = vcmp.ne.s32.totalorder %v7956, %v7958
  %vm7961 = vcmp.ne.s32.totalorder %v7957, %v7959
  %vm7962 = vmpackc.low %vm7961, %vm7960
  %v7963 = vunpack.c.l.b16 %v7471
  %v7964 = vunpack.c.h.b16 %v7471
  %v7965 = vunpack.c.l.b16 0
  %v7966 = vunpack.c.h.b16 0
  %vm7967 = vcmp.ne.s32.totalorder %v7963, %v7965
  %vm7968 = vcmp.ne.s32.totalorder %v7964, %v7966
  %vm7969 = vmpackc.low %vm7968, %vm7967
  %v7970 = vunpack.c.l.b16 %v7481
  %v7971 = vunpack.c.h.b16 %v7481
  %v7972 = vunpack.c.l.b16 0
  %v7973 = vunpack.c.h.b16 0
  %vm7974 = vcmp.ne.s32.totalorder %v7970, %v7972
  %vm7975 = vcmp.ne.s32.totalorder %v7971, %v7973
  %vm7976 = vmpackc.low %vm7975, %vm7974
  %v7977 = vunpack.c.l.b16 %v7491
  %v7978 = vunpack.c.h.b16 %v7491
  %v7979 = vunpack.c.l.b16 0
  %v7980 = vunpack.c.h.b16 0
  %vm7981 = vcmp.ne.s32.totalorder %v7977, %v7979
  %vm7982 = vcmp.ne.s32.totalorder %v7978, %v7980
  %vm7983 = vmpackc.low %vm7982, %vm7981
  %v7984 = vunpack.c.l.b16 %v7501
  %v7985 = vunpack.c.h.b16 %v7501
  %v7986 = vunpack.c.l.b16 0
  %v7987 = vunpack.c.h.b16 0
  %vm7988 = vcmp.ne.s32.totalorder %v7984, %v7986
  %vm7989 = vcmp.ne.s32.totalorder %v7985, %v7987
  %vm7990 = vmpackc.low %vm7989, %vm7988
  %v7991 = vunpack.c.l.b16 %v7511
  %v7992 = vunpack.c.h.b16 %v7511
  %v7993 = vunpack.c.l.b16 0
  %v7994 = vunpack.c.h.b16 0
  %vm7995 = vcmp.ne.s32.totalorder %v7991, %v7993
  %vm7996 = vcmp.ne.s32.totalorder %v7992, %v7994
  %vm7997 = vmpackc.low %vm7996, %vm7995
  %v7998 = vunpack.c.l.b16 %v7521
  %v7999 = vunpack.c.h.b16 %v7521
  %v8000 = vunpack.c.l.b16 0
  %v8001 = vunpack.c.h.b16 0
  %vm8002 = vcmp.ne.s32.totalorder %v7998, %v8000
  %vm8003 = vcmp.ne.s32.totalorder %v7999, %v8001
  %vm8004 = vmpackc.low %vm8003, %vm8002
  %v8005 = vunpack.c.l.b16 %v7531
  %v8006 = vunpack.c.h.b16 %v7531
  %v8007 = vunpack.c.l.b16 0
  %v8008 = vunpack.c.h.b16 0
  %vm8009 = vcmp.ne.s32.totalorder %v8005, %v8007
  %vm8010 = vcmp.ne.s32.totalorder %v8006, %v8008
  %vm8011 = vmpackc.low %vm8010, %vm8009
  %v8012 = vunpack.c.l.b16 %v7541
  %v8013 = vunpack.c.h.b16 %v7541
  %v8014 = vunpack.c.l.b16 0
  %v8015 = vunpack.c.h.b16 0
  %vm8016 = vcmp.ne.s32.totalorder %v8012, %v8014
  %vm8017 = vcmp.ne.s32.totalorder %v8013, %v8015
  %vm8018 = vmpackc.low %vm8017, %vm8016
  %v8019 = vunpack.c.l.b16 %v7551
  %v8020 = vunpack.c.h.b16 %v7551
  %v8021 = vunpack.c.l.b16 0
  %v8022 = vunpack.c.h.b16 0
  %vm8023 = vcmp.ne.s32.totalorder %v8019, %v8021
  %vm8024 = vcmp.ne.s32.totalorder %v8020, %v8022
  %vm8025 = vmpackc.low %vm8024, %vm8023
  %v8026 = vunpack.c.l.b16 %v7561
  %v8027 = vunpack.c.h.b16 %v7561
  %v8028 = vunpack.c.l.b16 0
  %v8029 = vunpack.c.h.b16 0
  %vm8030 = vcmp.ne.s32.totalorder %v8026, %v8028
  %vm8031 = vcmp.ne.s32.totalorder %v8027, %v8029
  %vm8032 = vmpackc.low %vm8031, %vm8030
  %v8033 = vunpack.c.l.b16 %v7571
  %v8034 = vunpack.c.h.b16 %v7571
  %v8035 = vunpack.c.l.b16 0
  %v8036 = vunpack.c.h.b16 0
  %vm8037 = vcmp.ne.s32.totalorder %v8033, %v8035
  %vm8038 = vcmp.ne.s32.totalorder %v8034, %v8036
  %vm8039 = vmpackc.low %vm8038, %vm8037
  %v8040 = vunpack.c.l.b16 %v7581
  %v8041 = vunpack.c.h.b16 %v7581
  %v8042 = vunpack.c.l.b16 0
  %v8043 = vunpack.c.h.b16 0
  %vm8044 = vcmp.ne.s32.totalorder %v8040, %v8042
  %vm8045 = vcmp.ne.s32.totalorder %v8041, %v8043
  %vm8046 = vmpackc.low %vm8045, %vm8044
  %v8047 = vunpack.c.l.b16 %v7591
  %v8048 = vunpack.c.h.b16 %v7591
  %v8049 = vunpack.c.l.b16 0
  %v8050 = vunpack.c.h.b16 0
  %vm8051 = vcmp.ne.s32.totalorder %v8047, %v8049
  %vm8052 = vcmp.ne.s32.totalorder %v8048, %v8050
  %vm8053 = vmpackc.low %vm8052, %vm8051
  %v8054 = vunpack.c.l.b16 %v7601
  %v8055 = vunpack.c.h.b16 %v7601
  %v8056 = vunpack.c.l.b16 0
  %v8057 = vunpack.c.h.b16 0
  %vm8058 = vcmp.ne.s32.totalorder %v8054, %v8056
  %vm8059 = vcmp.ne.s32.totalorder %v8055, %v8057
  %vm8060 = vmpackc.low %vm8059, %vm8058
  %v8061 = vunpack.c.l.b16 %v7611
  %v8062 = vunpack.c.h.b16 %v7611
  %v8063 = vunpack.c.l.b16 0
  %v8064 = vunpack.c.h.b16 0
  %vm8065 = vcmp.ne.s32.totalorder %v8061, %v8063
  %vm8066 = vcmp.ne.s32.totalorder %v8062, %v8064
  %vm8067 = vmpackc.low %vm8066, %vm8065
  %v8068 = vunpack.c.l.b16 %v7621
  %v8069 = vunpack.c.h.b16 %v7621
  %v8070 = vunpack.c.l.b16 0
  %v8071 = vunpack.c.h.b16 0
  %vm8072 = vcmp.ne.s32.totalorder %v8068, %v8070
  %vm8073 = vcmp.ne.s32.totalorder %v8069, %v8071
  %vm8074 = vmpackc.low %vm8073, %vm8072
  %v8075 = vunpack.c.l.b16 %v7626
  %v8076 = vunpack.c.h.b16 %v7626
  %v8077 = vunpack.c.l.b16 0
  %v8078 = vunpack.c.h.b16 0
  %vm8079 = vcmp.ne.s32.totalorder %v8075, %v8077
  %vm8080 = vcmp.ne.s32.totalorder %v8076, %v8078
  %vm8081 = vmpackc.low %vm8080, %vm8079
  %v8082 = vsel %vm7633, %v6665, 0
  %v8083 = vsel %vm7640, %v678, 0
  %v8084 = vsel %vm7647, %v679, 0
  %v8085 = vsel %vm7654, %v680, 0
  %v8086 = vsel %vm7661, %v681, 0
  %v8087 = vsel %vm7668, %v682, 0
  %v8088 = vsel %vm7675, %v683, 0
  %v8089 = vsel %vm7682, %v684, 0
  %v8090 = vsel %vm7689, %v685, 0
  %v8091 = vsel %vm7696, %v686, 0
  %v8092 = vsel %vm7703, %v687, 0
  %v8093 = vsel %vm7710, %v688, 0
  %v8094 = vsel %vm7717, %v689, 0
  %v8095 = vsel %vm7724, %v690, 0
  %v8096 = vsel %vm7731, %v691, 0
  %v8097 = vsel %vm7738, %v692, 0
  %v8098 = vsel %vm7745, %v693, 0
  %v8099 = vsel %vm7752, %v694, 0
  %v8100 = vsel %vm7759, %v695, 0
  %v8101 = vsel %vm7766, %v696, 0
  %v8102 = vsel %vm7773, %v697, 0
  %v8103 = vsel %vm7780, %v698, 0
  %v8104 = vsel %vm7787, %v699, 0
  %v8105 = vsel %vm7794, %v700, 0
  %v8106 = vsel %vm7801, %v701, 0
  %v8107 = vsel %vm7808, %v702, 0
  %v8108 = vsel %vm7815, %v703, 0
  %v8109 = vsel %vm7822, %v704, 0
  %v8110 = vsel %vm7829, %v705, 0
  %v8111 = vsel %vm7836, %v706, 0
  %v8112 = vsel %vm7843, %v707, 0
  %v8113 = vsel %vm7850, %v708, 0
  %v8114 = vsel %vm7857, %v709, 0
  %v8115 = vsel %vm7864, %v710, 0
  %v8116 = vsel %vm7871, %v711, 0
  %v8117 = vsel %vm7878, %v712, 0
  %v8118 = vsel %vm7885, %v713, 0
  %v8119 = vsel %vm7892, %v714, 0
  %v8120 = vsel %vm7899, %v715, 0
  %v8121 = vsel %vm7906, %v716, 0
  %v8122 = vsel %vm7913, %v717, 0
  %v8123 = vsel %vm7920, %v718, 0
  %v8124 = vsel %vm7927, %v719, 0
  %v8125 = vsel %vm7934, %v720, 0
  %v8126 = vsel %vm7941, %v721, 0
  %v8127 = vsel %vm7948, %v722, 0
  %v8128 = vsel %vm7955, %v723, 0
  %v8129 = vsel %vm7962, %v724, 0
  %v8130 = vsel %vm7969, %v725, 0
  %v8131 = vsel %vm7976, %v726, 0
  %v8132 = vsel %vm7983, %v727, 0
  %v8133 = vsel %vm7990, %v728, 0
  %v8134 = vsel %vm7997, %v729, 0
  %v8135 = vsel %vm8004, %v730, 0
  %v8136 = vsel %vm8011, %v731, 0
  %v8137 = vsel %vm8018, %v732, 0
  %v8138 = vsel %vm8025, %v733, 0
  %v8139 = vsel %vm8032, %v734, 0
  %v8140 = vsel %vm8039, %v735, 0
  %v8141 = vsel %vm8046, %v736, 0
  %v8142 = vsel %vm8053, %v737, 0
  %v8143 = vsel %vm8060, %v3896, 0
  %v8144 = vsel %vm8067, %v3897, 0
  %v8145 = vsel %vm8074, %v6666, 0
  %v8146 = vsel %vm8081, %v6667, 0
  %v8147 = vsel %vm481, 1, 0
  %v8148 = vsel %vm482, 1, 0
  %v8149 = vsel %vm483, 1, 0
  %v8150 = vsel %vm484, 1, 0
  %v8151 = vsel %vm485, 1, 0
  %v8152 = vsel %vm486, 1, 0
  %v8153 = vsel %vm487, 1, 0
  %v8154 = vsel %vm488, 1, 0
  %v8155 = vsel %vm489, 1, 0
  %v8156 = vsel %vm490, 1, 0
  %v8157 = vsel %vm491, 1, 0
  %v8158 = vsel %vm492, 1, 0
  %v8159 = vsel %vm493, 1, 0
  %v8160 = vsel %vm494, 1, 0
  %v8161 = vsel %vm495, 1, 0
  %v8162 = vsel %vm496, 1, 0
  %v8163 = vsel %vm497, 1, 0
  %v8164 = vsel %vm498, 1, 0
  %v8165 = vsel %vm499, 1, 0
  %v8166 = vsel %vm500, 1, 0
  %v8167 = vsel %vm501, 1, 0
  %v8168 = vsel %vm502, 1, 0
  %v8169 = vsel %vm503, 1, 0
  %v8170 = vsel %vm504, 1, 0
  %v8171 = vsel %vm505, 1, 0
  %v8172 = vsel %vm506, 1, 0
  %v8173 = vsel %vm507, 1, 0
  %v8174 = vsel %vm508, 1, 0
  %v8175 = vsel %vm509, 1, 0
  %v8176 = vsel %vm510, 1, 0
  %v8177 = vsel %vm511, 1, 0
  %v8178 = vsel %vm512, 1, 0
  %v8179 = vsel %vm513, 1, 0
  %v8180 = vsel %vm514, 1, 0
  %v8181 = vsel %vm515, 1, 0
  %v8182 = vsel %vm516, 1, 0
  %v8183 = vsel %vm517, 1, 0
  %v8184 = vsel %vm518, 1, 0
  %v8185 = vsel %vm519, 1, 0
  %v8186 = vsel %vm520, 1, 0
  %v8187 = vsel %vm521, 1, 0
  %v8188 = vsel %vm522, 1, 0
  %v8189 = vsel %vm523, 1, 0
  %v8190 = vsel %vm524, 1, 0
  %v8191 = vsel %vm525, 1, 0
  %v8192 = vsel %vm526, 1, 0
  %v8193 = vsel %vm527, 1, 0
  %v8194 = vsel %vm528, 1, 0
  %v8195 = vsel %vm529, 1, 0
  %v8196 = vsel %vm530, 1, 0
  %v8197 = vsel %vm531, 1, 0
  %v8198 = vsel %vm532, 1, 0
  %v8199 = vsel %vm533, 1, 0
  %v8200 = vsel %vm534, 1, 0
  %v8201 = vsel %vm535, 1, 0
  %v8202 = vsel %vm536, 1, 0
  %v8203 = vsel %vm537, 1, 0
  %v8204 = vsel %vm538, 1, 0
  %v8205 = vsel %vm539, 1, 0
  %v8206 = vsel %vm540, 1, 0
  %v8207 = vsel %vm541, 1, 0
  %v8208 = vsel %vm542, 1, 0
  %v8209 = vsel %vm543, 1, 0
  %v8210 = vsel %vm544, 1, 0
  %vm8211 = vcmp.eq.s32.totalorder %v8147, 1
  %vm8212 = vcmp.eq.s32.totalorder %v8148, 1
  %vm8213 = vcmp.eq.s32.totalorder %v8149, 1
  %vm8214 = vcmp.eq.s32.totalorder %v8150, 1
  %vm8215 = vcmp.eq.s32.totalorder %v8151, 1
  %vm8216 = vcmp.eq.s32.totalorder %v8152, 1
  %vm8217 = vcmp.eq.s32.totalorder %v8153, 1
  %vm8218 = vcmp.eq.s32.totalorder %v8154, 1
  %vm8219 = vcmp.eq.s32.totalorder %v8155, 1
  %vm8220 = vcmp.eq.s32.totalorder %v8156, 1
  %vm8221 = vcmp.eq.s32.totalorder %v8157, 1
  %vm8222 = vcmp.eq.s32.totalorder %v8158, 1
  %vm8223 = vcmp.eq.s32.totalorder %v8159, 1
  %vm8224 = vcmp.eq.s32.totalorder %v8160, 1
  %vm8225 = vcmp.eq.s32.totalorder %v8161, 1
  %vm8226 = vcmp.eq.s32.totalorder %v8162, 1
  %vm8227 = vcmp.eq.s32.totalorder %v8163, 1
  %vm8228 = vcmp.eq.s32.totalorder %v8164, 1
  %vm8229 = vcmp.eq.s32.totalorder %v8165, 1
  %vm8230 = vcmp.eq.s32.totalorder %v8166, 1
  %vm8231 = vcmp.eq.s32.totalorder %v8167, 1
  %vm8232 = vcmp.eq.s32.totalorder %v8168, 1
  %vm8233 = vcmp.eq.s32.totalorder %v8169, 1
  %vm8234 = vcmp.eq.s32.totalorder %v8170, 1
  %vm8235 = vcmp.eq.s32.totalorder %v8171, 1
  %vm8236 = vcmp.eq.s32.totalorder %v8172, 1
  %vm8237 = vcmp.eq.s32.totalorder %v8173, 1
  %vm8238 = vcmp.eq.s32.totalorder %v8174, 1
  %vm8239 = vcmp.eq.s32.totalorder %v8175, 1
  %vm8240 = vcmp.eq.s32.totalorder %v8176, 1
  %vm8241 = vcmp.eq.s32.totalorder %v8177, 1
  %vm8242 = vcmp.eq.s32.totalorder %v8178, 1
  %vm8243 = vcmp.eq.s32.totalorder %v8179, 1
  %vm8244 = vcmp.eq.s32.totalorder %v8180, 1
  %vm8245 = vcmp.eq.s32.totalorder %v8181, 1
  %vm8246 = vcmp.eq.s32.totalorder %v8182, 1
  %vm8247 = vcmp.eq.s32.totalorder %v8183, 1
  %vm8248 = vcmp.eq.s32.totalorder %v8184, 1
  %vm8249 = vcmp.eq.s32.totalorder %v8185, 1
  %vm8250 = vcmp.eq.s32.totalorder %v8186, 1
  %vm8251 = vcmp.eq.s32.totalorder %v8187, 1
  %vm8252 = vcmp.eq.s32.totalorder %v8188, 1
  %vm8253 = vcmp.eq.s32.totalorder %v8189, 1
  %vm8254 = vcmp.eq.s32.totalorder %v8190, 1
  %vm8255 = vcmp.eq.s32.totalorder %v8191, 1
  %vm8256 = vcmp.eq.s32.totalorder %v8192, 1
  %vm8257 = vcmp.eq.s32.totalorder %v8193, 1
  %vm8258 = vcmp.eq.s32.totalorder %v8194, 1
  %vm8259 = vcmp.eq.s32.totalorder %v8195, 1
  %vm8260 = vcmp.eq.s32.totalorder %v8196, 1
  %vm8261 = vcmp.eq.s32.totalorder %v8197, 1
  %vm8262 = vcmp.eq.s32.totalorder %v8198, 1
  %vm8263 = vcmp.eq.s32.totalorder %v8199, 1
  %vm8264 = vcmp.eq.s32.totalorder %v8200, 1
  %vm8265 = vcmp.eq.s32.totalorder %v8201, 1
  %vm8266 = vcmp.eq.s32.totalorder %v8202, 1
  %vm8267 = vcmp.eq.s32.totalorder %v8203, 1
  %vm8268 = vcmp.eq.s32.totalorder %v8204, 1
  %vm8269 = vcmp.eq.s32.totalorder %v8205, 1
  %vm8270 = vcmp.eq.s32.totalorder %v8206, 1
  %vm8271 = vcmp.eq.s32.totalorder %v8207, 1
  %vm8272 = vcmp.eq.s32.totalorder %v8208, 1
  %vm8273 = vcmp.eq.s32.totalorder %v8209, 1
  %vm8274 = vcmp.eq.s32.totalorder %v8210, 1
  %vm8275 = vmpackc.low %vm8211, %vm8211
  %vm8276 = vmpackc.low %vm8212, %vm8212
  %vm8277 = vmpackc.low %vm8213, %vm8213
  %vm8278 = vmpackc.low %vm8214, %vm8214
  %vm8279 = vmpackc.low %vm8215, %vm8215
  %vm8280 = vmpackc.low %vm8216, %vm8216
  %vm8281 = vmpackc.low %vm8217, %vm8217
  %vm8282 = vmpackc.low %vm8218, %vm8218
  %vm8283 = vmpackc.low %vm8219, %vm8219
  %vm8284 = vmpackc.low %vm8220, %vm8220
  %vm8285 = vmpackc.low %vm8221, %vm8221
  %vm8286 = vmpackc.low %vm8222, %vm8222
  %vm8287 = vmpackc.low %vm8223, %vm8223
  %vm8288 = vmpackc.low %vm8224, %vm8224
  %vm8289 = vmpackc.low %vm8225, %vm8225
  %vm8290 = vmpackc.low %vm8226, %vm8226
  %vm8291 = vmpackc.low %vm8227, %vm8227
  %vm8292 = vmpackc.low %vm8228, %vm8228
  %vm8293 = vmpackc.low %vm8229, %vm8229
  %vm8294 = vmpackc.low %vm8230, %vm8230
  %vm8295 = vmpackc.low %vm8231, %vm8231
  %vm8296 = vmpackc.low %vm8232, %vm8232
  %vm8297 = vmpackc.low %vm8233, %vm8233
  %vm8298 = vmpackc.low %vm8234, %vm8234
  %vm8299 = vmpackc.low %vm8235, %vm8235
  %vm8300 = vmpackc.low %vm8236, %vm8236
  %vm8301 = vmpackc.low %vm8237, %vm8237
  %vm8302 = vmpackc.low %vm8238, %vm8238
  %vm8303 = vmpackc.low %vm8239, %vm8239
  %vm8304 = vmpackc.low %vm8240, %vm8240
  %vm8305 = vmpackc.low %vm8241, %vm8241
  %vm8306 = vmpackc.low %vm8242, %vm8242
  %vm8307 = vmpackc.low %vm8243, %vm8243
  %vm8308 = vmpackc.low %vm8244, %vm8244
  %vm8309 = vmpackc.low %vm8245, %vm8245
  %vm8310 = vmpackc.low %vm8246, %vm8246
  %vm8311 = vmpackc.low %vm8247, %vm8247
  %vm8312 = vmpackc.low %vm8248, %vm8248
  %vm8313 = vmpackc.low %vm8249, %vm8249
  %vm8314 = vmpackc.low %vm8250, %vm8250
  %vm8315 = vmpackc.low %vm8251, %vm8251
  %vm8316 = vmpackc.low %vm8252, %vm8252
  %vm8317 = vmpackc.low %vm8253, %vm8253
  %vm8318 = vmpackc.low %vm8254, %vm8254
  %vm8319 = vmpackc.low %vm8255, %vm8255
  %vm8320 = vmpackc.low %vm8256, %vm8256
  %vm8321 = vmpackc.low %vm8257, %vm8257
  %vm8322 = vmpackc.low %vm8258, %vm8258
  %vm8323 = vmpackc.low %vm8259, %vm8259
  %vm8324 = vmpackc.low %vm8260, %vm8260
  %vm8325 = vmpackc.low %vm8261, %vm8261
  %vm8326 = vmpackc.low %vm8262, %vm8262
  %vm8327 = vmpackc.low %vm8263, %vm8263
  %vm8328 = vmpackc.low %vm8264, %vm8264
  %vm8329 = vmpackc.low %vm8265, %vm8265
  %vm8330 = vmpackc.low %vm8266, %vm8266
  %vm8331 = vmpackc.low %vm8267, %vm8267
  %vm8332 = vmpackc.low %vm8268, %vm8268
  %vm8333 = vmpackc.low %vm8269, %vm8269
  %vm8334 = vmpackc.low %vm8270, %vm8270
  %vm8335 = vmpackc.low %vm8271, %vm8271
  %vm8336 = vmpackc.low %vm8272, %vm8272
  %vm8337 = vmpackc.low %vm8273, %vm8273
  %vm8338 = vmpackc.low %vm8274, %vm8274
  %v8339 = vsel %vm8275, %v678, 0
  %v8340 = vsel %vm8276, %v679, 0
  %v8341 = vsel %vm8277, %v680, 0
  %v8342 = vsel %vm8278, %v681, 0
  %v8343 = vsel %vm8279, %v682, 0
  %v8344 = vsel %vm8280, %v683, 0
  %v8345 = vsel %vm8281, %v684, 0
  %v8346 = vsel %vm8282, %v685, 0
  %v8347 = vsel %vm8283, %v686, 0
  %v8348 = vsel %vm8284, %v687, 0
  %v8349 = vsel %vm8285, %v688, 0
  %v8350 = vsel %vm8286, %v689, 0
  %v8351 = vsel %vm8287, %v690, 0
  %v8352 = vsel %vm8288, %v691, 0
  %v8353 = vsel %vm8289, %v692, 0
  %v8354 = vsel %vm8290, %v693, 0
  %v8355 = vsel %vm8291, %v694, 0
  %v8356 = vsel %vm8292, %v695, 0
  %v8357 = vsel %vm8293, %v696, 0
  %v8358 = vsel %vm8294, %v697, 0
  %v8359 = vsel %vm8295, %v698, 0
  %v8360 = vsel %vm8296, %v699, 0
  %v8361 = vsel %vm8297, %v700, 0
  %v8362 = vsel %vm8298, %v701, 0
  %v8363 = vsel %vm8299, %v702, 0
  %v8364 = vsel %vm8300, %v703, 0
  %v8365 = vsel %vm8301, %v704, 0
  %v8366 = vsel %vm8302, %v705, 0
  %v8367 = vsel %vm8303, %v706, 0
  %v8368 = vsel %vm8304, %v707, 0
  %v8369 = vsel %vm8305, %v708, 0
  %v8370 = vsel %vm8306, %v709, 0
  %v8371 = vsel %vm8307, %v710, 0
  %v8372 = vsel %vm8308, %v711, 0
  %v8373 = vsel %vm8309, %v712, 0
  %v8374 = vsel %vm8310, %v713, 0
  %v8375 = vsel %vm8311, %v714, 0
  %v8376 = vsel %vm8312, %v715, 0
  %v8377 = vsel %vm8313, %v716, 0
  %v8378 = vsel %vm8314, %v717, 0
  %v8379 = vsel %vm8315, %v718, 0
  %v8380 = vsel %vm8316, %v719, 0
  %v8381 = vsel %vm8317, %v720, 0
  %v8382 = vsel %vm8318, %v721, 0
  %v8383 = vsel %vm8319, %v722, 0
  %v8384 = vsel %vm8320, %v723, 0
  %v8385 = vsel %vm8321, %v724, 0
  %v8386 = vsel %vm8322, %v725, 0
  %v8387 = vsel %vm8323, %v726, 0
  %v8388 = vsel %vm8324, %v727, 0
  %v8389 = vsel %vm8325, %v728, 0
  %v8390 = vsel %vm8326, %v729, 0
  %v8391 = vsel %vm8327, %v730, 0
  %v8392 = vsel %vm8328, %v731, 0
  %v8393 = vsel %vm8329, %v732, 0
  %v8394 = vsel %vm8330, %v733, 0
  %v8395 = vsel %vm8331, %v734, 0
  %v8396 = vsel %vm8332, %v735, 0
  %v8397 = vsel %vm8333, %v736, 0
  %v8398 = vsel %vm8334, %v737, 0
  %v8399 = vsel %vm8335, %v3896, 0
  %v8400 = vsel %vm8336, %v3897, 0
  %v8401 = vsel %vm8337, %v6666, 0
  %v8402 = vsel %vm8338, %v6667, 0
  %v8403 = vld [vmem:[#allocation2 + $0x114] sm:$0x1]
  %vm8404 = vmand %vm481, %vm609
  %vm8405 = vmand %vm482, %vm610
  %vm8406 = vmand %vm483, %vm611
  %vm8407 = vmand %vm484, %vm612
  %vm8408 = vmand %vm485, %vm613
  %vm8409 = vmand %vm486, %vm614
  %vm8410 = vmand %vm487, %vm615
  %vm8411 = vmand %vm488, %vm616
  %vm8412 = vmand %vm489, %vm617
  %vm8413 = vmand %vm490, %vm618
  %vm8414 = vmand %vm491, %vm619
  %vm8415 = vmand %vm492, %vm620
  %vm8416 = vmand %vm493, %vm621
  %vm8417 = vmand %vm494, %vm622
  %vm8418 = vmand %vm495, %vm623
  %vm8419 = vmand %vm496, %vm624
  %vm8420 = vmand %vm497, %vm625
  %vm8421 = vmand %vm498, %vm626
  %vm8422 = vmand %vm499, %vm627
  %vm8423 = vmand %vm500, %vm628
  %vm8424 = vmand %vm501, %vm629
  %vm8425 = vmand %vm502, %vm630
  %vm8426 = vmand %vm503, %vm631
  %vm8427 = vmand %vm504, %vm632
  %vm8428 = vmand %vm505, %vm633
  %vm8429 = vmand %vm506, %vm634
  %vm8430 = vmand %vm507, %vm635
  %vm8431 = vmand %vm508, %vm636
  %vm8432 = vmand %vm509, %vm637
  %vm8433 = vmand %vm510, %vm638
  %vm8434 = vmand %vm511, %vm639
  %vm8435 = vmand %vm512, %vm640
  %vm8436 = vmand %vm513, %vm641
  %vm8437 = vmand %vm514, %vm642
  %vm8438 = vmand %vm515, %vm643
  %vm8439 = vmand %vm516, %vm644
  %vm8440 = vmand %vm517, %vm645
  %vm8441 = vmand %vm518, %vm646
  %vm8442 = vmand %vm519, %vm647
  %vm8443 = vmand %vm520, %vm648
  %vm8444 = vmand %vm521, %vm649
  %vm8445 = vmand %vm522, %vm650
  %vm8446 = vmand %vm523, %vm651
  %vm8447 = vmand %vm524, %vm652
  %vm8448 = vmand %vm525, %vm653
  %vm8449 = vmand %vm526, %vm654
  %vm8450 = vmand %vm527, %vm655
  %vm8451 = vmand %vm528, %vm656
  %vm8452 = vmand %vm529, %vm657
  %vm8453 = vmand %vm530, %vm658
  %vm8454 = vmand %vm531, %vm659
  %vm8455 = vmand %vm532, %vm660
  %vm8456 = vmand %vm533, %vm661
  %vm8457 = vmand %vm534, %vm662
  %vm8458 = vmand %vm535, %vm663
  %vm8459 = vmand %vm536, %vm664
  %vm8460 = vmand %vm537, %vm665
  %vm8461 = vmand %vm538, %vm666
  %vm8462 = vmand %vm539, %vm667
  %vm8463 = vmand %vm540, %vm668
  %vm8464 = vmand %vm541, %vm669
  %vm8465 = vmand %vm542, %vm670
  %vm8466 = vmand %vm543, %vm671
  %vm8467 = vmand %vm544, %vm672
  %v8468 = vsel %vm8404, 1, 0
  %v8469 = vsel %vm8405, 1, 0
  %v8470 = vsel %vm8406, 1, 0
  %v8471 = vsel %vm8407, 1, 0
  %v8472 = vsel %vm8408, 1, 0
  %v8473 = vsel %vm8409, 1, 0
  %v8474 = vsel %vm8410, 1, 0
  %v8475 = vsel %vm8411, 1, 0
  %v8476 = vsel %vm8412, 1, 0
  %v8477 = vsel %vm8413, 1, 0
  %v8478 = vsel %vm8414, 1, 0
  %v8479 = vsel %vm8415, 1, 0
  %v8480 = vsel %vm8416, 1, 0
  %v8481 = vsel %vm8417, 1, 0
  %v8482 = vsel %vm8418, 1, 0
  %v8483 = vsel %vm8419, 1, 0
  %v8484 = vsel %vm8420, 1, 0
  %v8485 = vsel %vm8421, 1, 0
  %v8486 = vsel %vm8422, 1, 0
  %v8487 = vsel %vm8423, 1, 0
  %v8488 = vsel %vm8424, 1, 0
  %v8489 = vsel %vm8425, 1, 0
  %v8490 = vsel %vm8426, 1, 0
  %v8491 = vsel %vm8427, 1, 0
  %v8492 = vsel %vm8428, 1, 0
  %v8493 = vsel %vm8429, 1, 0
  %v8494 = vsel %vm8430, 1, 0
  %v8495 = vsel %vm8431, 1, 0
  %v8496 = vsel %vm8432, 1, 0
  %v8497 = vsel %vm8433, 1, 0
  %v8498 = vsel %vm8434, 1, 0
  %v8499 = vsel %vm8435, 1, 0
  %v8500 = vsel %vm8436, 1, 0
  %v8501 = vsel %vm8437, 1, 0
  %v8502 = vsel %vm8438, 1, 0
  %v8503 = vsel %vm8439, 1, 0
  %v8504 = vsel %vm8440, 1, 0
  %v8505 = vsel %vm8441, 1, 0
  %v8506 = vsel %vm8442, 1, 0
  %v8507 = vsel %vm8443, 1, 0
  %v8508 = vsel %vm8444, 1, 0
  %v8509 = vsel %vm8445, 1, 0
  %v8510 = vsel %vm8446, 1, 0
  %v8511 = vsel %vm8447, 1, 0
  %v8512 = vsel %vm8448, 1, 0
  %v8513 = vsel %vm8449, 1, 0
  %v8514 = vsel %vm8450, 1, 0
  %v8515 = vsel %vm8451, 1, 0
  %v8516 = vsel %vm8452, 1, 0
  %v8517 = vsel %vm8453, 1, 0
  %v8518 = vsel %vm8454, 1, 0
  %v8519 = vsel %vm8455, 1, 0
  %v8520 = vsel %vm8456, 1, 0
  %v8521 = vsel %vm8457, 1, 0
  %v8522 = vsel %vm8458, 1, 0
  %v8523 = vsel %vm8459, 1, 0
  %v8524 = vsel %vm8460, 1, 0
  %v8525 = vsel %vm8461, 1, 0
  %v8526 = vsel %vm8462, 1, 0
  %v8527 = vsel %vm8463, 1, 0
  %v8528 = vsel %vm8464, 1, 0
  %v8529 = vsel %vm8465, 1, 0
  %v8530 = vsel %vm8466, 1, 0
  %v8531 = vsel %vm8467, 1, 0
  %vm8532 = vcmp.eq.s32.totalorder %v8468, 1
  %vm8533 = vcmp.eq.s32.totalorder %v8469, 1
  %vm8534 = vcmp.eq.s32.totalorder %v8470, 1
  %vm8535 = vcmp.eq.s32.totalorder %v8471, 1
  %vm8536 = vcmp.eq.s32.totalorder %v8472, 1
  %vm8537 = vcmp.eq.s32.totalorder %v8473, 1
  %vm8538 = vcmp.eq.s32.totalorder %v8474, 1
  %vm8539 = vcmp.eq.s32.totalorder %v8475, 1
  %vm8540 = vcmp.eq.s32.totalorder %v8476, 1
  %vm8541 = vcmp.eq.s32.totalorder %v8477, 1
  %vm8542 = vcmp.eq.s32.totalorder %v8478, 1
  %vm8543 = vcmp.eq.s32.totalorder %v8479, 1
  %vm8544 = vcmp.eq.s32.totalorder %v8480, 1
  %vm8545 = vcmp.eq.s32.totalorder %v8481, 1
  %vm8546 = vcmp.eq.s32.totalorder %v8482, 1
  %vm8547 = vcmp.eq.s32.totalorder %v8483, 1
  %vm8548 = vcmp.eq.s32.totalorder %v8484, 1
  %vm8549 = vcmp.eq.s32.totalorder %v8485, 1
  %vm8550 = vcmp.eq.s32.totalorder %v8486, 1
  %vm8551 = vcmp.eq.s32.totalorder %v8487, 1
  %vm8552 = vcmp.eq.s32.totalorder %v8488, 1
  %vm8553 = vcmp.eq.s32.totalorder %v8489, 1
  %vm8554 = vcmp.eq.s32.totalorder %v8490, 1
  %vm8555 = vcmp.eq.s32.totalorder %v8491, 1
  %vm8556 = vcmp.eq.s32.totalorder %v8492, 1
  %vm8557 = vcmp.eq.s32.totalorder %v8493, 1
  %vm8558 = vcmp.eq.s32.totalorder %v8494, 1
  %vm8559 = vcmp.eq.s32.totalorder %v8495, 1
  %vm8560 = vcmp.eq.s32.totalorder %v8496, 1
  %vm8561 = vcmp.eq.s32.totalorder %v8497, 1
  %vm8562 = vcmp.eq.s32.totalorder %v8498, 1
  %vm8563 = vcmp.eq.s32.totalorder %v8499, 1
  %vm8564 = vcmp.eq.s32.totalorder %v8500, 1
  %vm8565 = vcmp.eq.s32.totalorder %v8501, 1
  %vm8566 = vcmp.eq.s32.totalorder %v8502, 1
  %vm8567 = vcmp.eq.s32.totalorder %v8503, 1
  %vm8568 = vcmp.eq.s32.totalorder %v8504, 1
  %vm8569 = vcmp.eq.s32.totalorder %v8505, 1
  %vm8570 = vcmp.eq.s32.totalorder %v8506, 1
  %vm8571 = vcmp.eq.s32.totalorder %v8507, 1
  %vm8572 = vcmp.eq.s32.totalorder %v8508, 1
  %vm8573 = vcmp.eq.s32.totalorder %v8509, 1
  %vm8574 = vcmp.eq.s32.totalorder %v8510, 1
  %vm8575 = vcmp.eq.s32.totalorder %v8511, 1
  %vm8576 = vcmp.eq.s32.totalorder %v8512, 1
  %vm8577 = vcmp.eq.s32.totalorder %v8513, 1
  %vm8578 = vcmp.eq.s32.totalorder %v8514, 1
  %vm8579 = vcmp.eq.s32.totalorder %v8515, 1
  %vm8580 = vcmp.eq.s32.totalorder %v8516, 1
  %vm8581 = vcmp.eq.s32.totalorder %v8517, 1
  %vm8582 = vcmp.eq.s32.totalorder %v8518, 1
  %vm8583 = vcmp.eq.s32.totalorder %v8519, 1
  %vm8584 = vcmp.eq.s32.totalorder %v8520, 1
  %vm8585 = vcmp.eq.s32.totalorder %v8521, 1
  %vm8586 = vcmp.eq.s32.totalorder %v8522, 1
  %vm8587 = vcmp.eq.s32.totalorder %v8523, 1
  %vm8588 = vcmp.eq.s32.totalorder %v8524, 1
  %vm8589 = vcmp.eq.s32.totalorder %v8525, 1
  %vm8590 = vcmp.eq.s32.totalorder %v8526, 1
  %vm8591 = vcmp.eq.s32.totalorder %v8527, 1
  %vm8592 = vcmp.eq.s32.totalorder %v8528, 1
  %vm8593 = vcmp.eq.s32.totalorder %v8529, 1
  %vm8594 = vcmp.eq.s32.totalorder %v8530, 1
  %vm8595 = vcmp.eq.s32.totalorder %v8531, 1
  %vm8596 = vmpackc.low %vm8532, %vm8532
  %vm8597 = vmpackc.low %vm8533, %vm8533
  %vm8598 = vmpackc.low %vm8534, %vm8534
  %vm8599 = vmpackc.low %vm8535, %vm8535
  %vm8600 = vmpackc.low %vm8536, %vm8536
  %vm8601 = vmpackc.low %vm8537, %vm8537
  %vm8602 = vmpackc.low %vm8538, %vm8538
  %vm8603 = vmpackc.low %vm8539, %vm8539
  %vm8604 = vmpackc.low %vm8540, %vm8540
  %vm8605 = vmpackc.low %vm8541, %vm8541
  %vm8606 = vmpackc.low %vm8542, %vm8542
  %vm8607 = vmpackc.low %vm8543, %vm8543
  %vm8608 = vmpackc.low %vm8544, %vm8544
  %vm8609 = vmpackc.low %vm8545, %vm8545
  %vm8610 = vmpackc.low %vm8546, %vm8546
  %vm8611 = vmpackc.low %vm8547, %vm8547
  %vm8612 = vmpackc.low %vm8548, %vm8548
  %vm8613 = vmpackc.low %vm8549, %vm8549
  %vm8614 = vmpackc.low %vm8550, %vm8550
  %vm8615 = vmpackc.low %vm8551, %vm8551
  %vm8616 = vmpackc.low %vm8552, %vm8552
  %vm8617 = vmpackc.low %vm8553, %vm8553
  %vm8618 = vmpackc.low %vm8554, %vm8554
  %vm8619 = vmpackc.low %vm8555, %vm8555
  %vm8620 = vmpackc.low %vm8556, %vm8556
  %vm8621 = vmpackc.low %vm8557, %vm8557
  %vm8622 = vmpackc.low %vm8558, %vm8558
  %vm8623 = vmpackc.low %vm8559, %vm8559
  %vm8624 = vmpackc.low %vm8560, %vm8560
  %vm8625 = vmpackc.low %vm8561, %vm8561
  %vm8626 = vmpackc.low %vm8562, %vm8562
  %vm8627 = vmpackc.low %vm8563, %vm8563
  %vm8628 = vmpackc.low %vm8564, %vm8564
  %vm8629 = vmpackc.low %vm8565, %vm8565
  %vm8630 = vmpackc.low %vm8566, %vm8566
  %vm8631 = vmpackc.low %vm8567, %vm8567
  %vm8632 = vmpackc.low %vm8568, %vm8568
  %vm8633 = vmpackc.low %vm8569, %vm8569
  %vm8634 = vmpackc.low %vm8570, %vm8570
  %vm8635 = vmpackc.low %vm8571, %vm8571
  %vm8636 = vmpackc.low %vm8572, %vm8572
  %vm8637 = vmpackc.low %vm8573, %vm8573
  %vm8638 = vmpackc.low %vm8574, %vm8574
  %vm8639 = vmpackc.low %vm8575, %vm8575
  %vm8640 = vmpackc.low %vm8576, %vm8576
  %vm8641 = vmpackc.low %vm8577, %vm8577
  %vm8642 = vmpackc.low %vm8578, %vm8578
  %vm8643 = vmpackc.low %vm8579, %vm8579
  %vm8644 = vmpackc.low %vm8580, %vm8580
  %vm8645 = vmpackc.low %vm8581, %vm8581
  %vm8646 = vmpackc.low %vm8582, %vm8582
  %vm8647 = vmpackc.low %vm8583, %vm8583
  %vm8648 = vmpackc.low %vm8584, %vm8584
  %vm8649 = vmpackc.low %vm8585, %vm8585
  %vm8650 = vmpackc.low %vm8586, %vm8586
  %vm8651 = vmpackc.low %vm8587, %vm8587
  %vm8652 = vmpackc.low %vm8588, %vm8588
  %vm8653 = vmpackc.low %vm8589, %vm8589
  %vm8654 = vmpackc.low %vm8590, %vm8590
  %vm8655 = vmpackc.low %vm8591, %vm8591
  %vm8656 = vmpackc.low %vm8592, %vm8592
  %vm8657 = vmpackc.low %vm8593, %vm8593
  %vm8658 = vmpackc.low %vm8594, %vm8594
  %vm8659 = vmpackc.low %vm8595, %vm8595
  %v8660 = vsel %vm8596, 65537, 0
  %v8661 = vsel %vm8597, 65537, 0
  %v8662 = vsel %vm8598, 65537, 0
  %v8663 = vsel %vm8599, 65537, 0
  %v8664 = vsel %vm8600, 65537, 0
  %v8665 = vsel %vm8601, 65537, 0
  %v8666 = vsel %vm8602, 65537, 0
  %v8667 = vsel %vm8603, 65537, 0
  %v8668 = vsel %vm8604, 65537, 0
  %v8669 = vsel %vm8605, 65537, 0
  %v8670 = vsel %vm8606, 65537, 0
  %v8671 = vsel %vm8607, 65537, 0
  %v8672 = vsel %vm8608, 65537, 0
  %v8673 = vsel %vm8609, 65537, 0
  %v8674 = vsel %vm8610, 65537, 0
  %v8675 = vsel %vm8611, 65537, 0
  %v8676 = vsel %vm8612, 65537, 0
  %v8677 = vsel %vm8613, 65537, 0
  %v8678 = vsel %vm8614, 65537, 0
  %v8679 = vsel %vm8615, 65537, 0
  %v8680 = vsel %vm8616, 65537, 0
  %v8681 = vsel %vm8617, 65537, 0
  %v8682 = vsel %vm8618, 65537, 0
  %v8683 = vsel %vm8619, 65537, 0
  %v8684 = vsel %vm8620, 65537, 0
  %v8685 = vsel %vm8621, 65537, 0
  %v8686 = vsel %vm8622, 65537, 0
  %v8687 = vsel %vm8623, 65537, 0
  %v8688 = vsel %vm8624, 65537, 0
  %v8689 = vsel %vm8625, 65537, 0
  %v8690 = vsel %vm8626, 65537, 0
  %v8691 = vsel %vm8627, 65537, 0
  %v8692 = vsel %vm8628, 65537, 0
  %v8693 = vsel %vm8629, 65537, 0
  %v8694 = vsel %vm8630, 65537, 0
  %v8695 = vsel %vm8631, 65537, 0
  %v8696 = vsel %vm8632, 65537, 0
  %v8697 = vsel %vm8633, 65537, 0
  %v8698 = vsel %vm8634, 65537, 0
  %v8699 = vsel %vm8635, 65537, 0
  %v8700 = vsel %vm8636, 65537, 0
  %v8701 = vsel %vm8637, 65537, 0
  %v8702 = vsel %vm8638, 65537, 0
  %v8703 = vsel %vm8639, 65537, 0
  %v8704 = vsel %vm8640, 65537, 0
  %v8705 = vsel %vm8641, 65537, 0
  %v8706 = vsel %vm8642, 65537, 0
  %v8707 = vsel %vm8643, 65537, 0
  %v8708 = vsel %vm8644, 65537, 0
  %v8709 = vsel %vm8645, 65537, 0
  %v8710 = vsel %vm8646, 65537, 0
  %v8711 = vsel %vm8647, 65537, 0
  %v8712 = vsel %vm8648, 65537, 0
  %v8713 = vsel %vm8649, 65537, 0
  %v8714 = vsel %vm8650, 65537, 0
  %v8715 = vsel %vm8651, 65537, 0
  %v8716 = vsel %vm8652, 65537, 0
  %v8717 = vsel %vm8653, 65537, 0
  %v8718 = vsel %vm8654, 65537, 0
  %v8719 = vsel %vm8655, 65537, 0
  %v8720 = vsel %vm8656, 65537, 0
  %v8721 = vsel %vm8657, 65537, 0
  %v8722 = vsel %vm8658, 65537, 0
  %v8723 = vsel %vm8659, 65537, 0
  %v8725 = vshrl.u32 %v8660, 16
  %v8727 = vrot.slane %v8725, 7
  %v8728 = vshll.u32 %v8660, 16
  %v8730 = vor.u32 %v8727, %v8728
  %v8731 = vrot.slane %v8727, 4
  %v8733 = vshrl.u32 %v8661, 16
  %v8735 = vrot.slane %v8733, 7
  %v8736 = vshll.u32 %v8661, 16
  %v8738 = vor.u32 %v8735, %v8736
  %v8739 = vsel %vm2799, %v8731, %v8738
  %v8740 = vrot.slane %v8735, 4
  %v8742 = vshrl.u32 %v8662, 16
  %v8744 = vrot.slane %v8742, 7
  %v8745 = vshll.u32 %v8662, 16
  %v8747 = vor.u32 %v8744, %v8745
  %v8748 = vsel %vm2799, %v8740, %v8747
  %v8749 = vrot.slane %v8744, 4
  %v8751 = vshrl.u32 %v8663, 16
  %v8753 = vrot.slane %v8751, 7
  %v8754 = vshll.u32 %v8663, 16
  %v8756 = vor.u32 %v8753, %v8754
  %v8757 = vsel %vm2799, %v8749, %v8756
  %v8758 = vrot.slane %v8753, 4
  %v8760 = vshrl.u32 %v8664, 16
  %v8762 = vrot.slane %v8760, 7
  %v8763 = vshll.u32 %v8664, 16
  %v8765 = vor.u32 %v8762, %v8763
  %v8766 = vsel %vm2799, %v8758, %v8765
  %v8767 = vrot.slane %v8762, 4
  %v8769 = vshrl.u32 %v8665, 16
  %v8771 = vrot.slane %v8769, 7
  %v8772 = vshll.u32 %v8665, 16
  %v8774 = vor.u32 %v8771, %v8772
  %v8775 = vsel %vm2799, %v8767, %v8774
  %v8776 = vrot.slane %v8771, 4
  %v8778 = vshrl.u32 %v8666, 16
  %v8780 = vrot.slane %v8778, 7
  %v8781 = vshll.u32 %v8666, 16
  %v8783 = vor.u32 %v8780, %v8781
  %v8784 = vsel %vm2799, %v8776, %v8783
  %v8785 = vrot.slane %v8780, 4
  %v8787 = vshrl.u32 %v8667, 16
  %v8789 = vrot.slane %v8787, 7
  %v8790 = vshll.u32 %v8667, 16
  %v8792 = vor.u32 %v8789, %v8790
  %v8793 = vsel %vm2799, %v8785, %v8792
  %v8794 = vrot.slane %v8789, 4
  %v8796 = vshrl.u32 %v8668, 16
  %v8798 = vrot.slane %v8796, 7
  %v8799 = vshll.u32 %v8668, 16
  %v8801 = vor.u32 %v8798, %v8799
  %v8802 = vsel %vm2799, %v8794, %v8801
  %v8803 = vrot.slane %v8798, 4
  %v8805 = vshrl.u32 %v8669, 16
  %v8807 = vrot.slane %v8805, 7
  %v8808 = vshll.u32 %v8669, 16
  %v8810 = vor.u32 %v8807, %v8808
  %v8811 = vsel %vm2799, %v8803, %v8810
  %v8812 = vrot.slane %v8807, 4
  %v8814 = vshrl.u32 %v8670, 16
  %v8816 = vrot.slane %v8814, 7
  %v8817 = vshll.u32 %v8670, 16
  %v8819 = vor.u32 %v8816, %v8817
  %v8820 = vsel %vm2799, %v8812, %v8819
  %v8821 = vrot.slane %v8816, 4
  %v8823 = vshrl.u32 %v8671, 16
  %v8825 = vrot.slane %v8823, 7
  %v8826 = vshll.u32 %v8671, 16
  %v8828 = vor.u32 %v8825, %v8826
  %v8829 = vsel %vm2799, %v8821, %v8828
  %v8830 = vrot.slane %v8825, 4
  %v8832 = vshrl.u32 %v8672, 16
  %v8834 = vrot.slane %v8832, 7
  %v8835 = vshll.u32 %v8672, 16
  %v8837 = vor.u32 %v8834, %v8835
  %v8838 = vsel %vm2799, %v8830, %v8837
  %v8839 = vrot.slane %v8834, 4
  %v8841 = vshrl.u32 %v8673, 16
  %v8843 = vrot.slane %v8841, 7
  %v8844 = vshll.u32 %v8673, 16
  %v8846 = vor.u32 %v8843, %v8844
  %v8847 = vsel %vm2799, %v8839, %v8846
  %v8848 = vrot.slane %v8843, 4
  %v8850 = vshrl.u32 %v8674, 16
  %v8852 = vrot.slane %v8850, 7
  %v8853 = vshll.u32 %v8674, 16
  %v8855 = vor.u32 %v8852, %v8853
  %v8856 = vsel %vm2799, %v8848, %v8855
  %v8857 = vrot.slane %v8852, 4
  %v8859 = vshrl.u32 %v8675, 16
  %v8861 = vrot.slane %v8859, 7
  %v8862 = vshll.u32 %v8675, 16
  %v8864 = vor.u32 %v8861, %v8862
  %v8865 = vsel %vm2799, %v8857, %v8864
  %v8866 = vrot.slane %v8861, 4
  %v8868 = vshrl.u32 %v8676, 16
  %v8870 = vrot.slane %v8868, 7
  %v8871 = vshll.u32 %v8676, 16
  %v8873 = vor.u32 %v8870, %v8871
  %v8874 = vsel %vm2799, %v8866, %v8873
  %v8875 = vrot.slane %v8870, 4
  %v8877 = vshrl.u32 %v8677, 16
  %v8879 = vrot.slane %v8877, 7
  %v8880 = vshll.u32 %v8677, 16
  %v8882 = vor.u32 %v8879, %v8880
  %v8883 = vsel %vm2799, %v8875, %v8882
  %v8884 = vrot.slane %v8879, 4
  %v8886 = vshrl.u32 %v8678, 16
  %v8888 = vrot.slane %v8886, 7
  %v8889 = vshll.u32 %v8678, 16
  %v8891 = vor.u32 %v8888, %v8889
  %v8892 = vsel %vm2799, %v8884, %v8891
  %v8893 = vrot.slane %v8888, 4
  %v8895 = vshrl.u32 %v8679, 16
  %v8897 = vrot.slane %v8895, 7
  %v8898 = vshll.u32 %v8679, 16
  %v8900 = vor.u32 %v8897, %v8898
  %v8901 = vsel %vm2799, %v8893, %v8900
  %v8902 = vrot.slane %v8897, 4
  %v8904 = vshrl.u32 %v8680, 16
  %v8906 = vrot.slane %v8904, 7
  %v8907 = vshll.u32 %v8680, 16
  %v8909 = vor.u32 %v8906, %v8907
  %v8910 = vsel %vm2799, %v8902, %v8909
  %v8911 = vrot.slane %v8906, 4
  %v8913 = vshrl.u32 %v8681, 16
  %v8915 = vrot.slane %v8913, 7
  %v8916 = vshll.u32 %v8681, 16
  %v8918 = vor.u32 %v8915, %v8916
  %v8919 = vsel %vm2799, %v8911, %v8918
  %v8920 = vrot.slane %v8915, 4
  %v8922 = vshrl.u32 %v8682, 16
  %v8924 = vrot.slane %v8922, 7
  %v8925 = vshll.u32 %v8682, 16
  %v8927 = vor.u32 %v8924, %v8925
  %v8928 = vsel %vm2799, %v8920, %v8927
  %v8929 = vrot.slane %v8924, 4
  %v8931 = vshrl.u32 %v8683, 16
  %v8933 = vrot.slane %v8931, 7
  %v8934 = vshll.u32 %v8683, 16
  %v8936 = vor.u32 %v8933, %v8934
  %v8937 = vsel %vm2799, %v8929, %v8936
  %v8938 = vrot.slane %v8933, 4
  %v8940 = vshrl.u32 %v8684, 16
  %v8942 = vrot.slane %v8940, 7
  %v8943 = vshll.u32 %v8684, 16
  %v8945 = vor.u32 %v8942, %v8943
  %v8946 = vsel %vm2799, %v8938, %v8945
  %v8947 = vrot.slane %v8942, 4
  %v8949 = vshrl.u32 %v8685, 16
  %v8951 = vrot.slane %v8949, 7
  %v8952 = vshll.u32 %v8685, 16
  %v8954 = vor.u32 %v8951, %v8952
  %v8955 = vsel %vm2799, %v8947, %v8954
  %v8956 = vrot.slane %v8951, 4
  %v8958 = vshrl.u32 %v8686, 16
  %v8960 = vrot.slane %v8958, 7
  %v8961 = vshll.u32 %v8686, 16
  %v8963 = vor.u32 %v8960, %v8961
  %v8964 = vsel %vm2799, %v8956, %v8963
  %v8965 = vrot.slane %v8960, 4
  %v8967 = vshrl.u32 %v8687, 16
  %v8969 = vrot.slane %v8967, 7
  %v8970 = vshll.u32 %v8687, 16
  %v8972 = vor.u32 %v8969, %v8970
  %v8973 = vsel %vm2799, %v8965, %v8972
  %v8974 = vrot.slane %v8969, 4
  %v8976 = vshrl.u32 %v8688, 16
  %v8978 = vrot.slane %v8976, 7
  %v8979 = vshll.u32 %v8688, 16
  %v8981 = vor.u32 %v8978, %v8979
  %v8982 = vsel %vm2799, %v8974, %v8981
  %v8983 = vrot.slane %v8978, 4
  %v8985 = vshrl.u32 %v8689, 16
  %v8987 = vrot.slane %v8985, 7
  %v8988 = vshll.u32 %v8689, 16
  %v8990 = vor.u32 %v8987, %v8988
  %v8991 = vsel %vm2799, %v8983, %v8990
  %v8992 = vrot.slane %v8987, 4
  %v8994 = vshrl.u32 %v8690, 16
  %v8996 = vrot.slane %v8994, 7
  %v8997 = vshll.u32 %v8690, 16
  %v8999 = vor.u32 %v8996, %v8997
  %v9000 = vsel %vm2799, %v8992, %v8999
  %v9001 = vrot.slane %v8996, 4
  %v9003 = vshrl.u32 %v8691, 16
  %v9005 = vrot.slane %v9003, 7
  %v9006 = vshll.u32 %v8691, 16
  %v9008 = vor.u32 %v9005, %v9006
  %v9009 = vsel %vm2799, %v9001, %v9008
  %v9010 = vrot.slane %v9005, 4
  %v9012 = vshrl.u32 %v8692, 16
  %v9014 = vrot.slane %v9012, 7
  %v9015 = vshll.u32 %v8692, 16
  %v9017 = vor.u32 %v9014, %v9015
  %v9018 = vsel %vm2799, %v9010, %v9017
  %v9019 = vrot.slane %v9014, 4
  %v9021 = vshrl.u32 %v8693, 16
  %v9023 = vrot.slane %v9021, 7
  %v9024 = vshll.u32 %v8693, 16
  %v9026 = vor.u32 %v9023, %v9024
  %v9027 = vsel %vm2799, %v9019, %v9026
  %v9028 = vrot.slane %v9023, 4
  %v9030 = vshrl.u32 %v8694, 16
  %v9032 = vrot.slane %v9030, 7
  %v9033 = vshll.u32 %v8694, 16
  %v9035 = vor.u32 %v9032, %v9033
  %v9036 = vsel %vm2799, %v9028, %v9035
  %v9037 = vrot.slane %v9032, 4
  %v9039 = vshrl.u32 %v8695, 16
  %v9041 = vrot.slane %v9039, 7
  %v9042 = vshll.u32 %v8695, 16
  %v9044 = vor.u32 %v9041, %v9042
  %v9045 = vsel %vm2799, %v9037, %v9044
  %v9046 = vrot.slane %v9041, 4
  %v9048 = vshrl.u32 %v8696, 16
  %v9050 = vrot.slane %v9048, 7
  %v9051 = vshll.u32 %v8696, 16
  %v9053 = vor.u32 %v9050, %v9051
  %v9054 = vsel %vm2799, %v9046, %v9053
  %v9055 = vrot.slane %v9050, 4
  %v9057 = vshrl.u32 %v8697, 16
  %v9059 = vrot.slane %v9057, 7
  %v9060 = vshll.u32 %v8697, 16
  %v9062 = vor.u32 %v9059, %v9060
  %v9063 = vsel %vm2799, %v9055, %v9062
  %v9064 = vrot.slane %v9059, 4
  %v9066 = vshrl.u32 %v8698, 16
  %v9068 = vrot.slane %v9066, 7
  %v9069 = vshll.u32 %v8698, 16
  %v9071 = vor.u32 %v9068, %v9069
  %v9072 = vsel %vm2799, %v9064, %v9071
  %v9073 = vrot.slane %v9068, 4
  %v9075 = vshrl.u32 %v8699, 16
  %v9077 = vrot.slane %v9075, 7
  %v9078 = vshll.u32 %v8699, 16
  %v9080 = vor.u32 %v9077, %v9078
  %v9081 = vsel %vm2799, %v9073, %v9080
  %v9082 = vrot.slane %v9077, 4
  %v9084 = vshrl.u32 %v8700, 16
  %v9086 = vrot.slane %v9084, 7
  %v9087 = vshll.u32 %v8700, 16
  %v9089 = vor.u32 %v9086, %v9087
  %v9090 = vsel %vm2799, %v9082, %v9089
  %v9091 = vrot.slane %v9086, 4
  %v9093 = vshrl.u32 %v8701, 16
  %v9095 = vrot.slane %v9093, 7
  %v9096 = vshll.u32 %v8701, 16
  %v9098 = vor.u32 %v9095, %v9096
  %v9099 = vsel %vm2799, %v9091, %v9098
  %v9100 = vrot.slane %v9095, 4
  %v9102 = vshrl.u32 %v8702, 16
  %v9104 = vrot.slane %v9102, 7
  %v9105 = vshll.u32 %v8702, 16
  %v9107 = vor.u32 %v9104, %v9105
  %v9108 = vsel %vm2799, %v9100, %v9107
  %v9109 = vrot.slane %v9104, 4
  %v9111 = vshrl.u32 %v8703, 16
  %v9113 = vrot.slane %v9111, 7
  %v9114 = vshll.u32 %v8703, 16
  %v9116 = vor.u32 %v9113, %v9114
  %v9117 = vsel %vm2799, %v9109, %v9116
  %v9118 = vrot.slane %v9113, 4
  %v9120 = vshrl.u32 %v8704, 16
  %v9122 = vrot.slane %v9120, 7
  %v9123 = vshll.u32 %v8704, 16
  %v9125 = vor.u32 %v9122, %v9123
  %v9126 = vsel %vm2799, %v9118, %v9125
  %v9127 = vrot.slane %v9122, 4
  %v9129 = vshrl.u32 %v8705, 16
  %v9131 = vrot.slane %v9129, 7
  %v9132 = vshll.u32 %v8705, 16
  %v9134 = vor.u32 %v9131, %v9132
  %v9135 = vsel %vm2799, %v9127, %v9134
  %v9136 = vrot.slane %v9131, 4
  %v9138 = vshrl.u32 %v8706, 16
  %v9140 = vrot.slane %v9138, 7
  %v9141 = vshll.u32 %v8706, 16
  %v9143 = vor.u32 %v9140, %v9141
  %v9144 = vsel %vm2799, %v9136, %v9143
  %v9145 = vrot.slane %v9140, 4
  %v9147 = vshrl.u32 %v8707, 16
  %v9149 = vrot.slane %v9147, 7
  %v9150 = vshll.u32 %v8707, 16
  %v9152 = vor.u32 %v9149, %v9150
  %v9153 = vsel %vm2799, %v9145, %v9152
  %v9154 = vrot.slane %v9149, 4
  %v9156 = vshrl.u32 %v8708, 16
  %v9158 = vrot.slane %v9156, 7
  %v9159 = vshll.u32 %v8708, 16
  %v9161 = vor.u32 %v9158, %v9159
  %v9162 = vsel %vm2799, %v9154, %v9161
  %v9163 = vrot.slane %v9158, 4
  %v9165 = vshrl.u32 %v8709, 16
  %v9167 = vrot.slane %v9165, 7
  %v9168 = vshll.u32 %v8709, 16
  %v9170 = vor.u32 %v9167, %v9168
  %v9171 = vsel %vm2799, %v9163, %v9170
  %v9172 = vrot.slane %v9167, 4
  %v9174 = vshrl.u32 %v8710, 16
  %v9176 = vrot.slane %v9174, 7
  %v9177 = vshll.u32 %v8710, 16
  %v9179 = vor.u32 %v9176, %v9177
  %v9180 = vsel %vm2799, %v9172, %v9179
  %v9181 = vrot.slane %v9176, 4
  %v9183 = vshrl.u32 %v8711, 16
  %v9185 = vrot.slane %v9183, 7
  %v9186 = vshll.u32 %v8711, 16
  %v9188 = vor.u32 %v9185, %v9186
  %v9189 = vsel %vm2799, %v9181, %v9188
  %v9190 = vrot.slane %v9185, 4
  %v9192 = vshrl.u32 %v8712, 16
  %v9194 = vrot.slane %v9192, 7
  %v9195 = vshll.u32 %v8712, 16
  %v9197 = vor.u32 %v9194, %v9195
  %v9198 = vsel %vm2799, %v9190, %v9197
  %v9199 = vrot.slane %v9194, 4
  %v9201 = vshrl.u32 %v8713, 16
  %v9203 = vrot.slane %v9201, 7
  %v9204 = vshll.u32 %v8713, 16
  %v9206 = vor.u32 %v9203, %v9204
  %v9207 = vsel %vm2799, %v9199, %v9206
  %v9208 = vrot.slane %v9203, 4
  %v9210 = vshrl.u32 %v8714, 16
  %v9212 = vrot.slane %v9210, 7
  %v9213 = vshll.u32 %v8714, 16
  %v9215 = vor.u32 %v9212, %v9213
  %v9216 = vsel %vm2799, %v9208, %v9215
  %v9217 = vrot.slane %v9212, 4
  %v9219 = vshrl.u32 %v8715, 16
  %v9221 = vrot.slane %v9219, 7
  %v9222 = vshll.u32 %v8715, 16
  %v9224 = vor.u32 %v9221, %v9222
  %v9225 = vsel %vm2799, %v9217, %v9224
  %v9226 = vrot.slane %v9221, 4
  %v9228 = vshrl.u32 %v8716, 16
  %v9230 = vrot.slane %v9228, 7
  %v9231 = vshll.u32 %v8716, 16
  %v9233 = vor.u32 %v9230, %v9231
  %v9234 = vsel %vm2799, %v9226, %v9233
  %v9235 = vrot.slane %v9230, 4
  %v9237 = vshrl.u32 %v8717, 16
  %v9239 = vrot.slane %v9237, 7
  %v9240 = vshll.u32 %v8717, 16
  %v9242 = vor.u32 %v9239, %v9240
  %v9243 = vsel %vm2799, %v9235, %v9242
  %v9244 = vrot.slane %v9239, 4
  %v9246 = vshrl.u32 %v8718, 16
  %v9248 = vrot.slane %v9246, 7
  %v9249 = vshll.u32 %v8718, 16
  %v9251 = vor.u32 %v9248, %v9249
  %v9252 = vsel %vm2799, %v9244, %v9251
  %v9253 = vrot.slane %v9248, 4
  %v9255 = vshrl.u32 %v8719, 16
  %v9257 = vrot.slane %v9255, 7
  %v9258 = vshll.u32 %v8719, 16
  %v9260 = vor.u32 %v9257, %v9258
  %v9261 = vsel %vm2799, %v9253, %v9260
  %v9262 = vrot.slane %v9257, 4
  %v9264 = vshrl.u32 %v8720, 16
  %v9266 = vrot.slane %v9264, 7
  %v9267 = vshll.u32 %v8720, 16
  %v9269 = vor.u32 %v9266, %v9267
  %v9270 = vsel %vm2799, %v9262, %v9269
  %v9271 = vrot.slane %v9266, 4
  %v9273 = vshrl.u32 %v8721, 16
  %v9275 = vrot.slane %v9273, 7
  %v9276 = vshll.u32 %v8721, 16
  %v9278 = vor.u32 %v9275, %v9276
  %v9279 = vsel %vm2799, %v9271, %v9278
  %v9280 = vrot.slane %v9275, 4
  %v9282 = vshrl.u32 %v8722, 16
  %v9284 = vrot.slane %v9282, 7
  %v9285 = vshll.u32 %v8722, 16
  %v9287 = vor.u32 %v9284, %v9285
  %v9288 = vsel %vm2799, %v9280, %v9287
  %v9289 = vrot.slane %v9284, 4
  %v9291 = vshrl.u32 %v8723, 16
  %v9293 = vrot.slane %v9291, 7
  %v9294 = vshll.u32 %v8723, 16
  %v9296 = vor.u32 %v9293, %v9294
  %v9297 = vsel %vm2799, %v9289, %v9296
  %v9298 = vrot.slane %v9293, 4
  %v9299 = vunpack.c.l.b16 %v8730
  %v9300 = vunpack.c.h.b16 %v8730
  %v9301 = vunpack.c.l.b16 0
  %v9302 = vunpack.c.h.b16 0
  %vm9303 = vcmp.ne.s32.totalorder %v9299, %v9301
  %vm9304 = vcmp.ne.s32.totalorder %v9300, %v9302
  %vm9305 = vmpackc.low %vm9304, %vm9303
  %v9306 = vunpack.c.l.b16 %v8739
  %v9307 = vunpack.c.h.b16 %v8739
  %v9308 = vunpack.c.l.b16 0
  %v9309 = vunpack.c.h.b16 0
  %vm9310 = vcmp.ne.s32.totalorder %v9306, %v9308
  %vm9311 = vcmp.ne.s32.totalorder %v9307, %v9309
  %vm9312 = vmpackc.low %vm9311, %vm9310
  %v9313 = vunpack.c.l.b16 %v8748
  %v9314 = vunpack.c.h.b16 %v8748
  %v9315 = vunpack.c.l.b16 0
  %v9316 = vunpack.c.h.b16 0
  %vm9317 = vcmp.ne.s32.totalorder %v9313, %v9315
  %vm9318 = vcmp.ne.s32.totalorder %v9314, %v9316
  %vm9319 = vmpackc.low %vm9318, %vm9317
  %v9320 = vunpack.c.l.b16 %v8757
  %v9321 = vunpack.c.h.b16 %v8757
  %v9322 = vunpack.c.l.b16 0
  %v9323 = vunpack.c.h.b16 0
  %vm9324 = vcmp.ne.s32.totalorder %v9320, %v9322
  %vm9325 = vcmp.ne.s32.totalorder %v9321, %v9323
  %vm9326 = vmpackc.low %vm9325, %vm9324
  %v9327 = vunpack.c.l.b16 %v8766
  %v9328 = vunpack.c.h.b16 %v8766
  %v9329 = vunpack.c.l.b16 0
  %v9330 = vunpack.c.h.b16 0
  %vm9331 = vcmp.ne.s32.totalorder %v9327, %v9329
  %vm9332 = vcmp.ne.s32.totalorder %v9328, %v9330
  %vm9333 = vmpackc.low %vm9332, %vm9331
  %v9334 = vunpack.c.l.b16 %v8775
  %v9335 = vunpack.c.h.b16 %v8775
  %v9336 = vunpack.c.l.b16 0
  %v9337 = vunpack.c.h.b16 0
  %vm9338 = vcmp.ne.s32.totalorder %v9334, %v9336
  %vm9339 = vcmp.ne.s32.totalorder %v9335, %v9337
  %vm9340 = vmpackc.low %vm9339, %vm9338
  %v9341 = vunpack.c.l.b16 %v8784
  %v9342 = vunpack.c.h.b16 %v8784
  %v9343 = vunpack.c.l.b16 0
  %v9344 = vunpack.c.h.b16 0
  %vm9345 = vcmp.ne.s32.totalorder %v9341, %v9343
  %vm9346 = vcmp.ne.s32.totalorder %v9342, %v9344
  %vm9347 = vmpackc.low %vm9346, %vm9345
  %v9348 = vunpack.c.l.b16 %v8793
  %v9349 = vunpack.c.h.b16 %v8793
  %v9350 = vunpack.c.l.b16 0
  %v9351 = vunpack.c.h.b16 0
  %vm9352 = vcmp.ne.s32.totalorder %v9348, %v9350
  %vm9353 = vcmp.ne.s32.totalorder %v9349, %v9351
  %vm9354 = vmpackc.low %vm9353, %vm9352
  %v9355 = vunpack.c.l.b16 %v8802
  %v9356 = vunpack.c.h.b16 %v8802
  %v9357 = vunpack.c.l.b16 0
  %v9358 = vunpack.c.h.b16 0
  %vm9359 = vcmp.ne.s32.totalorder %v9355, %v9357
  %vm9360 = vcmp.ne.s32.totalorder %v9356, %v9358
  %vm9361 = vmpackc.low %vm9360, %vm9359
  %v9362 = vunpack.c.l.b16 %v8811
  %v9363 = vunpack.c.h.b16 %v8811
  %v9364 = vunpack.c.l.b16 0
  %v9365 = vunpack.c.h.b16 0
  %vm9366 = vcmp.ne.s32.totalorder %v9362, %v9364
  %vm9367 = vcmp.ne.s32.totalorder %v9363, %v9365
  %vm9368 = vmpackc.low %vm9367, %vm9366
  %v9369 = vunpack.c.l.b16 %v8820
  %v9370 = vunpack.c.h.b16 %v8820
  %v9371 = vunpack.c.l.b16 0
  %v9372 = vunpack.c.h.b16 0
  %vm9373 = vcmp.ne.s32.totalorder %v9369, %v9371
  %vm9374 = vcmp.ne.s32.totalorder %v9370, %v9372
  %vm9375 = vmpackc.low %vm9374, %vm9373
  %v9376 = vunpack.c.l.b16 %v8829
  %v9377 = vunpack.c.h.b16 %v8829
  %v9378 = vunpack.c.l.b16 0
  %v9379 = vunpack.c.h.b16 0
  %vm9380 = vcmp.ne.s32.totalorder %v9376, %v9378
  %vm9381 = vcmp.ne.s32.totalorder %v9377, %v9379
  %vm9382 = vmpackc.low %vm9381, %vm9380
  %v9383 = vunpack.c.l.b16 %v8838
  %v9384 = vunpack.c.h.b16 %v8838
  %v9385 = vunpack.c.l.b16 0
  %v9386 = vunpack.c.h.b16 0
  %vm9387 = vcmp.ne.s32.totalorder %v9383, %v9385
  %vm9388 = vcmp.ne.s32.totalorder %v9384, %v9386
  %vm9389 = vmpackc.low %vm9388, %vm9387
  %v9390 = vunpack.c.l.b16 %v8847
  %v9391 = vunpack.c.h.b16 %v8847
  %v9392 = vunpack.c.l.b16 0
  %v9393 = vunpack.c.h.b16 0
  %vm9394 = vcmp.ne.s32.totalorder %v9390, %v9392
  %vm9395 = vcmp.ne.s32.totalorder %v9391, %v9393
  %vm9396 = vmpackc.low %vm9395, %vm9394
  %v9397 = vunpack.c.l.b16 %v8856
  %v9398 = vunpack.c.h.b16 %v8856
  %v9399 = vunpack.c.l.b16 0
  %v9400 = vunpack.c.h.b16 0
  %vm9401 = vcmp.ne.s32.totalorder %v9397, %v9399
  %vm9402 = vcmp.ne.s32.totalorder %v9398, %v9400
  %vm9403 = vmpackc.low %vm9402, %vm9401
  %v9404 = vunpack.c.l.b16 %v8865
  %v9405 = vunpack.c.h.b16 %v8865
  %v9406 = vunpack.c.l.b16 0
  %v9407 = vunpack.c.h.b16 0
  %vm9408 = vcmp.ne.s32.totalorder %v9404, %v9406
  %vm9409 = vcmp.ne.s32.totalorder %v9405, %v9407
  %vm9410 = vmpackc.low %vm9409, %vm9408
  %v9411 = vunpack.c.l.b16 %v8874
  %v9412 = vunpack.c.h.b16 %v8874
  %v9413 = vunpack.c.l.b16 0
  %v9414 = vunpack.c.h.b16 0
  %vm9415 = vcmp.ne.s32.totalorder %v9411, %v9413
  %vm9416 = vcmp.ne.s32.totalorder %v9412, %v9414
  %vm9417 = vmpackc.low %vm9416, %vm9415
  %v9418 = vunpack.c.l.b16 %v8883
  %v9419 = vunpack.c.h.b16 %v8883
  %v9420 = vunpack.c.l.b16 0
  %v9421 = vunpack.c.h.b16 0
  %vm9422 = vcmp.ne.s32.totalorder %v9418, %v9420
  %vm9423 = vcmp.ne.s32.totalorder %v9419, %v9421
  %vm9424 = vmpackc.low %vm9423, %vm9422
  %v9425 = vunpack.c.l.b16 %v8892
  %v9426 = vunpack.c.h.b16 %v8892
  %v9427 = vunpack.c.l.b16 0
  %v9428 = vunpack.c.h.b16 0
  %vm9429 = vcmp.ne.s32.totalorder %v9425, %v9427
  %vm9430 = vcmp.ne.s32.totalorder %v9426, %v9428
  %vm9431 = vmpackc.low %vm9430, %vm9429
  %v9432 = vunpack.c.l.b16 %v8901
  %v9433 = vunpack.c.h.b16 %v8901
  %v9434 = vunpack.c.l.b16 0
  %v9435 = vunpack.c.h.b16 0
  %vm9436 = vcmp.ne.s32.totalorder %v9432, %v9434
  %vm9437 = vcmp.ne.s32.totalorder %v9433, %v9435
  %vm9438 = vmpackc.low %vm9437, %vm9436
  %v9439 = vunpack.c.l.b16 %v8910
  %v9440 = vunpack.c.h.b16 %v8910
  %v9441 = vunpack.c.l.b16 0
  %v9442 = vunpack.c.h.b16 0
  %vm9443 = vcmp.ne.s32.totalorder %v9439, %v9441
  %vm9444 = vcmp.ne.s32.totalorder %v9440, %v9442
  %vm9445 = vmpackc.low %vm9444, %vm9443
  %v9446 = vunpack.c.l.b16 %v8919
  %v9447 = vunpack.c.h.b16 %v8919
  %v9448 = vunpack.c.l.b16 0
  %v9449 = vunpack.c.h.b16 0
  %vm9450 = vcmp.ne.s32.totalorder %v9446, %v9448
  %vm9451 = vcmp.ne.s32.totalorder %v9447, %v9449
  %vm9452 = vmpackc.low %vm9451, %vm9450
  %v9453 = vunpack.c.l.b16 %v8928
  %v9454 = vunpack.c.h.b16 %v8928
  %v9455 = vunpack.c.l.b16 0
  %v9456 = vunpack.c.h.b16 0
  %vm9457 = vcmp.ne.s32.totalorder %v9453, %v9455
  %vm9458 = vcmp.ne.s32.totalorder %v9454, %v9456
  %vm9459 = vmpackc.low %vm9458, %vm9457
  %v9460 = vunpack.c.l.b16 %v8937
  %v9461 = vunpack.c.h.b16 %v8937
  %v9462 = vunpack.c.l.b16 0
  %v9463 = vunpack.c.h.b16 0
  %vm9464 = vcmp.ne.s32.totalorder %v9460, %v9462
  %vm9465 = vcmp.ne.s32.totalorder %v9461, %v9463
  %vm9466 = vmpackc.low %vm9465, %vm9464
  %v9467 = vunpack.c.l.b16 %v8946
  %v9468 = vunpack.c.h.b16 %v8946
  %v9469 = vunpack.c.l.b16 0
  %v9470 = vunpack.c.h.b16 0
  %vm9471 = vcmp.ne.s32.totalorder %v9467, %v9469
  %vm9472 = vcmp.ne.s32.totalorder %v9468, %v9470
  %vm9473 = vmpackc.low %vm9472, %vm9471
  %v9474 = vunpack.c.l.b16 %v8955
  %v9475 = vunpack.c.h.b16 %v8955
  %v9476 = vunpack.c.l.b16 0
  %v9477 = vunpack.c.h.b16 0
  %vm9478 = vcmp.ne.s32.totalorder %v9474, %v9476
  %vm9479 = vcmp.ne.s32.totalorder %v9475, %v9477
  %vm9480 = vmpackc.low %vm9479, %vm9478
  %v9481 = vunpack.c.l.b16 %v8964
  %v9482 = vunpack.c.h.b16 %v8964
  %v9483 = vunpack.c.l.b16 0
  %v9484 = vunpack.c.h.b16 0
  %vm9485 = vcmp.ne.s32.totalorder %v9481, %v9483
  %vm9486 = vcmp.ne.s32.totalorder %v9482, %v9484
  %vm9487 = vmpackc.low %vm9486, %vm9485
  %v9488 = vunpack.c.l.b16 %v8973
  %v9489 = vunpack.c.h.b16 %v8973
  %v9490 = vunpack.c.l.b16 0
  %v9491 = vunpack.c.h.b16 0
  %vm9492 = vcmp.ne.s32.totalorder %v9488, %v9490
  %vm9493 = vcmp.ne.s32.totalorder %v9489, %v9491
  %vm9494 = vmpackc.low %vm9493, %vm9492
  %v9495 = vunpack.c.l.b16 %v8982
  %v9496 = vunpack.c.h.b16 %v8982
  %v9497 = vunpack.c.l.b16 0
  %v9498 = vunpack.c.h.b16 0
  %vm9499 = vcmp.ne.s32.totalorder %v9495, %v9497
  %vm9500 = vcmp.ne.s32.totalorder %v9496, %v9498
  %vm9501 = vmpackc.low %vm9500, %vm9499
  %v9502 = vunpack.c.l.b16 %v8991
  %v9503 = vunpack.c.h.b16 %v8991
  %v9504 = vunpack.c.l.b16 0
  %v9505 = vunpack.c.h.b16 0
  %vm9506 = vcmp.ne.s32.totalorder %v9502, %v9504
  %vm9507 = vcmp.ne.s32.totalorder %v9503, %v9505
  %vm9508 = vmpackc.low %vm9507, %vm9506
  %v9509 = vunpack.c.l.b16 %v9000
  %v9510 = vunpack.c.h.b16 %v9000
  %v9511 = vunpack.c.l.b16 0
  %v9512 = vunpack.c.h.b16 0
  %vm9513 = vcmp.ne.s32.totalorder %v9509, %v9511
  %vm9514 = vcmp.ne.s32.totalorder %v9510, %v9512
  %vm9515 = vmpackc.low %vm9514, %vm9513
  %v9516 = vunpack.c.l.b16 %v9009
  %v9517 = vunpack.c.h.b16 %v9009
  %v9518 = vunpack.c.l.b16 0
  %v9519 = vunpack.c.h.b16 0
  %vm9520 = vcmp.ne.s32.totalorder %v9516, %v9518
  %vm9521 = vcmp.ne.s32.totalorder %v9517, %v9519
  %vm9522 = vmpackc.low %vm9521, %vm9520
  %v9523 = vunpack.c.l.b16 %v9018
  %v9524 = vunpack.c.h.b16 %v9018
  %v9525 = vunpack.c.l.b16 0
  %v9526 = vunpack.c.h.b16 0
  %vm9527 = vcmp.ne.s32.totalorder %v9523, %v9525
  %vm9528 = vcmp.ne.s32.totalorder %v9524, %v9526
  %vm9529 = vmpackc.low %vm9528, %vm9527
  %v9530 = vunpack.c.l.b16 %v9027
  %v9531 = vunpack.c.h.b16 %v9027
  %v9532 = vunpack.c.l.b16 0
  %v9533 = vunpack.c.h.b16 0
  %vm9534 = vcmp.ne.s32.totalorder %v9530, %v9532
  %vm9535 = vcmp.ne.s32.totalorder %v9531, %v9533
  %vm9536 = vmpackc.low %vm9535, %vm9534
  %v9537 = vunpack.c.l.b16 %v9036
  %v9538 = vunpack.c.h.b16 %v9036
  %v9539 = vunpack.c.l.b16 0
  %v9540 = vunpack.c.h.b16 0
  %vm9541 = vcmp.ne.s32.totalorder %v9537, %v9539
  %vm9542 = vcmp.ne.s32.totalorder %v9538, %v9540
  %vm9543 = vmpackc.low %vm9542, %vm9541
  %v9544 = vunpack.c.l.b16 %v9045
  %v9545 = vunpack.c.h.b16 %v9045
  %v9546 = vunpack.c.l.b16 0
  %v9547 = vunpack.c.h.b16 0
  %vm9548 = vcmp.ne.s32.totalorder %v9544, %v9546
  %vm9549 = vcmp.ne.s32.totalorder %v9545, %v9547
  %vm9550 = vmpackc.low %vm9549, %vm9548
  %v9551 = vunpack.c.l.b16 %v9054
  %v9552 = vunpack.c.h.b16 %v9054
  %v9553 = vunpack.c.l.b16 0
  %v9554 = vunpack.c.h.b16 0
  %vm9555 = vcmp.ne.s32.totalorder %v9551, %v9553
  %vm9556 = vcmp.ne.s32.totalorder %v9552, %v9554
  %vm9557 = vmpackc.low %vm9556, %vm9555
  %v9558 = vunpack.c.l.b16 %v9063
  %v9559 = vunpack.c.h.b16 %v9063
  %v9560 = vunpack.c.l.b16 0
  %v9561 = vunpack.c.h.b16 0
  %vm9562 = vcmp.ne.s32.totalorder %v9558, %v9560
  %vm9563 = vcmp.ne.s32.totalorder %v9559, %v9561
  %vm9564 = vmpackc.low %vm9563, %vm9562
  %v9565 = vunpack.c.l.b16 %v9072
  %v9566 = vunpack.c.h.b16 %v9072
  %v9567 = vunpack.c.l.b16 0
  %v9568 = vunpack.c.h.b16 0
  %vm9569 = vcmp.ne.s32.totalorder %v9565, %v9567
  %vm9570 = vcmp.ne.s32.totalorder %v9566, %v9568
  %vm9571 = vmpackc.low %vm9570, %vm9569
  %v9572 = vunpack.c.l.b16 %v9081
  %v9573 = vunpack.c.h.b16 %v9081
  %v9574 = vunpack.c.l.b16 0
  %v9575 = vunpack.c.h.b16 0
  %vm9576 = vcmp.ne.s32.totalorder %v9572, %v9574
  %vm9577 = vcmp.ne.s32.totalorder %v9573, %v9575
  %vm9578 = vmpackc.low %vm9577, %vm9576
  %v9579 = vunpack.c.l.b16 %v9090
  %v9580 = vunpack.c.h.b16 %v9090
  %v9581 = vunpack.c.l.b16 0
  %v9582 = vunpack.c.h.b16 0
  %vm9583 = vcmp.ne.s32.totalorder %v9579, %v9581
  %vm9584 = vcmp.ne.s32.totalorder %v9580, %v9582
  %vm9585 = vmpackc.low %vm9584, %vm9583
  %v9586 = vunpack.c.l.b16 %v9099
  %v9587 = vunpack.c.h.b16 %v9099
  %v9588 = vunpack.c.l.b16 0
  %v9589 = vunpack.c.h.b16 0
  %vm9590 = vcmp.ne.s32.totalorder %v9586, %v9588
  %vm9591 = vcmp.ne.s32.totalorder %v9587, %v9589
  %vm9592 = vmpackc.low %vm9591, %vm9590
  %v9593 = vunpack.c.l.b16 %v9108
  %v9594 = vunpack.c.h.b16 %v9108
  %v9595 = vunpack.c.l.b16 0
  %v9596 = vunpack.c.h.b16 0
  %vm9597 = vcmp.ne.s32.totalorder %v9593, %v9595
  %vm9598 = vcmp.ne.s32.totalorder %v9594, %v9596
  %vm9599 = vmpackc.low %vm9598, %vm9597
  %v9600 = vunpack.c.l.b16 %v9117
  %v9601 = vunpack.c.h.b16 %v9117
  %v9602 = vunpack.c.l.b16 0
  %v9603 = vunpack.c.h.b16 0
  %vm9604 = vcmp.ne.s32.totalorder %v9600, %v9602
  %vm9605 = vcmp.ne.s32.totalorder %v9601, %v9603
  %vm9606 = vmpackc.low %vm9605, %vm9604
  %v9607 = vunpack.c.l.b16 %v9126
  %v9608 = vunpack.c.h.b16 %v9126
  %v9609 = vunpack.c.l.b16 0
  %v9610 = vunpack.c.h.b16 0
  %vm9611 = vcmp.ne.s32.totalorder %v9607, %v9609
  %vm9612 = vcmp.ne.s32.totalorder %v9608, %v9610
  %vm9613 = vmpackc.low %vm9612, %vm9611
  %v9614 = vunpack.c.l.b16 %v9135
  %v9615 = vunpack.c.h.b16 %v9135
  %v9616 = vunpack.c.l.b16 0
  %v9617 = vunpack.c.h.b16 0
  %vm9618 = vcmp.ne.s32.totalorder %v9614, %v9616
  %vm9619 = vcmp.ne.s32.totalorder %v9615, %v9617
  %vm9620 = vmpackc.low %vm9619, %vm9618
  %v9621 = vunpack.c.l.b16 %v9144
  %v9622 = vunpack.c.h.b16 %v9144
  %v9623 = vunpack.c.l.b16 0
  %v9624 = vunpack.c.h.b16 0
  %vm9625 = vcmp.ne.s32.totalorder %v9621, %v9623
  %vm9626 = vcmp.ne.s32.totalorder %v9622, %v9624
  %vm9627 = vmpackc.low %vm9626, %vm9625
  %v9628 = vunpack.c.l.b16 %v9153
  %v9629 = vunpack.c.h.b16 %v9153
  %v9630 = vunpack.c.l.b16 0
  %v9631 = vunpack.c.h.b16 0
  %vm9632 = vcmp.ne.s32.totalorder %v9628, %v9630
  %vm9633 = vcmp.ne.s32.totalorder %v9629, %v9631
  %vm9634 = vmpackc.low %vm9633, %vm9632
  %v9635 = vunpack.c.l.b16 %v9162
  %v9636 = vunpack.c.h.b16 %v9162
  %v9637 = vunpack.c.l.b16 0
  %v9638 = vunpack.c.h.b16 0
  %vm9639 = vcmp.ne.s32.totalorder %v9635, %v9637
  %vm9640 = vcmp.ne.s32.totalorder %v9636, %v9638
  %vm9641 = vmpackc.low %vm9640, %vm9639
  %v9642 = vunpack.c.l.b16 %v9171
  %v9643 = vunpack.c.h.b16 %v9171
  %v9644 = vunpack.c.l.b16 0
  %v9645 = vunpack.c.h.b16 0
  %vm9646 = vcmp.ne.s32.totalorder %v9642, %v9644
  %vm9647 = vcmp.ne.s32.totalorder %v9643, %v9645
  %vm9648 = vmpackc.low %vm9647, %vm9646
  %v9649 = vunpack.c.l.b16 %v9180
  %v9650 = vunpack.c.h.b16 %v9180
  %v9651 = vunpack.c.l.b16 0
  %v9652 = vunpack.c.h.b16 0
  %vm9653 = vcmp.ne.s32.totalorder %v9649, %v9651
  %vm9654 = vcmp.ne.s32.totalorder %v9650, %v9652
  %vm9655 = vmpackc.low %vm9654, %vm9653
  %v9656 = vunpack.c.l.b16 %v9189
  %v9657 = vunpack.c.h.b16 %v9189
  %v9658 = vunpack.c.l.b16 0
  %v9659 = vunpack.c.h.b16 0
  %vm9660 = vcmp.ne.s32.totalorder %v9656, %v9658
  %vm9661 = vcmp.ne.s32.totalorder %v9657, %v9659
  %vm9662 = vmpackc.low %vm9661, %vm9660
  %v9663 = vunpack.c.l.b16 %v9198
  %v9664 = vunpack.c.h.b16 %v9198
  %v9665 = vunpack.c.l.b16 0
  %v9666 = vunpack.c.h.b16 0
  %vm9667 = vcmp.ne.s32.totalorder %v9663, %v9665
  %vm9668 = vcmp.ne.s32.totalorder %v9664, %v9666
  %vm9669 = vmpackc.low %vm9668, %vm9667
  %v9670 = vunpack.c.l.b16 %v9207
  %v9671 = vunpack.c.h.b16 %v9207
  %v9672 = vunpack.c.l.b16 0
  %v9673 = vunpack.c.h.b16 0
  %vm9674 = vcmp.ne.s32.totalorder %v9670, %v9672
  %vm9675 = vcmp.ne.s32.totalorder %v9671, %v9673
  %vm9676 = vmpackc.low %vm9675, %vm9674
  %v9677 = vunpack.c.l.b16 %v9216
  %v9678 = vunpack.c.h.b16 %v9216
  %v9679 = vunpack.c.l.b16 0
  %v9680 = vunpack.c.h.b16 0
  %vm9681 = vcmp.ne.s32.totalorder %v9677, %v9679
  %vm9682 = vcmp.ne.s32.totalorder %v9678, %v9680
  %vm9683 = vmpackc.low %vm9682, %vm9681
  %v9684 = vunpack.c.l.b16 %v9225
  %v9685 = vunpack.c.h.b16 %v9225
  %v9686 = vunpack.c.l.b16 0
  %v9687 = vunpack.c.h.b16 0
  %vm9688 = vcmp.ne.s32.totalorder %v9684, %v9686
  %vm9689 = vcmp.ne.s32.totalorder %v9685, %v9687
  %vm9690 = vmpackc.low %vm9689, %vm9688
  %v9691 = vunpack.c.l.b16 %v9234
  %v9692 = vunpack.c.h.b16 %v9234
  %v9693 = vunpack.c.l.b16 0
  %v9694 = vunpack.c.h.b16 0
  %vm9695 = vcmp.ne.s32.totalorder %v9691, %v9693
  %vm9696 = vcmp.ne.s32.totalorder %v9692, %v9694
  %vm9697 = vmpackc.low %vm9696, %vm9695
  %v9698 = vunpack.c.l.b16 %v9243
  %v9699 = vunpack.c.h.b16 %v9243
  %v9700 = vunpack.c.l.b16 0
  %v9701 = vunpack.c.h.b16 0
  %vm9702 = vcmp.ne.s32.totalorder %v9698, %v9700
  %vm9703 = vcmp.ne.s32.totalorder %v9699, %v9701
  %vm9704 = vmpackc.low %vm9703, %vm9702
  %v9705 = vunpack.c.l.b16 %v9252
  %v9706 = vunpack.c.h.b16 %v9252
  %v9707 = vunpack.c.l.b16 0
  %v9708 = vunpack.c.h.b16 0
  %vm9709 = vcmp.ne.s32.totalorder %v9705, %v9707
  %vm9710 = vcmp.ne.s32.totalorder %v9706, %v9708
  %vm9711 = vmpackc.low %vm9710, %vm9709
  %v9712 = vunpack.c.l.b16 %v9261
  %v9713 = vunpack.c.h.b16 %v9261
  %v9714 = vunpack.c.l.b16 0
  %v9715 = vunpack.c.h.b16 0
  %vm9716 = vcmp.ne.s32.totalorder %v9712, %v9714
  %vm9717 = vcmp.ne.s32.totalorder %v9713, %v9715
  %vm9718 = vmpackc.low %vm9717, %vm9716
  %v9719 = vunpack.c.l.b16 %v9270
  %v9720 = vunpack.c.h.b16 %v9270
  %v9721 = vunpack.c.l.b16 0
  %v9722 = vunpack.c.h.b16 0
  %vm9723 = vcmp.ne.s32.totalorder %v9719, %v9721
  %vm9724 = vcmp.ne.s32.totalorder %v9720, %v9722
  %vm9725 = vmpackc.low %vm9724, %vm9723
  %v9726 = vunpack.c.l.b16 %v9279
  %v9727 = vunpack.c.h.b16 %v9279
  %v9728 = vunpack.c.l.b16 0
  %v9729 = vunpack.c.h.b16 0
  %vm9730 = vcmp.ne.s32.totalorder %v9726, %v9728
  %vm9731 = vcmp.ne.s32.totalorder %v9727, %v9729
  %vm9732 = vmpackc.low %vm9731, %vm9730
  %v9733 = vunpack.c.l.b16 %v9288
  %v9734 = vunpack.c.h.b16 %v9288
  %v9735 = vunpack.c.l.b16 0
  %v9736 = vunpack.c.h.b16 0
  %vm9737 = vcmp.ne.s32.totalorder %v9733, %v9735
  %vm9738 = vcmp.ne.s32.totalorder %v9734, %v9736
  %vm9739 = vmpackc.low %vm9738, %vm9737
  %v9740 = vunpack.c.l.b16 %v9297
  %v9741 = vunpack.c.h.b16 %v9297
  %v9742 = vunpack.c.l.b16 0
  %v9743 = vunpack.c.h.b16 0
  %vm9744 = vcmp.ne.s32.totalorder %v9740, %v9742
  %vm9745 = vcmp.ne.s32.totalorder %v9741, %v9743
  %vm9746 = vmpackc.low %vm9745, %vm9744
  %v9747 = vunpack.c.l.b16 %v9298
  %v9748 = vunpack.c.h.b16 %v9298
  %v9749 = vunpack.c.l.b16 0
  %v9750 = vunpack.c.h.b16 0
  %vm9751 = vcmp.ne.s32.totalorder %v9747, %v9749
  %vm9752 = vcmp.ne.s32.totalorder %v9748, %v9750
  %vm9753 = vmpackc.low %vm9752, %vm9751
  %v9754 = vsel %vm9305, %v678, 0
  %v9755 = vsel %vm9312, %v679, 0
  %v9756 = vsel %vm9319, %v680, 0
  %v9757 = vsel %vm9326, %v681, 0
  %v9758 = vsel %vm9333, %v682, 0
  %v9759 = vsel %vm9340, %v683, 0
  %v9760 = vsel %vm9347, %v684, 0
  %v9761 = vsel %vm9354, %v685, 0
  %v9762 = vsel %vm9361, %v686, 0
  %v9763 = vsel %vm9368, %v687, 0
  %v9764 = vsel %vm9375, %v688, 0
  %v9765 = vsel %vm9382, %v689, 0
  %v9766 = vsel %vm9389, %v690, 0
  %v9767 = vsel %vm9396, %v691, 0
  %v9768 = vsel %vm9403, %v692, 0
  %v9769 = vsel %vm9410, %v693, 0
  %v9770 = vsel %vm9417, %v694, 0
  %v9771 = vsel %vm9424, %v695, 0
  %v9772 = vsel %vm9431, %v696, 0
  %v9773 = vsel %vm9438, %v697, 0
  %v9774 = vsel %vm9445, %v698, 0
  %v9775 = vsel %vm9452, %v699, 0
  %v9776 = vsel %vm9459, %v700, 0
  %v9777 = vsel %vm9466, %v701, 0
  %v9778 = vsel %vm9473, %v702, 0
  %v9779 = vsel %vm9480, %v703, 0
  %v9780 = vsel %vm9487, %v704, 0
  %v9781 = vsel %vm9494, %v705, 0
  %v9782 = vsel %vm9501, %v706, 0
  %v9783 = vsel %vm9508, %v707, 0
  %v9784 = vsel %vm9515, %v708, 0
  %v9785 = vsel %vm9522, %v709, 0
  %v9786 = vsel %vm9529, %v710, 0
  %v9787 = vsel %vm9536, %v711, 0
  %v9788 = vsel %vm9543, %v712, 0
  %v9789 = vsel %vm9550, %v713, 0
  %v9790 = vsel %vm9557, %v714, 0
  %v9791 = vsel %vm9564, %v715, 0
  %v9792 = vsel %vm9571, %v716, 0
  %v9793 = vsel %vm9578, %v717, 0
  %v9794 = vsel %vm9585, %v718, 0
  %v9795 = vsel %vm9592, %v719, 0
  %v9796 = vsel %vm9599, %v720, 0
  %v9797 = vsel %vm9606, %v721, 0
  %v9798 = vsel %vm9613, %v722, 0
  %v9799 = vsel %vm9620, %v723, 0
  %v9800 = vsel %vm9627, %v724, 0
  %v9801 = vsel %vm9634, %v725, 0
  %v9802 = vsel %vm9641, %v726, 0
  %v9803 = vsel %vm9648, %v727, 0
  %v9804 = vsel %vm9655, %v728, 0
  %v9805 = vsel %vm9662, %v729, 0
  %v9806 = vsel %vm9669, %v730, 0
  %v9807 = vsel %vm9676, %v731, 0
  %v9808 = vsel %vm9683, %v732, 0
  %v9809 = vsel %vm9690, %v733, 0
  %v9810 = vsel %vm9697, %v734, 0
  %v9811 = vsel %vm9704, %v735, 0
  %v9812 = vsel %vm9711, %v736, 0
  %v9813 = vsel %vm9718, %v737, 0
  %v9814 = vsel %vm9725, %v3896, 0
  %v9815 = vsel %vm9732, %v3897, 0
  %v9816 = vsel %vm9739, %v6666, 0
  %v9817 = vsel %vm9746, %v6667, 0
  %v9818 = vsel %vm9753, %v8403, 0
  %v9884 = vunpack.c.l.b16 %v2155
  %v9885 = vunpack.c.l.b16 %v2156
  %v9886 = vunpack.c.l.b16 %v2157
  %v9887 = vunpack.c.l.b16 %v2158
  %v9888 = vunpack.c.l.b16 %v2159
  %v9889 = vunpack.c.l.b16 %v2160
  %v9890 = vunpack.c.l.b16 %v2161
  %v9891 = vunpack.c.l.b16 %v2162
  %v9892 = vunpack.c.l.b16 %v2163
  %v9893 = vunpack.c.l.b16 %v2164
  %v9894 = vunpack.c.l.b16 %v2165
  %v9895 = vunpack.c.l.b16 %v2166
  %v9896 = vunpack.c.l.b16 %v2167
  %v9897 = vunpack.c.l.b16 %v2168
  %v9898 = vunpack.c.l.b16 %v2169
  %v9899 = vunpack.c.l.b16 %v2170
  %v9900 = vunpack.c.l.b16 %v2171
  %v9901 = vunpack.c.l.b16 %v2172
  %v9902 = vunpack.c.l.b16 %v2173
  %v9903 = vunpack.c.l.b16 %v2174
  %v9904 = vunpack.c.l.b16 %v2175
  %v9905 = vunpack.c.l.b16 %v2176
  %v9906 = vunpack.c.l.b16 %v2177
  %v9907 = vunpack.c.l.b16 %v2178
  %v9908 = vunpack.c.l.b16 %v2179
  %v9909 = vunpack.c.l.b16 %v2180
  %v9910 = vunpack.c.l.b16 %v2181
  %v9911 = vunpack.c.l.b16 %v2182
  %v9912 = vunpack.c.l.b16 %v2183
  %v9913 = vunpack.c.l.b16 %v2184
  %v9914 = vunpack.c.l.b16 %v2185
  %v9915 = vunpack.c.l.b16 %v2186
  %v9916 = vunpack.c.l.b16 %v2187
  %v9917 = vunpack.c.l.b16 %v2188
  %v9918 = vunpack.c.l.b16 %v2189
  %v9919 = vunpack.c.l.b16 %v2190
  %v9920 = vunpack.c.l.b16 %v2191
  %v9921 = vunpack.c.l.b16 %v2192
  %v9922 = vunpack.c.l.b16 %v2193
  %v9923 = vunpack.c.l.b16 %v2194
  %v9924 = vunpack.c.l.b16 %v2195
  %v9925 = vunpack.c.l.b16 %v2196
  %v9926 = vunpack.c.l.b16 %v2197
  %v9927 = vunpack.c.l.b16 %v2198
  %v9928 = vunpack.c.l.b16 %v2199
  %v9929 = vunpack.c.l.b16 %v2200
  %v9930 = vunpack.c.l.b16 %v2201
  %v9931 = vunpack.c.l.b16 %v2202
  %v9932 = vunpack.c.l.b16 %v2203
  %v9933 = vunpack.c.l.b16 %v2204
  %v9934 = vunpack.c.l.b16 %v2205
  %v9935 = vunpack.c.l.b16 %v2206
  %v9936 = vunpack.c.l.b16 %v2207
  %v9937 = vunpack.c.l.b16 %v2208
  %v9938 = vunpack.c.l.b16 %v2209
  %v9939 = vunpack.c.l.b16 %v2210
  %v9940 = vunpack.c.l.b16 %v2211
  %v9941 = vunpack.c.l.b16 %v2212
  %v9942 = vunpack.c.l.b16 %v2213
  %v9943 = vunpack.c.l.b16 %v2214
  %v9944 = vunpack.c.l.b16 %v2215
  %v9945 = vunpack.c.l.b16 %v2216
  %v9946 = vunpack.c.l.b16 %v2217
  %v9947 = vunpack.c.l.b16 %v2218
  %v9948 = vunpack.c.l.b16 %v2219
  %v9949 = vpack.c.b16 %v9885, %v9884
  %v9950 = vpack.c.b16 %v9887, %v9886
  %v9951 = vpack.c.b16 %v9889, %v9888
  %v9952 = vpack.c.b16 %v9891, %v9890
  %v9953 = vpack.c.b16 %v9893, %v9892
  %v9954 = vpack.c.b16 %v9895, %v9894
  %v9955 = vpack.c.b16 %v9897, %v9896
  %v9956 = vpack.c.b16 %v9899, %v9898
  %v9957 = vpack.c.b16 %v9901, %v9900
  %v9958 = vpack.c.b16 %v9903, %v9902
  %v9959 = vpack.c.b16 %v9905, %v9904
  %v9960 = vpack.c.b16 %v9907, %v9906
  %v9961 = vpack.c.b16 %v9909, %v9908
  %v9962 = vpack.c.b16 %v9911, %v9910
  %v9963 = vpack.c.b16 %v9913, %v9912
  %v9964 = vpack.c.b16 %v9915, %v9914
  %v9965 = vpack.c.b16 %v9917, %v9916
  %v9966 = vpack.c.b16 %v9919, %v9918
  %v9967 = vpack.c.b16 %v9921, %v9920
  %v9968 = vpack.c.b16 %v9923, %v9922
  %v9969 = vpack.c.b16 %v9925, %v9924
  %v9970 = vpack.c.b16 %v9927, %v9926
  %v9971 = vpack.c.b16 %v9929, %v9928
  %v9972 = vpack.c.b16 %v9931, %v9930
  %v9973 = vpack.c.b16 %v9933, %v9932
  %v9974 = vpack.c.b16 %v9935, %v9934
  %v9975 = vpack.c.b16 %v9937, %v9936
  %v9976 = vpack.c.b16 %v9939, %v9938
  %v9977 = vpack.c.b16 %v9941, %v9940
  %v9978 = vpack.c.b16 %v9943, %v9942
  %v9979 = vpack.c.b16 %v9945, %v9944
  %v9980 = vpack.c.b16 %v9947, %v9946
  %v9981 = vpack.c.b16 %v9948, %v9948
  %v10046 = vunpack.c.l.b16 %v2412
  %v10047 = vunpack.c.l.b16 %v2413
  %v10048 = vunpack.c.l.b16 %v2414
  %v10049 = vunpack.c.l.b16 %v2415
  %v10050 = vunpack.c.l.b16 %v2416
  %v10051 = vunpack.c.l.b16 %v2417
  %v10052 = vunpack.c.l.b16 %v2418
  %v10053 = vunpack.c.l.b16 %v2419
  %v10054 = vunpack.c.l.b16 %v2420
  %v10055 = vunpack.c.l.b16 %v2421
  %v10056 = vunpack.c.l.b16 %v2422
  %v10057 = vunpack.c.l.b16 %v2423
  %v10058 = vunpack.c.l.b16 %v2424
  %v10059 = vunpack.c.l.b16 %v2425
  %v10060 = vunpack.c.l.b16 %v2426
  %v10061 = vunpack.c.l.b16 %v2427
  %v10062 = vunpack.c.l.b16 %v2428
  %v10063 = vunpack.c.l.b16 %v2429
  %v10064 = vunpack.c.l.b16 %v2430
  %v10065 = vunpack.c.l.b16 %v2431
  %v10066 = vunpack.c.l.b16 %v2432
  %v10067 = vunpack.c.l.b16 %v2433
  %v10068 = vunpack.c.l.b16 %v2434
  %v10069 = vunpack.c.l.b16 %v2435
  %v10070 = vunpack.c.l.b16 %v2436
  %v10071 = vunpack.c.l.b16 %v2437
  %v10072 = vunpack.c.l.b16 %v2438
  %v10073 = vunpack.c.l.b16 %v2439
  %v10074 = vunpack.c.l.b16 %v2440
  %v10075 = vunpack.c.l.b16 %v2441
  %v10076 = vunpack.c.l.b16 %v2442
  %v10077 = vunpack.c.l.b16 %v2443
  %v10078 = vunpack.c.l.b16 %v2444
  %v10079 = vunpack.c.l.b16 %v2445
  %v10080 = vunpack.c.l.b16 %v2446
  %v10081 = vunpack.c.l.b16 %v2447
  %v10082 = vunpack.c.l.b16 %v2448
  %v10083 = vunpack.c.l.b16 %v2449
  %v10084 = vunpack.c.l.b16 %v2450
  %v10085 = vunpack.c.l.b16 %v2451
  %v10086 = vunpack.c.l.b16 %v2452
  %v10087 = vunpack.c.l.b16 %v2453
  %v10088 = vunpack.c.l.b16 %v2454
  %v10089 = vunpack.c.l.b16 %v2455
  %v10090 = vunpack.c.l.b16 %v2456
  %v10091 = vunpack.c.l.b16 %v2457
  %v10092 = vunpack.c.l.b16 %v2458
  %v10093 = vunpack.c.l.b16 %v2459
  %v10094 = vunpack.c.l.b16 %v2460
  %v10095 = vunpack.c.l.b16 %v2461
  %v10096 = vunpack.c.l.b16 %v2462
  %v10097 = vunpack.c.l.b16 %v2463
  %v10098 = vunpack.c.l.b16 %v2464
  %v10099 = vunpack.c.l.b16 %v2465
  %v10100 = vunpack.c.l.b16 %v2466
  %v10101 = vunpack.c.l.b16 %v2467
  %v10102 = vunpack.c.l.b16 %v2468
  %v10103 = vunpack.c.l.b16 %v2469
  %v10104 = vunpack.c.l.b16 %v2470
  %v10105 = vunpack.c.l.b16 %v2471
  %v10106 = vunpack.c.l.b16 %v2472
  %v10107 = vunpack.c.l.b16 %v2473
  %v10108 = vunpack.c.l.b16 %v2474
  %v10109 = vunpack.c.l.b16 %v2475
  %v10110 = vpack.c.b16 %v10047, %v10046
  %v10111 = vpack.c.b16 %v10049, %v10048
  %v10112 = vpack.c.b16 %v10051, %v10050
  %v10113 = vpack.c.b16 %v10053, %v10052
  %v10114 = vpack.c.b16 %v10055, %v10054
  %v10115 = vpack.c.b16 %v10057, %v10056
  %v10116 = vpack.c.b16 %v10059, %v10058
  %v10117 = vpack.c.b16 %v10061, %v10060
  %v10118 = vpack.c.b16 %v10063, %v10062
  %v10119 = vpack.c.b16 %v10065, %v10064
  %v10120 = vpack.c.b16 %v10067, %v10066
  %v10121 = vpack.c.b16 %v10069, %v10068
  %v10122 = vpack.c.b16 %v10071, %v10070
  %v10123 = vpack.c.b16 %v10073, %v10072
  %v10124 = vpack.c.b16 %v10075, %v10074
  %v10125 = vpack.c.b16 %v10077, %v10076
  %v10126 = vpack.c.b16 %v10079, %v10078
  %v10127 = vpack.c.b16 %v10081, %v10080
  %v10128 = vpack.c.b16 %v10083, %v10082
  %v10129 = vpack.c.b16 %v10085, %v10084
  %v10130 = vpack.c.b16 %v10087, %v10086
  %v10131 = vpack.c.b16 %v10089, %v10088
  %v10132 = vpack.c.b16 %v10091, %v10090
  %v10133 = vpack.c.b16 %v10093, %v10092
  %v10134 = vpack.c.b16 %v10095, %v10094
  %v10135 = vpack.c.b16 %v10097, %v10096
  %v10136 = vpack.c.b16 %v10099, %v10098
  %v10137 = vpack.c.b16 %v10101, %v10100
  %v10138 = vpack.c.b16 %v10103, %v10102
  %v10139 = vpack.c.b16 %v10105, %v10104
  %v10140 = vpack.c.b16 %v10107, %v10106
  %v10141 = vpack.c.b16 %v10109, %v10108
  %v10143 = vshrl.u32 %v10110, 16
  %v10145 = vrot.slane %v10143, 4
  %v10146 = vshll.u32 %v10110, 16
  %v10148 = vrot.slane %v10146, 5
  %v10149 = vor.u32 %v10145, %v10148
  %v10151 = vshrl.u32 %v10111, 16
  %v10153 = vrot.slane %v10151, 4
  %v10154 = vshll.u32 %v10111, 16
  %v10156 = vrot.slane %v10154, 5
  %v10157 = vor.u32 %v10153, %v10156
  %v10158 = vsel %vm1058, %v10149, %v10157
  %v10160 = vshrl.u32 %v10112, 16
  %v10162 = vrot.slane %v10160, 4
  %v10163 = vshll.u32 %v10112, 16
  %v10165 = vrot.slane %v10163, 5
  %v10166 = vor.u32 %v10162, %v10165
  %v10167 = vsel %vm1058, %v10157, %v10166
  %v10169 = vshrl.u32 %v10113, 16
  %v10171 = vrot.slane %v10169, 4
  %v10172 = vshll.u32 %v10113, 16
  %v10174 = vrot.slane %v10172, 5
  %v10175 = vor.u32 %v10171, %v10174
  %v10176 = vsel %vm1058, %v10166, %v10175
  %v10178 = vshrl.u32 %v10114, 16
  %v10180 = vrot.slane %v10178, 4
  %v10181 = vshll.u32 %v10114, 16
  %v10183 = vrot.slane %v10181, 5
  %v10184 = vor.u32 %v10180, %v10183
  %v10185 = vsel %vm1058, %v10175, %v10184
  %v10187 = vshrl.u32 %v10115, 16
  %v10189 = vrot.slane %v10187, 4
  %v10190 = vshll.u32 %v10115, 16
  %v10192 = vrot.slane %v10190, 5
  %v10193 = vor.u32 %v10189, %v10192
  %v10194 = vsel %vm1058, %v10184, %v10193
  %v10196 = vshrl.u32 %v10116, 16
  %v10198 = vrot.slane %v10196, 4
  %v10199 = vshll.u32 %v10116, 16
  %v10201 = vrot.slane %v10199, 5
  %v10202 = vor.u32 %v10198, %v10201
  %v10203 = vsel %vm1058, %v10193, %v10202
  %v10205 = vshrl.u32 %v10117, 16
  %v10207 = vrot.slane %v10205, 4
  %v10208 = vshll.u32 %v10117, 16
  %v10210 = vrot.slane %v10208, 5
  %v10211 = vor.u32 %v10207, %v10210
  %v10212 = vsel %vm1058, %v10202, %v10211
  %v10214 = vshrl.u32 %v10118, 16
  %v10216 = vrot.slane %v10214, 4
  %v10217 = vshll.u32 %v10118, 16
  %v10219 = vrot.slane %v10217, 5
  %v10220 = vor.u32 %v10216, %v10219
  %v10221 = vsel %vm1058, %v10211, %v10220
  %v10223 = vshrl.u32 %v10119, 16
  %v10225 = vrot.slane %v10223, 4
  %v10226 = vshll.u32 %v10119, 16
  %v10228 = vrot.slane %v10226, 5
  %v10229 = vor.u32 %v10225, %v10228
  %v10230 = vsel %vm1058, %v10220, %v10229
  %v10232 = vshrl.u32 %v10120, 16
  %v10234 = vrot.slane %v10232, 4
  %v10235 = vshll.u32 %v10120, 16
  %v10237 = vrot.slane %v10235, 5
  %v10238 = vor.u32 %v10234, %v10237
  %v10239 = vsel %vm1058, %v10229, %v10238
  %v10241 = vshrl.u32 %v10121, 16
  %v10243 = vrot.slane %v10241, 4
  %v10244 = vshll.u32 %v10121, 16
  %v10246 = vrot.slane %v10244, 5
  %v10247 = vor.u32 %v10243, %v10246
  %v10248 = vsel %vm1058, %v10238, %v10247
  %v10250 = vshrl.u32 %v10122, 16
  %v10252 = vrot.slane %v10250, 4
  %v10253 = vshll.u32 %v10122, 16
  %v10255 = vrot.slane %v10253, 5
  %v10256 = vor.u32 %v10252, %v10255
  %v10257 = vsel %vm1058, %v10247, %v10256
  %v10259 = vshrl.u32 %v10123, 16
  %v10261 = vrot.slane %v10259, 4
  %v10262 = vshll.u32 %v10123, 16
  %v10264 = vrot.slane %v10262, 5
  %v10265 = vor.u32 %v10261, %v10264
  %v10266 = vsel %vm1058, %v10256, %v10265
  %v10268 = vshrl.u32 %v10124, 16
  %v10270 = vrot.slane %v10268, 4
  %v10271 = vshll.u32 %v10124, 16
  %v10273 = vrot.slane %v10271, 5
  %v10274 = vor.u32 %v10270, %v10273
  %v10275 = vsel %vm1058, %v10265, %v10274
  %v10277 = vshrl.u32 %v10125, 16
  %v10279 = vrot.slane %v10277, 4
  %v10280 = vshll.u32 %v10125, 16
  %v10282 = vrot.slane %v10280, 5
  %v10283 = vor.u32 %v10279, %v10282
  %v10284 = vsel %vm1058, %v10274, %v10283
  %v10286 = vshrl.u32 %v10126, 16
  %v10288 = vrot.slane %v10286, 4
  %v10289 = vshll.u32 %v10126, 16
  %v10291 = vrot.slane %v10289, 5
  %v10292 = vor.u32 %v10288, %v10291
  %v10293 = vsel %vm1058, %v10283, %v10292
  %v10295 = vshrl.u32 %v10127, 16
  %v10297 = vrot.slane %v10295, 4
  %v10298 = vshll.u32 %v10127, 16
  %v10300 = vrot.slane %v10298, 5
  %v10301 = vor.u32 %v10297, %v10300
  %v10302 = vsel %vm1058, %v10292, %v10301
  %v10304 = vshrl.u32 %v10128, 16
  %v10306 = vrot.slane %v10304, 4
  %v10307 = vshll.u32 %v10128, 16
  %v10309 = vrot.slane %v10307, 5
  %v10310 = vor.u32 %v10306, %v10309
  %v10311 = vsel %vm1058, %v10301, %v10310
  %v10313 = vshrl.u32 %v10129, 16
  %v10315 = vrot.slane %v10313, 4
  %v10316 = vshll.u32 %v10129, 16
  %v10318 = vrot.slane %v10316, 5
  %v10319 = vor.u32 %v10315, %v10318
  %v10320 = vsel %vm1058, %v10310, %v10319
  %v10322 = vshrl.u32 %v10130, 16
  %v10324 = vrot.slane %v10322, 4
  %v10325 = vshll.u32 %v10130, 16
  %v10327 = vrot.slane %v10325, 5
  %v10328 = vor.u32 %v10324, %v10327
  %v10329 = vsel %vm1058, %v10319, %v10328
  %v10331 = vshrl.u32 %v10131, 16
  %v10333 = vrot.slane %v10331, 4
  %v10334 = vshll.u32 %v10131, 16
  %v10336 = vrot.slane %v10334, 5
  %v10337 = vor.u32 %v10333, %v10336
  %v10338 = vsel %vm1058, %v10328, %v10337
  %v10340 = vshrl.u32 %v10132, 16
  %v10342 = vrot.slane %v10340, 4
  %v10343 = vshll.u32 %v10132, 16
  %v10345 = vrot.slane %v10343, 5
  %v10346 = vor.u32 %v10342, %v10345
  %v10347 = vsel %vm1058, %v10337, %v10346
  %v10349 = vshrl.u32 %v10133, 16
  %v10351 = vrot.slane %v10349, 4
  %v10352 = vshll.u32 %v10133, 16
  %v10354 = vrot.slane %v10352, 5
  %v10355 = vor.u32 %v10351, %v10354
  %v10356 = vsel %vm1058, %v10346, %v10355
  %v10358 = vshrl.u32 %v10134, 16
  %v10360 = vrot.slane %v10358, 4
  %v10361 = vshll.u32 %v10134, 16
  %v10363 = vrot.slane %v10361, 5
  %v10364 = vor.u32 %v10360, %v10363
  %v10365 = vsel %vm1058, %v10355, %v10364
  %v10367 = vshrl.u32 %v10135, 16
  %v10369 = vrot.slane %v10367, 4
  %v10370 = vshll.u32 %v10135, 16
  %v10372 = vrot.slane %v10370, 5
  %v10373 = vor.u32 %v10369, %v10372
  %v10374 = vsel %vm1058, %v10364, %v10373
  %v10376 = vshrl.u32 %v10136, 16
  %v10378 = vrot.slane %v10376, 4
  %v10379 = vshll.u32 %v10136, 16
  %v10381 = vrot.slane %v10379, 5
  %v10382 = vor.u32 %v10378, %v10381
  %v10383 = vsel %vm1058, %v10373, %v10382
  %v10385 = vshrl.u32 %v10137, 16
  %v10387 = vrot.slane %v10385, 4
  %v10388 = vshll.u32 %v10137, 16
  %v10390 = vrot.slane %v10388, 5
  %v10391 = vor.u32 %v10387, %v10390
  %v10392 = vsel %vm1058, %v10382, %v10391
  %v10394 = vshrl.u32 %v10138, 16
  %v10396 = vrot.slane %v10394, 4
  %v10397 = vshll.u32 %v10138, 16
  %v10399 = vrot.slane %v10397, 5
  %v10400 = vor.u32 %v10396, %v10399
  %v10401 = vsel %vm1058, %v10391, %v10400
  %v10403 = vshrl.u32 %v10139, 16
  %v10405 = vrot.slane %v10403, 4
  %v10406 = vshll.u32 %v10139, 16
  %v10408 = vrot.slane %v10406, 5
  %v10409 = vor.u32 %v10405, %v10408
  %v10410 = vsel %vm1058, %v10400, %v10409
  %v10412 = vshrl.u32 %v10140, 16
  %v10414 = vrot.slane %v10412, 4
  %v10415 = vshll.u32 %v10140, 16
  %v10417 = vrot.slane %v10415, 5
  %v10418 = vor.u32 %v10414, %v10417
  %v10419 = vsel %vm1058, %v10409, %v10418
  %v10421 = vshrl.u32 %v10141, 16
  %v10423 = vrot.slane %v10421, 4
  %v10424 = vshll.u32 %v10141, 16
  %v10426 = vrot.slane %v10424, 5
  %v10427 = vor.u32 %v10423, %v10426
  %v10428 = vsel %vm1058, %v10418, %v10427
  %10429 = vrot.lane.b32.xlu0 %v10149, 4
  %v10430 = vpop.permute.xlu0 %10429
  %10431 = vrot.lane.b32.xlu0 %v10158, 4
  %v10432 = vpop.permute.xlu0 %10431
  %10433 = vrot.lane.b32.xlu0 %v10167, 4
  %v10434 = vpop.permute.xlu0 %10433
  %10435 = vrot.lane.b32.xlu0 %v10176, 4
  %v10436 = vpop.permute.xlu0 %10435
  %10437 = vrot.lane.b32.xlu0 %v10185, 4
  %v10438 = vpop.permute.xlu0 %10437
  %10439 = vrot.lane.b32.xlu0 %v10194, 4
  %v10440 = vpop.permute.xlu0 %10439
  %10441 = vrot.lane.b32.xlu0 %v10203, 4
  %v10442 = vpop.permute.xlu0 %10441
  %10443 = vrot.lane.b32.xlu0 %v10212, 4
  %v10444 = vpop.permute.xlu0 %10443
  %10445 = vrot.lane.b32.xlu0 %v10221, 4
  %v10446 = vpop.permute.xlu0 %10445
  %10447 = vrot.lane.b32.xlu0 %v10230, 4
  %v10448 = vpop.permute.xlu0 %10447
  %10449 = vrot.lane.b32.xlu0 %v10239, 4
  %v10450 = vpop.permute.xlu0 %10449
  %10451 = vrot.lane.b32.xlu0 %v10248, 4
  %v10452 = vpop.permute.xlu0 %10451
  %10453 = vrot.lane.b32.xlu0 %v10257, 4
  %v10454 = vpop.permute.xlu0 %10453
  %10455 = vrot.lane.b32.xlu0 %v10266, 4
  %v10456 = vpop.permute.xlu0 %10455
  %10457 = vrot.lane.b32.xlu0 %v10275, 4
  %v10458 = vpop.permute.xlu0 %10457
  %10459 = vrot.lane.b32.xlu0 %v10284, 4
  %v10460 = vpop.permute.xlu0 %10459
  %10461 = vrot.lane.b32.xlu0 %v10293, 4
  %v10462 = vpop.permute.xlu0 %10461
  %10463 = vrot.lane.b32.xlu0 %v10302, 4
  %v10464 = vpop.permute.xlu0 %10463
  %10465 = vrot.lane.b32.xlu0 %v10311, 4
  %v10466 = vpop.permute.xlu0 %10465
  %10467 = vrot.lane.b32.xlu0 %v10320, 4
  %v10468 = vpop.permute.xlu0 %10467
  %10469 = vrot.lane.b32.xlu0 %v10329, 4
  %v10470 = vpop.permute.xlu0 %10469
  %10471 = vrot.lane.b32.xlu0 %v10338, 4
  %v10472 = vpop.permute.xlu0 %10471
  %10473 = vrot.lane.b32.xlu0 %v10347, 4
  %v10474 = vpop.permute.xlu0 %10473
  %10475 = vrot.lane.b32.xlu0 %v10356, 4
  %v10476 = vpop.permute.xlu0 %10475
  %10477 = vrot.lane.b32.xlu0 %v10365, 4
  %v10478 = vpop.permute.xlu0 %10477
  %10479 = vrot.lane.b32.xlu0 %v10374, 4
  %v10480 = vpop.permute.xlu0 %10479
  %10481 = vrot.lane.b32.xlu0 %v10383, 4
  %v10482 = vpop.permute.xlu0 %10481
  %10483 = vrot.lane.b32.xlu0 %v10392, 4
  %v10484 = vpop.permute.xlu0 %10483
  %10485 = vrot.lane.b32.xlu0 %v10401, 4
  %v10486 = vpop.permute.xlu0 %10485
  %10487 = vrot.lane.b32.xlu0 %v10410, 4
  %v10488 = vpop.permute.xlu0 %10487
  %10489 = vrot.lane.b32.xlu0 %v10419, 4
  %v10490 = vpop.permute.xlu0 %10489
  %10491 = vrot.lane.b32.xlu0 %v10428, 4
  %v10492 = vpop.permute.xlu0 %10491
  %10493 = vrot.lane.b32.xlu0 %v10427, 4
  %v10494 = vpop.permute.xlu0 %10493
  %v10560 = vunpack.c.l.b16 %v3830
  %v10561 = vunpack.c.l.b16 %v3831
  %v10562 = vunpack.c.l.b16 %v3832
  %v10563 = vunpack.c.l.b16 %v3833
  %v10564 = vunpack.c.l.b16 %v3834
  %v10565 = vunpack.c.l.b16 %v3835
  %v10566 = vunpack.c.l.b16 %v3836
  %v10567 = vunpack.c.l.b16 %v3837
  %v10568 = vunpack.c.l.b16 %v3838
  %v10569 = vunpack.c.l.b16 %v3839
  %v10570 = vunpack.c.l.b16 %v3840
  %v10571 = vunpack.c.l.b16 %v3841
  %v10572 = vunpack.c.l.b16 %v3842
  %v10573 = vunpack.c.l.b16 %v3843
  %v10574 = vunpack.c.l.b16 %v3844
  %v10575 = vunpack.c.l.b16 %v3845
  %v10576 = vunpack.c.l.b16 %v3846
  %v10577 = vunpack.c.l.b16 %v3847
  %v10578 = vunpack.c.l.b16 %v3848
  %v10579 = vunpack.c.l.b16 %v3849
  %v10580 = vunpack.c.l.b16 %v3850
  %v10581 = vunpack.c.l.b16 %v3851
  %v10582 = vunpack.c.l.b16 %v3852
  %v10583 = vunpack.c.l.b16 %v3853
  %v10584 = vunpack.c.l.b16 %v3854
  %v10585 = vunpack.c.l.b16 %v3855
  %v10586 = vunpack.c.l.b16 %v3856
  %v10587 = vunpack.c.l.b16 %v3857
  %v10588 = vunpack.c.l.b16 %v3858
  %v10589 = vunpack.c.l.b16 %v3859
  %v10590 = vunpack.c.l.b16 %v3860
  %v10591 = vunpack.c.l.b16 %v3861
  %v10592 = vunpack.c.l.b16 %v3862
  %v10593 = vunpack.c.l.b16 %v3863
  %v10594 = vunpack.c.l.b16 %v3864
  %v10595 = vunpack.c.l.b16 %v3865
  %v10596 = vunpack.c.l.b16 %v3866
  %v10597 = vunpack.c.l.b16 %v3867
  %v10598 = vunpack.c.l.b16 %v3868
  %v10599 = vunpack.c.l.b16 %v3869
  %v10600 = vunpack.c.l.b16 %v3870
  %v10601 = vunpack.c.l.b16 %v3871
  %v10602 = vunpack.c.l.b16 %v3872
  %v10603 = vunpack.c.l.b16 %v3873
  %v10604 = vunpack.c.l.b16 %v3874
  %v10605 = vunpack.c.l.b16 %v3875
  %v10606 = vunpack.c.l.b16 %v3876
  %v10607 = vunpack.c.l.b16 %v3877
  %v10608 = vunpack.c.l.b16 %v3878
  %v10609 = vunpack.c.l.b16 %v3879
  %v10610 = vunpack.c.l.b16 %v3880
  %v10611 = vunpack.c.l.b16 %v3881
  %v10612 = vunpack.c.l.b16 %v3882
  %v10613 = vunpack.c.l.b16 %v3883
  %v10614 = vunpack.c.l.b16 %v3884
  %v10615 = vunpack.c.l.b16 %v3885
  %v10616 = vunpack.c.l.b16 %v3886
  %v10617 = vunpack.c.l.b16 %v3887
  %v10618 = vunpack.c.l.b16 %v3888
  %v10619 = vunpack.c.l.b16 %v3889
  %v10620 = vunpack.c.l.b16 %v3890
  %v10621 = vunpack.c.l.b16 %v3891
  %v10622 = vunpack.c.l.b16 %v3892
  %v10623 = vunpack.c.l.b16 %v3893
  %v10624 = vunpack.c.l.b16 %v3894
  %v10625 = vpack.c.b16 %v10561, %v10560
  %v10626 = vpack.c.b16 %v10563, %v10562
  %v10627 = vpack.c.b16 %v10565, %v10564
  %v10628 = vpack.c.b16 %v10567, %v10566
  %v10629 = vpack.c.b16 %v10569, %v10568
  %v10630 = vpack.c.b16 %v10571, %v10570
  %v10631 = vpack.c.b16 %v10573, %v10572
  %v10632 = vpack.c.b16 %v10575, %v10574
  %v10633 = vpack.c.b16 %v10577, %v10576
  %v10634 = vpack.c.b16 %v10579, %v10578
  %v10635 = vpack.c.b16 %v10581, %v10580
  %v10636 = vpack.c.b16 %v10583, %v10582
  %v10637 = vpack.c.b16 %v10585, %v10584
  %v10638 = vpack.c.b16 %v10587, %v10586
  %v10639 = vpack.c.b16 %v10589, %v10588
  %v10640 = vpack.c.b16 %v10591, %v10590
  %v10641 = vpack.c.b16 %v10593, %v10592
  %v10642 = vpack.c.b16 %v10595, %v10594
  %v10643 = vpack.c.b16 %v10597, %v10596
  %v10644 = vpack.c.b16 %v10599, %v10598
  %v10645 = vpack.c.b16 %v10601, %v10600
  %v10646 = vpack.c.b16 %v10603, %v10602
  %v10647 = vpack.c.b16 %v10605, %v10604
  %v10648 = vpack.c.b16 %v10607, %v10606
  %v10649 = vpack.c.b16 %v10609, %v10608
  %v10650 = vpack.c.b16 %v10611, %v10610
  %v10651 = vpack.c.b16 %v10613, %v10612
  %v10652 = vpack.c.b16 %v10615, %v10614
  %v10653 = vpack.c.b16 %v10617, %v10616
  %v10654 = vpack.c.b16 %v10619, %v10618
  %v10655 = vpack.c.b16 %v10621, %v10620
  %v10656 = vpack.c.b16 %v10623, %v10622
  %v10657 = vpack.c.b16 %v10624, %v10624
  %vm10658 = vcmask 1042432
  %v10659 = vrot.slane %v10625, 5
  %v10660 = vrot.slane %v10626, 5
  %v10661 = vsel %vm10658, %v10659, %v10660
  %v10662 = vrot.slane %v10627, 5
  %v10663 = vsel %vm10658, %v10660, %v10662
  %v10664 = vrot.slane %v10628, 5
  %v10665 = vsel %vm10658, %v10662, %v10664
  %v10666 = vrot.slane %v10629, 5
  %v10667 = vsel %vm10658, %v10664, %v10666
  %v10668 = vrot.slane %v10630, 5
  %v10669 = vsel %vm10658, %v10666, %v10668
  %v10670 = vrot.slane %v10631, 5
  %v10671 = vsel %vm10658, %v10668, %v10670
  %v10672 = vrot.slane %v10632, 5
  %v10673 = vsel %vm10658, %v10670, %v10672
  %v10674 = vrot.slane %v10633, 5
  %v10675 = vsel %vm10658, %v10672, %v10674
  %v10676 = vrot.slane %v10634, 5
  %v10677 = vsel %vm10658, %v10674, %v10676
  %v10678 = vrot.slane %v10635, 5
  %v10679 = vsel %vm10658, %v10676, %v10678
  %v10680 = vrot.slane %v10636, 5
  %v10681 = vsel %vm10658, %v10678, %v10680
  %v10682 = vrot.slane %v10637, 5
  %v10683 = vsel %vm10658, %v10680, %v10682
  %v10684 = vrot.slane %v10638, 5
  %v10685 = vsel %vm10658, %v10682, %v10684
  %v10686 = vrot.slane %v10639, 5
  %v10687 = vsel %vm10658, %v10684, %v10686
  %v10688 = vrot.slane %v10640, 5
  %v10689 = vsel %vm10658, %v10686, %v10688
  %v10690 = vrot.slane %v10641, 5
  %v10691 = vsel %vm10658, %v10688, %v10690
  %v10692 = vrot.slane %v10642, 5
  %v10693 = vsel %vm10658, %v10690, %v10692
  %v10694 = vrot.slane %v10643, 5
  %v10695 = vsel %vm10658, %v10692, %v10694
  %v10696 = vrot.slane %v10644, 5
  %v10697 = vsel %vm10658, %v10694, %v10696
  %v10698 = vrot.slane %v10645, 5
  %v10699 = vsel %vm10658, %v10696, %v10698
  %v10700 = vrot.slane %v10646, 5
  %v10701 = vsel %vm10658, %v10698, %v10700
  %v10702 = vrot.slane %v10647, 5
  %v10703 = vsel %vm10658, %v10700, %v10702
  %v10704 = vrot.slane %v10648, 5
  %v10705 = vsel %vm10658, %v10702, %v10704
  %v10706 = vrot.slane %v10649, 5
  %v10707 = vsel %vm10658, %v10704, %v10706
  %v10708 = vrot.slane %v10650, 5
  %v10709 = vsel %vm10658, %v10706, %v10708
  %v10710 = vrot.slane %v10651, 5
  %v10711 = vsel %vm10658, %v10708, %v10710
  %v10712 = vrot.slane %v10652, 5
  %v10713 = vsel %vm10658, %v10710, %v10712
  %v10714 = vrot.slane %v10653, 5
  %v10715 = vsel %vm10658, %v10712, %v10714
  %v10716 = vrot.slane %v10654, 5
  %v10717 = vsel %vm10658, %v10714, %v10716
  %v10718 = vrot.slane %v10655, 5
  %v10719 = vsel %vm10658, %v10716, %v10718
  %v10720 = vrot.slane %v10656, 5
  %v10721 = vsel %vm10658, %v10718, %v10720
  %v10722 = vrot.slane %v10657, 5
  %v10723 = vsel %vm10658, %v10720, %v10722
  %10724 = vrot.lane.b32.xlu0 %v10659, 8
  %v10725 = vpop.permute.xlu0 %10724
  %10726 = vrot.lane.b32.xlu0 %v10661, 8
  %v10727 = vpop.permute.xlu0 %10726
  %10728 = vrot.lane.b32.xlu0 %v10663, 8
  %v10729 = vpop.permute.xlu0 %10728
  %10730 = vrot.lane.b32.xlu0 %v10665, 8
  %v10731 = vpop.permute.xlu0 %10730
  %10732 = vrot.lane.b32.xlu0 %v10667, 8
  %v10733 = vpop.permute.xlu0 %10732
  %10734 = vrot.lane.b32.xlu0 %v10669, 8
  %v10735 = vpop.permute.xlu0 %10734
  %10736 = vrot.lane.b32.xlu0 %v10671, 8
  %v10737 = vpop.permute.xlu0 %10736
  %10738 = vrot.lane.b32.xlu0 %v10673, 8
  %v10739 = vpop.permute.xlu0 %10738
  %10740 = vrot.lane.b32.xlu0 %v10675, 8
  %v10741 = vpop.permute.xlu0 %10740
  %10742 = vrot.lane.b32.xlu0 %v10677, 8
  %v10743 = vpop.permute.xlu0 %10742
  %10744 = vrot.lane.b32.xlu0 %v10679, 8
  %v10745 = vpop.permute.xlu0 %10744
  %10746 = vrot.lane.b32.xlu0 %v10681, 8
  %v10747 = vpop.permute.xlu0 %10746
  %10748 = vrot.lane.b32.xlu0 %v10683, 8
  %v10749 = vpop.permute.xlu0 %10748
  %10750 = vrot.lane.b32.xlu0 %v10685, 8
  %v10751 = vpop.permute.xlu0 %10750
  %10752 = vrot.lane.b32.xlu0 %v10687, 8
  %v10753 = vpop.permute.xlu0 %10752
  %10754 = vrot.lane.b32.xlu0 %v10689, 8
  %v10755 = vpop.permute.xlu0 %10754
  %10756 = vrot.lane.b32.xlu0 %v10691, 8
  %v10757 = vpop.permute.xlu0 %10756
  %10758 = vrot.lane.b32.xlu0 %v10693, 8
  %v10759 = vpop.permute.xlu0 %10758
  %10760 = vrot.lane.b32.xlu0 %v10695, 8
  %v10761 = vpop.permute.xlu0 %10760
  %10762 = vrot.lane.b32.xlu0 %v10697, 8
  %v10763 = vpop.permute.xlu0 %10762
  %10764 = vrot.lane.b32.xlu0 %v10699, 8
  %v10765 = vpop.permute.xlu0 %10764
  %10766 = vrot.lane.b32.xlu0 %v10701, 8
  %v10767 = vpop.permute.xlu0 %10766
  %10768 = vrot.lane.b32.xlu0 %v10703, 8
  %v10769 = vpop.permute.xlu0 %10768
  %10770 = vrot.lane.b32.xlu0 %v10705, 8
  %v10771 = vpop.permute.xlu0 %10770
  %10772 = vrot.lane.b32.xlu0 %v10707, 8
  %v10773 = vpop.permute.xlu0 %10772
  %10774 = vrot.lane.b32.xlu0 %v10709, 8
  %v10775 = vpop.permute.xlu0 %10774
  %10776 = vrot.lane.b32.xlu0 %v10711, 8
  %v10777 = vpop.permute.xlu0 %10776
  %10778 = vrot.lane.b32.xlu0 %v10713, 8
  %v10779 = vpop.permute.xlu0 %10778
  %10780 = vrot.lane.b32.xlu0 %v10715, 8
  %v10781 = vpop.permute.xlu0 %10780
  %10782 = vrot.lane.b32.xlu0 %v10717, 8
  %v10783 = vpop.permute.xlu0 %10782
  %10784 = vrot.lane.b32.xlu0 %v10719, 8
  %v10785 = vpop.permute.xlu0 %10784
  %10786 = vrot.lane.b32.xlu0 %v10721, 8
  %v10787 = vpop.permute.xlu0 %10786
  %10788 = vrot.lane.b32.xlu0 %v10723, 8
  %v10789 = vpop.permute.xlu0 %10788
  %v10855 = vunpack.c.l.b16 %v5248
  %v10856 = vunpack.c.l.b16 %v5249
  %v10857 = vunpack.c.l.b16 %v5250
  %v10858 = vunpack.c.l.b16 %v5251
  %v10859 = vunpack.c.l.b16 %v5252
  %v10860 = vunpack.c.l.b16 %v5253
  %v10861 = vunpack.c.l.b16 %v5254
  %v10862 = vunpack.c.l.b16 %v5255
  %v10863 = vunpack.c.l.b16 %v5256
  %v10864 = vunpack.c.l.b16 %v5257
  %v10865 = vunpack.c.l.b16 %v5258
  %v10866 = vunpack.c.l.b16 %v5259
  %v10867 = vunpack.c.l.b16 %v5260
  %v10868 = vunpack.c.l.b16 %v5261
  %v10869 = vunpack.c.l.b16 %v5262
  %v10870 = vunpack.c.l.b16 %v5263
  %v10871 = vunpack.c.l.b16 %v5264
  %v10872 = vunpack.c.l.b16 %v5265
  %v10873 = vunpack.c.l.b16 %v5266
  %v10874 = vunpack.c.l.b16 %v5267
  %v10875 = vunpack.c.l.b16 %v5268
  %v10876 = vunpack.c.l.b16 %v5269
  %v10877 = vunpack.c.l.b16 %v5270
  %v10878 = vunpack.c.l.b16 %v5271
  %v10879 = vunpack.c.l.b16 %v5272
  %v10880 = vunpack.c.l.b16 %v5273
  %v10881 = vunpack.c.l.b16 %v5274
  %v10882 = vunpack.c.l.b16 %v5275
  %v10883 = vunpack.c.l.b16 %v5276
  %v10884 = vunpack.c.l.b16 %v5277
  %v10885 = vunpack.c.l.b16 %v5278
  %v10886 = vunpack.c.l.b16 %v5279
  %v10887 = vunpack.c.l.b16 %v5280
  %v10888 = vunpack.c.l.b16 %v5281
  %v10889 = vunpack.c.l.b16 %v5282
  %v10890 = vunpack.c.l.b16 %v5283
  %v10891 = vunpack.c.l.b16 %v5284
  %v10892 = vunpack.c.l.b16 %v5285
  %v10893 = vunpack.c.l.b16 %v5286
  %v10894 = vunpack.c.l.b16 %v5287
  %v10895 = vunpack.c.l.b16 %v5288
  %v10896 = vunpack.c.l.b16 %v5289
  %v10897 = vunpack.c.l.b16 %v5290
  %v10898 = vunpack.c.l.b16 %v5291
  %v10899 = vunpack.c.l.b16 %v5292
  %v10900 = vunpack.c.l.b16 %v5293
  %v10901 = vunpack.c.l.b16 %v5294
  %v10902 = vunpack.c.l.b16 %v5295
  %v10903 = vunpack.c.l.b16 %v5296
  %v10904 = vunpack.c.l.b16 %v5297
  %v10905 = vunpack.c.l.b16 %v5298
  %v10906 = vunpack.c.l.b16 %v5299
  %v10907 = vunpack.c.l.b16 %v5300
  %v10908 = vunpack.c.l.b16 %v5301
  %v10909 = vunpack.c.l.b16 %v5302
  %v10910 = vunpack.c.l.b16 %v5303
  %v10911 = vunpack.c.l.b16 %v5304
  %v10912 = vunpack.c.l.b16 %v5305
  %v10913 = vunpack.c.l.b16 %v5306
  %v10914 = vunpack.c.l.b16 %v5307
  %v10915 = vunpack.c.l.b16 %v5308
  %v10916 = vunpack.c.l.b16 %v5309
  %v10917 = vunpack.c.l.b16 %v5310
  %v10918 = vunpack.c.l.b16 %v5311
  %v10919 = vunpack.c.l.b16 %v5312
  %v10920 = vpack.c.b16 %v10856, %v10855
  %v10921 = vpack.c.b16 %v10858, %v10857
  %v10922 = vpack.c.b16 %v10860, %v10859
  %v10923 = vpack.c.b16 %v10862, %v10861
  %v10924 = vpack.c.b16 %v10864, %v10863
  %v10925 = vpack.c.b16 %v10866, %v10865
  %v10926 = vpack.c.b16 %v10868, %v10867
  %v10927 = vpack.c.b16 %v10870, %v10869
  %v10928 = vpack.c.b16 %v10872, %v10871
  %v10929 = vpack.c.b16 %v10874, %v10873
  %v10930 = vpack.c.b16 %v10876, %v10875
  %v10931 = vpack.c.b16 %v10878, %v10877
  %v10932 = vpack.c.b16 %v10880, %v10879
  %v10933 = vpack.c.b16 %v10882, %v10881
  %v10934 = vpack.c.b16 %v10884, %v10883
  %v10935 = vpack.c.b16 %v10886, %v10885
  %v10936 = vpack.c.b16 %v10888, %v10887
  %v10937 = vpack.c.b16 %v10890, %v10889
  %v10938 = vpack.c.b16 %v10892, %v10891
  %v10939 = vpack.c.b16 %v10894, %v10893
  %v10940 = vpack.c.b16 %v10896, %v10895
  %v10941 = vpack.c.b16 %v10898, %v10897
  %v10942 = vpack.c.b16 %v10900, %v10899
  %v10943 = vpack.c.b16 %v10902, %v10901
  %v10944 = vpack.c.b16 %v10904, %v10903
  %v10945 = vpack.c.b16 %v10906, %v10905
  %v10946 = vpack.c.b16 %v10908, %v10907
  %v10947 = vpack.c.b16 %v10910, %v10909
  %v10948 = vpack.c.b16 %v10912, %v10911
  %v10949 = vpack.c.b16 %v10914, %v10913
  %v10950 = vpack.c.b16 %v10916, %v10915
  %v10951 = vpack.c.b16 %v10918, %v10917
  %v10952 = vpack.c.b16 %v10919, %v10919
  %10953 = vrot.lane.b32.xlu0 %v10920, 12
  %v10954 = vpop.permute.xlu0 %10953
  %10955 = vrot.lane.b32.xlu0 %v10921, 12
  %v10956 = vpop.permute.xlu0 %10955
  %10957 = vrot.lane.b32.xlu0 %v10922, 12
  %v10958 = vpop.permute.xlu0 %10957
  %10959 = vrot.lane.b32.xlu0 %v10923, 12
  %v10960 = vpop.permute.xlu0 %10959
  %10961 = vrot.lane.b32.xlu0 %v10924, 12
  %v10962 = vpop.permute.xlu0 %10961
  %10963 = vrot.lane.b32.xlu0 %v10925, 12
  %v10964 = vpop.permute.xlu0 %10963
  %10965 = vrot.lane.b32.xlu0 %v10926, 12
  %v10966 = vpop.permute.xlu0 %10965
  %10967 = vrot.lane.b32.xlu0 %v10927, 12
  %v10968 = vpop.permute.xlu0 %10967
  %10969 = vrot.lane.b32.xlu0 %v10928, 12
  %v10970 = vpop.permute.xlu0 %10969
  %10971 = vrot.lane.b32.xlu0 %v10929, 12
  %v10972 = vpop.permute.xlu0 %10971
  %10973 = vrot.lane.b32.xlu0 %v10930, 12
  %v10974 = vpop.permute.xlu0 %10973
  %10975 = vrot.lane.b32.xlu0 %v10931, 12
  %v10976 = vpop.permute.xlu0 %10975
  %10977 = vrot.lane.b32.xlu0 %v10932, 12
  %v10978 = vpop.permute.xlu0 %10977
  %10979 = vrot.lane.b32.xlu0 %v10933, 12
  %v10980 = vpop.permute.xlu0 %10979
  %10981 = vrot.lane.b32.xlu0 %v10934, 12
  %v10982 = vpop.permute.xlu0 %10981
  %10983 = vrot.lane.b32.xlu0 %v10935, 12
  %v10984 = vpop.permute.xlu0 %10983
  %10985 = vrot.lane.b32.xlu0 %v10936, 12
  %v10986 = vpop.permute.xlu0 %10985
  %10987 = vrot.lane.b32.xlu0 %v10937, 12
  %v10988 = vpop.permute.xlu0 %10987
  %10989 = vrot.lane.b32.xlu0 %v10938, 12
  %v10990 = vpop.permute.xlu0 %10989
  %10991 = vrot.lane.b32.xlu0 %v10939, 12
  %v10992 = vpop.permute.xlu0 %10991
  %10993 = vrot.lane.b32.xlu0 %v10940, 12
  %v10994 = vpop.permute.xlu0 %10993
  %10995 = vrot.lane.b32.xlu0 %v10941, 12
  %v10996 = vpop.permute.xlu0 %10995
  %10997 = vrot.lane.b32.xlu0 %v10942, 12
  %v10998 = vpop.permute.xlu0 %10997
  %10999 = vrot.lane.b32.xlu0 %v10943, 12
  %v11000 = vpop.permute.xlu0 %10999
  %11001 = vrot.lane.b32.xlu0 %v10944, 12
  %v11002 = vpop.permute.xlu0 %11001
  %11003 = vrot.lane.b32.xlu0 %v10945, 12
  %v11004 = vpop.permute.xlu0 %11003
  %11005 = vrot.lane.b32.xlu0 %v10946, 12
  %v11006 = vpop.permute.xlu0 %11005
  %11007 = vrot.lane.b32.xlu0 %v10947, 12
  %v11008 = vpop.permute.xlu0 %11007
  %11009 = vrot.lane.b32.xlu0 %v10948, 12
  %v11010 = vpop.permute.xlu0 %11009
  %11011 = vrot.lane.b32.xlu0 %v10949, 12
  %v11012 = vpop.permute.xlu0 %11011
  %11013 = vrot.lane.b32.xlu0 %v10950, 12
  %v11014 = vpop.permute.xlu0 %11013
  %11015 = vrot.lane.b32.xlu0 %v10951, 12
  %v11016 = vpop.permute.xlu0 %11015
  %11017 = vrot.lane.b32.xlu0 %v10952, 12
  %v11018 = vpop.permute.xlu0 %11017
  %v11083 = vunpack.c.l.b16 %v676
  %v11084 = vunpack.c.l.b16 %v677
  %v11085 = vunpack.c.l.b16 %v678
  %v11086 = vunpack.c.l.b16 %v679
  %v11087 = vunpack.c.l.b16 %v680
  %v11088 = vunpack.c.l.b16 %v681
  %v11089 = vunpack.c.l.b16 %v682
  %v11090 = vunpack.c.l.b16 %v683
  %v11091 = vunpack.c.l.b16 %v684
  %v11092 = vunpack.c.l.b16 %v685
  %v11093 = vunpack.c.l.b16 %v686
  %v11094 = vunpack.c.l.b16 %v687
  %v11095 = vunpack.c.l.b16 %v688
  %v11096 = vunpack.c.l.b16 %v689
  %v11097 = vunpack.c.l.b16 %v690
  %v11098 = vunpack.c.l.b16 %v691
  %v11099 = vunpack.c.l.b16 %v692
  %v11100 = vunpack.c.l.b16 %v693
  %v11101 = vunpack.c.l.b16 %v694
  %v11102 = vunpack.c.l.b16 %v695
  %v11103 = vunpack.c.l.b16 %v696
  %v11104 = vunpack.c.l.b16 %v697
  %v11105 = vunpack.c.l.b16 %v698
  %v11106 = vunpack.c.l.b16 %v699
  %v11107 = vunpack.c.l.b16 %v700
  %v11108 = vunpack.c.l.b16 %v701
  %v11109 = vunpack.c.l.b16 %v702
  %v11110 = vunpack.c.l.b16 %v703
  %v11111 = vunpack.c.l.b16 %v704
  %v11112 = vunpack.c.l.b16 %v705
  %v11113 = vunpack.c.l.b16 %v706
  %v11114 = vunpack.c.l.b16 %v707
  %v11115 = vunpack.c.l.b16 %v708
  %v11116 = vunpack.c.l.b16 %v709
  %v11117 = vunpack.c.l.b16 %v710
  %v11118 = vunpack.c.l.b16 %v711
  %v11119 = vunpack.c.l.b16 %v712
  %v11120 = vunpack.c.l.b16 %v713
  %v11121 = vunpack.c.l.b16 %v714
  %v11122 = vunpack.c.l.b16 %v715
  %v11123 = vunpack.c.l.b16 %v716
  %v11124 = vunpack.c.l.b16 %v717
  %v11125 = vunpack.c.l.b16 %v718
  %v11126 = vunpack.c.l.b16 %v719
  %v11127 = vunpack.c.l.b16 %v720
  %v11128 = vunpack.c.l.b16 %v721
  %v11129 = vunpack.c.l.b16 %v722
  %v11130 = vunpack.c.l.b16 %v723
  %v11131 = vunpack.c.l.b16 %v724
  %v11132 = vunpack.c.l.b16 %v725
  %v11133 = vunpack.c.l.b16 %v726
  %v11134 = vunpack.c.l.b16 %v727
  %v11135 = vunpack.c.l.b16 %v728
  %v11136 = vunpack.c.l.b16 %v729
  %v11137 = vunpack.c.l.b16 %v730
  %v11138 = vunpack.c.l.b16 %v731
  %v11139 = vunpack.c.l.b16 %v732
  %v11140 = vunpack.c.l.b16 %v733
  %v11141 = vunpack.c.l.b16 %v734
  %v11142 = vunpack.c.l.b16 %v735
  %v11143 = vunpack.c.l.b16 %v736
  %v11144 = vunpack.c.l.b16 %v737
  %v11145 = vunpack.c.l.b16 %v3896
  %v11146 = vunpack.c.l.b16 %v3897
  %v11147 = vpack.c.b16 %v11084, %v11083
  %v11148 = vpack.c.b16 %v11086, %v11085
  %v11149 = vpack.c.b16 %v11088, %v11087
  %v11150 = vpack.c.b16 %v11090, %v11089
  %v11151 = vpack.c.b16 %v11092, %v11091
  %v11152 = vpack.c.b16 %v11094, %v11093
  %v11153 = vpack.c.b16 %v11096, %v11095
  %v11154 = vpack.c.b16 %v11098, %v11097
  %v11155 = vpack.c.b16 %v11100, %v11099
  %v11156 = vpack.c.b16 %v11102, %v11101
  %v11157 = vpack.c.b16 %v11104, %v11103
  %v11158 = vpack.c.b16 %v11106, %v11105
  %v11159 = vpack.c.b16 %v11108, %v11107
  %v11160 = vpack.c.b16 %v11110, %v11109
  %v11161 = vpack.c.b16 %v11112, %v11111
  %v11162 = vpack.c.b16 %v11114, %v11113
  %v11163 = vpack.c.b16 %v11116, %v11115
  %v11164 = vpack.c.b16 %v11118, %v11117
  %v11165 = vpack.c.b16 %v11120, %v11119
  %v11166 = vpack.c.b16 %v11122, %v11121
  %v11167 = vpack.c.b16 %v11124, %v11123
  %v11168 = vpack.c.b16 %v11126, %v11125
  %v11169 = vpack.c.b16 %v11128, %v11127
  %v11170 = vpack.c.b16 %v11130, %v11129
  %v11171 = vpack.c.b16 %v11132, %v11131
  %v11172 = vpack.c.b16 %v11134, %v11133
  %v11173 = vpack.c.b16 %v11136, %v11135
  %v11174 = vpack.c.b16 %v11138, %v11137
  %v11175 = vpack.c.b16 %v11140, %v11139
  %v11176 = vpack.c.b16 %v11142, %v11141
  %v11177 = vpack.c.b16 %v11144, %v11143
  %v11178 = vpack.c.b16 %v11146, %v11145
  %v11180 = vshrl.u32 %v11147, 16
  %v11182 = vrot.slane %v11180, 4
  %v11183 = vshll.u32 %v11147, 16
  %v11185 = vrot.slane %v11183, 5
  %v11186 = vor.u32 %v11182, %v11185
  %v11188 = vshrl.u32 %v11148, 16
  %v11190 = vrot.slane %v11188, 4
  %v11191 = vshll.u32 %v11148, 16
  %v11193 = vrot.slane %v11191, 5
  %v11194 = vor.u32 %v11190, %v11193
  %v11195 = vsel %vm1058, %v11186, %v11194
  %v11197 = vshrl.u32 %v11149, 16
  %v11199 = vrot.slane %v11197, 4
  %v11200 = vshll.u32 %v11149, 16
  %v11202 = vrot.slane %v11200, 5
  %v11203 = vor.u32 %v11199, %v11202
  %v11204 = vsel %vm1058, %v11194, %v11203
  %v11206 = vshrl.u32 %v11150, 16
  %v11208 = vrot.slane %v11206, 4
  %v11209 = vshll.u32 %v11150, 16
  %v11211 = vrot.slane %v11209, 5
  %v11212 = vor.u32 %v11208, %v11211
  %v11213 = vsel %vm1058, %v11203, %v11212
  %v11215 = vshrl.u32 %v11151, 16
  %v11217 = vrot.slane %v11215, 4
  %v11218 = vshll.u32 %v11151, 16
  %v11220 = vrot.slane %v11218, 5
  %v11221 = vor.u32 %v11217, %v11220
  %v11222 = vsel %vm1058, %v11212, %v11221
  %v11224 = vshrl.u32 %v11152, 16
  %v11226 = vrot.slane %v11224, 4
  %v11227 = vshll.u32 %v11152, 16
  %v11229 = vrot.slane %v11227, 5
  %v11230 = vor.u32 %v11226, %v11229
  %v11231 = vsel %vm1058, %v11221, %v11230
  %v11233 = vshrl.u32 %v11153, 16
  %v11235 = vrot.slane %v11233, 4
  %v11236 = vshll.u32 %v11153, 16
  %v11238 = vrot.slane %v11236, 5
  %v11239 = vor.u32 %v11235, %v11238
  %v11240 = vsel %vm1058, %v11230, %v11239
  %v11242 = vshrl.u32 %v11154, 16
  %v11244 = vrot.slane %v11242, 4
  %v11245 = vshll.u32 %v11154, 16
  %v11247 = vrot.slane %v11245, 5
  %v11248 = vor.u32 %v11244, %v11247
  %v11249 = vsel %vm1058, %v11239, %v11248
  %v11251 = vshrl.u32 %v11155, 16
  %v11253 = vrot.slane %v11251, 4
  %v11254 = vshll.u32 %v11155, 16
  %v11256 = vrot.slane %v11254, 5
  %v11257 = vor.u32 %v11253, %v11256
  %v11258 = vsel %vm1058, %v11248, %v11257
  %v11260 = vshrl.u32 %v11156, 16
  %v11262 = vrot.slane %v11260, 4
  %v11263 = vshll.u32 %v11156, 16
  %v11265 = vrot.slane %v11263, 5
  %v11266 = vor.u32 %v11262, %v11265
  %v11267 = vsel %vm1058, %v11257, %v11266
  %v11269 = vshrl.u32 %v11157, 16
  %v11271 = vrot.slane %v11269, 4
  %v11272 = vshll.u32 %v11157, 16
  %v11274 = vrot.slane %v11272, 5
  %v11275 = vor.u32 %v11271, %v11274
  %v11276 = vsel %vm1058, %v11266, %v11275
  %v11278 = vshrl.u32 %v11158, 16
  %v11280 = vrot.slane %v11278, 4
  %v11281 = vshll.u32 %v11158, 16
  %v11283 = vrot.slane %v11281, 5
  %v11284 = vor.u32 %v11280, %v11283
  %v11285 = vsel %vm1058, %v11275, %v11284
  %v11287 = vshrl.u32 %v11159, 16
  %v11289 = vrot.slane %v11287, 4
  %v11290 = vshll.u32 %v11159, 16
  %v11292 = vrot.slane %v11290, 5
  %v11293 = vor.u32 %v11289, %v11292
  %v11294 = vsel %vm1058, %v11284, %v11293
  %v11296 = vshrl.u32 %v11160, 16
  %v11298 = vrot.slane %v11296, 4
  %v11299 = vshll.u32 %v11160, 16
  %v11301 = vrot.slane %v11299, 5
  %v11302 = vor.u32 %v11298, %v11301
  %v11303 = vsel %vm1058, %v11293, %v11302
  %v11305 = vshrl.u32 %v11161, 16
  %v11307 = vrot.slane %v11305, 4
  %v11308 = vshll.u32 %v11161, 16
  %v11310 = vrot.slane %v11308, 5
  %v11311 = vor.u32 %v11307, %v11310
  %v11312 = vsel %vm1058, %v11302, %v11311
  %v11314 = vshrl.u32 %v11162, 16
  %v11316 = vrot.slane %v11314, 4
  %v11317 = vshll.u32 %v11162, 16
  %v11319 = vrot.slane %v11317, 5
  %v11320 = vor.u32 %v11316, %v11319
  %v11321 = vsel %vm1058, %v11311, %v11320
  %v11323 = vshrl.u32 %v11163, 16
  %v11325 = vrot.slane %v11323, 4
  %v11326 = vshll.u32 %v11163, 16
  %v11328 = vrot.slane %v11326, 5
  %v11329 = vor.u32 %v11325, %v11328
  %v11330 = vsel %vm1058, %v11320, %v11329
  %v11332 = vshrl.u32 %v11164, 16
  %v11334 = vrot.slane %v11332, 4
  %v11335 = vshll.u32 %v11164, 16
  %v11337 = vrot.slane %v11335, 5
  %v11338 = vor.u32 %v11334, %v11337
  %v11339 = vsel %vm1058, %v11329, %v11338
  %v11341 = vshrl.u32 %v11165, 16
  %v11343 = vrot.slane %v11341, 4
  %v11344 = vshll.u32 %v11165, 16
  %v11346 = vrot.slane %v11344, 5
  %v11347 = vor.u32 %v11343, %v11346
  %v11348 = vsel %vm1058, %v11338, %v11347
  %v11350 = vshrl.u32 %v11166, 16
  %v11352 = vrot.slane %v11350, 4
  %v11353 = vshll.u32 %v11166, 16
  %v11355 = vrot.slane %v11353, 5
  %v11356 = vor.u32 %v11352, %v11355
  %v11357 = vsel %vm1058, %v11347, %v11356
  %v11359 = vshrl.u32 %v11167, 16
  %v11361 = vrot.slane %v11359, 4
  %v11362 = vshll.u32 %v11167, 16
  %v11364 = vrot.slane %v11362, 5
  %v11365 = vor.u32 %v11361, %v11364
  %v11366 = vsel %vm1058, %v11356, %v11365
  %v11368 = vshrl.u32 %v11168, 16
  %v11370 = vrot.slane %v11368, 4
  %v11371 = vshll.u32 %v11168, 16
  %v11373 = vrot.slane %v11371, 5
  %v11374 = vor.u32 %v11370, %v11373
  %v11375 = vsel %vm1058, %v11365, %v11374
  %v11377 = vshrl.u32 %v11169, 16
  %v11379 = vrot.slane %v11377, 4
  %v11380 = vshll.u32 %v11169, 16
  %v11382 = vrot.slane %v11380, 5
  %v11383 = vor.u32 %v11379, %v11382
  %v11384 = vsel %vm1058, %v11374, %v11383
  %v11386 = vshrl.u32 %v11170, 16
  %v11388 = vrot.slane %v11386, 4
  %v11389 = vshll.u32 %v11170, 16
  %v11391 = vrot.slane %v11389, 5
  %v11392 = vor.u32 %v11388, %v11391
  %v11393 = vsel %vm1058, %v11383, %v11392
  %v11395 = vshrl.u32 %v11171, 16
  %v11397 = vrot.slane %v11395, 4
  %v11398 = vshll.u32 %v11171, 16
  %v11400 = vrot.slane %v11398, 5
  %v11401 = vor.u32 %v11397, %v11400
  %v11402 = vsel %vm1058, %v11392, %v11401
  %v11404 = vshrl.u32 %v11172, 16
  %v11406 = vrot.slane %v11404, 4
  %v11407 = vshll.u32 %v11172, 16
  %v11409 = vrot.slane %v11407, 5
  %v11410 = vor.u32 %v11406, %v11409
  %v11411 = vsel %vm1058, %v11401, %v11410
  %v11413 = vshrl.u32 %v11173, 16
  %v11415 = vrot.slane %v11413, 4
  %v11416 = vshll.u32 %v11173, 16
  %v11418 = vrot.slane %v11416, 5
  %v11419 = vor.u32 %v11415, %v11418
  %v11420 = vsel %vm1058, %v11410, %v11419
  %v11422 = vshrl.u32 %v11174, 16
  %v11424 = vrot.slane %v11422, 4
  %v11425 = vshll.u32 %v11174, 16
  %v11427 = vrot.slane %v11425, 5
  %v11428 = vor.u32 %v11424, %v11427
  %v11429 = vsel %vm1058, %v11419, %v11428
  %v11431 = vshrl.u32 %v11175, 16
  %v11433 = vrot.slane %v11431, 4
  %v11434 = vshll.u32 %v11175, 16
  %v11436 = vrot.slane %v11434, 5
  %v11437 = vor.u32 %v11433, %v11436
  %v11438 = vsel %vm1058, %v11428, %v11437
  %v11440 = vshrl.u32 %v11176, 16
  %v11442 = vrot.slane %v11440, 4
  %v11443 = vshll.u32 %v11176, 16
  %v11445 = vrot.slane %v11443, 5
  %v11446 = vor.u32 %v11442, %v11445
  %v11447 = vsel %vm1058, %v11437, %v11446
  %v11449 = vshrl.u32 %v11177, 16
  %v11451 = vrot.slane %v11449, 4
  %v11452 = vshll.u32 %v11177, 16
  %v11454 = vrot.slane %v11452, 5
  %v11455 = vor.u32 %v11451, %v11454
  %v11456 = vsel %vm1058, %v11446, %v11455
  %v11458 = vshrl.u32 %v11178, 16
  %v11460 = vrot.slane %v11458, 4
  %v11461 = vshll.u32 %v11178, 16
  %v11463 = vrot.slane %v11461, 5
  %v11464 = vor.u32 %v11460, %v11463
  %v11465 = vsel %vm1058, %v11455, %v11464
  %11466 = vrot.lane.b32.xlu0 %v11186, 16
  %v11467 = vpop.permute.xlu0 %11466
  %11468 = vrot.lane.b32.xlu0 %v11195, 16
  %v11469 = vpop.permute.xlu0 %11468
  %11470 = vrot.lane.b32.xlu0 %v11204, 16
  %v11471 = vpop.permute.xlu0 %11470
  %11472 = vrot.lane.b32.xlu0 %v11213, 16
  %v11473 = vpop.permute.xlu0 %11472
  %11474 = vrot.lane.b32.xlu0 %v11222, 16
  %v11475 = vpop.permute.xlu0 %11474
  %11476 = vrot.lane.b32.xlu0 %v11231, 16
  %v11477 = vpop.permute.xlu0 %11476
  %11478 = vrot.lane.b32.xlu0 %v11240, 16
  %v11479 = vpop.permute.xlu0 %11478
  %11480 = vrot.lane.b32.xlu0 %v11249, 16
  %v11481 = vpop.permute.xlu0 %11480
  %11482 = vrot.lane.b32.xlu0 %v11258, 16
  %v11483 = vpop.permute.xlu0 %11482
  %11484 = vrot.lane.b32.xlu0 %v11267, 16
  %v11485 = vpop.permute.xlu0 %11484
  %11486 = vrot.lane.b32.xlu0 %v11276, 16
  %v11487 = vpop.permute.xlu0 %11486
  %11488 = vrot.lane.b32.xlu0 %v11285, 16
  %v11489 = vpop.permute.xlu0 %11488
  %11490 = vrot.lane.b32.xlu0 %v11294, 16
  %v11491 = vpop.permute.xlu0 %11490
  %11492 = vrot.lane.b32.xlu0 %v11303, 16
  %v11493 = vpop.permute.xlu0 %11492
  %11494 = vrot.lane.b32.xlu0 %v11312, 16
  %v11495 = vpop.permute.xlu0 %11494
  %11496 = vrot.lane.b32.xlu0 %v11321, 16
  %v11497 = vpop.permute.xlu0 %11496
  %11498 = vrot.lane.b32.xlu0 %v11330, 16
  %v11499 = vpop.permute.xlu0 %11498
  %11500 = vrot.lane.b32.xlu0 %v11339, 16
  %v11501 = vpop.permute.xlu0 %11500
  %11502 = vrot.lane.b32.xlu0 %v11348, 16
  %v11503 = vpop.permute.xlu0 %11502
  %11504 = vrot.lane.b32.xlu0 %v11357, 16
  %v11505 = vpop.permute.xlu0 %11504
  %11506 = vrot.lane.b32.xlu0 %v11366, 16
  %v11507 = vpop.permute.xlu0 %11506
  %11508 = vrot.lane.b32.xlu0 %v11375, 16
  %v11509 = vpop.permute.xlu0 %11508
  %11510 = vrot.lane.b32.xlu0 %v11384, 16
  %v11511 = vpop.permute.xlu0 %11510
  %11512 = vrot.lane.b32.xlu0 %v11393, 16
  %v11513 = vpop.permute.xlu0 %11512
  %11514 = vrot.lane.b32.xlu0 %v11402, 16
  %v11515 = vpop.permute.xlu0 %11514
  %11516 = vrot.lane.b32.xlu0 %v11411, 16
  %v11517 = vpop.permute.xlu0 %11516
  %11518 = vrot.lane.b32.xlu0 %v11420, 16
  %v11519 = vpop.permute.xlu0 %11518
  %11520 = vrot.lane.b32.xlu0 %v11429, 16
  %v11521 = vpop.permute.xlu0 %11520
  %11522 = vrot.lane.b32.xlu0 %v11438, 16
  %v11523 = vpop.permute.xlu0 %11522
  %11524 = vrot.lane.b32.xlu0 %v11447, 16
  %v11525 = vpop.permute.xlu0 %11524
  %11526 = vrot.lane.b32.xlu0 %v11456, 16
  %v11527 = vpop.permute.xlu0 %11526
  %11528 = vrot.lane.b32.xlu0 %v11465, 16
  %v11529 = vpop.permute.xlu0 %11528
  %11530 = vrot.lane.b32.xlu0 %v11464, 16
  %v11531 = vpop.permute.xlu0 %11530
  %v11597 = vunpack.c.l.b16 %v6600
  %v11598 = vunpack.c.l.b16 %v6601
  %v11599 = vunpack.c.l.b16 %v6602
  %v11600 = vunpack.c.l.b16 %v6603
  %v11601 = vunpack.c.l.b16 %v6604
  %v11602 = vunpack.c.l.b16 %v6605
  %v11603 = vunpack.c.l.b16 %v6606
  %v11604 = vunpack.c.l.b16 %v6607
  %v11605 = vunpack.c.l.b16 %v6608
  %v11606 = vunpack.c.l.b16 %v6609
  %v11607 = vunpack.c.l.b16 %v6610
  %v11608 = vunpack.c.l.b16 %v6611
  %v11609 = vunpack.c.l.b16 %v6612
  %v11610 = vunpack.c.l.b16 %v6613
  %v11611 = vunpack.c.l.b16 %v6614
  %v11612 = vunpack.c.l.b16 %v6615
  %v11613 = vunpack.c.l.b16 %v6616
  %v11614 = vunpack.c.l.b16 %v6617
  %v11615 = vunpack.c.l.b16 %v6618
  %v11616 = vunpack.c.l.b16 %v6619
  %v11617 = vunpack.c.l.b16 %v6620
  %v11618 = vunpack.c.l.b16 %v6621
  %v11619 = vunpack.c.l.b16 %v6622
  %v11620 = vunpack.c.l.b16 %v6623
  %v11621 = vunpack.c.l.b16 %v6624
  %v11622 = vunpack.c.l.b16 %v6625
  %v11623 = vunpack.c.l.b16 %v6626
  %v11624 = vunpack.c.l.b16 %v6627
  %v11625 = vunpack.c.l.b16 %v6628
  %v11626 = vunpack.c.l.b16 %v6629
  %v11627 = vunpack.c.l.b16 %v6630
  %v11628 = vunpack.c.l.b16 %v6631
  %v11629 = vunpack.c.l.b16 %v6632
  %v11630 = vunpack.c.l.b16 %v6633
  %v11631 = vunpack.c.l.b16 %v6634
  %v11632 = vunpack.c.l.b16 %v6635
  %v11633 = vunpack.c.l.b16 %v6636
  %v11634 = vunpack.c.l.b16 %v6637
  %v11635 = vunpack.c.l.b16 %v6638
  %v11636 = vunpack.c.l.b16 %v6639
  %v11637 = vunpack.c.l.b16 %v6640
  %v11638 = vunpack.c.l.b16 %v6641
  %v11639 = vunpack.c.l.b16 %v6642
  %v11640 = vunpack.c.l.b16 %v6643
  %v11641 = vunpack.c.l.b16 %v6644
  %v11642 = vunpack.c.l.b16 %v6645
  %v11643 = vunpack.c.l.b16 %v6646
  %v11644 = vunpack.c.l.b16 %v6647
  %v11645 = vunpack.c.l.b16 %v6648
  %v11646 = vunpack.c.l.b16 %v6649
  %v11647 = vunpack.c.l.b16 %v6650
  %v11648 = vunpack.c.l.b16 %v6651
  %v11649 = vunpack.c.l.b16 %v6652
  %v11650 = vunpack.c.l.b16 %v6653
  %v11651 = vunpack.c.l.b16 %v6654
  %v11652 = vunpack.c.l.b16 %v6655
  %v11653 = vunpack.c.l.b16 %v6656
  %v11654 = vunpack.c.l.b16 %v6657
  %v11655 = vunpack.c.l.b16 %v6658
  %v11656 = vunpack.c.l.b16 %v6659
  %v11657 = vunpack.c.l.b16 %v6660
  %v11658 = vunpack.c.l.b16 %v6661
  %v11659 = vunpack.c.l.b16 %v6662
  %v11660 = vunpack.c.l.b16 %v6663
  %v11661 = vunpack.c.l.b16 %v6664
  %v11662 = vpack.c.b16 %v11598, %v11597
  %v11663 = vpack.c.b16 %v11600, %v11599
  %v11664 = vpack.c.b16 %v11602, %v11601
  %v11665 = vpack.c.b16 %v11604, %v11603
  %v11666 = vpack.c.b16 %v11606, %v11605
  %v11667 = vpack.c.b16 %v11608, %v11607
  %v11668 = vpack.c.b16 %v11610, %v11609
  %v11669 = vpack.c.b16 %v11612, %v11611
  %v11670 = vpack.c.b16 %v11614, %v11613
  %v11671 = vpack.c.b16 %v11616, %v11615
  %v11672 = vpack.c.b16 %v11618, %v11617
  %v11673 = vpack.c.b16 %v11620, %v11619
  %v11674 = vpack.c.b16 %v11622, %v11621
  %v11675 = vpack.c.b16 %v11624, %v11623
  %v11676 = vpack.c.b16 %v11626, %v11625
  %v11677 = vpack.c.b16 %v11628, %v11627
  %v11678 = vpack.c.b16 %v11630, %v11629
  %v11679 = vpack.c.b16 %v11632, %v11631
  %v11680 = vpack.c.b16 %v11634, %v11633
  %v11681 = vpack.c.b16 %v11636, %v11635
  %v11682 = vpack.c.b16 %v11638, %v11637
  %v11683 = vpack.c.b16 %v11640, %v11639
  %v11684 = vpack.c.b16 %v11642, %v11641
  %v11685 = vpack.c.b16 %v11644, %v11643
  %v11686 = vpack.c.b16 %v11646, %v11645
  %v11687 = vpack.c.b16 %v11648, %v11647
  %v11688 = vpack.c.b16 %v11650, %v11649
  %v11689 = vpack.c.b16 %v11652, %v11651
  %v11690 = vpack.c.b16 %v11654, %v11653
  %v11691 = vpack.c.b16 %v11656, %v11655
  %v11692 = vpack.c.b16 %v11658, %v11657
  %v11693 = vpack.c.b16 %v11660, %v11659
  %v11694 = vpack.c.b16 %v11661, %v11661
  %v11695 = vrot.slane %v11662, 5
  %v11696 = vrot.slane %v11663, 5
  %v11697 = vsel %vm10658, %v11695, %v11696
  %v11698 = vrot.slane %v11664, 5
  %v11699 = vsel %vm10658, %v11696, %v11698
  %v11700 = vrot.slane %v11665, 5
  %v11701 = vsel %vm10658, %v11698, %v11700
  %v11702 = vrot.slane %v11666, 5
  %v11703 = vsel %vm10658, %v11700, %v11702
  %v11704 = vrot.slane %v11667, 5
  %v11705 = vsel %vm10658, %v11702, %v11704
  %v11706 = vrot.slane %v11668, 5
  %v11707 = vsel %vm10658, %v11704, %v11706
  %v11708 = vrot.slane %v11669, 5
  %v11709 = vsel %vm10658, %v11706, %v11708
  %v11710 = vrot.slane %v11670, 5
  %v11711 = vsel %vm10658, %v11708, %v11710
  %v11712 = vrot.slane %v11671, 5
  %v11713 = vsel %vm10658, %v11710, %v11712
  %v11714 = vrot.slane %v11672, 5
  %v11715 = vsel %vm10658, %v11712, %v11714
  %v11716 = vrot.slane %v11673, 5
  %v11717 = vsel %vm10658, %v11714, %v11716
  %v11718 = vrot.slane %v11674, 5
  %v11719 = vsel %vm10658, %v11716, %v11718
  %v11720 = vrot.slane %v11675, 5
  %v11721 = vsel %vm10658, %v11718, %v11720
  %v11722 = vrot.slane %v11676, 5
  %v11723 = vsel %vm10658, %v11720, %v11722
  %v11724 = vrot.slane %v11677, 5
  %v11725 = vsel %vm10658, %v11722, %v11724
  %v11726 = vrot.slane %v11678, 5
  %v11727 = vsel %vm10658, %v11724, %v11726
  %v11728 = vrot.slane %v11679, 5
  %v11729 = vsel %vm10658, %v11726, %v11728
  %v11730 = vrot.slane %v11680, 5
  %v11731 = vsel %vm10658, %v11728, %v11730
  %v11732 = vrot.slane %v11681, 5
  %v11733 = vsel %vm10658, %v11730, %v11732
  %v11734 = vrot.slane %v11682, 5
  %v11735 = vsel %vm10658, %v11732, %v11734
  %v11736 = vrot.slane %v11683, 5
  %v11737 = vsel %vm10658, %v11734, %v11736
  %v11738 = vrot.slane %v11684, 5
  %v11739 = vsel %vm10658, %v11736, %v11738
  %v11740 = vrot.slane %v11685, 5
  %v11741 = vsel %vm10658, %v11738, %v11740
  %v11742 = vrot.slane %v11686, 5
  %v11743 = vsel %vm10658, %v11740, %v11742
  %v11744 = vrot.slane %v11687, 5
  %v11745 = vsel %vm10658, %v11742, %v11744
  %v11746 = vrot.slane %v11688, 5
  %v11747 = vsel %vm10658, %v11744, %v11746
  %v11748 = vrot.slane %v11689, 5
  %v11749 = vsel %vm10658, %v11746, %v11748
  %v11750 = vrot.slane %v11690, 5
  %v11751 = vsel %vm10658, %v11748, %v11750
  %v11752 = vrot.slane %v11691, 5
  %v11753 = vsel %vm10658, %v11750, %v11752
  %v11754 = vrot.slane %v11692, 5
  %v11755 = vsel %vm10658, %v11752, %v11754
  %v11756 = vrot.slane %v11693, 5
  %v11757 = vsel %vm10658, %v11754, %v11756
  %v11758 = vrot.slane %v11694, 5
  %v11759 = vsel %vm10658, %v11756, %v11758
  %11760 = vrot.lane.b32.xlu0 %v11695, 20
  %v11761 = vpop.permute.xlu0 %11760
  %11762 = vrot.lane.b32.xlu0 %v11697, 20
  %v11763 = vpop.permute.xlu0 %11762
  %11764 = vrot.lane.b32.xlu0 %v11699, 20
  %v11765 = vpop.permute.xlu0 %11764
  %11766 = vrot.lane.b32.xlu0 %v11701, 20
  %v11767 = vpop.permute.xlu0 %11766
  %11768 = vrot.lane.b32.xlu0 %v11703, 20
  %v11769 = vpop.permute.xlu0 %11768
  %11770 = vrot.lane.b32.xlu0 %v11705, 20
  %v11771 = vpop.permute.xlu0 %11770
  %11772 = vrot.lane.b32.xlu0 %v11707, 20
  %v11773 = vpop.permute.xlu0 %11772
  %11774 = vrot.lane.b32.xlu0 %v11709, 20
  %v11775 = vpop.permute.xlu0 %11774
  %11776 = vrot.lane.b32.xlu0 %v11711, 20
  %v11777 = vpop.permute.xlu0 %11776
  %11778 = vrot.lane.b32.xlu0 %v11713, 20
  %v11779 = vpop.permute.xlu0 %11778
  %11780 = vrot.lane.b32.xlu0 %v11715, 20
  %v11781 = vpop.permute.xlu0 %11780
  %11782 = vrot.lane.b32.xlu0 %v11717, 20
  %v11783 = vpop.permute.xlu0 %11782
  %11784 = vrot.lane.b32.xlu0 %v11719, 20
  %v11785 = vpop.permute.xlu0 %11784
  %11786 = vrot.lane.b32.xlu0 %v11721, 20
  %v11787 = vpop.permute.xlu0 %11786
  %11788 = vrot.lane.b32.xlu0 %v11723, 20
  %v11789 = vpop.permute.xlu0 %11788
  %11790 = vrot.lane.b32.xlu0 %v11725, 20
  %v11791 = vpop.permute.xlu0 %11790
  %11792 = vrot.lane.b32.xlu0 %v11727, 20
  %v11793 = vpop.permute.xlu0 %11792
  %11794 = vrot.lane.b32.xlu0 %v11729, 20
  %v11795 = vpop.permute.xlu0 %11794
  %11796 = vrot.lane.b32.xlu0 %v11731, 20
  %v11797 = vpop.permute.xlu0 %11796
  %11798 = vrot.lane.b32.xlu0 %v11733, 20
  %v11799 = vpop.permute.xlu0 %11798
  %11800 = vrot.lane.b32.xlu0 %v11735, 20
  %v11801 = vpop.permute.xlu0 %11800
  %11802 = vrot.lane.b32.xlu0 %v11737, 20
  %v11803 = vpop.permute.xlu0 %11802
  %11804 = vrot.lane.b32.xlu0 %v11739, 20
  %v11805 = vpop.permute.xlu0 %11804
  %11806 = vrot.lane.b32.xlu0 %v11741, 20
  %v11807 = vpop.permute.xlu0 %11806
  %11808 = vrot.lane.b32.xlu0 %v11743, 20
  %v11809 = vpop.permute.xlu0 %11808
  %11810 = vrot.lane.b32.xlu0 %v11745, 20
  %v11811 = vpop.permute.xlu0 %11810
  %11812 = vrot.lane.b32.xlu0 %v11747, 20
  %v11813 = vpop.permute.xlu0 %11812
  %11814 = vrot.lane.b32.xlu0 %v11749, 20
  %v11815 = vpop.permute.xlu0 %11814
  %11816 = vrot.lane.b32.xlu0 %v11751, 20
  %v11817 = vpop.permute.xlu0 %11816
  %11818 = vrot.lane.b32.xlu0 %v11753, 20
  %v11819 = vpop.permute.xlu0 %11818
  %11820 = vrot.lane.b32.xlu0 %v11755, 20
  %v11821 = vpop.permute.xlu0 %11820
  %11822 = vrot.lane.b32.xlu0 %v11757, 20
  %v11823 = vpop.permute.xlu0 %11822
  %11824 = vrot.lane.b32.xlu0 %v11759, 20
  %v11825 = vpop.permute.xlu0 %11824
  %v11891 = vunpack.c.l.b16 %v8082
  %v11892 = vunpack.c.l.b16 %v8083
  %v11893 = vunpack.c.l.b16 %v8084
  %v11894 = vunpack.c.l.b16 %v8085
  %v11895 = vunpack.c.l.b16 %v8086
  %v11896 = vunpack.c.l.b16 %v8087
  %v11897 = vunpack.c.l.b16 %v8088
  %v11898 = vunpack.c.l.b16 %v8089
  %v11899 = vunpack.c.l.b16 %v8090
  %v11900 = vunpack.c.l.b16 %v8091
  %v11901 = vunpack.c.l.b16 %v8092
  %v11902 = vunpack.c.l.b16 %v8093
  %v11903 = vunpack.c.l.b16 %v8094
  %v11904 = vunpack.c.l.b16 %v8095
  %v11905 = vunpack.c.l.b16 %v8096
  %v11906 = vunpack.c.l.b16 %v8097
  %v11907 = vunpack.c.l.b16 %v8098
  %v11908 = vunpack.c.l.b16 %v8099
  %v11909 = vunpack.c.l.b16 %v8100
  %v11910 = vunpack.c.l.b16 %v8101
  %v11911 = vunpack.c.l.b16 %v8102
  %v11912 = vunpack.c.l.b16 %v8103
  %v11913 = vunpack.c.l.b16 %v8104
  %v11914 = vunpack.c.l.b16 %v8105
  %v11915 = vunpack.c.l.b16 %v8106
  %v11916 = vunpack.c.l.b16 %v8107
  %v11917 = vunpack.c.l.b16 %v8108
  %v11918 = vunpack.c.l.b16 %v8109
  %v11919 = vunpack.c.l.b16 %v8110
  %v11920 = vunpack.c.l.b16 %v8111
  %v11921 = vunpack.c.l.b16 %v8112
  %v11922 = vunpack.c.l.b16 %v8113
  %v11923 = vunpack.c.l.b16 %v8114
  %v11924 = vunpack.c.l.b16 %v8115
  %v11925 = vunpack.c.l.b16 %v8116
  %v11926 = vunpack.c.l.b16 %v8117
  %v11927 = vunpack.c.l.b16 %v8118
  %v11928 = vunpack.c.l.b16 %v8119
  %v11929 = vunpack.c.l.b16 %v8120
  %v11930 = vunpack.c.l.b16 %v8121
  %v11931 = vunpack.c.l.b16 %v8122
  %v11932 = vunpack.c.l.b16 %v8123
  %v11933 = vunpack.c.l.b16 %v8124
  %v11934 = vunpack.c.l.b16 %v8125
  %v11935 = vunpack.c.l.b16 %v8126
  %v11936 = vunpack.c.l.b16 %v8127
  %v11937 = vunpack.c.l.b16 %v8128
  %v11938 = vunpack.c.l.b16 %v8129
  %v11939 = vunpack.c.l.b16 %v8130
  %v11940 = vunpack.c.l.b16 %v8131
  %v11941 = vunpack.c.l.b16 %v8132
  %v11942 = vunpack.c.l.b16 %v8133
  %v11943 = vunpack.c.l.b16 %v8134
  %v11944 = vunpack.c.l.b16 %v8135
  %v11945 = vunpack.c.l.b16 %v8136
  %v11946 = vunpack.c.l.b16 %v8137
  %v11947 = vunpack.c.l.b16 %v8138
  %v11948 = vunpack.c.l.b16 %v8139
  %v11949 = vunpack.c.l.b16 %v8140
  %v11950 = vunpack.c.l.b16 %v8141
  %v11951 = vunpack.c.l.b16 %v8142
  %v11952 = vunpack.c.l.b16 %v8143
  %v11953 = vunpack.c.l.b16 %v8144
  %v11954 = vunpack.c.l.b16 %v8145
  %v11955 = vunpack.c.l.b16 %v8146
  %v11956 = vpack.c.b16 %v11892, %v11891
  %v11957 = vpack.c.b16 %v11894, %v11893
  %v11958 = vpack.c.b16 %v11896, %v11895
  %v11959 = vpack.c.b16 %v11898, %v11897
  %v11960 = vpack.c.b16 %v11900, %v11899
  %v11961 = vpack.c.b16 %v11902, %v11901
  %v11962 = vpack.c.b16 %v11904, %v11903
  %v11963 = vpack.c.b16 %v11906, %v11905
  %v11964 = vpack.c.b16 %v11908, %v11907
  %v11965 = vpack.c.b16 %v11910, %v11909
  %v11966 = vpack.c.b16 %v11912, %v11911
  %v11967 = vpack.c.b16 %v11914, %v11913
  %v11968 = vpack.c.b16 %v11916, %v11915
  %v11969 = vpack.c.b16 %v11918, %v11917
  %v11970 = vpack.c.b16 %v11920, %v11919
  %v11971 = vpack.c.b16 %v11922, %v11921
  %v11972 = vpack.c.b16 %v11924, %v11923
  %v11973 = vpack.c.b16 %v11926, %v11925
  %v11974 = vpack.c.b16 %v11928, %v11927
  %v11975 = vpack.c.b16 %v11930, %v11929
  %v11976 = vpack.c.b16 %v11932, %v11931
  %v11977 = vpack.c.b16 %v11934, %v11933
  %v11978 = vpack.c.b16 %v11936, %v11935
  %v11979 = vpack.c.b16 %v11938, %v11937
  %v11980 = vpack.c.b16 %v11940, %v11939
  %v11981 = vpack.c.b16 %v11942, %v11941
  %v11982 = vpack.c.b16 %v11944, %v11943
  %v11983 = vpack.c.b16 %v11946, %v11945
  %v11984 = vpack.c.b16 %v11948, %v11947
  %v11985 = vpack.c.b16 %v11950, %v11949
  %v11986 = vpack.c.b16 %v11952, %v11951
  %v11987 = vpack.c.b16 %v11954, %v11953
  %v11988 = vpack.c.b16 %v11955, %v11955
  %11989 = vrot.lane.b32.xlu0 %v11956, 24
  %v11990 = vpop.permute.xlu0 %11989
  %11991 = vrot.lane.b32.xlu0 %v11957, 24
  %v11992 = vpop.permute.xlu0 %11991
  %11993 = vrot.lane.b32.xlu0 %v11958, 24
  %v11994 = vpop.permute.xlu0 %11993
  %11995 = vrot.lane.b32.xlu0 %v11959, 24
  %v11996 = vpop.permute.xlu0 %11995
  %11997 = vrot.lane.b32.xlu0 %v11960, 24
  %v11998 = vpop.permute.xlu0 %11997
  %11999 = vrot.lane.b32.xlu0 %v11961, 24
  %v12000 = vpop.permute.xlu0 %11999
  %12001 = vrot.lane.b32.xlu0 %v11962, 24
  %v12002 = vpop.permute.xlu0 %12001
  %12003 = vrot.lane.b32.xlu0 %v11963, 24
  %v12004 = vpop.permute.xlu0 %12003
  %12005 = vrot.lane.b32.xlu0 %v11964, 24
  %v12006 = vpop.permute.xlu0 %12005
  %12007 = vrot.lane.b32.xlu0 %v11965, 24
  %v12008 = vpop.permute.xlu0 %12007
  %12009 = vrot.lane.b32.xlu0 %v11966, 24
  %v12010 = vpop.permute.xlu0 %12009
  %12011 = vrot.lane.b32.xlu0 %v11967, 24
  %v12012 = vpop.permute.xlu0 %12011
  %12013 = vrot.lane.b32.xlu0 %v11968, 24
  %v12014 = vpop.permute.xlu0 %12013
  %12015 = vrot.lane.b32.xlu0 %v11969, 24
  %v12016 = vpop.permute.xlu0 %12015
  %12017 = vrot.lane.b32.xlu0 %v11970, 24
  %v12018 = vpop.permute.xlu0 %12017
  %12019 = vrot.lane.b32.xlu0 %v11971, 24
  %v12020 = vpop.permute.xlu0 %12019
  %12021 = vrot.lane.b32.xlu0 %v11972, 24
  %v12022 = vpop.permute.xlu0 %12021
  %12023 = vrot.lane.b32.xlu0 %v11973, 24
  %v12024 = vpop.permute.xlu0 %12023
  %12025 = vrot.lane.b32.xlu0 %v11974, 24
  %v12026 = vpop.permute.xlu0 %12025
  %12027 = vrot.lane.b32.xlu0 %v11975, 24
  %v12028 = vpop.permute.xlu0 %12027
  %12029 = vrot.lane.b32.xlu0 %v11976, 24
  %v12030 = vpop.permute.xlu0 %12029
  %12031 = vrot.lane.b32.xlu0 %v11977, 24
  %v12032 = vpop.permute.xlu0 %12031
  %12033 = vrot.lane.b32.xlu0 %v11978, 24
  %v12034 = vpop.permute.xlu0 %12033
  %12035 = vrot.lane.b32.xlu0 %v11979, 24
  %v12036 = vpop.permute.xlu0 %12035
  %12037 = vrot.lane.b32.xlu0 %v11980, 24
  %v12038 = vpop.permute.xlu0 %12037
  %12039 = vrot.lane.b32.xlu0 %v11981, 24
  %v12040 = vpop.permute.xlu0 %12039
  %12041 = vrot.lane.b32.xlu0 %v11982, 24
  %v12042 = vpop.permute.xlu0 %12041
  %12043 = vrot.lane.b32.xlu0 %v11983, 24
  %v12044 = vpop.permute.xlu0 %12043
  %12045 = vrot.lane.b32.xlu0 %v11984, 24
  %v12046 = vpop.permute.xlu0 %12045
  %12047 = vrot.lane.b32.xlu0 %v11985, 24
  %v12048 = vpop.permute.xlu0 %12047
  %12049 = vrot.lane.b32.xlu0 %v11986, 24
  %v12050 = vpop.permute.xlu0 %12049
  %12051 = vrot.lane.b32.xlu0 %v11987, 24
  %v12052 = vpop.permute.xlu0 %12051
  %12053 = vrot.lane.b32.xlu0 %v11988, 24
  %v12054 = vpop.permute.xlu0 %12053
  %v12119 = vunpack.c.l.b16 %v8339
  %v12120 = vunpack.c.l.b16 %v8340
  %v12121 = vunpack.c.l.b16 %v8341
  %v12122 = vunpack.c.l.b16 %v8342
  %v12123 = vunpack.c.l.b16 %v8343
  %v12124 = vunpack.c.l.b16 %v8344
  %v12125 = vunpack.c.l.b16 %v8345
  %v12126 = vunpack.c.l.b16 %v8346
  %v12127 = vunpack.c.l.b16 %v8347
  %v12128 = vunpack.c.l.b16 %v8348
  %v12129 = vunpack.c.l.b16 %v8349
  %v12130 = vunpack.c.l.b16 %v8350
  %v12131 = vunpack.c.l.b16 %v8351
  %v12132 = vunpack.c.l.b16 %v8352
  %v12133 = vunpack.c.l.b16 %v8353
  %v12134 = vunpack.c.l.b16 %v8354
  %v12135 = vunpack.c.l.b16 %v8355
  %v12136 = vunpack.c.l.b16 %v8356
  %v12137 = vunpack.c.l.b16 %v8357
  %v12138 = vunpack.c.l.b16 %v8358
  %v12139 = vunpack.c.l.b16 %v8359
  %v12140 = vunpack.c.l.b16 %v8360
  %v12141 = vunpack.c.l.b16 %v8361
  %v12142 = vunpack.c.l.b16 %v8362
  %v12143 = vunpack.c.l.b16 %v8363
  %v12144 = vunpack.c.l.b16 %v8364
  %v12145 = vunpack.c.l.b16 %v8365
  %v12146 = vunpack.c.l.b16 %v8366
  %v12147 = vunpack.c.l.b16 %v8367
  %v12148 = vunpack.c.l.b16 %v8368
  %v12149 = vunpack.c.l.b16 %v8369
  %v12150 = vunpack.c.l.b16 %v8370
  %v12151 = vunpack.c.l.b16 %v8371
  %v12152 = vunpack.c.l.b16 %v8372
  %v12153 = vunpack.c.l.b16 %v8373
  %v12154 = vunpack.c.l.b16 %v8374
  %v12155 = vunpack.c.l.b16 %v8375
  %v12156 = vunpack.c.l.b16 %v8376
  %v12157 = vunpack.c.l.b16 %v8377
  %v12158 = vunpack.c.l.b16 %v8378
  %v12159 = vunpack.c.l.b16 %v8379
  %v12160 = vunpack.c.l.b16 %v8380
  %v12161 = vunpack.c.l.b16 %v8381
  %v12162 = vunpack.c.l.b16 %v8382
  %v12163 = vunpack.c.l.b16 %v8383
  %v12164 = vunpack.c.l.b16 %v8384
  %v12165 = vunpack.c.l.b16 %v8385
  %v12166 = vunpack.c.l.b16 %v8386
  %v12167 = vunpack.c.l.b16 %v8387
  %v12168 = vunpack.c.l.b16 %v8388
  %v12169 = vunpack.c.l.b16 %v8389
  %v12170 = vunpack.c.l.b16 %v8390
  %v12171 = vunpack.c.l.b16 %v8391
  %v12172 = vunpack.c.l.b16 %v8392
  %v12173 = vunpack.c.l.b16 %v8393
  %v12174 = vunpack.c.l.b16 %v8394
  %v12175 = vunpack.c.l.b16 %v8395
  %v12176 = vunpack.c.l.b16 %v8396
  %v12177 = vunpack.c.l.b16 %v8397
  %v12178 = vunpack.c.l.b16 %v8398
  %v12179 = vunpack.c.l.b16 %v8399
  %v12180 = vunpack.c.l.b16 %v8400
  %v12181 = vunpack.c.l.b16 %v8401
  %v12182 = vunpack.c.l.b16 %v8402
  %v12183 = vpack.c.b16 %v12120, %v12119
  %v12184 = vpack.c.b16 %v12122, %v12121
  %v12185 = vpack.c.b16 %v12124, %v12123
  %v12186 = vpack.c.b16 %v12126, %v12125
  %v12187 = vpack.c.b16 %v12128, %v12127
  %v12188 = vpack.c.b16 %v12130, %v12129
  %v12189 = vpack.c.b16 %v12132, %v12131
  %v12190 = vpack.c.b16 %v12134, %v12133
  %v12191 = vpack.c.b16 %v12136, %v12135
  %v12192 = vpack.c.b16 %v12138, %v12137
  %v12193 = vpack.c.b16 %v12140, %v12139
  %v12194 = vpack.c.b16 %v12142, %v12141
  %v12195 = vpack.c.b16 %v12144, %v12143
  %v12196 = vpack.c.b16 %v12146, %v12145
  %v12197 = vpack.c.b16 %v12148, %v12147
  %v12198 = vpack.c.b16 %v12150, %v12149
  %v12199 = vpack.c.b16 %v12152, %v12151
  %v12200 = vpack.c.b16 %v12154, %v12153
  %v12201 = vpack.c.b16 %v12156, %v12155
  %v12202 = vpack.c.b16 %v12158, %v12157
  %v12203 = vpack.c.b16 %v12160, %v12159
  %v12204 = vpack.c.b16 %v12162, %v12161
  %v12205 = vpack.c.b16 %v12164, %v12163
  %v12206 = vpack.c.b16 %v12166, %v12165
  %v12207 = vpack.c.b16 %v12168, %v12167
  %v12208 = vpack.c.b16 %v12170, %v12169
  %v12209 = vpack.c.b16 %v12172, %v12171
  %v12210 = vpack.c.b16 %v12174, %v12173
  %v12211 = vpack.c.b16 %v12176, %v12175
  %v12212 = vpack.c.b16 %v12178, %v12177
  %v12213 = vpack.c.b16 %v12180, %v12179
  %v12214 = vpack.c.b16 %v12182, %v12181
  %v12216 = vshrl.u32 %v12183, 16
  %v12218 = vrot.slane %v12216, 4
  %v12219 = vshll.u32 %v12183, 16
  %v12221 = vrot.slane %v12219, 5
  %v12222 = vor.u32 %v12218, %v12221
  %v12224 = vshrl.u32 %v12184, 16
  %v12226 = vrot.slane %v12224, 4
  %v12227 = vshll.u32 %v12184, 16
  %v12229 = vrot.slane %v12227, 5
  %v12230 = vor.u32 %v12226, %v12229
  %v12231 = vsel %vm1058, %v12222, %v12230
  %v12233 = vshrl.u32 %v12185, 16
  %v12235 = vrot.slane %v12233, 4
  %v12236 = vshll.u32 %v12185, 16
  %v12238 = vrot.slane %v12236, 5
  %v12239 = vor.u32 %v12235, %v12238
  %v12240 = vsel %vm1058, %v12230, %v12239
  %v12242 = vshrl.u32 %v12186, 16
  %v12244 = vrot.slane %v12242, 4
  %v12245 = vshll.u32 %v12186, 16
  %v12247 = vrot.slane %v12245, 5
  %v12248 = vor.u32 %v12244, %v12247
  %v12249 = vsel %vm1058, %v12239, %v12248
  %v12251 = vshrl.u32 %v12187, 16
  %v12253 = vrot.slane %v12251, 4
  %v12254 = vshll.u32 %v12187, 16
  %v12256 = vrot.slane %v12254, 5
  %v12257 = vor.u32 %v12253, %v12256
  %v12258 = vsel %vm1058, %v12248, %v12257
  %v12260 = vshrl.u32 %v12188, 16
  %v12262 = vrot.slane %v12260, 4
  %v12263 = vshll.u32 %v12188, 16
  %v12265 = vrot.slane %v12263, 5
  %v12266 = vor.u32 %v12262, %v12265
  %v12267 = vsel %vm1058, %v12257, %v12266
  %v12269 = vshrl.u32 %v12189, 16
  %v12271 = vrot.slane %v12269, 4
  %v12272 = vshll.u32 %v12189, 16
  %v12274 = vrot.slane %v12272, 5
  %v12275 = vor.u32 %v12271, %v12274
  %v12276 = vsel %vm1058, %v12266, %v12275
  %v12278 = vshrl.u32 %v12190, 16
  %v12280 = vrot.slane %v12278, 4
  %v12281 = vshll.u32 %v12190, 16
  %v12283 = vrot.slane %v12281, 5
  %v12284 = vor.u32 %v12280, %v12283
  %v12285 = vsel %vm1058, %v12275, %v12284
  %v12287 = vshrl.u32 %v12191, 16
  %v12289 = vrot.slane %v12287, 4
  %v12290 = vshll.u32 %v12191, 16
  %v12292 = vrot.slane %v12290, 5
  %v12293 = vor.u32 %v12289, %v12292
  %v12294 = vsel %vm1058, %v12284, %v12293
  %v12296 = vshrl.u32 %v12192, 16
  %v12298 = vrot.slane %v12296, 4
  %v12299 = vshll.u32 %v12192, 16
  %v12301 = vrot.slane %v12299, 5
  %v12302 = vor.u32 %v12298, %v12301
  %v12303 = vsel %vm1058, %v12293, %v12302
  %v12305 = vshrl.u32 %v12193, 16
  %v12307 = vrot.slane %v12305, 4
  %v12308 = vshll.u32 %v12193, 16
  %v12310 = vrot.slane %v12308, 5
  %v12311 = vor.u32 %v12307, %v12310
  %v12312 = vsel %vm1058, %v12302, %v12311
  %v12314 = vshrl.u32 %v12194, 16
  %v12316 = vrot.slane %v12314, 4
  %v12317 = vshll.u32 %v12194, 16
  %v12319 = vrot.slane %v12317, 5
  %v12320 = vor.u32 %v12316, %v12319
  %v12321 = vsel %vm1058, %v12311, %v12320
  %v12323 = vshrl.u32 %v12195, 16
  %v12325 = vrot.slane %v12323, 4
  %v12326 = vshll.u32 %v12195, 16
  %v12328 = vrot.slane %v12326, 5
  %v12329 = vor.u32 %v12325, %v12328
  %v12330 = vsel %vm1058, %v12320, %v12329
  %v12332 = vshrl.u32 %v12196, 16
  %v12334 = vrot.slane %v12332, 4
  %v12335 = vshll.u32 %v12196, 16
  %v12337 = vrot.slane %v12335, 5
  %v12338 = vor.u32 %v12334, %v12337
  %v12339 = vsel %vm1058, %v12329, %v12338
  %v12341 = vshrl.u32 %v12197, 16
  %v12343 = vrot.slane %v12341, 4
  %v12344 = vshll.u32 %v12197, 16
  %v12346 = vrot.slane %v12344, 5
  %v12347 = vor.u32 %v12343, %v12346
  %v12348 = vsel %vm1058, %v12338, %v12347
  %v12350 = vshrl.u32 %v12198, 16
  %v12352 = vrot.slane %v12350, 4
  %v12353 = vshll.u32 %v12198, 16
  %v12355 = vrot.slane %v12353, 5
  %v12356 = vor.u32 %v12352, %v12355
  %v12357 = vsel %vm1058, %v12347, %v12356
  %v12359 = vshrl.u32 %v12199, 16
  %v12361 = vrot.slane %v12359, 4
  %v12362 = vshll.u32 %v12199, 16
  %v12364 = vrot.slane %v12362, 5
  %v12365 = vor.u32 %v12361, %v12364
  %v12366 = vsel %vm1058, %v12356, %v12365
  %v12368 = vshrl.u32 %v12200, 16
  %v12370 = vrot.slane %v12368, 4
  %v12371 = vshll.u32 %v12200, 16
  %v12373 = vrot.slane %v12371, 5
  %v12374 = vor.u32 %v12370, %v12373
  %v12375 = vsel %vm1058, %v12365, %v12374
  %v12377 = vshrl.u32 %v12201, 16
  %v12379 = vrot.slane %v12377, 4
  %v12380 = vshll.u32 %v12201, 16
  %v12382 = vrot.slane %v12380, 5
  %v12383 = vor.u32 %v12379, %v12382
  %v12384 = vsel %vm1058, %v12374, %v12383
  %v12386 = vshrl.u32 %v12202, 16
  %v12388 = vrot.slane %v12386, 4
  %v12389 = vshll.u32 %v12202, 16
  %v12391 = vrot.slane %v12389, 5
  %v12392 = vor.u32 %v12388, %v12391
  %v12393 = vsel %vm1058, %v12383, %v12392
  %v12395 = vshrl.u32 %v12203, 16
  %v12397 = vrot.slane %v12395, 4
  %v12398 = vshll.u32 %v12203, 16
  %v12400 = vrot.slane %v12398, 5
  %v12401 = vor.u32 %v12397, %v12400
  %v12402 = vsel %vm1058, %v12392, %v12401
  %v12404 = vshrl.u32 %v12204, 16
  %v12406 = vrot.slane %v12404, 4
  %v12407 = vshll.u32 %v12204, 16
  %v12409 = vrot.slane %v12407, 5
  %v12410 = vor.u32 %v12406, %v12409
  %v12411 = vsel %vm1058, %v12401, %v12410
  %v12413 = vshrl.u32 %v12205, 16
  %v12415 = vrot.slane %v12413, 4
  %v12416 = vshll.u32 %v12205, 16
  %v12418 = vrot.slane %v12416, 5
  %v12419 = vor.u32 %v12415, %v12418
  %v12420 = vsel %vm1058, %v12410, %v12419
  %v12422 = vshrl.u32 %v12206, 16
  %v12424 = vrot.slane %v12422, 4
  %v12425 = vshll.u32 %v12206, 16
  %v12427 = vrot.slane %v12425, 5
  %v12428 = vor.u32 %v12424, %v12427
  %v12429 = vsel %vm1058, %v12419, %v12428
  %v12431 = vshrl.u32 %v12207, 16
  %v12433 = vrot.slane %v12431, 4
  %v12434 = vshll.u32 %v12207, 16
  %v12436 = vrot.slane %v12434, 5
  %v12437 = vor.u32 %v12433, %v12436
  %v12438 = vsel %vm1058, %v12428, %v12437
  %v12440 = vshrl.u32 %v12208, 16
  %v12442 = vrot.slane %v12440, 4
  %v12443 = vshll.u32 %v12208, 16
  %v12445 = vrot.slane %v12443, 5
  %v12446 = vor.u32 %v12442, %v12445
  %v12447 = vsel %vm1058, %v12437, %v12446
  %v12449 = vshrl.u32 %v12209, 16
  %v12451 = vrot.slane %v12449, 4
  %v12452 = vshll.u32 %v12209, 16
  %v12454 = vrot.slane %v12452, 5
  %v12455 = vor.u32 %v12451, %v12454
  %v12456 = vsel %vm1058, %v12446, %v12455
  %v12458 = vshrl.u32 %v12210, 16
  %v12460 = vrot.slane %v12458, 4
  %v12461 = vshll.u32 %v12210, 16
  %v12463 = vrot.slane %v12461, 5
  %v12464 = vor.u32 %v12460, %v12463
  %v12465 = vsel %vm1058, %v12455, %v12464
  %v12467 = vshrl.u32 %v12211, 16
  %v12469 = vrot.slane %v12467, 4
  %v12470 = vshll.u32 %v12211, 16
  %v12472 = vrot.slane %v12470, 5
  %v12473 = vor.u32 %v12469, %v12472
  %v12474 = vsel %vm1058, %v12464, %v12473
  %v12476 = vshrl.u32 %v12212, 16
  %v12478 = vrot.slane %v12476, 4
  %v12479 = vshll.u32 %v12212, 16
  %v12481 = vrot.slane %v12479, 5
  %v12482 = vor.u32 %v12478, %v12481
  %v12483 = vsel %vm1058, %v12473, %v12482
  %v12485 = vshrl.u32 %v12213, 16
  %v12487 = vrot.slane %v12485, 4
  %v12488 = vshll.u32 %v12213, 16
  %v12490 = vrot.slane %v12488, 5
  %v12491 = vor.u32 %v12487, %v12490
  %v12492 = vsel %vm1058, %v12482, %v12491
  %v12494 = vshrl.u32 %v12214, 16
  %v12496 = vrot.slane %v12494, 4
  %v12497 = vshll.u32 %v12214, 16
  %v12499 = vrot.slane %v12497, 5
  %v12500 = vor.u32 %v12496, %v12499
  %v12501 = vsel %vm1058, %v12491, %v12500
  %12502 = vrot.lane.b32.xlu0 %v12222, 28
  %v12503 = vpop.permute.xlu0 %12502
  %12504 = vrot.lane.b32.xlu0 %v12231, 28
  %v12505 = vpop.permute.xlu0 %12504
  %12506 = vrot.lane.b32.xlu0 %v12240, 28
  %v12507 = vpop.permute.xlu0 %12506
  %12508 = vrot.lane.b32.xlu0 %v12249, 28
  %v12509 = vpop.permute.xlu0 %12508
  %12510 = vrot.lane.b32.xlu0 %v12258, 28
  %v12511 = vpop.permute.xlu0 %12510
  %12512 = vrot.lane.b32.xlu0 %v12267, 28
  %v12513 = vpop.permute.xlu0 %12512
  %12514 = vrot.lane.b32.xlu0 %v12276, 28
  %v12515 = vpop.permute.xlu0 %12514
  %12516 = vrot.lane.b32.xlu0 %v12285, 28
  %v12517 = vpop.permute.xlu0 %12516
  %12518 = vrot.lane.b32.xlu0 %v12294, 28
  %v12519 = vpop.permute.xlu0 %12518
  %12520 = vrot.lane.b32.xlu0 %v12303, 28
  %v12521 = vpop.permute.xlu0 %12520
  %12522 = vrot.lane.b32.xlu0 %v12312, 28
  %v12523 = vpop.permute.xlu0 %12522
  %12524 = vrot.lane.b32.xlu0 %v12321, 28
  %v12525 = vpop.permute.xlu0 %12524
  %12526 = vrot.lane.b32.xlu0 %v12330, 28
  %v12527 = vpop.permute.xlu0 %12526
  %12528 = vrot.lane.b32.xlu0 %v12339, 28
  %v12529 = vpop.permute.xlu0 %12528
  %12530 = vrot.lane.b32.xlu0 %v12348, 28
  %v12531 = vpop.permute.xlu0 %12530
  %12532 = vrot.lane.b32.xlu0 %v12357, 28
  %v12533 = vpop.permute.xlu0 %12532
  %12534 = vrot.lane.b32.xlu0 %v12366, 28
  %v12535 = vpop.permute.xlu0 %12534
  %12536 = vrot.lane.b32.xlu0 %v12375, 28
  %v12537 = vpop.permute.xlu0 %12536
  %12538 = vrot.lane.b32.xlu0 %v12384, 28
  %v12539 = vpop.permute.xlu0 %12538
  %12540 = vrot.lane.b32.xlu0 %v12393, 28
  %v12541 = vpop.permute.xlu0 %12540
  %12542 = vrot.lane.b32.xlu0 %v12402, 28
  %v12543 = vpop.permute.xlu0 %12542
  %12544 = vrot.lane.b32.xlu0 %v12411, 28
  %v12545 = vpop.permute.xlu0 %12544
  %12546 = vrot.lane.b32.xlu0 %v12420, 28
  %v12547 = vpop.permute.xlu0 %12546
  %12548 = vrot.lane.b32.xlu0 %v12429, 28
  %v12549 = vpop.permute.xlu0 %12548
  %12550 = vrot.lane.b32.xlu0 %v12438, 28
  %v12551 = vpop.permute.xlu0 %12550
  %12552 = vrot.lane.b32.xlu0 %v12447, 28
  %v12553 = vpop.permute.xlu0 %12552
  %12554 = vrot.lane.b32.xlu0 %v12456, 28
  %v12555 = vpop.permute.xlu0 %12554
  %12556 = vrot.lane.b32.xlu0 %v12465, 28
  %v12557 = vpop.permute.xlu0 %12556
  %12558 = vrot.lane.b32.xlu0 %v12474, 28
  %v12559 = vpop.permute.xlu0 %12558
  %12560 = vrot.lane.b32.xlu0 %v12483, 28
  %v12561 = vpop.permute.xlu0 %12560
  %12562 = vrot.lane.b32.xlu0 %v12492, 28
  %v12563 = vpop.permute.xlu0 %12562
  %12564 = vrot.lane.b32.xlu0 %v12501, 28
  %v12565 = vpop.permute.xlu0 %12564
  %12566 = vrot.lane.b32.xlu0 %v12500, 28
  %v12567 = vpop.permute.xlu0 %12566
  %v12633 = vunpack.c.l.b16 %v9754
  %v12634 = vunpack.c.l.b16 %v9755
  %v12635 = vunpack.c.l.b16 %v9756
  %v12636 = vunpack.c.l.b16 %v9757
  %v12637 = vunpack.c.l.b16 %v9758
  %v12638 = vunpack.c.l.b16 %v9759
  %v12639 = vunpack.c.l.b16 %v9760
  %v12640 = vunpack.c.l.b16 %v9761
  %v12641 = vunpack.c.l.b16 %v9762
  %v12642 = vunpack.c.l.b16 %v9763
  %v12643 = vunpack.c.l.b16 %v9764
  %v12644 = vunpack.c.l.b16 %v9765
  %v12645 = vunpack.c.l.b16 %v9766
  %v12646 = vunpack.c.l.b16 %v9767
  %v12647 = vunpack.c.l.b16 %v9768
  %v12648 = vunpack.c.l.b16 %v9769
  %v12649 = vunpack.c.l.b16 %v9770
  %v12650 = vunpack.c.l.b16 %v9771
  %v12651 = vunpack.c.l.b16 %v9772
  %v12652 = vunpack.c.l.b16 %v9773
  %v12653 = vunpack.c.l.b16 %v9774
  %v12654 = vunpack.c.l.b16 %v9775
  %v12655 = vunpack.c.l.b16 %v9776
  %v12656 = vunpack.c.l.b16 %v9777
  %v12657 = vunpack.c.l.b16 %v9778
  %v12658 = vunpack.c.l.b16 %v9779
  %v12659 = vunpack.c.l.b16 %v9780
  %v12660 = vunpack.c.l.b16 %v9781
  %v12661 = vunpack.c.l.b16 %v9782
  %v12662 = vunpack.c.l.b16 %v9783
  %v12663 = vunpack.c.l.b16 %v9784
  %v12664 = vunpack.c.l.b16 %v9785
  %v12665 = vunpack.c.l.b16 %v9786
  %v12666 = vunpack.c.l.b16 %v9787
  %v12667 = vunpack.c.l.b16 %v9788
  %v12668 = vunpack.c.l.b16 %v9789
  %v12669 = vunpack.c.l.b16 %v9790
  %v12670 = vunpack.c.l.b16 %v9791
  %v12671 = vunpack.c.l.b16 %v9792
  %v12672 = vunpack.c.l.b16 %v9793
  %v12673 = vunpack.c.l.b16 %v9794
  %v12674 = vunpack.c.l.b16 %v9795
  %v12675 = vunpack.c.l.b16 %v9796
  %v12676 = vunpack.c.l.b16 %v9797
  %v12677 = vunpack.c.l.b16 %v9798
  %v12678 = vunpack.c.l.b16 %v9799
  %v12679 = vunpack.c.l.b16 %v9800
  %v12680 = vunpack.c.l.b16 %v9801
  %v12681 = vunpack.c.l.b16 %v9802
  %v12682 = vunpack.c.l.b16 %v9803
  %v12683 = vunpack.c.l.b16 %v9804
  %v12684 = vunpack.c.l.b16 %v9805
  %v12685 = vunpack.c.l.b16 %v9806
  %v12686 = vunpack.c.l.b16 %v9807
  %v12687 = vunpack.c.l.b16 %v9808
  %v12688 = vunpack.c.l.b16 %v9809
  %v12689 = vunpack.c.l.b16 %v9810
  %v12690 = vunpack.c.l.b16 %v9811
  %v12691 = vunpack.c.l.b16 %v9812
  %v12692 = vunpack.c.l.b16 %v9813
  %v12693 = vunpack.c.l.b16 %v9814
  %v12694 = vunpack.c.l.b16 %v9815
  %v12695 = vunpack.c.l.b16 %v9816
  %v12696 = vunpack.c.l.b16 %v9817
  %v12697 = vunpack.c.l.b16 %v9818
  %v12698 = vpack.c.b16 %v12634, %v12633
  %v12699 = vpack.c.b16 %v12636, %v12635
  %v12700 = vpack.c.b16 %v12638, %v12637
  %v12701 = vpack.c.b16 %v12640, %v12639
  %v12702 = vpack.c.b16 %v12642, %v12641
  %v12703 = vpack.c.b16 %v12644, %v12643
  %v12704 = vpack.c.b16 %v12646, %v12645
  %v12705 = vpack.c.b16 %v12648, %v12647
  %v12706 = vpack.c.b16 %v12650, %v12649
  %v12707 = vpack.c.b16 %v12652, %v12651
  %v12708 = vpack.c.b16 %v12654, %v12653
  %v12709 = vpack.c.b16 %v12656, %v12655
  %v12710 = vpack.c.b16 %v12658, %v12657
  %v12711 = vpack.c.b16 %v12660, %v12659
  %v12712 = vpack.c.b16 %v12662, %v12661
  %v12713 = vpack.c.b16 %v12664, %v12663
  %v12714 = vpack.c.b16 %v12666, %v12665
  %v12715 = vpack.c.b16 %v12668, %v12667
  %v12716 = vpack.c.b16 %v12670, %v12669
  %v12717 = vpack.c.b16 %v12672, %v12671
  %v12718 = vpack.c.b16 %v12674, %v12673
  %v12719 = vpack.c.b16 %v12676, %v12675
  %v12720 = vpack.c.b16 %v12678, %v12677
  %v12721 = vpack.c.b16 %v12680, %v12679
  %v12722 = vpack.c.b16 %v12682, %v12681
  %v12723 = vpack.c.b16 %v12684, %v12683
  %v12724 = vpack.c.b16 %v12686, %v12685
  %v12725 = vpack.c.b16 %v12688, %v12687
  %v12726 = vpack.c.b16 %v12690, %v12689
  %v12727 = vpack.c.b16 %v12692, %v12691
  %v12728 = vpack.c.b16 %v12694, %v12693
  %v12729 = vpack.c.b16 %v12696, %v12695
  %v12730 = vpack.c.b16 %v12697, %v12697
  %v12731 = vrot.slane %v12698, 5
  %v12732 = vrot.slane %v12699, 5
  %v12733 = vsel %vm10658, %v12731, %v12732
  %v12734 = vrot.slane %v12700, 5
  %v12735 = vsel %vm10658, %v12732, %v12734
  %v12736 = vrot.slane %v12701, 5
  %v12737 = vsel %vm10658, %v12734, %v12736
  %v12738 = vrot.slane %v12702, 5
  %v12739 = vsel %vm10658, %v12736, %v12738
  %v12740 = vrot.slane %v12703, 5
  %v12741 = vsel %vm10658, %v12738, %v12740
  %v12742 = vrot.slane %v12704, 5
  %v12743 = vsel %vm10658, %v12740, %v12742
  %v12744 = vrot.slane %v12705, 5
  %v12745 = vsel %vm10658, %v12742, %v12744
  %v12746 = vrot.slane %v12706, 5
  %v12747 = vsel %vm10658, %v12744, %v12746
  %v12748 = vrot.slane %v12707, 5
  %v12749 = vsel %vm10658, %v12746, %v12748
  %v12750 = vrot.slane %v12708, 5
  %v12751 = vsel %vm10658, %v12748, %v12750
  %v12752 = vrot.slane %v12709, 5
  %v12753 = vsel %vm10658, %v12750, %v12752
  %v12754 = vrot.slane %v12710, 5
  %v12755 = vsel %vm10658, %v12752, %v12754
  %v12756 = vrot.slane %v12711, 5
  %v12757 = vsel %vm10658, %v12754, %v12756
  %v12758 = vrot.slane %v12712, 5
  %v12759 = vsel %vm10658, %v12756, %v12758
  %v12760 = vrot.slane %v12713, 5
  %v12761 = vsel %vm10658, %v12758, %v12760
  %v12762 = vrot.slane %v12714, 5
  %v12763 = vsel %vm10658, %v12760, %v12762
  %v12764 = vrot.slane %v12715, 5
  %v12765 = vsel %vm10658, %v12762, %v12764
  %v12766 = vrot.slane %v12716, 5
  %v12767 = vsel %vm10658, %v12764, %v12766
  %v12768 = vrot.slane %v12717, 5
  %v12769 = vsel %vm10658, %v12766, %v12768
  %v12770 = vrot.slane %v12718, 5
  %v12771 = vsel %vm10658, %v12768, %v12770
  %v12772 = vrot.slane %v12719, 5
  %v12773 = vsel %vm10658, %v12770, %v12772
  %v12774 = vrot.slane %v12720, 5
  %v12775 = vsel %vm10658, %v12772, %v12774
  %v12776 = vrot.slane %v12721, 5
  %v12777 = vsel %vm10658, %v12774, %v12776
  %v12778 = vrot.slane %v12722, 5
  %v12779 = vsel %vm10658, %v12776, %v12778
  %v12780 = vrot.slane %v12723, 5
  %v12781 = vsel %vm10658, %v12778, %v12780
  %v12782 = vrot.slane %v12724, 5
  %v12783 = vsel %vm10658, %v12780, %v12782
  %v12784 = vrot.slane %v12725, 5
  %v12785 = vsel %vm10658, %v12782, %v12784
  %v12786 = vrot.slane %v12726, 5
  %v12787 = vsel %vm10658, %v12784, %v12786
  %v12788 = vrot.slane %v12727, 5
  %v12789 = vsel %vm10658, %v12786, %v12788
  %v12790 = vrot.slane %v12728, 5
  %v12791 = vsel %vm10658, %v12788, %v12790
  %v12792 = vrot.slane %v12729, 5
  %v12793 = vsel %vm10658, %v12790, %v12792
  %v12794 = vrot.slane %v12730, 5
  %v12795 = vsel %vm10658, %v12792, %v12794
  %12796 = vrot.lane.b32.xlu0 %v12731, 32
  %v12797 = vpop.permute.xlu0 %12796
  %12798 = vrot.lane.b32.xlu0 %v12733, 32
  %v12799 = vpop.permute.xlu0 %12798
  %12800 = vrot.lane.b32.xlu0 %v12735, 32
  %v12801 = vpop.permute.xlu0 %12800
  %12802 = vrot.lane.b32.xlu0 %v12737, 32
  %v12803 = vpop.permute.xlu0 %12802
  %12804 = vrot.lane.b32.xlu0 %v12739, 32
  %v12805 = vpop.permute.xlu0 %12804
  %12806 = vrot.lane.b32.xlu0 %v12741, 32
  %v12807 = vpop.permute.xlu0 %12806
  %12808 = vrot.lane.b32.xlu0 %v12743, 32
  %v12809 = vpop.permute.xlu0 %12808
  %12810 = vrot.lane.b32.xlu0 %v12745, 32
  %v12811 = vpop.permute.xlu0 %12810
  %12812 = vrot.lane.b32.xlu0 %v12747, 32
  %v12813 = vpop.permute.xlu0 %12812
  %12814 = vrot.lane.b32.xlu0 %v12749, 32
  %v12815 = vpop.permute.xlu0 %12814
  %12816 = vrot.lane.b32.xlu0 %v12751, 32
  %v12817 = vpop.permute.xlu0 %12816
  %12818 = vrot.lane.b32.xlu0 %v12753, 32
  %v12819 = vpop.permute.xlu0 %12818
  %12820 = vrot.lane.b32.xlu0 %v12755, 32
  %v12821 = vpop.permute.xlu0 %12820
  %12822 = vrot.lane.b32.xlu0 %v12757, 32
  %v12823 = vpop.permute.xlu0 %12822
  %12824 = vrot.lane.b32.xlu0 %v12759, 32
  %v12825 = vpop.permute.xlu0 %12824
  %12826 = vrot.lane.b32.xlu0 %v12761, 32
  %v12827 = vpop.permute.xlu0 %12826
  %12828 = vrot.lane.b32.xlu0 %v12763, 32
  %v12829 = vpop.permute.xlu0 %12828
  %12830 = vrot.lane.b32.xlu0 %v12765, 32
  %v12831 = vpop.permute.xlu0 %12830
  %12832 = vrot.lane.b32.xlu0 %v12767, 32
  %v12833 = vpop.permute.xlu0 %12832
  %12834 = vrot.lane.b32.xlu0 %v12769, 32
  %v12835 = vpop.permute.xlu0 %12834
  %12836 = vrot.lane.b32.xlu0 %v12771, 32
  %v12837 = vpop.permute.xlu0 %12836
  %12838 = vrot.lane.b32.xlu0 %v12773, 32
  %v12839 = vpop.permute.xlu0 %12838
  %12840 = vrot.lane.b32.xlu0 %v12775, 32
  %v12841 = vpop.permute.xlu0 %12840
  %12842 = vrot.lane.b32.xlu0 %v12777, 32
  %v12843 = vpop.permute.xlu0 %12842
  %12844 = vrot.lane.b32.xlu0 %v12779, 32
  %v12845 = vpop.permute.xlu0 %12844
  %12846 = vrot.lane.b32.xlu0 %v12781, 32
  %v12847 = vpop.permute.xlu0 %12846
  %12848 = vrot.lane.b32.xlu0 %v12783, 32
  %v12849 = vpop.permute.xlu0 %12848
  %12850 = vrot.lane.b32.xlu0 %v12785, 32
  %v12851 = vpop.permute.xlu0 %12850
  %12852 = vrot.lane.b32.xlu0 %v12787, 32
  %v12853 = vpop.permute.xlu0 %12852
  %12854 = vrot.lane.b32.xlu0 %v12789, 32
  %v12855 = vpop.permute.xlu0 %12854
  %12856 = vrot.lane.b32.xlu0 %v12791, 32
  %v12857 = vpop.permute.xlu0 %12856
  %12858 = vrot.lane.b32.xlu0 %v12793, 32
  %v12859 = vpop.permute.xlu0 %12858
  %12860 = vrot.lane.b32.xlu0 %v12795, 32
  %v12861 = vpop.permute.xlu0 %12860
  %vm12862 = vcmask 31744
  %v12865 = vsel %vm12862, %v9949, %v10430
  %v12868 = vsel %vm12862, %v9950, %v10432
  %v12871 = vsel %vm12862, %v9951, %v10434
  %v12874 = vsel %vm12862, %v9952, %v10436
  %v12877 = vsel %vm12862, %v9953, %v10438
  %v12880 = vsel %vm12862, %v9954, %v10440
  %v12883 = vsel %vm12862, %v9955, %v10442
  %v12886 = vsel %vm12862, %v9956, %v10444
  %v12889 = vsel %vm12862, %v9957, %v10446
  %v12892 = vsel %vm12862, %v9958, %v10448
  %v12895 = vsel %vm12862, %v9959, %v10450
  %v12898 = vsel %vm12862, %v9960, %v10452
  %v12901 = vsel %vm12862, %v9961, %v10454
  %v12904 = vsel %vm12862, %v9962, %v10456
  %v12907 = vsel %vm12862, %v9963, %v10458
  %v12910 = vsel %vm12862, %v9964, %v10460
  %v12913 = vsel %vm12862, %v9965, %v10462
  %v12916 = vsel %vm12862, %v9966, %v10464
  %v12919 = vsel %vm12862, %v9967, %v10466
  %v12922 = vsel %vm12862, %v9968, %v10468
  %v12925 = vsel %vm12862, %v9969, %v10470
  %v12928 = vsel %vm12862, %v9970, %v10472
  %v12931 = vsel %vm12862, %v9971, %v10474
  %v12934 = vsel %vm12862, %v9972, %v10476
  %v12937 = vsel %vm12862, %v9973, %v10478
  %v12940 = vsel %vm12862, %v9974, %v10480
  %v12943 = vsel %vm12862, %v9975, %v10482
  %v12946 = vsel %vm12862, %v9976, %v10484
  %v12949 = vsel %vm12862, %v9977, %v10486
  %v12952 = vsel %vm12862, %v9978, %v10488
  %v12955 = vsel %vm12862, %v9979, %v10490
  %v12958 = vsel %vm12862, %v9980, %v10492
  %v12961 = vsel %vm12862, %v9981, %v10494
  %vm12962 = vcmask 64512
  %v12964 = vsel %vm12962, %v12865, %v10725
  %v12966 = vsel %vm12962, %v12868, %v10727
  %v12968 = vsel %vm12962, %v12871, %v10729
  %v12970 = vsel %vm12962, %v12874, %v10731
  %v12972 = vsel %vm12962, %v12877, %v10733
  %v12974 = vsel %vm12962, %v12880, %v10735
  %v12976 = vsel %vm12962, %v12883, %v10737
  %v12978 = vsel %vm12962, %v12886, %v10739
  %v12980 = vsel %vm12962, %v12889, %v10741
  %v12982 = vsel %vm12962, %v12892, %v10743
  %v12984 = vsel %vm12962, %v12895, %v10745
  %v12986 = vsel %vm12962, %v12898, %v10747
  %v12988 = vsel %vm12962, %v12901, %v10749
  %v12990 = vsel %vm12962, %v12904, %v10751
  %v12992 = vsel %vm12962, %v12907, %v10753
  %v12994 = vsel %vm12962, %v12910, %v10755
  %v12996 = vsel %vm12962, %v12913, %v10757
  %v12998 = vsel %vm12962, %v12916, %v10759
  %v13000 = vsel %vm12962, %v12919, %v10761
  %v13002 = vsel %vm12962, %v12922, %v10763
  %v13004 = vsel %vm12962, %v12925, %v10765
  %v13006 = vsel %vm12962, %v12928, %v10767
  %v13008 = vsel %vm12962, %v12931, %v10769
  %v13010 = vsel %vm12962, %v12934, %v10771
  %v13012 = vsel %vm12962, %v12937, %v10773
  %v13014 = vsel %vm12962, %v12940, %v10775
  %v13016 = vsel %vm12962, %v12943, %v10777
  %v13018 = vsel %vm12962, %v12946, %v10779
  %v13020 = vsel %vm12962, %v12949, %v10781
  %v13022 = vsel %vm12962, %v12952, %v10783
  %v13024 = vsel %vm12962, %v12955, %v10785
  %v13026 = vsel %vm12962, %v12958, %v10787
  %v13028 = vsel %vm12962, %v12961, %v10789
  %vm13029 = vcmask 97280
  %v13031 = vsel %vm13029, %v12964, %v10954
  %v13033 = vsel %vm13029, %v12966, %v10956
  %v13035 = vsel %vm13029, %v12968, %v10958
  %v13037 = vsel %vm13029, %v12970, %v10960
  %v13039 = vsel %vm13029, %v12972, %v10962
  %v13041 = vsel %vm13029, %v12974, %v10964
  %v13043 = vsel %vm13029, %v12976, %v10966
  %v13045 = vsel %vm13029, %v12978, %v10968
  %v13047 = vsel %vm13029, %v12980, %v10970
  %v13049 = vsel %vm13029, %v12982, %v10972
  %v13051 = vsel %vm13029, %v12984, %v10974
  %v13053 = vsel %vm13029, %v12986, %v10976
  %v13055 = vsel %vm13029, %v12988, %v10978
  %v13057 = vsel %vm13029, %v12990, %v10980
  %v13059 = vsel %vm13029, %v12992, %v10982
  %v13061 = vsel %vm13029, %v12994, %v10984
  %v13063 = vsel %vm13029, %v12996, %v10986
  %v13065 = vsel %vm13029, %v12998, %v10988
  %v13067 = vsel %vm13029, %v13000, %v10990
  %v13069 = vsel %vm13029, %v13002, %v10992
  %v13071 = vsel %vm13029, %v13004, %v10994
  %v13073 = vsel %vm13029, %v13006, %v10996
  %v13075 = vsel %vm13029, %v13008, %v10998
  %v13077 = vsel %vm13029, %v13010, %v11000
  %v13079 = vsel %vm13029, %v13012, %v11002
  %v13081 = vsel %vm13029, %v13014, %v11004
  %v13083 = vsel %vm13029, %v13016, %v11006
  %v13085 = vsel %vm13029, %v13018, %v11008
  %v13087 = vsel %vm13029, %v13020, %v11010
  %v13089 = vsel %vm13029, %v13022, %v11012
  %v13091 = vsel %vm13029, %v13024, %v11014
  %v13093 = vsel %vm13029, %v13026, %v11016
  %v13095 = vsel %vm13029, %v13028, %v11018
  %vm13096 = vcmask 130048
  %v13098 = vsel %vm13096, %v13031, %v11467
  %v13100 = vsel %vm13096, %v13033, %v11469
  %v13102 = vsel %vm13096, %v13035, %v11471
  %v13104 = vsel %vm13096, %v13037, %v11473
  %v13106 = vsel %vm13096, %v13039, %v11475
  %v13108 = vsel %vm13096, %v13041, %v11477
  %v13110 = vsel %vm13096, %v13043, %v11479
  %v13112 = vsel %vm13096, %v13045, %v11481
  %v13114 = vsel %vm13096, %v13047, %v11483
  %v13116 = vsel %vm13096, %v13049, %v11485
  %v13118 = vsel %vm13096, %v13051, %v11487
  %v13120 = vsel %vm13096, %v13053, %v11489
  %v13122 = vsel %vm13096, %v13055, %v11491
  %v13124 = vsel %vm13096, %v13057, %v11493
  %v13126 = vsel %vm13096, %v13059, %v11495
  %v13128 = vsel %vm13096, %v13061, %v11497
  %v13130 = vsel %vm13096, %v13063, %v11499
  %v13132 = vsel %vm13096, %v13065, %v11501
  %v13134 = vsel %vm13096, %v13067, %v11503
  %v13136 = vsel %vm13096, %v13069, %v11505
  %v13138 = vsel %vm13096, %v13071, %v11507
  %v13140 = vsel %vm13096, %v13073, %v11509
  %v13142 = vsel %vm13096, %v13075, %v11511
  %v13144 = vsel %vm13096, %v13077, %v11513
  %v13146 = vsel %vm13096, %v13079, %v11515
  %v13148 = vsel %vm13096, %v13081, %v11517
  %v13150 = vsel %vm13096, %v13083, %v11519
  %v13152 = vsel %vm13096, %v13085, %v11521
  %v13154 = vsel %vm13096, %v13087, %v11523
  %v13156 = vsel %vm13096, %v13089, %v11525
  %v13158 = vsel %vm13096, %v13091, %v11527
  %v13160 = vsel %vm13096, %v13093, %v11529
  %v13162 = vsel %vm13096, %v13095, %v11531
  %vm13163 = vcmask 162816
  %v13165 = vsel %vm13163, %v13098, %v11761
  %v13167 = vsel %vm13163, %v13100, %v11763
  %v13169 = vsel %vm13163, %v13102, %v11765
  %v13171 = vsel %vm13163, %v13104, %v11767
  %v13173 = vsel %vm13163, %v13106, %v11769
  %v13175 = vsel %vm13163, %v13108, %v11771
  %v13177 = vsel %vm13163, %v13110, %v11773
  %v13179 = vsel %vm13163, %v13112, %v11775
  %v13181 = vsel %vm13163, %v13114, %v11777
  %v13183 = vsel %vm13163, %v13116, %v11779
  %v13185 = vsel %vm13163, %v13118, %v11781
  %v13187 = vsel %vm13163, %v13120, %v11783
  %v13189 = vsel %vm13163, %v13122, %v11785
  %v13191 = vsel %vm13163, %v13124, %v11787
  %v13193 = vsel %vm13163, %v13126, %v11789
  %v13195 = vsel %vm13163, %v13128, %v11791
  %v13197 = vsel %vm13163, %v13130, %v11793
  %v13199 = vsel %vm13163, %v13132, %v11795
  %v13201 = vsel %vm13163, %v13134, %v11797
  %v13203 = vsel %vm13163, %v13136, %v11799
  %v13205 = vsel %vm13163, %v13138, %v11801
  %v13207 = vsel %vm13163, %v13140, %v11803
  %v13209 = vsel %vm13163, %v13142, %v11805
  %v13211 = vsel %vm13163, %v13144, %v11807
  %v13213 = vsel %vm13163, %v13146, %v11809
  %v13215 = vsel %vm13163, %v13148, %v11811
  %v13217 = vsel %vm13163, %v13150, %v11813
  %v13219 = vsel %vm13163, %v13152, %v11815
  %v13221 = vsel %vm13163, %v13154, %v11817
  %v13223 = vsel %vm13163, %v13156, %v11819
  %v13225 = vsel %vm13163, %v13158, %v11821
  %v13227 = vsel %vm13163, %v13160, %v11823
  %v13229 = vsel %vm13163, %v13162, %v11825
  %vm13230 = vcmask 195584
  %v13232 = vsel %vm13230, %v13165, %v11990
  %v13234 = vsel %vm13230, %v13167, %v11992
  %v13236 = vsel %vm13230, %v13169, %v11994
  %v13238 = vsel %vm13230, %v13171, %v11996
  %v13240 = vsel %vm13230, %v13173, %v11998
  %v13242 = vsel %vm13230, %v13175, %v12000
  %v13244 = vsel %vm13230, %v13177, %v12002
  %v13246 = vsel %vm13230, %v13179, %v12004
  %v13248 = vsel %vm13230, %v13181, %v12006
  %v13250 = vsel %vm13230, %v13183, %v12008
  %v13252 = vsel %vm13230, %v13185, %v12010
  %v13254 = vsel %vm13230, %v13187, %v12012
  %v13256 = vsel %vm13230, %v13189, %v12014
  %v13258 = vsel %vm13230, %v13191, %v12016
  %v13260 = vsel %vm13230, %v13193, %v12018
  %v13262 = vsel %vm13230, %v13195, %v12020
  %v13264 = vsel %vm13230, %v13197, %v12022
  %v13266 = vsel %vm13230, %v13199, %v12024
  %v13268 = vsel %vm13230, %v13201, %v12026
  %v13270 = vsel %vm13230, %v13203, %v12028
  %v13272 = vsel %vm13230, %v13205, %v12030
  %v13274 = vsel %vm13230, %v13207, %v12032
  %v13276 = vsel %vm13230, %v13209, %v12034
  %v13278 = vsel %vm13230, %v13211, %v12036
  %v13280 = vsel %vm13230, %v13213, %v12038
  %v13282 = vsel %vm13230, %v13215, %v12040
  %v13284 = vsel %vm13230, %v13217, %v12042
  %v13286 = vsel %vm13230, %v13219, %v12044
  %v13288 = vsel %vm13230, %v13221, %v12046
  %v13290 = vsel %vm13230, %v13223, %v12048
  %v13292 = vsel %vm13230, %v13225, %v12050
  %v13294 = vsel %vm13230, %v13227, %v12052
  %v13296 = vsel %vm13230, %v13229, %v12054
  %vm13297 = vcmask 228352
  %v13299 = vsel %vm13297, %v13232, %v12503
  %v13301 = vsel %vm13297, %v13234, %v12505
  %v13303 = vsel %vm13297, %v13236, %v12507
  %v13305 = vsel %vm13297, %v13238, %v12509
  %v13307 = vsel %vm13297, %v13240, %v12511
  %v13309 = vsel %vm13297, %v13242, %v12513
  %v13311 = vsel %vm13297, %v13244, %v12515
  %v13313 = vsel %vm13297, %v13246, %v12517
  %v13315 = vsel %vm13297, %v13248, %v12519
  %v13317 = vsel %vm13297, %v13250, %v12521
  %v13319 = vsel %vm13297, %v13252, %v12523
  %v13321 = vsel %vm13297, %v13254, %v12525
  %v13323 = vsel %vm13297, %v13256, %v12527
  %v13325 = vsel %vm13297, %v13258, %v12529
  %v13327 = vsel %vm13297, %v13260, %v12531
  %v13329 = vsel %vm13297, %v13262, %v12533
  %v13331 = vsel %vm13297, %v13264, %v12535
  %v13333 = vsel %vm13297, %v13266, %v12537
  %v13335 = vsel %vm13297, %v13268, %v12539
  %v13337 = vsel %vm13297, %v13270, %v12541
  %v13339 = vsel %vm13297, %v13272, %v12543
  %v13341 = vsel %vm13297, %v13274, %v12545
  %v13343 = vsel %vm13297, %v13276, %v12547
  %v13345 = vsel %vm13297, %v13278, %v12549
  %v13347 = vsel %vm13297, %v13280, %v12551
  %v13349 = vsel %vm13297, %v13282, %v12553
  %v13351 = vsel %vm13297, %v13284, %v12555
  %v13353 = vsel %vm13297, %v13286, %v12557
  %v13355 = vsel %vm13297, %v13288, %v12559
  %v13357 = vsel %vm13297, %v13290, %v12561
  %v13359 = vsel %vm13297, %v13292, %v12563
  %v13361 = vsel %vm13297, %v13294, %v12565
  %v13363 = vsel %vm13297, %v13296, %v12567
  %vm13364 = vcmask 261120
  %v13366 = vsel %vm13364, %v13299, %v12797
  %v13368 = vsel %vm13364, %v13301, %v12799
  %v13370 = vsel %vm13364, %v13303, %v12801
  %v13372 = vsel %vm13364, %v13305, %v12803
  %v13374 = vsel %vm13364, %v13307, %v12805
  %v13376 = vsel %vm13364, %v13309, %v12807
  %v13378 = vsel %vm13364, %v13311, %v12809
  %v13380 = vsel %vm13364, %v13313, %v12811
  %v13382 = vsel %vm13364, %v13315, %v12813
  %v13384 = vsel %vm13364, %v13317, %v12815
  %v13386 = vsel %vm13364, %v13319, %v12817
  %v13388 = vsel %vm13364, %v13321, %v12819
  %v13390 = vsel %vm13364, %v13323, %v12821
  %v13392 = vsel %vm13364, %v13325, %v12823
  %v13394 = vsel %vm13364, %v13327, %v12825
  %v13396 = vsel %vm13364, %v13329, %v12827
  %v13398 = vsel %vm13364, %v13331, %v12829
  %v13400 = vsel %vm13364, %v13333, %v12831
  %v13402 = vsel %vm13364, %v13335, %v12833
  %v13404 = vsel %vm13364, %v13337, %v12835
  %v13406 = vsel %vm13364, %v13339, %v12837
  %v13408 = vsel %vm13364, %v13341, %v12839
  %v13410 = vsel %vm13364, %v13343, %v12841
  %v13412 = vsel %vm13364, %v13345, %v12843
  %v13414 = vsel %vm13364, %v13347, %v12845
  %v13416 = vsel %vm13364, %v13349, %v12847
  %v13418 = vsel %vm13364, %v13351, %v12849
  %v13420 = vsel %vm13364, %v13353, %v12851
  %v13422 = vsel %vm13364, %v13355, %v12853
  %v13424 = vsel %vm13364, %v13357, %v12855
  %v13426 = vsel %vm13364, %v13359, %v12857
  %v13428 = vsel %vm13364, %v13361, %v12859
  %v13430 = vsel %vm13364, %v13363, %v12861
  %v13431 = vld [vmem:[%s1] sm:$0xf]
  %v13432 = vld [vmem:[%s1 + $0x4] sm:$0xf]
  %v13433 = vld [vmem:[%s1 + $0x8] sm:$0xf]
  %v13434 = vld [vmem:[%s1 + $0xc] sm:$0xf]
  %v13435 = vld [vmem:[%s1 + $0x10] sm:$0x3]
  %v13436 = vld [vmem:[%s2] sm:$0x1]
  %v13438 = vperm.slane %v13436, 0
  %vm13440 = vsmask.f32 4352
  %v13441 = vshrl.u32 %v13366, 16
  %v13443 = vrot.slane %v13441, 3
  %v13444 = vshll.u32 %v13366, 16
  %v13446 = vrot.slane %v13444, 4
  %v13447 = vor.u32 %v13443, %v13446
  %v13448 = vshrl.u32 %v13368, 16
  %v13450 = vrot.slane %v13448, 3
  %v13451 = vshll.u32 %v13368, 16
  %v13453 = vrot.slane %v13451, 4
  %v13454 = vor.u32 %v13450, %v13453
  %v13455 = vsel %vm13440, %v13447, %v13454
  %v13456 = vshrl.u32 %v13370, 16
  %v13458 = vrot.slane %v13456, 3
  %v13459 = vshll.u32 %v13370, 16
  %v13461 = vrot.slane %v13459, 4
  %v13462 = vor.u32 %v13458, %v13461
  %v13463 = vsel %vm13440, %v13454, %v13462
  %v13464 = vshrl.u32 %v13372, 16
  %v13466 = vrot.slane %v13464, 3
  %v13467 = vshll.u32 %v13372, 16
  %v13469 = vrot.slane %v13467, 4
  %v13470 = vor.u32 %v13466, %v13469
  %v13471 = vsel %vm13440, %v13462, %v13470
  %v13472 = vshrl.u32 %v13374, 16
  %v13474 = vrot.slane %v13472, 3
  %v13475 = vshll.u32 %v13374, 16
  %v13477 = vrot.slane %v13475, 4
  %v13478 = vor.u32 %v13474, %v13477
  %v13479 = vsel %vm13440, %v13470, %v13478
  %v13480 = vshrl.u32 %v13376, 16
  %v13482 = vrot.slane %v13480, 3
  %v13483 = vshll.u32 %v13376, 16
  %v13485 = vrot.slane %v13483, 4
  %v13486 = vor.u32 %v13482, %v13485
  %v13487 = vsel %vm13440, %v13478, %v13486
  %v13488 = vshrl.u32 %v13378, 16
  %v13490 = vrot.slane %v13488, 3
  %v13491 = vshll.u32 %v13378, 16
  %v13493 = vrot.slane %v13491, 4
  %v13494 = vor.u32 %v13490, %v13493
  %v13495 = vsel %vm13440, %v13486, %v13494
  %v13496 = vshrl.u32 %v13380, 16
  %v13498 = vrot.slane %v13496, 3
  %v13499 = vshll.u32 %v13380, 16
  %v13501 = vrot.slane %v13499, 4
  %v13502 = vor.u32 %v13498, %v13501
  %v13503 = vsel %vm13440, %v13494, %v13502
  %v13504 = vshrl.u32 %v13382, 16
  %v13506 = vrot.slane %v13504, 3
  %v13507 = vshll.u32 %v13382, 16
  %v13509 = vrot.slane %v13507, 4
  %v13510 = vor.u32 %v13506, %v13509
  %v13511 = vsel %vm13440, %v13502, %v13510
  %v13512 = vshrl.u32 %v13384, 16
  %v13514 = vrot.slane %v13512, 3
  %v13515 = vshll.u32 %v13384, 16
  %v13517 = vrot.slane %v13515, 4
  %v13518 = vor.u32 %v13514, %v13517
  %v13519 = vsel %vm13440, %v13510, %v13518
  %v13520 = vshrl.u32 %v13386, 16
  %v13522 = vrot.slane %v13520, 3
  %v13523 = vshll.u32 %v13386, 16
  %v13525 = vrot.slane %v13523, 4
  %v13526 = vor.u32 %v13522, %v13525
  %v13527 = vsel %vm13440, %v13518, %v13526
  %v13528 = vshrl.u32 %v13388, 16
  %v13530 = vrot.slane %v13528, 3
  %v13531 = vshll.u32 %v13388, 16
  %v13533 = vrot.slane %v13531, 4
  %v13534 = vor.u32 %v13530, %v13533
  %v13535 = vsel %vm13440, %v13526, %v13534
  %v13536 = vshrl.u32 %v13390, 16
  %v13538 = vrot.slane %v13536, 3
  %v13539 = vshll.u32 %v13390, 16
  %v13541 = vrot.slane %v13539, 4
  %v13542 = vor.u32 %v13538, %v13541
  %v13543 = vsel %vm13440, %v13534, %v13542
  %v13544 = vshrl.u32 %v13392, 16
  %v13546 = vrot.slane %v13544, 3
  %v13547 = vshll.u32 %v13392, 16
  %v13549 = vrot.slane %v13547, 4
  %v13550 = vor.u32 %v13546, %v13549
  %v13551 = vsel %vm13440, %v13542, %v13550
  %v13552 = vshrl.u32 %v13394, 16
  %v13554 = vrot.slane %v13552, 3
  %v13555 = vshll.u32 %v13394, 16
  %v13557 = vrot.slane %v13555, 4
  %v13558 = vor.u32 %v13554, %v13557
  %v13559 = vsel %vm13440, %v13550, %v13558
  %v13560 = vshrl.u32 %v13396, 16
  %v13562 = vrot.slane %v13560, 3
  %v13563 = vshll.u32 %v13396, 16
  %v13565 = vrot.slane %v13563, 4
  %v13566 = vor.u32 %v13562, %v13565
  %v13567 = vsel %vm13440, %v13558, %v13566
  %v13568 = vshrl.u32 %v13398, 16
  %v13570 = vrot.slane %v13568, 3
  %v13571 = vshll.u32 %v13398, 16
  %v13573 = vrot.slane %v13571, 4
  %v13574 = vor.u32 %v13570, %v13573
  %v13575 = vsel %vm13440, %v13566, %v13574
  %v13576 = vshrl.u32 %v13400, 16
  %v13578 = vrot.slane %v13576, 3
  %v13579 = vshll.u32 %v13400, 16
  %v13581 = vrot.slane %v13579, 4
  %v13582 = vor.u32 %v13578, %v13581
  %v13583 = vsel %vm13440, %v13574, %v13582
  %v13584 = vshrl.u32 %v13402, 16
  %v13586 = vrot.slane %v13584, 3
  %v13587 = vshll.u32 %v13402, 16
  %v13589 = vrot.slane %v13587, 4
  %v13590 = vor.u32 %v13586, %v13589
  %v13591 = vsel %vm13440, %v13582, %v13590
  %v13592 = vshrl.u32 %v13404, 16
  %v13594 = vrot.slane %v13592, 3
  %v13595 = vshll.u32 %v13404, 16
  %v13597 = vrot.slane %v13595, 4
  %v13598 = vor.u32 %v13594, %v13597
  %v13599 = vsel %vm13440, %v13590, %v13598
  %v13600 = vshrl.u32 %v13406, 16
  %v13602 = vrot.slane %v13600, 3
  %v13603 = vshll.u32 %v13406, 16
  %v13605 = vrot.slane %v13603, 4
  %v13606 = vor.u32 %v13602, %v13605
  %v13607 = vsel %vm13440, %v13598, %v13606
  %v13608 = vshrl.u32 %v13408, 16
  %v13610 = vrot.slane %v13608, 3
  %v13611 = vshll.u32 %v13408, 16
  %v13613 = vrot.slane %v13611, 4
  %v13614 = vor.u32 %v13610, %v13613
  %v13615 = vsel %vm13440, %v13606, %v13614
  %v13616 = vshrl.u32 %v13410, 16
  %v13618 = vrot.slane %v13616, 3
  %v13619 = vshll.u32 %v13410, 16
  %v13621 = vrot.slane %v13619, 4
  %v13622 = vor.u32 %v13618, %v13621
  %v13623 = vsel %vm13440, %v13614, %v13622
  %v13624 = vshrl.u32 %v13412, 16
  %v13626 = vrot.slane %v13624, 3
  %v13627 = vshll.u32 %v13412, 16
  %v13629 = vrot.slane %v13627, 4
  %v13630 = vor.u32 %v13626, %v13629
  %v13631 = vsel %vm13440, %v13622, %v13630
  %v13632 = vshrl.u32 %v13414, 16
  %v13634 = vrot.slane %v13632, 3
  %v13635 = vshll.u32 %v13414, 16
  %v13637 = vrot.slane %v13635, 4
  %v13638 = vor.u32 %v13634, %v13637
  %v13639 = vsel %vm13440, %v13630, %v13638
  %v13640 = vshrl.u32 %v13416, 16
  %v13642 = vrot.slane %v13640, 3
  %v13643 = vshll.u32 %v13416, 16
  %v13645 = vrot.slane %v13643, 4
  %v13646 = vor.u32 %v13642, %v13645
  %v13647 = vsel %vm13440, %v13638, %v13646
  %v13648 = vshrl.u32 %v13418, 16
  %v13650 = vrot.slane %v13648, 3
  %v13651 = vshll.u32 %v13418, 16
  %v13653 = vrot.slane %v13651, 4
  %v13654 = vor.u32 %v13650, %v13653
  %v13655 = vsel %vm13440, %v13646, %v13654
  %v13656 = vshrl.u32 %v13420, 16
  %v13658 = vrot.slane %v13656, 3
  %v13659 = vshll.u32 %v13420, 16
  %v13661 = vrot.slane %v13659, 4
  %v13662 = vor.u32 %v13658, %v13661
  %v13663 = vsel %vm13440, %v13654, %v13662
  %v13664 = vshrl.u32 %v13422, 16
  %v13666 = vrot.slane %v13664, 3
  %v13667 = vshll.u32 %v13422, 16
  %v13669 = vrot.slane %v13667, 4
  %v13670 = vor.u32 %v13666, %v13669
  %v13671 = vsel %vm13440, %v13662, %v13670
  %v13672 = vshrl.u32 %v13424, 16
  %v13674 = vrot.slane %v13672, 3
  %v13675 = vshll.u32 %v13424, 16
  %v13677 = vrot.slane %v13675, 4
  %v13678 = vor.u32 %v13674, %v13677
  %v13679 = vsel %vm13440, %v13670, %v13678
  %v13680 = vshrl.u32 %v13426, 16
  %v13682 = vrot.slane %v13680, 3
  %v13683 = vshll.u32 %v13426, 16
  %v13685 = vrot.slane %v13683, 4
  %v13686 = vor.u32 %v13682, %v13685
  %v13687 = vsel %vm13440, %v13678, %v13686
  %v13688 = vshrl.u32 %v13428, 16
  %v13690 = vrot.slane %v13688, 3
  %v13691 = vshll.u32 %v13428, 16
  %v13693 = vrot.slane %v13691, 4
  %v13694 = vor.u32 %v13690, %v13693
  %v13695 = vsel %vm13440, %v13686, %v13694
  %v13696 = vshrl.u32 %v13430, 16
  %v13698 = vrot.slane %v13696, 3
  %v13699 = vshll.u32 %v13430, 16
  %v13701 = vrot.slane %v13699, 4
  %v13702 = vor.u32 %v13698, %v13701
  %v13703 = vsel %vm13440, %v13694, %v13702
  %v13709 = vunpack.c.l.b16 %v13431
  %v13710 = vunpack.c.l.b16 %v13432
  %v13711 = vunpack.c.l.b16 %v13433
  %v13712 = vunpack.c.l.b16 %v13434
  %v13713 = vunpack.c.l.b16 %v13435
  %v13714 = vpack.c.b16 %v13710, %v13709
  %v13715 = vpack.c.b16 %v13712, %v13711
  %v13716 = vpack.c.b16 %v13713, %v13713
  %vm13719 = vcmask 293888
  %v13721 = vsel %vm13719, %v13455, 0
  %v13724 = vsel %vm13719, %v13463, 0
  %v13727 = vsel %vm13719, %v13471, 0
  %v13730 = vsel %vm13719, %v13479, 0
  %v13733 = vsel %vm13719, %v13487, 0
  %v13736 = vsel %vm13719, %v13495, 0
  %v13739 = vsel %vm13719, %v13503, 0
  %v13742 = vsel %vm13719, %v13511, 0
  %v13745 = vsel %vm13719, %v13519, 0
  %v13748 = vsel %vm13719, %v13527, 0
  %v13751 = vsel %vm13719, %v13535, 0
  %v13754 = vsel %vm13719, %v13543, 0
  %v13757 = vsel %vm13719, %v13551, 0
  %v13760 = vsel %vm13719, %v13559, 0
  %v13763 = vsel %vm13719, %v13567, 0
  %v13766 = vsel %vm13719, %v13575, 0
  %v13769 = vsel %vm13719, %v13583, 0
  %v13772 = vsel %vm13719, %v13591, 0
  %v13775 = vsel %vm13719, %v13599, 0
  %v13778 = vsel %vm13719, %v13607, 0
  %v13781 = vsel %vm13719, %v13615, 0
  %v13784 = vsel %vm13719, %v13623, 0
  %v13787 = vsel %vm13719, %v13631, 0
  %v13790 = vsel %vm13719, %v13639, 0
  %v13793 = vsel %vm13719, %v13647, 0
  %v13796 = vsel %vm13719, %v13655, 0
  %v13799 = vsel %vm13719, %v13663, 0
  %v13802 = vsel %vm13719, %v13671, 0
  %v13805 = vsel %vm13719, %v13679, 0
  %v13808 = vsel %vm13719, %v13687, 0
  %v13811 = vsel %vm13719, %v13695, 0
  %v13814 = vsel %vm13719, %v13703, 0
  %vm13816 = vcmask 1041408
  %v13818 = vsel %vm13816, %v13716, 0
  %13820 = vmatpush.bf16.msra.mxu0 0
  %13821 = vmatpush.bf16.msra.mxu0 0
  %13822 = vmatpush.bf16.msra.mxu0 0
  %13823 = vmatpush.bf16.msra.mxu0 0
  %13824 = vmatpush.bf16.msra.mxu0 0
  %13825 = vmatpush.bf16.msra.mxu0 %v13818
  %13826 = vmatpush.bf16.msra.mxu0 %v13715
  %13827 = vmatpush.bf16.msra.mxu0 %v13714
  %13828 = vmatmul.bf16.gmra.mxu0 %v13721
  %v13829 = vpop.f32.mrf.mxu0
  %v13830 = vadd.f32 %v13438, %v13829
  %v13831 = vpop.f32.mrf.mxu0
  %v13832 = vadd.f32 %v13438, %v13831
  %13833 = vmatmul.bf16.gmra.mxu0 %v13724
  %v13834 = vpop.f32.mrf.mxu0
  %v13835 = vadd.f32 %v13438, %v13834
  %v13836 = vpop.f32.mrf.mxu0
  %v13837 = vadd.f32 %v13438, %v13836
  %13838 = vmatmul.bf16.gmra.mxu0 %v13727
  %v13839 = vpop.f32.mrf.mxu0
  %v13840 = vadd.f32 %v13438, %v13839
  %v13841 = vpop.f32.mrf.mxu0
  %v13842 = vadd.f32 %v13438, %v13841
  %13843 = vmatmul.bf16.gmra.mxu0 %v13730
  %v13844 = vpop.f32.mrf.mxu0
  %v13845 = vadd.f32 %v13438, %v13844
  %v13846 = vpop.f32.mrf.mxu0
  %v13847 = vadd.f32 %v13438, %v13846
  %13848 = vmatmul.bf16.gmra.mxu0 %v13733
  %v13849 = vpop.f32.mrf.mxu0
  %v13850 = vadd.f32 %v13438, %v13849
  %v13851 = vpop.f32.mrf.mxu0
  %v13852 = vadd.f32 %v13438, %v13851
  %13853 = vmatmul.bf16.gmra.mxu0 %v13736
  %v13854 = vpop.f32.mrf.mxu0
  %v13855 = vadd.f32 %v13438, %v13854
  %v13856 = vpop.f32.mrf.mxu0
  %v13857 = vadd.f32 %v13438, %v13856
  %13858 = vmatmul.bf16.gmra.mxu0 %v13739
  %v13859 = vpop.f32.mrf.mxu0
  %v13860 = vadd.f32 %v13438, %v13859
  %v13861 = vpop.f32.mrf.mxu0
  %v13862 = vadd.f32 %v13438, %v13861
  %13863 = vmatmul.bf16.gmra.mxu0 %v13742
  %v13864 = vpop.f32.mrf.mxu0
  %v13865 = vadd.f32 %v13438, %v13864
  %v13866 = vpop.f32.mrf.mxu0
  %v13867 = vadd.f32 %v13438, %v13866
  %13868 = vmatmul.bf16.gmra.mxu0 %v13745
  %v13869 = vpop.f32.mrf.mxu0
  %v13870 = vadd.f32 %v13438, %v13869
  %v13871 = vpop.f32.mrf.mxu0
  %v13872 = vadd.f32 %v13438, %v13871
  %13873 = vmatmul.bf16.gmra.mxu0 %v13748
  %v13874 = vpop.f32.mrf.mxu0
  %v13875 = vadd.f32 %v13438, %v13874
  %v13876 = vpop.f32.mrf.mxu0
  %v13877 = vadd.f32 %v13438, %v13876
  %13878 = vmatmul.bf16.gmra.mxu0 %v13751
  %v13879 = vpop.f32.mrf.mxu0
  %v13880 = vadd.f32 %v13438, %v13879
  %v13881 = vpop.f32.mrf.mxu0
  %v13882 = vadd.f32 %v13438, %v13881
  %13883 = vmatmul.bf16.gmra.mxu0 %v13754
  %v13884 = vpop.f32.mrf.mxu0
  %v13885 = vadd.f32 %v13438, %v13884
  %v13886 = vpop.f32.mrf.mxu0
  %v13887 = vadd.f32 %v13438, %v13886
  %13888 = vmatmul.bf16.gmra.mxu0 %v13757
  %v13889 = vpop.f32.mrf.mxu0
  %v13890 = vadd.f32 %v13438, %v13889
  %v13891 = vpop.f32.mrf.mxu0
  %v13892 = vadd.f32 %v13438, %v13891
  %13893 = vmatmul.bf16.gmra.mxu0 %v13760
  %v13894 = vpop.f32.mrf.mxu0
  %v13895 = vadd.f32 %v13438, %v13894
  %v13896 = vpop.f32.mrf.mxu0
  %v13897 = vadd.f32 %v13438, %v13896
  %13898 = vmatmul.bf16.gmra.mxu0 %v13763
  %v13899 = vpop.f32.mrf.mxu0
  %v13900 = vadd.f32 %v13438, %v13899
  %v13901 = vpop.f32.mrf.mxu0
  %v13902 = vadd.f32 %v13438, %v13901
  %13903 = vmatmul.bf16.gmra.mxu0 %v13766
  %v13904 = vpop.f32.mrf.mxu0
  %v13905 = vadd.f32 %v13438, %v13904
  %v13906 = vpop.f32.mrf.mxu0
  %v13907 = vadd.f32 %v13438, %v13906
  %13908 = vmatmul.bf16.gmra.mxu0 %v13769
  %v13909 = vpop.f32.mrf.mxu0
  %v13910 = vadd.f32 %v13438, %v13909
  %v13911 = vpop.f32.mrf.mxu0
  %v13912 = vadd.f32 %v13438, %v13911
  %13913 = vmatmul.bf16.gmra.mxu0 %v13772
  %v13914 = vpop.f32.mrf.mxu0
  %v13915 = vadd.f32 %v13438, %v13914
  %v13916 = vpop.f32.mrf.mxu0
  %v13917 = vadd.f32 %v13438, %v13916
  %13918 = vmatmul.bf16.gmra.mxu0 %v13775
  %v13919 = vpop.f32.mrf.mxu0
  %v13920 = vadd.f32 %v13438, %v13919
  %v13921 = vpop.f32.mrf.mxu0
  %v13922 = vadd.f32 %v13438, %v13921
  %13923 = vmatmul.bf16.gmra.mxu0 %v13778
  %v13924 = vpop.f32.mrf.mxu0
  %v13925 = vadd.f32 %v13438, %v13924
  %v13926 = vpop.f32.mrf.mxu0
  %v13927 = vadd.f32 %v13438, %v13926
  %13928 = vmatmul.bf16.gmra.mxu0 %v13781
  %v13929 = vpop.f32.mrf.mxu0
  %v13930 = vadd.f32 %v13438, %v13929
  %v13931 = vpop.f32.mrf.mxu0
  %v13932 = vadd.f32 %v13438, %v13931
  %13933 = vmatmul.bf16.gmra.mxu0 %v13784
  %v13934 = vpop.f32.mrf.mxu0
  %v13935 = vadd.f32 %v13438, %v13934
  %v13936 = vpop.f32.mrf.mxu0
  %v13937 = vadd.f32 %v13438, %v13936
  %13938 = vmatmul.bf16.gmra.mxu0 %v13787
  %v13939 = vpop.f32.mrf.mxu0
  %v13940 = vadd.f32 %v13438, %v13939
  %v13941 = vpop.f32.mrf.mxu0
  %v13942 = vadd.f32 %v13438, %v13941
  %13943 = vmatmul.bf16.gmra.mxu0 %v13790
  %v13944 = vpop.f32.mrf.mxu0
  %v13945 = vadd.f32 %v13438, %v13944
  %v13946 = vpop.f32.mrf.mxu0
  %v13947 = vadd.f32 %v13438, %v13946
  %13948 = vmatmul.bf16.gmra.mxu0 %v13793
  %v13949 = vpop.f32.mrf.mxu0
  %v13950 = vadd.f32 %v13438, %v13949
  %v13951 = vpop.f32.mrf.mxu0
  %v13952 = vadd.f32 %v13438, %v13951
  %13953 = vmatmul.bf16.gmra.mxu0 %v13796
  %v13954 = vpop.f32.mrf.mxu0
  %v13955 = vadd.f32 %v13438, %v13954
  %v13956 = vpop.f32.mrf.mxu0
  %v13957 = vadd.f32 %v13438, %v13956
  %13958 = vmatmul.bf16.gmra.mxu0 %v13799
  %v13959 = vpop.f32.mrf.mxu0
  %v13960 = vadd.f32 %v13438, %v13959
  %v13961 = vpop.f32.mrf.mxu0
  %v13962 = vadd.f32 %v13438, %v13961
  %13963 = vmatmul.bf16.gmra.mxu0 %v13802
  %v13964 = vpop.f32.mrf.mxu0
  %v13965 = vadd.f32 %v13438, %v13964
  %v13966 = vpop.f32.mrf.mxu0
  %v13967 = vadd.f32 %v13438, %v13966
  %13968 = vmatmul.bf16.gmra.mxu0 %v13805
  %v13969 = vpop.f32.mrf.mxu0
  %v13970 = vadd.f32 %v13438, %v13969
  %v13971 = vpop.f32.mrf.mxu0
  %v13972 = vadd.f32 %v13438, %v13971
  %13973 = vmatmul.bf16.gmra.mxu0 %v13808
  %v13974 = vpop.f32.mrf.mxu0
  %v13975 = vadd.f32 %v13438, %v13974
  %v13976 = vpop.f32.mrf.mxu0
  %v13977 = vadd.f32 %v13438, %v13976
  %13978 = vmatmul.bf16.gmra.mxu0 %v13811
  %v13979 = vpop.f32.mrf.mxu0
  %v13980 = vadd.f32 %v13438, %v13979
  %v13981 = vpop.f32.mrf.mxu0
  %v13982 = vadd.f32 %v13438, %v13981
  %13983 = vmatmul.bf16.gmra.mxu0 %v13814
  %v13984 = vpop.f32.mrf.mxu0
  %v13985 = vadd.f32 %v13438, %v13984
  %v13986 = vpop.f32.mrf.mxu0
  %v13987 = vadd.f32 %v13438, %v13986
  %13988 = vdwg.mxu0
  %v13989 = vmax.f32 %v13830, 0.0
  %v13990 = vmax.f32 %v13832, 0.0
  %v13991 = vmax.f32 %v13835, 0.0
  %v13992 = vmax.f32 %v13837, 0.0
  %v13993 = vmax.f32 %v13840, 0.0
  %v13994 = vmax.f32 %v13842, 0.0
  %v13995 = vmax.f32 %v13845, 0.0
  %v13996 = vmax.f32 %v13847, 0.0
  %v13997 = vmax.f32 %v13850, 0.0
  %v13998 = vmax.f32 %v13852, 0.0
  %v13999 = vmax.f32 %v13855, 0.0
  %v14000 = vmax.f32 %v13857, 0.0
  %v14001 = vmax.f32 %v13860, 0.0
  %v14002 = vmax.f32 %v13862, 0.0
  %v14003 = vmax.f32 %v13865, 0.0
  %v14004 = vmax.f32 %v13867, 0.0
  %v14005 = vmax.f32 %v13870, 0.0
  %v14006 = vmax.f32 %v13872, 0.0
  %v14007 = vmax.f32 %v13875, 0.0
  %v14008 = vmax.f32 %v13877, 0.0
  %v14009 = vmax.f32 %v13880, 0.0
  %v14010 = vmax.f32 %v13882, 0.0
  %v14011 = vmax.f32 %v13885, 0.0
  %v14012 = vmax.f32 %v13887, 0.0
  %v14013 = vmax.f32 %v13890, 0.0
  %v14014 = vmax.f32 %v13892, 0.0
  %v14015 = vmax.f32 %v13895, 0.0
  %v14016 = vmax.f32 %v13897, 0.0
  %v14017 = vmax.f32 %v13900, 0.0
  %v14018 = vmax.f32 %v13902, 0.0
  %v14019 = vmax.f32 %v13905, 0.0
  %v14020 = vmax.f32 %v13907, 0.0
  %v14021 = vmax.f32 %v13910, 0.0
  %v14022 = vmax.f32 %v13912, 0.0
  %v14023 = vmax.f32 %v13915, 0.0
  %v14024 = vmax.f32 %v13917, 0.0
  %v14025 = vmax.f32 %v13920, 0.0
  %v14026 = vmax.f32 %v13922, 0.0
  %v14027 = vmax.f32 %v13925, 0.0
  %v14028 = vmax.f32 %v13927, 0.0
  %v14029 = vmax.f32 %v13930, 0.0
  %v14030 = vmax.f32 %v13932, 0.0
  %v14031 = vmax.f32 %v13935, 0.0
  %v14032 = vmax.f32 %v13937, 0.0
  %v14033 = vmax.f32 %v13940, 0.0
  %v14034 = vmax.f32 %v13942, 0.0
  %v14035 = vmax.f32 %v13945, 0.0
  %v14036 = vmax.f32 %v13947, 0.0
  %v14037 = vmax.f32 %v13950, 0.0
  %v14038 = vmax.f32 %v13952, 0.0
  %v14039 = vmax.f32 %v13955, 0.0
  %v14040 = vmax.f32 %v13957, 0.0
  %v14041 = vmax.f32 %v13960, 0.0
  %v14042 = vmax.f32 %v13962, 0.0
  %v14043 = vmax.f32 %v13965, 0.0
  %v14044 = vmax.f32 %v13967, 0.0
  %v14045 = vmax.f32 %v13970, 0.0
  %v14046 = vmax.f32 %v13972, 0.0
  %v14047 = vmax.f32 %v13975, 0.0
  %v14048 = vmax.f32 %v13977, 0.0
  %v14049 = vmax.f32 %v13980, 0.0
  %v14050 = vmax.f32 %v13982, 0.0
  %v14051 = vmax.f32 %v13985, 0.0
  %v14052 = vmax.f32 %v13987, 0.0
  %v14053 = vld [vmem:[%s3] sm:$0x1]
  %v14055 = vperm.slane %v14053, 0
  %v14057 = vmul.f32 %v13989, %v14055
  %v14058 = vmul.f32 %v13990, %v14055
  %v14059 = vmul.f32 %v13991, %v14055
  %v14060 = vmul.f32 %v13992, %v14055
  %v14061 = vmul.f32 %v13993, %v14055
  %v14062 = vmul.f32 %v13994, %v14055
  %v14063 = vmul.f32 %v13995, %v14055
  %v14064 = vmul.f32 %v13996, %v14055
  %v14065 = vmul.f32 %v13997, %v14055
  %v14066 = vmul.f32 %v13998, %v14055
  %v14067 = vmul.f32 %v13999, %v14055
  %v14068 = vmul.f32 %v14000, %v14055
  %v14069 = vmul.f32 %v14001, %v14055
  %v14070 = vmul.f32 %v14002, %v14055
  %v14071 = vmul.f32 %v14003, %v14055
  %v14072 = vmul.f32 %v14004, %v14055
  %v14073 = vmul.f32 %v14005, %v14055
  %v14074 = vmul.f32 %v14006, %v14055
  %v14075 = vmul.f32 %v14007, %v14055
  %v14076 = vmul.f32 %v14008, %v14055
  %v14077 = vmul.f32 %v14009, %v14055
  %v14078 = vmul.f32 %v14010, %v14055
  %v14079 = vmul.f32 %v14011, %v14055
  %v14080 = vmul.f32 %v14012, %v14055
  %v14081 = vmul.f32 %v14013, %v14055
  %v14082 = vmul.f32 %v14014, %v14055
  %v14083 = vmul.f32 %v14015, %v14055
  %v14084 = vmul.f32 %v14016, %v14055
  %v14085 = vmul.f32 %v14017, %v14055
  %v14086 = vmul.f32 %v14018, %v14055
  %v14087 = vmul.f32 %v14019, %v14055
  %v14088 = vmul.f32 %v14020, %v14055
  %v14089 = vmul.f32 %v14021, %v14055
  %v14090 = vmul.f32 %v14022, %v14055
  %v14091 = vmul.f32 %v14023, %v14055
  %v14092 = vmul.f32 %v14024, %v14055
  %v14093 = vmul.f32 %v14025, %v14055
  %v14094 = vmul.f32 %v14026, %v14055
  %v14095 = vmul.f32 %v14027, %v14055
  %v14096 = vmul.f32 %v14028, %v14055
  %v14097 = vmul.f32 %v14029, %v14055
  %v14098 = vmul.f32 %v14030, %v14055
  %v14099 = vmul.f32 %v14031, %v14055
  %v14100 = vmul.f32 %v14032, %v14055
  %v14101 = vmul.f32 %v14033, %v14055
  %v14102 = vmul.f32 %v14034, %v14055
  %v14103 = vmul.f32 %v14035, %v14055
  %v14104 = vmul.f32 %v14036, %v14055
  %v14105 = vmul.f32 %v14037, %v14055
  %v14106 = vmul.f32 %v14038, %v14055
  %v14107 = vmul.f32 %v14039, %v14055
  %v14108 = vmul.f32 %v14040, %v14055
  %v14109 = vmul.f32 %v14041, %v14055
  %v14110 = vmul.f32 %v14042, %v14055
  %v14111 = vmul.f32 %v14043, %v14055
  %v14112 = vmul.f32 %v14044, %v14055
  %v14113 = vmul.f32 %v14045, %v14055
  %v14114 = vmul.f32 %v14046, %v14055
  %v14115 = vmul.f32 %v14047, %v14055
  %v14116 = vmul.f32 %v14048, %v14055
  %v14117 = vmul.f32 %v14049, %v14055
  %v14118 = vmul.f32 %v14050, %v14055
  %v14119 = vmul.f32 %v14051, %v14055
  %v14120 = vmul.f32 %v14052, %v14055
  %v14121 = vadd.f32 %v14057, %v14058
  %v14122 = vadd.f32 %v14121, %v14059
  %v14123 = vadd.f32 %v14122, %v14060
  %v14124 = vadd.f32 %v14123, %v14061
  %v14125 = vadd.f32 %v14124, %v14062
  %v14126 = vadd.f32 %v14125, %v14063
  %v14127 = vadd.f32 %v14126, %v14064
  %v14128 = vadd.f32 %v14127, %v14065
  %v14129 = vadd.f32 %v14128, %v14066
  %v14130 = vadd.f32 %v14129, %v14067
  %v14131 = vadd.f32 %v14130, %v14068
  %v14132 = vadd.f32 %v14131, %v14069
  %v14133 = vadd.f32 %v14132, %v14070
  %v14134 = vadd.f32 %v14133, %v14071
  %v14135 = vadd.f32 %v14134, %v14072
  %v14136 = vadd.f32 %v14135, %v14073
  %v14137 = vadd.f32 %v14136, %v14074
  %v14138 = vadd.f32 %v14137, %v14075
  %v14139 = vadd.f32 %v14138, %v14076
  %v14140 = vadd.f32 %v14139, %v14077
  %v14141 = vadd.f32 %v14140, %v14078
  %v14142 = vadd.f32 %v14141, %v14079
  %v14143 = vadd.f32 %v14142, %v14080
  %v14144 = vadd.f32 %v14143, %v14081
  %v14145 = vadd.f32 %v14144, %v14082
  %v14146 = vadd.f32 %v14145, %v14083
  %v14147 = vadd.f32 %v14146, %v14084
  %v14148 = vadd.f32 %v14147, %v14085
  %v14149 = vadd.f32 %v14148, %v14086
  %v14150 = vadd.f32 %v14149, %v14087
  %v14151 = vadd.f32 %v14150, %v14088
  %v14152 = vrot.slane %v14151, 4
  %v14153 = vadd.f32 %v14151, %v14152
  %v14154 = vrot.slane %v14153, 2
  %v14155 = vadd.f32 %v14153, %v14154
  %v14156 = vrot.slane %v14155, 1
  %v14157 = vadd.f32 %v14155, %v14156
  %v14158 = vadd.f32 %v14089, %v14090
  %v14159 = vadd.f32 %v14158, %v14091
  %v14160 = vadd.f32 %v14159, %v14092
  %v14161 = vadd.f32 %v14160, %v14093
  %v14162 = vadd.f32 %v14161, %v14094
  %v14163 = vadd.f32 %v14162, %v14095
  %v14164 = vadd.f32 %v14163, %v14096
  %v14165 = vadd.f32 %v14164, %v14097
  %v14166 = vadd.f32 %v14165, %v14098
  %v14167 = vadd.f32 %v14166, %v14099
  %v14168 = vadd.f32 %v14167, %v14100
  %v14169 = vadd.f32 %v14168, %v14101
  %v14170 = vadd.f32 %v14169, %v14102
  %v14171 = vadd.f32 %v14170, %v14103
  %v14172 = vadd.f32 %v14171, %v14104
  %v14173 = vadd.f32 %v14172, %v14105
  %v14174 = vadd.f32 %v14173, %v14106
  %v14175 = vadd.f32 %v14174, %v14107
  %v14176 = vadd.f32 %v14175, %v14108
  %v14177 = vadd.f32 %v14176, %v14109
  %v14178 = vadd.f32 %v14177, %v14110
  %v14179 = vadd.f32 %v14178, %v14111
  %v14180 = vadd.f32 %v14179, %v14112
  %v14181 = vadd.f32 %v14180, %v14113
  %v14182 = vadd.f32 %v14181, %v14114
  %v14183 = vadd.f32 %v14182, %v14115
  %v14184 = vadd.f32 %v14183, %v14116
  %v14185 = vadd.f32 %v14184, %v14117
  %v14186 = vadd.f32 %v14185, %v14118
  %v14187 = vadd.f32 %v14186, %v14119
  %v14188 = vadd.f32 %v14187, %v14120
  %v14189 = vrot.slane %v14188, 4
  %v14190 = vadd.f32 %v14188, %v14189
  %v14191 = vrot.slane %v14190, 2
  %v14192 = vadd.f32 %v14190, %v14191
  %v14193 = vrot.slane %v14192, 1
  %v14194 = vadd.f32 %v14192, %v14193
  %vm14197 = vcmask 1041409
  %v14198 = vsel %vm14197, %v14194, %v14157
  %v14200 = vsel %vm13816, %v14198, 0.0
  %14201 = vadd.xlane.f32.xlu0 %v14200
  %v14202 = vpop.xlane.xlu0 %14201
  %v14203 = vmul.f32 %v14202, 0.00390625
  %v14204 = vld [vmem:[#allocation3] sm:$0x1]
  %v14206 = vperm.slane %v14204, 0
  %v14208 = vadd.f32 %v14203, %v14206
  %v14209 = vmax.f32 %v14208, 0.0
  %v14210 = vmul.f32 %v14208, 0.9
  %v14211 = vsub.f32 %v14209, %v14210
  %v14212 = vand.u32 2147483647, %v14208
  %v14213 = vsub.f32 0.0, %v14212
  %v14214 = vmul.f32 %v14213, 1.442695
  %v14215 = vpow.pop %v14214
  %v14216 = vadd.f32 %v14215, 1.0
  %v14217 = vlog2.pop %v14216
  %v14218 = vmul.f32 %v14217, 0.6931472
  %v14219 = vmul.f32 -0.5, %v14215
  %v14220 = vadd.f32 %v14219, 1.0
  %v14221 = vmul.f32 %v14220, %v14215
  %v14222 = vand.u32 2147483647, %v14215
  %vm14223 = vcmp.lt.f32.partialorder %v14222, 0.0004427343
  %v14224 = vsel %vm14223, %v14221, %v14218
  %v14225 = vadd.f32 %v14211, %v14224
  %vm14226 = vcmask 1024
  %14227 = vst.msk [vmem:[%s5] sm:$0x3] %vm14226, %v14225
  // Predicated region
  $region22: #{tpu_custom_call.1} parent=0 // pred_check
    _
  $region23: #{tpu_custom_call.1} parent=0 // pred_check_branch
    %14229 = sbr.rel (0) target = $region25
  $region24: #{tpu_custom_call.1} parent=0 // pred_region
    _
  $region25: #{tpu_custom_call.1} parent=0 // pred_fallthru
    _
  // Predicated region
  $region26: #{tpu_custom_call.1} parent=0 // pred_check
    _
  $region27: #{tpu_custom_call.1} parent=0 // pred_check_branch
    %14231 = sbr.rel (0) target = $region29
  $region28: #{tpu_custom_call.1} parent=0 // pred_region
    _
  $region29: #{tpu_custom_call.1} parent=0 // pred_fallthru
    _

</llo_original>
